<compile_context>
chip_gen: v5e
topology: v5e:2x2
jax: 0.10.0
libtpu: 0.0.40
codegen_flags: <defaults>
</compile_context>

<pallas_src>
import functools

import jax
import jax.numpy as jnp
import numpy as np
from jax.experimental import pallas as pl
from jax.experimental.pallas import tpu as pltpu


# ---------------------------------------------------------------------------
# Fused forward kernel
# ---------------------------------------------------------------------------
def _fused_forward_kernel(x_ref, emb_w_ref, emb_vec_ref, mask_ref,
                          wqkv_ref, bqkv_ref, wo_ref, gat_vec_ref,
                          out_w_ref, out_vec_ref,
                          out_ref, attn_ref,
                          qkv_scr_ref, o_cat_ref,
                          *, batch, num_nodes, num_heads, head_dim, num_layers):
    f32 = jnp.float32
    N, B = num_nodes, batch
    H = num_heads * head_dim
    scale = jnp.float32(1.0 / np.sqrt(head_dim))
    inv_lh = jnp.float32(1.0 / (num_layers * num_heads))

    def layer_norm(y, gamma, beta):                      # nn.LayerNorm, eps=1e-5
        mu = jnp.mean(y, axis=-1, keepdims=True)
        var = jnp.mean(jnp.square(y - mu), axis=-1, keepdims=True)
        return (y - mu) * jax.lax.rsqrt(var + jnp.float32(1e-5)) * gamma + beta

    head_mask = mask_ref[...]                            # (heads, 1, H) 0/1

    # --- disease_embedding + norm1 on the batch-folded (B*N, F) slab --------
    ev = emb_vec_ref[...]                                # (3, H): emb_b, g1, b1
    h = jnp.dot(x_ref[...], emb_w_ref[...],
                preferred_element_type=f32) + ev[0:1]
    h = layer_norm(h, ev[1:2], ev[2:3])                  # (B*N, H)

    attn_sums = [jnp.zeros((N, N), f32) for _ in range(B)]

    for l in range(num_layers):                          # static, 3 GAT layers
        gv = gat_vec_ref[l]                              # (3, H): bo, gamma, beta

        # Flat, lane-dense Q|K|V projection for BOTH batch elements at once.
        qkv_scr_ref[...] = (jnp.dot(h, wqkv_ref[l],
                                    preferred_element_type=f32)
                            + bqkv_ref[l])               # (B*N, 3H)

        for b in range(B):                               # static, B == 2
            r0 = b * N
            qb = qkv_scr_ref[r0:r0 + N, 0:H]             # (N, H)
            kb = qkv_scr_ref[r0:r0 + N, H:2 * H]
            vb = qkv_scr_ref[r0:r0 + N, 2 * H:3 * H]

            # Per-head separation via a constant lane mask (no reshapes /
            # major transposes): head h keeps only its hd columns.
            qm = jnp.broadcast_to(qb, (num_heads, N, H)) * head_mask
            kx = jnp.broadcast_to(kb, (num_heads, N, H))
            vm = jnp.broadcast_to(vb, (num_heads, N, H)) * head_mask

            # bb_coords is None -> adj == 1/N everywhere, masked_fill never
            # fires; attention is a plain per-head softmax.
            s = jnp.einsum('hnf,hmf->hnm', qm, kx,
                           preferred_element_type=f32) * scale   # (heads, N, N)
            s = s - jnp.max(s, axis=-1, keepdims=True)
            e = jnp.exp(s)
            p = e * pl.reciprocal(jnp.sum(e, axis=-1, keepdims=True),
                                  approx=True)                   # softmax

            attn_sums[b] = attn_sums[b] + jnp.sum(p, axis=0)     # sum over heads

            # PV with head-masked V: each head's output lands in its own lane
            # block, so the head-sum below IS the concat-over-heads.
            o3 = jnp.einsum('hnm,hmf->hnf', p, vm,
                            preferred_element_type=f32)          # (heads, N, H)
            o_cat_ref[r0:r0 + N, :] = jnp.sum(o3, axis=0)        # (N, H)

        # Fused W_o + LayerNorm + ELU for both batch elements in one go.
        y = jnp.dot(o_cat_ref[...], wo_ref[l],
                    preferred_element_type=f32) + gv[0:1]        # (B*N, H)
        y = layer_norm(y, gv[1:2], gv[2:3])
        # F.elu; clamp exp so the unselected branch stays finite.
        h = jnp.where(y > 0, y, jnp.exp(jnp.minimum(y, 0.0)) - 1.0)

    # --- output_proj + norm2 on the batch-folded slab (lane-dense store) ----
    ov = out_vec_ref[...]                                # (3, F): out_b, g2, b2
    ob = jnp.dot(h, out_w_ref[...], preferred_element_type=f32) + ov[0:1]
    out_ref[...] = layer_norm(ob, ov[1:2], ov[2:3])      # (B*N, F)

    # final attention = mean over layers x heads, written exactly once.
    for b in range(B):
        attn_ref[b] = attn_sums[b] * inv_lh


# ---------------------------------------------------------------------------
# Wrapper: one fused pallas_call
# ---------------------------------------------------------------------------
def spatial_distance_graph_forward(features, params, *, num_heads, head_dim):
    B, N, F = features.shape
    H = num_heads * head_dim
    num_layers = params["wqkv"].shape[0]
    x_flat = features.reshape(B * N, F)        # fold batch into the sublane dim

    # Constant per-head lane mask: row h is 1 on columns [h*hd, (h+1)*hd).
    head_mask = jnp.repeat(jnp.eye(num_heads, dtype=jnp.float32),
                           head_dim, axis=1).reshape(num_heads, 1, H)

    kernel = functools.partial(
        _fused_forward_kernel, batch=B, num_nodes=N,
        num_heads=num_heads, head_dim=head_dim, num_layers=num_layers)

    inputs = (x_flat, params["emb_w"], params["emb_vec"], head_mask,
              params["wqkv"], params["bqkv"], params["wo"], params["gat_vec"],
              params["out_w"], params["out_vec"])

    def _full(shape):
        nd = len(shape)
        return pl.BlockSpec(tuple(shape), lambda i, _nd=nd: (0,) * _nd)

    out_flat, final_attention = pl.pallas_call(
        kernel,
        out_shape=(jax.ShapeDtypeStruct((B * N, F), jnp.float32),
                   jax.ShapeDtypeStruct((B, N, N), jnp.float32)),
        grid=(1,),                     # whole forward = one VMEM-resident step
        in_specs=[_full(a.shape) for a in inputs],
        out_specs=(_full((B * N, F)), _full((B, N, N))),
        scratch_shapes=[pltpu.VMEM((B * N, 3 * H), jnp.float32),   # qkv
                        pltpu.VMEM((B * N, H), jnp.float32)],      # o concat
        compiler_params=pltpu.CompilerParams(
            dimension_semantics=("arbitrary",)),
    )(*inputs)
    return out_flat.reshape(B, N, F), final_attention


# ---------------------------------------------------------------------------
# Parameter construction (deterministic, synthetic), packed lane-dense
# ---------------------------------------------------------------------------
def init_params(key, feature_dim, hidden_dim, num_heads, num_layers=3):
    H = hidden_dim
    keys = jax.random.split(key, 2 + num_layers)

    def lin(k, din, dout):
        kw, kb = jax.random.split(k)
        w = jax.random.normal(kw, (din, dout), jnp.float32) * 0.05
        b = jax.random.normal(kb, (dout,), jnp.float32) * 0.01
        return w, b

    emb_w, emb_b = lin(keys[0], feature_dim, H)
    out_w, out_b = lin(keys[1], H, feature_dim)

    wqkv_l, bqkv_l, wo_l, gvec_l = [], [], [], []
    for l in range(num_layers):
        kq, kk, kv, ko = jax.random.split(keys[2 + l], 4)
        wq, bq = lin(kq, H, H)
        wk, bk = lin(kk, H, H)
        wv, bv = lin(kv, H, H)
        wo, bo = lin(ko, H, H)
        # Columns are in PyTorch Linear output order (head-major), matching
        # the .view(B, N, heads, head_dim) split of the reference module.
        wqkv_l.append(jnp.concatenate([wq, wk, wv], axis=1))          # (H, 3H)
        bqkv_l.append(jnp.concatenate([bq, bk, bv], axis=0)[None])    # (1, 3H)
        wo_l.append(wo)                                               # (H, H)
        gvec_l.append(jnp.stack(
            [bo, jnp.ones((H,), jnp.float32), jnp.zeros((H,), jnp.float32)], 0))

    return dict(
        emb_w=emb_w,
        emb_vec=jnp.stack([emb_b, jnp.ones((H,), jnp.float32),
                           jnp.zeros((H,), jnp.float32)], 0),
        wqkv=jnp.stack(wqkv_l, 0),        # (L, H, 3H)   lane-dense
        bqkv=jnp.stack(bqkv_l, 0),        # (L, 1, 3H)
        wo=jnp.stack(wo_l, 0),            # (L, H, H)
        gat_vec=jnp.stack(gvec_l, 0),     # (L, 3, H)
        out_w=out_w,                      # (H, F)
        out_vec=jnp.stack([out_b, jnp.ones((feature_dim,), jnp.float32),
                           jnp.zeros((feature_dim,), jnp.float32)], 0),
    )


# ---------------------------------------------------------------------------
if __name__ == "__main__":
    # Small config consistent with the module (num_diseases=14, 8 heads);
    # feature_dim=128 keeps the main output lane-dense.
    B, NUM_DISEASES = 2, 14
    FEATURE_DIM, HIDDEN_DIM, NUM_HEADS = 128, 64, 8
    HEAD_DIM = HIDDEN_DIM // NUM_HEADS

    key = jax.random.PRNGKey(0)
    k_feat, k_param = jax.random.split(key)
    features = jax.random.normal(k_feat, (B, NUM_DISEASES, FEATURE_DIM),
                                 jnp.float32)
    params = init_params(k_param, FEATURE_DIM, HIDDEN_DIM, NUM_HEADS)

    output, final_attention = spatial_distance_graph_forward(
        features, params, num_heads=NUM_HEADS, head_dim=HEAD_DIM)
    jax.block_until_ready((output, final_attention))

    assert output.shape == (B, NUM_DISEASES, FEATURE_DIM)
    assert final_attention.shape == (B, NUM_DISEASES, NUM_DISEASES)
    assert bool(jnp.all(jnp.isfinite(output)))
    assert bool(jnp.all(jnp.isfinite(final_attention)))
    # Head/layer-averaged softmax rows must sum to ~1 (approx reciprocal on
    # the EUP introduces a small relative error, hence the looser tolerance).
    row_sums = jnp.sum(final_attention, axis=-1)
    assert bool(jnp.max(jnp.abs(row_sums - 1.0)) < 5e-3)
    print("KERNEL_OK")
</pallas_src>

<mosaic_0001>
module attributes {stable_mosaic.version = 11 : i64} {
  func.func @_fused_forward_kernel(%arg0: i32, %arg1: memref<28x128xf32, #tpu.memory_space<vmem>>, %arg2: memref<128x64xf32, #tpu.memory_space<vmem>>, %arg3: memref<3x64xf32, #tpu.memory_space<vmem>>, %arg4: memref<8x1x64xf32, #tpu.memory_space<vmem>>, %arg5: memref<3x64x192xf32, #tpu.memory_space<vmem>>, %arg6: memref<3x1x192xf32, #tpu.memory_space<vmem>>, %arg7: memref<3x64x64xf32, #tpu.memory_space<vmem>>, %arg8: memref<3x3x64xf32, #tpu.memory_space<vmem>>, %arg9: memref<64x128xf32, #tpu.memory_space<vmem>>, %arg10: memref<3x128xf32, #tpu.memory_space<vmem>>, %arg11: memref<28x128xf32, #tpu.memory_space<vmem>>, %arg12: memref<2x14x14xf32, #tpu.memory_space<vmem>>, %arg13: memref<28x192xf32, #tpu.memory_space<vmem>>, %arg14: memref<28x64xf32, #tpu.memory_space<vmem>>) attributes {dimension_semantics = [#tpu.dimension_semantics<arbitrary>], iteration_bounds = array<i64: 1>, scalar_prefetch = 0 : i64, scratch_operands = 2 : i64, tpu.core_type = #tpu.core_type<tc>, window_params = [{pipeline_mode = #tpu.pipeline_mode<synchronous>, transform_indices = @transform_0, window_bounds = array<i64: 28, 128>}, {pipeline_mode = #tpu.pipeline_mode<synchronous>, transform_indices = @transform_1, window_bounds = array<i64: 128, 64>}, {pipeline_mode = #tpu.pipeline_mode<synchronous>, transform_indices = @transform_2, window_bounds = array<i64: 3, 64>}, {pipeline_mode = #tpu.pipeline_mode<synchronous>, transform_indices = @transform_3, window_bounds = array<i64: 8, 1, 64>}, {pipeline_mode = #tpu.pipeline_mode<synchronous>, transform_indices = @transform_4, window_bounds = array<i64: 3, 64, 192>}, {pipeline_mode = #tpu.pipeline_mode<synchronous>, transform_indices = @transform_5, window_bounds = array<i64: 3, 1, 192>}, {pipeline_mode = #tpu.pipeline_mode<synchronous>, transform_indices = @transform_6, window_bounds = array<i64: 3, 64, 64>}, {pipeline_mode = #tpu.pipeline_mode<synchronous>, transform_indices = @transform_7, window_bounds = array<i64: 3, 3, 64>}, {pipeline_mode = #tpu.pipeline_mode<synchronous>, transform_indices = @transform_8, window_bounds = array<i64: 64, 128>}, {pipeline_mode = #tpu.pipeline_mode<synchronous>, transform_indices = @transform_9, window_bounds = array<i64: 3, 128>}, {pipeline_mode = #tpu.pipeline_mode<synchronous>, transform_indices = @transform_10, window_bounds = array<i64: 28, 128>}, {pipeline_mode = #tpu.pipeline_mode<synchronous>, transform_indices = @transform_11, window_bounds = array<i64: 2, 14, 14>}]} {
    %c0 = arith.constant 0 : index
    %c0_0 = arith.constant 0 : index
    %c0_1 = arith.constant 0 : index
    %0 = vector.load %arg4[%c0, %c0_0, %c0_1] : memref<8x1x64xf32, #tpu.memory_space<vmem>>, vector<8x1x64xf32>
    %c0_2 = arith.constant 0 : index
    %c0_3 = arith.constant 0 : index
    %1 = vector.load %arg3[%c0_2, %c0_3] : memref<3x64xf32, #tpu.memory_space<vmem>>, vector<3x64xf32>
    %c0_4 = arith.constant 0 : index
    %c0_5 = arith.constant 0 : index
    %2 = vector.load %arg1[%c0_4, %c0_5] : memref<28x128xf32, #tpu.memory_space<vmem>>, vector<28x128xf32>
    %c0_6 = arith.constant 0 : index
    %c0_7 = arith.constant 0 : index
    %3 = vector.load %arg2[%c0_6, %c0_7] : memref<128x64xf32, #tpu.memory_space<vmem>>, vector<128x64xf32>
    %cst = arith.constant dense<0.000000e+00> : vector<28x64xf32>
    %4 = tpu.matmul %2, %3, %cst {dimension_numbers = #tpu.dot_dimension_numbers<[1], [0], [0], [1], [0, 0, 1, 1], [], []>} : vector<28x128xf32>, vector<128x64xf32>, vector<28x64xf32> -> vector<28x64xf32>
    %5 = vector.extract_strided_slice %1 {offsets = [0, 0], sizes = [1, 64], strides = [1, 1]} : vector<3x64xf32> to vector<1x64xf32>
    %6 = vector.broadcast %5 : vector<1x64xf32> to vector<28x64xf32>
    %7 = arith.addf %4, %6 : vector<28x64xf32>
    %8 = vector.extract_strided_slice %1 {offsets = [1, 0], sizes = [1, 64], strides = [1, 1]} : vector<3x64xf32> to vector<1x64xf32>
    %9 = vector.extract_strided_slice %1 {offsets = [2, 0], sizes = [1, 64], strides = [1, 1]} : vector<3x64xf32> to vector<1x64xf32>
    %cst_8 = arith.constant dense<0.000000e+00> : vector<28xf32>
    %10 = vector.multi_reduction <add>, %7, %cst_8 [1] : vector<28x64xf32> to vector<28xf32>
    %11 = vector.shape_cast %10 : vector<28xf32> to vector<28x1xf32>
    %cst_9 = arith.constant 6.400000e+01 : f32
    %12 = vector.broadcast %cst_9 : f32 to vector<28x1xf32>
    %13 = arith.divf %11, %12 : vector<28x1xf32>
    %14 = vector.broadcast %13 : vector<28x1xf32> to vector<28x64xf32>
    %15 = arith.subf %7, %14 : vector<28x64xf32>
    %16 = arith.mulf %15, %15 : vector<28x64xf32>
    %cst_10 = arith.constant dense<0.000000e+00> : vector<28xf32>
    %17 = vector.multi_reduction <add>, %16, %cst_10 [1] : vector<28x64xf32> to vector<28xf32>
    %18 = vector.shape_cast %17 : vector<28xf32> to vector<28x1xf32>
    %cst_11 = arith.constant 6.400000e+01 : f32
    %19 = vector.broadcast %cst_11 : f32 to vector<28x1xf32>
    %20 = arith.divf %18, %19 : vector<28x1xf32>
    %21 = vector.broadcast %13 : vector<28x1xf32> to vector<28x64xf32>
    %22 = arith.subf %7, %21 : vector<28x64xf32>
    %cst_12 = arith.constant 9.99999974E-6 : f32
    %23 = vector.broadcast %cst_12 : f32 to vector<28x1xf32>
    %24 = arith.addf %20, %23 : vector<28x1xf32>
    %25 = math.rsqrt %24 : vector<28x1xf32>
    %26 = vector.broadcast %25 : vector<28x1xf32> to vector<28x64xf32>
    %27 = arith.mulf %22, %26 : vector<28x64xf32>
    %28 = vector.broadcast %8 : vector<1x64xf32> to vector<28x64xf32>
    %29 = arith.mulf %27, %28 : vector<28x64xf32>
    %30 = vector.broadcast %9 : vector<1x64xf32> to vector<28x64xf32>
    %31 = arith.addf %29, %30 : vector<28x64xf32>
    %cst_13 = arith.constant 0.000000e+00 : f32
    %32 = vector.broadcast %cst_13 : f32 to vector<14x14xf32>
    %cst_14 = arith.constant 0.000000e+00 : f32
    %33 = vector.broadcast %cst_14 : f32 to vector<14x14xf32>
    %c0_15 = arith.constant 0 : index
    %c0_16 = arith.constant 0 : index
    %c0_17 = arith.constant 0 : index
    %34 = vector.load %arg8[%c0_15, %c0_16, %c0_17] : memref<3x3x64xf32, #tpu.memory_space<vmem>>, vector<1x3x64xf32>
    %35 = vector.shape_cast %34 : vector<1x3x64xf32> to vector<3x64xf32>
    %c0_18 = arith.constant 0 : index
    %c0_19 = arith.constant 0 : index
    %c0_20 = arith.constant 0 : index
    %36 = vector.load %arg5[%c0_18, %c0_19, %c0_20] : memref<3x64x192xf32, #tpu.memory_space<vmem>>, vector<1x64x192xf32>
    %37 = vector.shape_cast %36 : vector<1x64x192xf32> to vector<64x192xf32>
    %cst_21 = arith.constant dense<0.000000e+00> : vector<28x192xf32>
    %38 = tpu.matmul %31, %37, %cst_21 {dimension_numbers = #tpu.dot_dimension_numbers<[1], [0], [0], [1], [0, 0, 1, 1], [], []>} : vector<28x64xf32>, vector<64x192xf32>, vector<28x192xf32> -> vector<28x192xf32>
    %c0_22 = arith.constant 0 : index
    %c0_23 = arith.constant 0 : index
    %c0_24 = arith.constant 0 : index
    %39 = vector.load %arg6[%c0_22, %c0_23, %c0_24] : memref<3x1x192xf32, #tpu.memory_space<vmem>>, vector<1x1x192xf32>
    %40 = vector.shape_cast %39 : vector<1x1x192xf32> to vector<1x192xf32>
    %41 = vector.broadcast %40 : vector<1x192xf32> to vector<28x192xf32>
    %42 = arith.addf %38, %41 : vector<28x192xf32>
    %c0_25 = arith.constant 0 : index
    %c0_26 = arith.constant 0 : index
    %43 = vector.load %arg13[%c0_25, %c0_26] : memref<28x192xf32, #tpu.memory_space<vmem>>, vector<28x192xf32>
    tpu.vector_store %arg13[%c0_25, %c0_26], %42 {strides = array<i32>} : memref<28x192xf32, #tpu.memory_space<vmem>>, vector<28x192xf32>,
    %c0_27 = arith.constant 0 : index
    %c0_28 = arith.constant 0 : index
    %44 = vector.load %arg13[%c0_27, %c0_28] : memref<28x192xf32, #tpu.memory_space<vmem>>, vector<14x64xf32>
    %c0_29 = arith.constant 0 : index
    %c64 = arith.constant 64 : index
    %45 = vector.load %arg13[%c0_29, %c64] : memref<28x192xf32, #tpu.memory_space<vmem>>, vector<14x64xf32>
    %c0_30 = arith.constant 0 : index
    %c128 = arith.constant 128 : index
    %46 = vector.load %arg13[%c0_30, %c128] : memref<28x192xf32, #tpu.memory_space<vmem>>, vector<14x64xf32>
    %47 = vector.shape_cast %44 : vector<14x64xf32> to vector<1x14x64xf32>
    %48 = vector.broadcast %47 : vector<1x14x64xf32> to vector<8x14x64xf32>
    %49 = vector.broadcast %0 : vector<8x1x64xf32> to vector<8x14x64xf32>
    %50 = arith.mulf %48, %49 : vector<8x14x64xf32>
    %51 = vector.shape_cast %45 : vector<14x64xf32> to vector<1x14x64xf32>
    %52 = vector.broadcast %51 : vector<1x14x64xf32> to vector<8x14x64xf32>
    %53 = vector.shape_cast %46 : vector<14x64xf32> to vector<1x14x64xf32>
    %54 = vector.broadcast %53 : vector<1x14x64xf32> to vector<8x14x64xf32>
    %55 = vector.broadcast %0 : vector<8x1x64xf32> to vector<8x14x64xf32>
    %56 = arith.mulf %54, %55 : vector<8x14x64xf32>
    "tpu.trace_start"() <{level = 10 : i32, message = "hnf,hmf->hnm"}> : () -> ()
    %cst_31 = arith.constant dense<0.000000e+00> : vector<8x14x14xf32>
    %57 = tpu.matmul %50, %52, %cst_31 {dimension_numbers = #tpu.dot_dimension_numbers<[2], [2], [1], [1], [0, 0, 0, 1, 1, 1], [0], [0]>} : vector<8x14x64xf32>, vector<8x14x64xf32>, vector<8x14x14xf32> -> vector<8x14x14xf32>
    "tpu.trace_stop"() : () -> ()
    %cst_32 = arith.constant 0.353553385 : f32
    %58 = vector.broadcast %cst_32 : f32 to vector<8x14x14xf32>
    %59 = arith.mulf %57, %58 : vector<8x14x14xf32>
    %cst_33 = arith.constant dense<0xFF800000> : vector<8x14xf32>
    %60 = vector.multi_reduction <maximumf>, %59, %cst_33 [2] : vector<8x14x14xf32> to vector<8x14xf32>
    %61 = vector.shape_cast %60 : vector<8x14xf32> to vector<8x14x1xf32>
    %62 = vector.broadcast %61 : vector<8x14x1xf32> to vector<8x14x14xf32>
    %63 = arith.subf %59, %62 : vector<8x14x14xf32>
    %64 = math.exp %63 : vector<8x14x14xf32>
    %cst_34 = arith.constant dense<0.000000e+00> : vector<8x14xf32>
    %65 = vector.multi_reduction <add>, %64, %cst_34 [2] : vector<8x14x14xf32> to vector<8x14xf32>
    %66 = vector.shape_cast %65 : vector<8x14xf32> to vector<8x14x1xf32>
    %67 = tpu.reciprocal %66 {approx = true} : vector<8x14x1xf32> -> vector<8x14x1xf32>
    %68 = vector.broadcast %67 : vector<8x14x1xf32> to vector<8x14x14xf32>
    %69 = arith.mulf %64, %68 : vector<8x14x14xf32>
    %cst_35 = arith.constant dense<0.000000e+00> : vector<14x14xf32>
    %70 = vector.multi_reduction <add>, %69, %cst_35 [0] : vector<8x14x14xf32> to vector<14x14xf32>
    %71 = arith.addf %32, %70 : vector<14x14xf32>
    "tpu.trace_start"() <{level = 10 : i32, message = "hnm,hmf->hnf"}> : () -> ()
    %cst_36 = arith.constant dense<0.000000e+00> : vector<8x14x64xf32>
    %72 = tpu.matmul %69, %56, %cst_36 {dimension_numbers = #tpu.dot_dimension_numbers<[2], [1], [1], [2], [0, 0, 0, 1, 1, 2], [0], [0]>} : vector<8x14x14xf32>, vector<8x14x64xf32>, vector<8x14x64xf32> -> vector<8x14x64xf32>
    "tpu.trace_stop"() : () -> ()
    %cst_37 = arith.constant dense<0.000000e+00> : vector<14x64xf32>
    %73 = vector.multi_reduction <add>, %72, %cst_37 [0] : vector<8x14x64xf32> to vector<14x64xf32>
    %c0_38 = arith.constant 0 : index
    %c0_39 = arith.constant 0 : index
    %74 = vector.load %arg14[%c0_38, %c0_39] : memref<28x64xf32, #tpu.memory_space<vmem>>, vector<14x64xf32>
    tpu.vector_store %arg14[%c0_38, %c0_39], %73 {strides = array<i32>} : memref<28x64xf32, #tpu.memory_space<vmem>>, vector<14x64xf32>,
    %c14 = arith.constant 14 : index
    %c0_40 = arith.constant 0 : index
    %75 = vector.load %arg13[%c14, %c0_40] : memref<28x192xf32, #tpu.memory_space<vmem>>, vector<14x64xf32>
    %c14_41 = arith.constant 14 : index
    %c64_42 = arith.constant 64 : index
    %76 = vector.load %arg13[%c14_41, %c64_42] : memref<28x192xf32, #tpu.memory_space<vmem>>, vector<14x64xf32>
    %c14_43 = arith.constant 14 : index
    %c128_44 = arith.constant 128 : index
    %77 = vector.load %arg13[%c14_43, %c128_44] : memref<28x192xf32, #tpu.memory_space<vmem>>, vector<14x64xf32>
    %78 = vector.shape_cast %75 : vector<14x64xf32> to vector<1x14x64xf32>
    %79 = vector.broadcast %78 : vector<1x14x64xf32> to vector<8x14x64xf32>
    %80 = vector.broadcast %0 : vector<8x1x64xf32> to vector<8x14x64xf32>
    %81 = arith.mulf %79, %80 : vector<8x14x64xf32>
    %82 = vector.shape_cast %76 : vector<14x64xf32> to vector<1x14x64xf32>
    %83 = vector.broadcast %82 : vector<1x14x64xf32> to vector<8x14x64xf32>
    %84 = vector.shape_cast %77 : vector<14x64xf32> to vector<1x14x64xf32>
    %85 = vector.broadcast %84 : vector<1x14x64xf32> to vector<8x14x64xf32>
    %86 = vector.broadcast %0 : vector<8x1x64xf32> to vector<8x14x64xf32>
    %87 = arith.mulf %85, %86 : vector<8x14x64xf32>
    "tpu.trace_start"() <{level = 10 : i32, message = "hnf,hmf->hnm"}> : () -> ()
    %cst_45 = arith.constant dense<0.000000e+00> : vector<8x14x14xf32>
    %88 = tpu.matmul %81, %83, %cst_45 {dimension_numbers = #tpu.dot_dimension_numbers<[2], [2], [1], [1], [0, 0, 0, 1, 1, 1], [0], [0]>} : vector<8x14x64xf32>, vector<8x14x64xf32>, vector<8x14x14xf32> -> vector<8x14x14xf32>
    "tpu.trace_stop"() : () -> ()
    %cst_46 = arith.constant 0.353553385 : f32
    %89 = vector.broadcast %cst_46 : f32 to vector<8x14x14xf32>
    %90 = arith.mulf %88, %89 : vector<8x14x14xf32>
    %cst_47 = arith.constant dense<0xFF800000> : vector<8x14xf32>
    %91 = vector.multi_reduction <maximumf>, %90, %cst_47 [2] : vector<8x14x14xf32> to vector<8x14xf32>
    %92 = vector.shape_cast %91 : vector<8x14xf32> to vector<8x14x1xf32>
    %93 = vector.broadcast %92 : vector<8x14x1xf32> to vector<8x14x14xf32>
    %94 = arith.subf %90, %93 : vector<8x14x14xf32>
    %95 = math.exp %94 : vector<8x14x14xf32>
    %cst_48 = arith.constant dense<0.000000e+00> : vector<8x14xf32>
    %96 = vector.multi_reduction <add>, %95, %cst_48 [2] : vector<8x14x14xf32> to vector<8x14xf32>
    %97 = vector.shape_cast %96 : vector<8x14xf32> to vector<8x14x1xf32>
    %98 = tpu.reciprocal %97 {approx = true} : vector<8x14x1xf32> -> vector<8x14x1xf32>
    %99 = vector.broadcast %98 : vector<8x14x1xf32> to vector<8x14x14xf32>
    %100 = arith.mulf %95, %99 : vector<8x14x14xf32>
    %cst_49 = arith.constant dense<0.000000e+00> : vector<14x14xf32>
    %101 = vector.multi_reduction <add>, %100, %cst_49 [0] : vector<8x14x14xf32> to vector<14x14xf32>
    %102 = arith.addf %33, %101 : vector<14x14xf32>
    "tpu.trace_start"() <{level = 10 : i32, message = "hnm,hmf->hnf"}> : () -> ()
    %cst_50 = arith.constant dense<0.000000e+00> : vector<8x14x64xf32>
    %103 = tpu.matmul %100, %87, %cst_50 {dimension_numbers = #tpu.dot_dimension_numbers<[2], [1], [1], [2], [0, 0, 0, 1, 1, 2], [0], [0]>} : vector<8x14x14xf32>, vector<8x14x64xf32>, vector<8x14x64xf32> -> vector<8x14x64xf32>
    "tpu.trace_stop"() : () -> ()
    %cst_51 = arith.constant dense<0.000000e+00> : vector<14x64xf32>
    %104 = vector.multi_reduction <add>, %103, %cst_51 [0] : vector<8x14x64xf32> to vector<14x64xf32>
    %c14_52 = arith.constant 14 : index
    %c0_53 = arith.constant 0 : index
    %105 = vector.load %arg14[%c14_52, %c0_53] : memref<28x64xf32, #tpu.memory_space<vmem>>, vector<14x64xf32>
    tpu.vector_store %arg14[%c14_52, %c0_53], %104 {strides = array<i32>} : memref<28x64xf32, #tpu.memory_space<vmem>>, vector<14x64xf32>,
    %c0_54 = arith.constant 0 : index
    %c0_55 = arith.constant 0 : index
    %106 = vector.load %arg14[%c0_54, %c0_55] : memref<28x64xf32, #tpu.memory_space<vmem>>, vector<28x64xf32>
    %c0_56 = arith.constant 0 : index
    %c0_57 = arith.constant 0 : index
    %c0_58 = arith.constant 0 : index
    %107 = vector.load %arg7[%c0_56, %c0_57, %c0_58] : memref<3x64x64xf32, #tpu.memory_space<vmem>>, vector<1x64x64xf32>
    %108 = vector.shape_cast %107 : vector<1x64x64xf32> to vector<64x64xf32>
    %cst_59 = arith.constant dense<0.000000e+00> : vector<28x64xf32>
    %109 = tpu.matmul %106, %108, %cst_59 {dimension_numbers = #tpu.dot_dimension_numbers<[1], [0], [0], [1], [0, 0, 1, 1], [], []>} : vector<28x64xf32>, vector<64x64xf32>, vector<28x64xf32> -> vector<28x64xf32>
    %110 = vector.extract_strided_slice %35 {offsets = [0, 0], sizes = [1, 64], strides = [1, 1]} : vector<3x64xf32> to vector<1x64xf32>
    %111 = vector.broadcast %110 : vector<1x64xf32> to vector<28x64xf32>
    %112 = arith.addf %109, %111 : vector<28x64xf32>
    %113 = vector.extract_strided_slice %35 {offsets = [1, 0], sizes = [1, 64], strides = [1, 1]} : vector<3x64xf32> to vector<1x64xf32>
    %114 = vector.extract_strided_slice %35 {offsets = [2, 0], sizes = [1, 64], strides = [1, 1]} : vector<3x64xf32> to vector<1x64xf32>
    %cst_60 = arith.constant dense<0.000000e+00> : vector<28xf32>
    %115 = vector.multi_reduction <add>, %112, %cst_60 [1] : vector<28x64xf32> to vector<28xf32>
    %116 = vector.shape_cast %115 : vector<28xf32> to vector<28x1xf32>
    %cst_61 = arith.constant 6.400000e+01 : f32
    %117 = vector.broadcast %cst_61 : f32 to vector<28x1xf32>
    %118 = arith.divf %116, %117 : vector<28x1xf32>
    %119 = vector.broadcast %118 : vector<28x1xf32> to vector<28x64xf32>
    %120 = arith.subf %112, %119 : vector<28x64xf32>
    %121 = arith.mulf %120, %120 : vector<28x64xf32>
    %cst_62 = arith.constant dense<0.000000e+00> : vector<28xf32>
    %122 = vector.multi_reduction <add>, %121, %cst_62 [1] : vector<28x64xf32> to vector<28xf32>
    %123 = vector.shape_cast %122 : vector<28xf32> to vector<28x1xf32>
    %cst_63 = arith.constant 6.400000e+01 : f32
    %124 = vector.broadcast %cst_63 : f32 to vector<28x1xf32>
    %125 = arith.divf %123, %124 : vector<28x1xf32>
    %126 = vector.broadcast %118 : vector<28x1xf32> to vector<28x64xf32>
    %127 = arith.subf %112, %126 : vector<28x64xf32>
    %cst_64 = arith.constant 9.99999974E-6 : f32
    %128 = vector.broadcast %cst_64 : f32 to vector<28x1xf32>
    %129 = arith.addf %125, %128 : vector<28x1xf32>
    %130 = math.rsqrt %129 : vector<28x1xf32>
    %131 = vector.broadcast %130 : vector<28x1xf32> to vector<28x64xf32>
    %132 = arith.mulf %127, %131 : vector<28x64xf32>
    %133 = vector.broadcast %113 : vector<1x64xf32> to vector<28x64xf32>
    %134 = arith.mulf %132, %133 : vector<28x64xf32>
    %135 = vector.broadcast %114 : vector<1x64xf32> to vector<28x64xf32>
    %136 = arith.addf %134, %135 : vector<28x64xf32>
    %cst_65 = arith.constant 0.000000e+00 : f32
    %137 = vector.broadcast %cst_65 : f32 to vector<28x64xf32>
    %138 = arith.cmpf ogt, %136, %137 : vector<28x64xf32>
    %cst_66 = arith.constant 0.000000e+00 : f32
    %139 = vector.broadcast %cst_66 : f32 to vector<28x64xf32>
    %140 = arith.minimumf %136, %139 : vector<28x64xf32>
    %141 = math.exp %140 : vector<28x64xf32>
    %cst_67 = arith.constant 1.000000e+00 : f32
    %142 = vector.broadcast %cst_67 : f32 to vector<28x64xf32>
    %143 = arith.subf %141, %142 : vector<28x64xf32>
    %144 = arith.select %138, %136, %143 : vector<28x64xi1>, vector<28x64xf32>
    %c1 = arith.constant 1 : index
    %c0_68 = arith.constant 0 : index
    %c0_69 = arith.constant 0 : index
    %145 = vector.load %arg8[%c1, %c0_68, %c0_69] : memref<3x3x64xf32, #tpu.memory_space<vmem>>, vector<1x3x64xf32>
    %146 = vector.shape_cast %145 : vector<1x3x64xf32> to vector<3x64xf32>
    %c1_70 = arith.constant 1 : index
    %c0_71 = arith.constant 0 : index
    %c0_72 = arith.constant 0 : index
    %147 = vector.load %arg5[%c1_70, %c0_71, %c0_72] : memref<3x64x192xf32, #tpu.memory_space<vmem>>, vector<1x64x192xf32>
    %148 = vector.shape_cast %147 : vector<1x64x192xf32> to vector<64x192xf32>
    %cst_73 = arith.constant dense<0.000000e+00> : vector<28x192xf32>
    %149 = tpu.matmul %144, %148, %cst_73 {dimension_numbers = #tpu.dot_dimension_numbers<[1], [0], [0], [1], [0, 0, 1, 1], [], []>} : vector<28x64xf32>, vector<64x192xf32>, vector<28x192xf32> -> vector<28x192xf32>
    %c1_74 = arith.constant 1 : index
    %c0_75 = arith.constant 0 : index
    %c0_76 = arith.constant 0 : index
    %150 = vector.load %arg6[%c1_74, %c0_75, %c0_76] : memref<3x1x192xf32, #tpu.memory_space<vmem>>, vector<1x1x192xf32>
    %151 = vector.shape_cast %150 : vector<1x1x192xf32> to vector<1x192xf32>
    %152 = vector.broadcast %151 : vector<1x192xf32> to vector<28x192xf32>
    %153 = arith.addf %149, %152 : vector<28x192xf32>
    %c0_77 = arith.constant 0 : index
    %c0_78 = arith.constant 0 : index
    %154 = vector.load %arg13[%c0_77, %c0_78] : memref<28x192xf32, #tpu.memory_space<vmem>>, vector<28x192xf32>
    tpu.vector_store %arg13[%c0_77, %c0_78], %153 {strides = array<i32>} : memref<28x192xf32, #tpu.memory_space<vmem>>, vector<28x192xf32>,
    %c0_79 = arith.constant 0 : index
    %c0_80 = arith.constant 0 : index
    %155 = vector.load %arg13[%c0_79, %c0_80] : memref<28x192xf32, #tpu.memory_space<vmem>>, vector<14x64xf32>
    %c0_81 = arith.constant 0 : index
    %c64_82 = arith.constant 64 : index
    %156 = vector.load %arg13[%c0_81, %c64_82] : memref<28x192xf32, #tpu.memory_space<vmem>>, vector<14x64xf32>
    %c0_83 = arith.constant 0 : index
    %c128_84 = arith.constant 128 : index
    %157 = vector.load %arg13[%c0_83, %c128_84] : memref<28x192xf32, #tpu.memory_space<vmem>>, vector<14x64xf32>
    %158 = vector.shape_cast %155 : vector<14x64xf32> to vector<1x14x64xf32>
    %159 = vector.broadcast %158 : vector<1x14x64xf32> to vector<8x14x64xf32>
    %160 = vector.broadcast %0 : vector<8x1x64xf32> to vector<8x14x64xf32>
    %161 = arith.mulf %159, %160 : vector<8x14x64xf32>
    %162 = vector.shape_cast %156 : vector<14x64xf32> to vector<1x14x64xf32>
    %163 = vector.broadcast %162 : vector<1x14x64xf32> to vector<8x14x64xf32>
    %164 = vector.shape_cast %157 : vector<14x64xf32> to vector<1x14x64xf32>
    %165 = vector.broadcast %164 : vector<1x14x64xf32> to vector<8x14x64xf32>
    %166 = vector.broadcast %0 : vector<8x1x64xf32> to vector<8x14x64xf32>
    %167 = arith.mulf %165, %166 : vector<8x14x64xf32>
    "tpu.trace_start"() <{level = 10 : i32, message = "hnf,hmf->hnm"}> : () -> ()
    %cst_85 = arith.constant dense<0.000000e+00> : vector<8x14x14xf32>
    %168 = tpu.matmul %161, %163, %cst_85 {dimension_numbers = #tpu.dot_dimension_numbers<[2], [2], [1], [1], [0, 0, 0, 1, 1, 1], [0], [0]>} : vector<8x14x64xf32>, vector<8x14x64xf32>, vector<8x14x14xf32> -> vector<8x14x14xf32>
    "tpu.trace_stop"() : () -> ()
    %cst_86 = arith.constant 0.353553385 : f32
    %169 = vector.broadcast %cst_86 : f32 to vector<8x14x14xf32>
    %170 = arith.mulf %168, %169 : vector<8x14x14xf32>
    %cst_87 = arith.constant dense<0xFF800000> : vector<8x14xf32>
    %171 = vector.multi_reduction <maximumf>, %170, %cst_87 [2] : vector<8x14x14xf32> to vector<8x14xf32>
    %172 = vector.shape_cast %171 : vector<8x14xf32> to vector<8x14x1xf32>
    %173 = vector.broadcast %172 : vector<8x14x1xf32> to vector<8x14x14xf32>
    %174 = arith.subf %170, %173 : vector<8x14x14xf32>
    %175 = math.exp %174 : vector<8x14x14xf32>
    %cst_88 = arith.constant dense<0.000000e+00> : vector<8x14xf32>
    %176 = vector.multi_reduction <add>, %175, %cst_88 [2] : vector<8x14x14xf32> to vector<8x14xf32>
    %177 = vector.shape_cast %176 : vector<8x14xf32> to vector<8x14x1xf32>
    %178 = tpu.reciprocal %177 {approx = true} : vector<8x14x1xf32> -> vector<8x14x1xf32>
    %179 = vector.broadcast %178 : vector<8x14x1xf32> to vector<8x14x14xf32>
    %180 = arith.mulf %175, %179 : vector<8x14x14xf32>
    %cst_89 = arith.constant dense<0.000000e+00> : vector<14x14xf32>
    %181 = vector.multi_reduction <add>, %180, %cst_89 [0] : vector<8x14x14xf32> to vector<14x14xf32>
    %182 = arith.addf %71, %181 : vector<14x14xf32>
    "tpu.trace_start"() <{level = 10 : i32, message = "hnm,hmf->hnf"}> : () -> ()
    %cst_90 = arith.constant dense<0.000000e+00> : vector<8x14x64xf32>
    %183 = tpu.matmul %180, %167, %cst_90 {dimension_numbers = #tpu.dot_dimension_numbers<[2], [1], [1], [2], [0, 0, 0, 1, 1, 2], [0], [0]>} : vector<8x14x14xf32>, vector<8x14x64xf32>, vector<8x14x64xf32> -> vector<8x14x64xf32>
    "tpu.trace_stop"() : () -> ()
    %cst_91 = arith.constant dense<0.000000e+00> : vector<14x64xf32>
    %184 = vector.multi_reduction <add>, %183, %cst_91 [0] : vector<8x14x64xf32> to vector<14x64xf32>
    %c0_92 = arith.constant 0 : index
    %c0_93 = arith.constant 0 : index
    %185 = vector.load %arg14[%c0_92, %c0_93] : memref<28x64xf32, #tpu.memory_space<vmem>>, vector<14x64xf32>
    tpu.vector_store %arg14[%c0_92, %c0_93], %184 {strides = array<i32>} : memref<28x64xf32, #tpu.memory_space<vmem>>, vector<14x64xf32>,
    %c14_94 = arith.constant 14 : index
    %c0_95 = arith.constant 0 : index
    %186 = vector.load %arg13[%c14_94, %c0_95] : memref<28x192xf32, #tpu.memory_space<vmem>>, vector<14x64xf32>
    %c14_96 = arith.constant 14 : index
    %c64_97 = arith.constant 64 : index
    %187 = vector.load %arg13[%c14_96, %c64_97] : memref<28x192xf32, #tpu.memory_space<vmem>>, vector<14x64xf32>
    %c14_98 = arith.constant 14 : index
    %c128_99 = arith.constant 128 : index
    %188 = vector.load %arg13[%c14_98, %c128_99] : memref<28x192xf32, #tpu.memory_space<vmem>>, vector<14x64xf32>
    %189 = vector.shape_cast %186 : vector<14x64xf32> to vector<1x14x64xf32>
    %190 = vector.broadcast %189 : vector<1x14x64xf32> to vector<8x14x64xf32>
    %191 = vector.broadcast %0 : vector<8x1x64xf32> to vector<8x14x64xf32>
    %192 = arith.mulf %190, %191 : vector<8x14x64xf32>
    %193 = vector.shape_cast %187 : vector<14x64xf32> to vector<1x14x64xf32>
    %194 = vector.broadcast %193 : vector<1x14x64xf32> to vector<8x14x64xf32>
    %195 = vector.shape_cast %188 : vector<14x64xf32> to vector<1x14x64xf32>
    %196 = vector.broadcast %195 : vector<1x14x64xf32> to vector<8x14x64xf32>
    %197 = vector.broadcast %0 : vector<8x1x64xf32> to vector<8x14x64xf32>
    %198 = arith.mulf %196, %197 : vector<8x14x64xf32>
    "tpu.trace_start"() <{level = 10 : i32, message = "hnf,hmf->hnm"}> : () -> ()
    %cst_100 = arith.constant dense<0.000000e+00> : vector<8x14x14xf32>
    %199 = tpu.matmul %192, %194, %cst_100 {dimension_numbers = #tpu.dot_dimension_numbers<[2], [2], [1], [1], [0, 0, 0, 1, 1, 1], [0], [0]>} : vector<8x14x64xf32>, vector<8x14x64xf32>, vector<8x14x14xf32> -> vector<8x14x14xf32>
    "tpu.trace_stop"() : () -> ()
    %cst_101 = arith.constant 0.353553385 : f32
    %200 = vector.broadcast %cst_101 : f32 to vector<8x14x14xf32>
    %201 = arith.mulf %199, %200 : vector<8x14x14xf32>
    %cst_102 = arith.constant dense<0xFF800000> : vector<8x14xf32>
    %202 = vector.multi_reduction <maximumf>, %201, %cst_102 [2] : vector<8x14x14xf32> to vector<8x14xf32>
    %203 = vector.shape_cast %202 : vector<8x14xf32> to vector<8x14x1xf32>
    %204 = vector.broadcast %203 : vector<8x14x1xf32> to vector<8x14x14xf32>
    %205 = arith.subf %201, %204 : vector<8x14x14xf32>
    %206 = math.exp %205 : vector<8x14x14xf32>
    %cst_103 = arith.constant dense<0.000000e+00> : vector<8x14xf32>
    %207 = vector.multi_reduction <add>, %206, %cst_103 [2] : vector<8x14x14xf32> to vector<8x14xf32>
    %208 = vector.shape_cast %207 : vector<8x14xf32> to vector<8x14x1xf32>
    %209 = tpu.reciprocal %208 {approx = true} : vector<8x14x1xf32> -> vector<8x14x1xf32>
    %210 = vector.broadcast %209 : vector<8x14x1xf32> to vector<8x14x14xf32>
    %211 = arith.mulf %206, %210 : vector<8x14x14xf32>
    %cst_104 = arith.constant dense<0.000000e+00> : vector<14x14xf32>
    %212 = vector.multi_reduction <add>, %211, %cst_104 [0] : vector<8x14x14xf32> to vector<14x14xf32>
    %213 = arith.addf %102, %212 : vector<14x14xf32>
    "tpu.trace_start"() <{level = 10 : i32, message = "hnm,hmf->hnf"}> : () -> ()
    %cst_105 = arith.constant dense<0.000000e+00> : vector<8x14x64xf32>
    %214 = tpu.matmul %211, %198, %cst_105 {dimension_numbers = #tpu.dot_dimension_numbers<[2], [1], [1], [2], [0, 0, 0, 1, 1, 2], [0], [0]>} : vector<8x14x14xf32>, vector<8x14x64xf32>, vector<8x14x64xf32> -> vector<8x14x64xf32>
    "tpu.trace_stop"() : () -> ()
    %cst_106 = arith.constant dense<0.000000e+00> : vector<14x64xf32>
    %215 = vector.multi_reduction <add>, %214, %cst_106 [0] : vector<8x14x64xf32> to vector<14x64xf32>
    %c14_107 = arith.constant 14 : index
    %c0_108 = arith.constant 0 : index
    %216 = vector.load %arg14[%c14_107, %c0_108] : memref<28x64xf32, #tpu.memory_space<vmem>>, vector<14x64xf32>
    tpu.vector_store %arg14[%c14_107, %c0_108], %215 {strides = array<i32>} : memref<28x64xf32, #tpu.memory_space<vmem>>, vector<14x64xf32>,
    %c0_109 = arith.constant 0 : index
    %c0_110 = arith.constant 0 : index
    %217 = vector.load %arg14[%c0_109, %c0_110] : memref<28x64xf32, #tpu.memory_space<vmem>>, vector<28x64xf32>
    %c1_111 = arith.constant 1 : index
    %c0_112 = arith.constant 0 : index
    %c0_113 = arith.constant 0 : index
    %218 = vector.load %arg7[%c1_111, %c0_112, %c0_113] : memref<3x64x64xf32, #tpu.memory_space<vmem>>, vector<1x64x64xf32>
    %219 = vector.shape_cast %218 : vector<1x64x64xf32> to vector<64x64xf32>
    %cst_114 = arith.constant dense<0.000000e+00> : vector<28x64xf32>
    %220 = tpu.matmul %217, %219, %cst_114 {dimension_numbers = #tpu.dot_dimension_numbers<[1], [0], [0], [1], [0, 0, 1, 1], [], []>} : vector<28x64xf32>, vector<64x64xf32>, vector<28x64xf32> -> vector<28x64xf32>
    %221 = vector.extract_strided_slice %146 {offsets = [0, 0], sizes = [1, 64], strides = [1, 1]} : vector<3x64xf32> to vector<1x64xf32>
    %222 = vector.broadcast %221 : vector<1x64xf32> to vector<28x64xf32>
    %223 = arith.addf %220, %222 : vector<28x64xf32>
    %224 = vector.extract_strided_slice %146 {offsets = [1, 0], sizes = [1, 64], strides = [1, 1]} : vector<3x64xf32> to vector<1x64xf32>
    %225 = vector.extract_strided_slice %146 {offsets = [2, 0], sizes = [1, 64], strides = [1, 1]} : vector<3x64xf32> to vector<1x64xf32>
    %cst_115 = arith.constant dense<0.000000e+00> : vector<28xf32>
    %226 = vector.multi_reduction <add>, %223, %cst_115 [1] : vector<28x64xf32> to vector<28xf32>
    %227 = vector.shape_cast %226 : vector<28xf32> to vector<28x1xf32>
    %cst_116 = arith.constant 6.400000e+01 : f32
    %228 = vector.broadcast %cst_116 : f32 to vector<28x1xf32>
    %229 = arith.divf %227, %228 : vector<28x1xf32>
    %230 = vector.broadcast %229 : vector<28x1xf32> to vector<28x64xf32>
    %231 = arith.subf %223, %230 : vector<28x64xf32>
    %232 = arith.mulf %231, %231 : vector<28x64xf32>
    %cst_117 = arith.constant dense<0.000000e+00> : vector<28xf32>
    %233 = vector.multi_reduction <add>, %232, %cst_117 [1] : vector<28x64xf32> to vector<28xf32>
    %234 = vector.shape_cast %233 : vector<28xf32> to vector<28x1xf32>
    %cst_118 = arith.constant 6.400000e+01 : f32
    %235 = vector.broadcast %cst_118 : f32 to vector<28x1xf32>
    %236 = arith.divf %234, %235 : vector<28x1xf32>
    %237 = vector.broadcast %229 : vector<28x1xf32> to vector<28x64xf32>
    %238 = arith.subf %223, %237 : vector<28x64xf32>
    %cst_119 = arith.constant 9.99999974E-6 : f32
    %239 = vector.broadcast %cst_119 : f32 to vector<28x1xf32>
    %240 = arith.addf %236, %239 : vector<28x1xf32>
    %241 = math.rsqrt %240 : vector<28x1xf32>
    %242 = vector.broadcast %241 : vector<28x1xf32> to vector<28x64xf32>
    %243 = arith.mulf %238, %242 : vector<28x64xf32>
    %244 = vector.broadcast %224 : vector<1x64xf32> to vector<28x64xf32>
    %245 = arith.mulf %243, %244 : vector<28x64xf32>
    %246 = vector.broadcast %225 : vector<1x64xf32> to vector<28x64xf32>
    %247 = arith.addf %245, %246 : vector<28x64xf32>
    %cst_120 = arith.constant 0.000000e+00 : f32
    %248 = vector.broadcast %cst_120 : f32 to vector<28x64xf32>
    %249 = arith.cmpf ogt, %247, %248 : vector<28x64xf32>
    %cst_121 = arith.constant 0.000000e+00 : f32
    %250 = vector.broadcast %cst_121 : f32 to vector<28x64xf32>
    %251 = arith.minimumf %247, %250 : vector<28x64xf32>
    %252 = math.exp %251 : vector<28x64xf32>
    %cst_122 = arith.constant 1.000000e+00 : f32
    %253 = vector.broadcast %cst_122 : f32 to vector<28x64xf32>
    %254 = arith.subf %252, %253 : vector<28x64xf32>
    %255 = arith.select %249, %247, %254 : vector<28x64xi1>, vector<28x64xf32>
    %c2 = arith.constant 2 : index
    %c0_123 = arith.constant 0 : index
    %c0_124 = arith.constant 0 : index
    %256 = vector.load %arg8[%c2, %c0_123, %c0_124] : memref<3x3x64xf32, #tpu.memory_space<vmem>>, vector<1x3x64xf32>
    %257 = vector.shape_cast %256 : vector<1x3x64xf32> to vector<3x64xf32>
    %c2_125 = arith.constant 2 : index
    %c0_126 = arith.constant 0 : index
    %c0_127 = arith.constant 0 : index
    %258 = vector.load %arg5[%c2_125, %c0_126, %c0_127] : memref<3x64x192xf32, #tpu.memory_space<vmem>>, vector<1x64x192xf32>
    %259 = vector.shape_cast %258 : vector<1x64x192xf32> to vector<64x192xf32>
    %cst_128 = arith.constant dense<0.000000e+00> : vector<28x192xf32>
    %260 = tpu.matmul %255, %259, %cst_128 {dimension_numbers = #tpu.dot_dimension_numbers<[1], [0], [0], [1], [0, 0, 1, 1], [], []>} : vector<28x64xf32>, vector<64x192xf32>, vector<28x192xf32> -> vector<28x192xf32>
    %c2_129 = arith.constant 2 : index
    %c0_130 = arith.constant 0 : index
    %c0_131 = arith.constant 0 : index
    %261 = vector.load %arg6[%c2_129, %c0_130, %c0_131] : memref<3x1x192xf32, #tpu.memory_space<vmem>>, vector<1x1x192xf32>
    %262 = vector.shape_cast %261 : vector<1x1x192xf32> to vector<1x192xf32>
    %263 = vector.broadcast %262 : vector<1x192xf32> to vector<28x192xf32>
    %264 = arith.addf %260, %263 : vector<28x192xf32>
    %c0_132 = arith.constant 0 : index
    %c0_133 = arith.constant 0 : index
    %265 = vector.load %arg13[%c0_132, %c0_133] : memref<28x192xf32, #tpu.memory_space<vmem>>, vector<28x192xf32>
    tpu.vector_store %arg13[%c0_132, %c0_133], %264 {strides = array<i32>} : memref<28x192xf32, #tpu.memory_space<vmem>>, vector<28x192xf32>,
    %c0_134 = arith.constant 0 : index
    %c0_135 = arith.constant 0 : index
    %266 = vector.load %arg13[%c0_134, %c0_135] : memref<28x192xf32, #tpu.memory_space<vmem>>, vector<14x64xf32>
    %c0_136 = arith.constant 0 : index
    %c64_137 = arith.constant 64 : index
    %267 = vector.load %arg13[%c0_136, %c64_137] : memref<28x192xf32, #tpu.memory_space<vmem>>, vector<14x64xf32>
    %c0_138 = arith.constant 0 : index
    %c128_139 = arith.constant 128 : index
    %268 = vector.load %arg13[%c0_138, %c128_139] : memref<28x192xf32, #tpu.memory_space<vmem>>, vector<14x64xf32>
    %269 = vector.shape_cast %266 : vector<14x64xf32> to vector<1x14x64xf32>
    %270 = vector.broadcast %269 : vector<1x14x64xf32> to vector<8x14x64xf32>
    %271 = vector.broadcast %0 : vector<8x1x64xf32> to vector<8x14x64xf32>
    %272 = arith.mulf %270, %271 : vector<8x14x64xf32>
    %273 = vector.shape_cast %267 : vector<14x64xf32> to vector<1x14x64xf32>
    %274 = vector.broadcast %273 : vector<1x14x64xf32> to vector<8x14x64xf32>
    %275 = vector.shape_cast %268 : vector<14x64xf32> to vector<1x14x64xf32>
    %276 = vector.broadcast %275 : vector<1x14x64xf32> to vector<8x14x64xf32>
    %277 = vector.broadcast %0 : vector<8x1x64xf32> to vector<8x14x64xf32>
    %278 = arith.mulf %276, %277 : vector<8x14x64xf32>
    "tpu.trace_start"() <{level = 10 : i32, message = "hnf,hmf->hnm"}> : () -> ()
    %cst_140 = arith.constant dense<0.000000e+00> : vector<8x14x14xf32>
    %279 = tpu.matmul %272, %274, %cst_140 {dimension_numbers = #tpu.dot_dimension_numbers<[2], [2], [1], [1], [0, 0, 0, 1, 1, 1], [0], [0]>} : vector<8x14x64xf32>, vector<8x14x64xf32>, vector<8x14x14xf32> -> vector<8x14x14xf32>
    "tpu.trace_stop"() : () -> ()
    %cst_141 = arith.constant 0.353553385 : f32
    %280 = vector.broadcast %cst_141 : f32 to vector<8x14x14xf32>
    %281 = arith.mulf %279, %280 : vector<8x14x14xf32>
    %cst_142 = arith.constant dense<0xFF800000> : vector<8x14xf32>
    %282 = vector.multi_reduction <maximumf>, %281, %cst_142 [2] : vector<8x14x14xf32> to vector<8x14xf32>
    %283 = vector.shape_cast %282 : vector<8x14xf32> to vector<8x14x1xf32>
    %284 = vector.broadcast %283 : vector<8x14x1xf32> to vector<8x14x14xf32>
    %285 = arith.subf %281, %284 : vector<8x14x14xf32>
    %286 = math.exp %285 : vector<8x14x14xf32>
    %cst_143 = arith.constant dense<0.000000e+00> : vector<8x14xf32>
    %287 = vector.multi_reduction <add>, %286, %cst_143 [2] : vector<8x14x14xf32> to vector<8x14xf32>
    %288 = vector.shape_cast %287 : vector<8x14xf32> to vector<8x14x1xf32>
    %289 = tpu.reciprocal %288 {approx = true} : vector<8x14x1xf32> -> vector<8x14x1xf32>
    %290 = vector.broadcast %289 : vector<8x14x1xf32> to vector<8x14x14xf32>
    %291 = arith.mulf %286, %290 : vector<8x14x14xf32>
    %cst_144 = arith.constant dense<0.000000e+00> : vector<14x14xf32>
    %292 = vector.multi_reduction <add>, %291, %cst_144 [0] : vector<8x14x14xf32> to vector<14x14xf32>
    %293 = arith.addf %182, %292 : vector<14x14xf32>
    "tpu.trace_start"() <{level = 10 : i32, message = "hnm,hmf->hnf"}> : () -> ()
    %cst_145 = arith.constant dense<0.000000e+00> : vector<8x14x64xf32>
    %294 = tpu.matmul %291, %278, %cst_145 {dimension_numbers = #tpu.dot_dimension_numbers<[2], [1], [1], [2], [0, 0, 0, 1, 1, 2], [0], [0]>} : vector<8x14x14xf32>, vector<8x14x64xf32>, vector<8x14x64xf32> -> vector<8x14x64xf32>
    "tpu.trace_stop"() : () -> ()
    %cst_146 = arith.constant dense<0.000000e+00> : vector<14x64xf32>
    %295 = vector.multi_reduction <add>, %294, %cst_146 [0] : vector<8x14x64xf32> to vector<14x64xf32>
    %c0_147 = arith.constant 0 : index
    %c0_148 = arith.constant 0 : index
    %296 = vector.load %arg14[%c0_147, %c0_148] : memref<28x64xf32, #tpu.memory_space<vmem>>, vector<14x64xf32>
    tpu.vector_store %arg14[%c0_147, %c0_148], %295 {strides = array<i32>} : memref<28x64xf32, #tpu.memory_space<vmem>>, vector<14x64xf32>,
    %c14_149 = arith.constant 14 : index
    %c0_150 = arith.constant 0 : index
    %297 = vector.load %arg13[%c14_149, %c0_150] : memref<28x192xf32, #tpu.memory_space<vmem>>, vector<14x64xf32>
    %c14_151 = arith.constant 14 : index
    %c64_152 = arith.constant 64 : index
    %298 = vector.load %arg13[%c14_151, %c64_152] : memref<28x192xf32, #tpu.memory_space<vmem>>, vector<14x64xf32>
    %c14_153 = arith.constant 14 : index
    %c128_154 = arith.constant 128 : index
    %299 = vector.load %arg13[%c14_153, %c128_154] : memref<28x192xf32, #tpu.memory_space<vmem>>, vector<14x64xf32>
    %300 = vector.shape_cast %297 : vector<14x64xf32> to vector<1x14x64xf32>
    %301 = vector.broadcast %300 : vector<1x14x64xf32> to vector<8x14x64xf32>
    %302 = vector.broadcast %0 : vector<8x1x64xf32> to vector<8x14x64xf32>
    %303 = arith.mulf %301, %302 : vector<8x14x64xf32>
    %304 = vector.shape_cast %298 : vector<14x64xf32> to vector<1x14x64xf32>
    %305 = vector.broadcast %304 : vector<1x14x64xf32> to vector<8x14x64xf32>
    %306 = vector.shape_cast %299 : vector<14x64xf32> to vector<1x14x64xf32>
    %307 = vector.broadcast %306 : vector<1x14x64xf32> to vector<8x14x64xf32>
    %308 = vector.broadcast %0 : vector<8x1x64xf32> to vector<8x14x64xf32>
    %309 = arith.mulf %307, %308 : vector<8x14x64xf32>
    "tpu.trace_start"() <{level = 10 : i32, message = "hnf,hmf->hnm"}> : () -> ()
    %cst_155 = arith.constant dense<0.000000e+00> : vector<8x14x14xf32>
    %310 = tpu.matmul %303, %305, %cst_155 {dimension_numbers = #tpu.dot_dimension_numbers<[2], [2], [1], [1], [0, 0, 0, 1, 1, 1], [0], [0]>} : vector<8x14x64xf32>, vector<8x14x64xf32>, vector<8x14x14xf32> -> vector<8x14x14xf32>
    "tpu.trace_stop"() : () -> ()
    %cst_156 = arith.constant 0.353553385 : f32
    %311 = vector.broadcast %cst_156 : f32 to vector<8x14x14xf32>
    %312 = arith.mulf %310, %311 : vector<8x14x14xf32>
    %cst_157 = arith.constant dense<0xFF800000> : vector<8x14xf32>
    %313 = vector.multi_reduction <maximumf>, %312, %cst_157 [2] : vector<8x14x14xf32> to vector<8x14xf32>
    %314 = vector.shape_cast %313 : vector<8x14xf32> to vector<8x14x1xf32>
    %315 = vector.broadcast %314 : vector<8x14x1xf32> to vector<8x14x14xf32>
    %316 = arith.subf %312, %315 : vector<8x14x14xf32>
    %317 = math.exp %316 : vector<8x14x14xf32>
    %cst_158 = arith.constant dense<0.000000e+00> : vector<8x14xf32>
    %318 = vector.multi_reduction <add>, %317, %cst_158 [2] : vector<8x14x14xf32> to vector<8x14xf32>
    %319 = vector.shape_cast %318 : vector<8x14xf32> to vector<8x14x1xf32>
    %320 = tpu.reciprocal %319 {approx = true} : vector<8x14x1xf32> -> vector<8x14x1xf32>
    %321 = vector.broadcast %320 : vector<8x14x1xf32> to vector<8x14x14xf32>
    %322 = arith.mulf %317, %321 : vector<8x14x14xf32>
    %cst_159 = arith.constant dense<0.000000e+00> : vector<14x14xf32>
    %323 = vector.multi_reduction <add>, %322, %cst_159 [0] : vector<8x14x14xf32> to vector<14x14xf32>
    %324 = arith.addf %213, %323 : vector<14x14xf32>
    "tpu.trace_start"() <{level = 10 : i32, message = "hnm,hmf->hnf"}> : () -> ()
    %cst_160 = arith.constant dense<0.000000e+00> : vector<8x14x64xf32>
    %325 = tpu.matmul %322, %309, %cst_160 {dimension_numbers = #tpu.dot_dimension_numbers<[2], [1], [1], [2], [0, 0, 0, 1, 1, 2], [0], [0]>} : vector<8x14x14xf32>, vector<8x14x64xf32>, vector<8x14x64xf32> -> vector<8x14x64xf32>
    "tpu.trace_stop"() : () -> ()
    %cst_161 = arith.constant dense<0.000000e+00> : vector<14x64xf32>
    %326 = vector.multi_reduction <add>, %325, %cst_161 [0] : vector<8x14x64xf32> to vector<14x64xf32>
    %c14_162 = arith.constant 14 : index
    %c0_163 = arith.constant 0 : index
    %327 = vector.load %arg14[%c14_162, %c0_163] : memref<28x64xf32, #tpu.memory_space<vmem>>, vector<14x64xf32>
    tpu.vector_store %arg14[%c14_162, %c0_163], %326 {strides = array<i32>} : memref<28x64xf32, #tpu.memory_space<vmem>>, vector<14x64xf32>,
    %c0_164 = arith.constant 0 : index
    %c0_165 = arith.constant 0 : index
    %328 = vector.load %arg14[%c0_164, %c0_165] : memref<28x64xf32, #tpu.memory_space<vmem>>, vector<28x64xf32>
    %c2_166 = arith.constant 2 : index
    %c0_167 = arith.constant 0 : index
    %c0_168 = arith.constant 0 : index
    %329 = vector.load %arg7[%c2_166, %c0_167, %c0_168] : memref<3x64x64xf32, #tpu.memory_space<vmem>>, vector<1x64x64xf32>
    %330 = vector.shape_cast %329 : vector<1x64x64xf32> to vector<64x64xf32>
    %cst_169 = arith.constant dense<0.000000e+00> : vector<28x64xf32>
    %331 = tpu.matmul %328, %330, %cst_169 {dimension_numbers = #tpu.dot_dimension_numbers<[1], [0], [0], [1], [0, 0, 1, 1], [], []>} : vector<28x64xf32>, vector<64x64xf32>, vector<28x64xf32> -> vector<28x64xf32>
    %332 = vector.extract_strided_slice %257 {offsets = [0, 0], sizes = [1, 64], strides = [1, 1]} : vector<3x64xf32> to vector<1x64xf32>
    %333 = vector.broadcast %332 : vector<1x64xf32> to vector<28x64xf32>
    %334 = arith.addf %331, %333 : vector<28x64xf32>
    %335 = vector.extract_strided_slice %257 {offsets = [1, 0], sizes = [1, 64], strides = [1, 1]} : vector<3x64xf32> to vector<1x64xf32>
    %336 = vector.extract_strided_slice %257 {offsets = [2, 0], sizes = [1, 64], strides = [1, 1]} : vector<3x64xf32> to vector<1x64xf32>
    %cst_170 = arith.constant dense<0.000000e+00> : vector<28xf32>
    %337 = vector.multi_reduction <add>, %334, %cst_170 [1] : vector<28x64xf32> to vector<28xf32>
    %338 = vector.shape_cast %337 : vector<28xf32> to vector<28x1xf32>
    %cst_171 = arith.constant 6.400000e+01 : f32
    %339 = vector.broadcast %cst_171 : f32 to vector<28x1xf32>
    %340 = arith.divf %338, %339 : vector<28x1xf32>
    %341 = vector.broadcast %340 : vector<28x1xf32> to vector<28x64xf32>
    %342 = arith.subf %334, %341 : vector<28x64xf32>
    %343 = arith.mulf %342, %342 : vector<28x64xf32>
    %cst_172 = arith.constant dense<0.000000e+00> : vector<28xf32>
    %344 = vector.multi_reduction <add>, %343, %cst_172 [1] : vector<28x64xf32> to vector<28xf32>
    %345 = vector.shape_cast %344 : vector<28xf32> to vector<28x1xf32>
    %cst_173 = arith.constant 6.400000e+01 : f32
    %346 = vector.broadcast %cst_173 : f32 to vector<28x1xf32>
    %347 = arith.divf %345, %346 : vector<28x1xf32>
    %348 = vector.broadcast %340 : vector<28x1xf32> to vector<28x64xf32>
    %349 = arith.subf %334, %348 : vector<28x64xf32>
    %cst_174 = arith.constant 9.99999974E-6 : f32
    %350 = vector.broadcast %cst_174 : f32 to vector<28x1xf32>
    %351 = arith.addf %347, %350 : vector<28x1xf32>
    %352 = math.rsqrt %351 : vector<28x1xf32>
    %353 = vector.broadcast %352 : vector<28x1xf32> to vector<28x64xf32>
    %354 = arith.mulf %349, %353 : vector<28x64xf32>
    %355 = vector.broadcast %335 : vector<1x64xf32> to vector<28x64xf32>
    %356 = arith.mulf %354, %355 : vector<28x64xf32>
    %357 = vector.broadcast %336 : vector<1x64xf32> to vector<28x64xf32>
    %358 = arith.addf %356, %357 : vector<28x64xf32>
    %cst_175 = arith.constant 0.000000e+00 : f32
    %359 = vector.broadcast %cst_175 : f32 to vector<28x64xf32>
    %360 = arith.cmpf ogt, %358, %359 : vector<28x64xf32>
    %cst_176 = arith.constant 0.000000e+00 : f32
    %361 = vector.broadcast %cst_176 : f32 to vector<28x64xf32>
    %362 = arith.minimumf %358, %361 : vector<28x64xf32>
    %363 = math.exp %362 : vector<28x64xf32>
    %cst_177 = arith.constant 1.000000e+00 : f32
    %364 = vector.broadcast %cst_177 : f32 to vector<28x64xf32>
    %365 = arith.subf %363, %364 : vector<28x64xf32>
    %366 = arith.select %360, %358, %365 : vector<28x64xi1>, vector<28x64xf32>
    %c0_178 = arith.constant 0 : index
    %c0_179 = arith.constant 0 : index
    %367 = vector.load %arg10[%c0_178, %c0_179] : memref<3x128xf32, #tpu.memory_space<vmem>>, vector<3x128xf32>
    %c0_180 = arith.constant 0 : index
    %c0_181 = arith.constant 0 : index
    %368 = vector.load %arg9[%c0_180, %c0_181] : memref<64x128xf32, #tpu.memory_space<vmem>>, vector<64x128xf32>
    %cst_182 = arith.constant dense<0.000000e+00> : vector<28x128xf32>
    %369 = tpu.matmul %366, %368, %cst_182 {dimension_numbers = #tpu.dot_dimension_numbers<[1], [0], [0], [1], [0, 0, 1, 1], [], []>} : vector<28x64xf32>, vector<64x128xf32>, vector<28x128xf32> -> vector<28x128xf32>
    %370 = vector.extract_strided_slice %367 {offsets = [0, 0], sizes = [1, 128], strides = [1, 1]} : vector<3x128xf32> to vector<1x128xf32>
    %371 = vector.broadcast %370 : vector<1x128xf32> to vector<28x128xf32>
    %372 = arith.addf %369, %371 : vector<28x128xf32>
    %373 = vector.extract_strided_slice %367 {offsets = [1, 0], sizes = [1, 128], strides = [1, 1]} : vector<3x128xf32> to vector<1x128xf32>
    %374 = vector.extract_strided_slice %367 {offsets = [2, 0], sizes = [1, 128], strides = [1, 1]} : vector<3x128xf32> to vector<1x128xf32>
    %cst_183 = arith.constant dense<0.000000e+00> : vector<28xf32>
    %375 = vector.multi_reduction <add>, %372, %cst_183 [1] : vector<28x128xf32> to vector<28xf32>
    %376 = vector.shape_cast %375 : vector<28xf32> to vector<28x1xf32>
    %cst_184 = arith.constant 1.280000e+02 : f32
    %377 = vector.broadcast %cst_184 : f32 to vector<28x1xf32>
    %378 = arith.divf %376, %377 : vector<28x1xf32>
    %379 = vector.broadcast %378 : vector<28x1xf32> to vector<28x128xf32>
    %380 = arith.subf %372, %379 : vector<28x128xf32>
    %381 = arith.mulf %380, %380 : vector<28x128xf32>
    %cst_185 = arith.constant dense<0.000000e+00> : vector<28xf32>
    %382 = vector.multi_reduction <add>, %381, %cst_185 [1] : vector<28x128xf32> to vector<28xf32>
    %383 = vector.shape_cast %382 : vector<28xf32> to vector<28x1xf32>
    %cst_186 = arith.constant 1.280000e+02 : f32
    %384 = vector.broadcast %cst_186 : f32 to vector<28x1xf32>
    %385 = arith.divf %383, %384 : vector<28x1xf32>
    %386 = vector.broadcast %378 : vector<28x1xf32> to vector<28x128xf32>
    %387 = arith.subf %372, %386 : vector<28x128xf32>
    %cst_187 = arith.constant 9.99999974E-6 : f32
    %388 = vector.broadcast %cst_187 : f32 to vector<28x1xf32>
    %389 = arith.addf %385, %388 : vector<28x1xf32>
    %390 = math.rsqrt %389 : vector<28x1xf32>
    %391 = vector.broadcast %390 : vector<28x1xf32> to vector<28x128xf32>
    %392 = arith.mulf %387, %391 : vector<28x128xf32>
    %393 = vector.broadcast %373 : vector<1x128xf32> to vector<28x128xf32>
    %394 = arith.mulf %392, %393 : vector<28x128xf32>
    %395 = vector.broadcast %374 : vector<1x128xf32> to vector<28x128xf32>
    %396 = arith.addf %394, %395 : vector<28x128xf32>
    %c0_188 = arith.constant 0 : index
    %c0_189 = arith.constant 0 : index
    %397 = vector.load %arg11[%c0_188, %c0_189] : memref<28x128xf32, #tpu.memory_space<vmem>>, vector<28x128xf32>
    tpu.vector_store %arg11[%c0_188, %c0_189], %396 {strides = array<i32>} : memref<28x128xf32, #tpu.memory_space<vmem>>, vector<28x128xf32>,
    %cst_190 = arith.constant 0.0416666679 : f32
    %398 = vector.broadcast %cst_190 : f32 to vector<14x14xf32>
    %399 = arith.mulf %293, %398 : vector<14x14xf32>
    %c0_191 = arith.constant 0 : index
    %c0_192 = arith.constant 0 : index
    %c0_193 = arith.constant 0 : index
    %400 = vector.load %arg12[%c0_191, %c0_192, %c0_193] : memref<2x14x14xf32, #tpu.memory_space<vmem>>, vector<1x14x14xf32>
    %401 = vector.shape_cast %400 : vector<1x14x14xf32> to vector<14x14xf32>
    %402 = vector.shape_cast %399 : vector<14x14xf32> to vector<1x14x14xf32>
    tpu.vector_store %arg12[%c0_191, %c0_192, %c0_193], %402 {strides = array<i32>} : memref<2x14x14xf32, #tpu.memory_space<vmem>>, vector<1x14x14xf32>,
    %cst_194 = arith.constant 0.0416666679 : f32
    %403 = vector.broadcast %cst_194 : f32 to vector<14x14xf32>
    %404 = arith.mulf %324, %403 : vector<14x14xf32>
    %c1_195 = arith.constant 1 : index
    %c0_196 = arith.constant 0 : index
    %c0_197 = arith.constant 0 : index
    %405 = vector.load %arg12[%c1_195, %c0_196, %c0_197] : memref<2x14x14xf32, #tpu.memory_space<vmem>>, vector<1x14x14xf32>
    %406 = vector.shape_cast %405 : vector<1x14x14xf32> to vector<14x14xf32>
    %407 = vector.shape_cast %404 : vector<14x14xf32> to vector<1x14x14xf32>
    tpu.vector_store %arg12[%c1_195, %c0_196, %c0_197], %407 {strides = array<i32>} : memref<2x14x14xf32, #tpu.memory_space<vmem>>, vector<1x14x14xf32>,
    return
  }
  func.func @transform_0(%arg0: i32) -> (i32, i32) {
    %c0_i32 = arith.constant 0 : i32
    %c0_i32_0 = arith.constant 0 : i32
    %c0_i32_1 = arith.constant 0 : i32
    return %c0_i32, %c0_i32_0 : i32, i32
  }
  func.func @transform_1(%arg0: i32) -> (i32, i32) {
    %c0_i32 = arith.constant 0 : i32
    %c0_i32_0 = arith.constant 0 : i32
    %c0_i32_1 = arith.constant 0 : i32
    return %c0_i32, %c0_i32_0 : i32, i32
  }
  func.func @transform_2(%arg0: i32) -> (i32, i32) {
    %c0_i32 = arith.constant 0 : i32
    %c0_i32_0 = arith.constant 0 : i32
    %c0_i32_1 = arith.constant 0 : i32
    return %c0_i32, %c0_i32_0 : i32, i32
  }
  func.func @transform_3(%arg0: i32) -> (i32, i32, i32) {
    %c0_i32 = arith.constant 0 : i32
    %c0_i32_0 = arith.constant 0 : i32
    %c0_i32_1 = arith.constant 0 : i32
    %c0_i32_2 = arith.constant 0 : i32
    return %c0_i32, %c0_i32_0, %c0_i32_1 : i32, i32, i32
  }
  func.func @transform_4(%arg0: i32) -> (i32, i32, i32) {
    %c0_i32 = arith.constant 0 : i32
    %c0_i32_0 = arith.constant 0 : i32
    %c0_i32_1 = arith.constant 0 : i32
    %c0_i32_2 = arith.constant 0 : i32
    return %c0_i32, %c0_i32_0, %c0_i32_1 : i32, i32, i32
  }
  func.func @transform_5(%arg0: i32) -> (i32, i32, i32) {
    %c0_i32 = arith.constant 0 : i32
    %c0_i32_0 = arith.constant 0 : i32
    %c0_i32_1 = arith.constant 0 : i32
    %c0_i32_2 = arith.constant 0 : i32
    return %c0_i32, %c0_i32_0, %c0_i32_1 : i32, i32, i32
  }
  func.func @transform_6(%arg0: i32) -> (i32, i32, i32) {
    %c0_i32 = arith.constant 0 : i32
    %c0_i32_0 = arith.constant 0 : i32
    %c0_i32_1 = arith.constant 0 : i32
    %c0_i32_2 = arith.constant 0 : i32
    return %c0_i32, %c0_i32_0, %c0_i32_1 : i32, i32, i32
  }
  func.func @transform_7(%arg0: i32) -> (i32, i32, i32) {
    %c0_i32 = arith.constant 0 : i32
    %c0_i32_0 = arith.constant 0 : i32
    %c0_i32_1 = arith.constant 0 : i32
    %c0_i32_2 = arith.constant 0 : i32
    return %c0_i32, %c0_i32_0, %c0_i32_1 : i32, i32, i32
  }
  func.func @transform_8(%arg0: i32) -> (i32, i32) {
    %c0_i32 = arith.constant 0 : i32
    %c0_i32_0 = arith.constant 0 : i32
    %c0_i32_1 = arith.constant 0 : i32
    return %c0_i32, %c0_i32_0 : i32, i32
  }
  func.func @transform_9(%arg0: i32) -> (i32, i32) {
    %c0_i32 = arith.constant 0 : i32
    %c0_i32_0 = arith.constant 0 : i32
    %c0_i32_1 = arith.constant 0 : i32
    return %c0_i32, %c0_i32_0 : i32, i32
  }
  func.func @transform_10(%arg0: i32) -> (i32, i32) {
    %c0_i32 = arith.constant 0 : i32
    %c0_i32_0 = arith.constant 0 : i32
    %c0_i32_1 = arith.constant 0 : i32
    return %c0_i32, %c0_i32_0 : i32, i32
  }
  func.func @transform_11(%arg0: i32) -> (i32, i32, i32) {
    %c0_i32 = arith.constant 0 : i32
    %c0_i32_0 = arith.constant 0 : i32
    %c0_i32_1 = arith.constant 0 : i32
    %c0_i32_2 = arith.constant 0 : i32
    return %c0_i32, %c0_i32_0, %c0_i32_1 : i32, i32, i32
  }
}

</mosaic_0001>

<llo_original>
// kernel: tpu_custom_call.1
$region0: #{tpu_custom_call.1}
  #allocation0 [shape = 'u32[]', space=smem, size = 0x4, offset = 0x4, fixed_abs, tag = 'smem constant byte address 0x4 - core index']
  #allocation1 [shape = 'u32[72,128]{1,0:T(1,128)}', space=vmem, size = 0x9000, scoped, tag = 'internal scratch']
  #allocation2 [shape = 'f32[28,192]{1,0:T(8,128)}', space=vmem, size = 0x8000, scoped, tag = 'scratch operand']
  #allocation3 [shape = 'f32[28,64]{1,0:T(8,128)}', space=vmem, size = 0x4000, scoped, tag = 'scratch operand']
  %s0 = inlined_call_operand.hbm [shape: f32[28,128], index: 0, kind: input, shape index: {}]
  %s1 = inlined_call_operand.vmem [shape: f32[128,64], index: 1, kind: input, shape index: {}]
  %s2 = inlined_call_operand.vmem [shape: f32[3,64], index: 2, kind: input, shape index: {}]
  %s3 = inlined_call_operand.hbm [shape: f32[8,1,64], index: 3, kind: input, shape index: {}]
  %s4 = inlined_call_operand.hbm [shape: f32[3,64,192], index: 4, kind: input, shape index: {}]
  %s5 = inlined_call_operand.hbm [shape: f32[3,1,192], index: 5, kind: input, shape index: {}]
  %s6 = inlined_call_operand.vmem [shape: f32[3,64,64], index: 6, kind: input, shape index: {}]
  %s7 = inlined_call_operand.hbm [shape: f32[3,3,64], index: 7, kind: input, shape index: {}]
  %s8 = inlined_call_operand.hbm [shape: f32[64,128], index: 8, kind: input, shape index: {}]
  %s9 = inlined_call_operand.vmem [shape: f32[3,128], index: 9, kind: input, shape index: {}]
  %s10 = inlined_call_operand.hbm [shape: f32[28,128], index: 10, kind: output, shape index: {0}]
  %s11 = inlined_call_operand.vmem [shape: f32[2,14,14], index: 11, kind: output, shape index: {1}]
  %12 = xla_tuple %s10, %s11
  %s13 = sld [smem:[#allocation0]]
  $region82: #{tpu_custom_call.1} parent=0
    _
  %s15 = ssub.s32 1, %s13
  %s16 = scalar_select 0, %s15, %s13
  $region1: #{tpu_custom_call.1} parent=0
    #allocation4 [shape = 'u8[16384]{0}', space=vmem, size = 0x4000, scoped, tag = 'input window, operand 0, single buffered']
    #allocation5 [shape = 's32[1]{0}', space=sflag, size = 0x4, scoped, tag = 'scoped memory for tpu_custom_call.1']
    #allocation6 [shape = 's32[1]{0}', space=sflag, size = 0x4, scoped, tag = 'scoped memory for tpu_custom_call.1']
    #allocation7 [shape = 'u8[4096]{0}', space=vmem, size = 0x1000, scoped, tag = 'input window, operand 3, single buffered']
    #allocation8 [shape = 's32[1]{0}', space=sflag, size = 0x4, scoped, tag = 'scoped memory for tpu_custom_call.1']
    #allocation9 [shape = 'u8[196608]{0}', space=vmem, size = 0x30000, scoped, tag = 'input window, operand 4, single buffered']
    #allocation10 [shape = 'u8[3072]{0}', space=vmem, size = 0xc00, scoped, tag = 'input window, operand 5, single buffered']
    #allocation11 [shape = 's32[1]{0}', space=sflag, size = 0x4, scoped, tag = 'scoped memory for tpu_custom_call.1']
    #allocation12 [shape = 'u8[6144]{0}', space=vmem, size = 0x1800, scoped, tag = 'input window, operand 7, single buffered']
    #allocation13 [shape = 'u8[32768]{0}', space=vmem, size = 0x8000, scoped, tag = 'input window, operand 8, single buffered']
    #allocation14 [shape = 's32[1]{0}', space=sflag, size = 0x4, scoped, tag = 'scoped memory for tpu_custom_call.1']
    #allocation15 [shape = 'u8[16384]{0}', space=vmem, size = 0x4000, scoped, tag = 'output window, operand 0, single buffered']
    %17 = vsyncpa [#allocation5], 0
    %18 = vsyncpa [#allocation8], 0
    %19 = vsyncpa [#allocation11], 0
    %20 = vsyncpa [#allocation14], 0
    %21 = vsyncpa [#allocation6], 0
    // Predicated region
    $region2: #{tpu_custom_call.1} parent=1 // pred_check
      _
    $region3: #{tpu_custom_call.1} parent=1 // pred_check_branch
      %23 = sbr.rel (0) target = $region5
    $region4: #{tpu_custom_call.1} parent=1 // pred_region
      %25 = vsyncadd [#allocation5], 0
      %s26 = sshll.u32 %s0, 4
      %s27 = int_to_ptr.hbm [resolvable:$true] %s26
      %s28 = sshll.u32 [#allocation4], 4
      %s29 = int_to_ptr.vmem [resolvable:$true] %s28
      %34 = dma.hbm_to_vmem [thread:$0]  %s27, 512, %s29, [#allocation5], 128, 128, 8
    $region5: #{tpu_custom_call.1} parent=1 // pred_fallthru
      _
    // Predicated region
    $region6: #{tpu_custom_call.1} parent=1 // pred_check
      _
    $region7: #{tpu_custom_call.1} parent=1 // pred_check_branch
      %36 = sbr.rel (0) target = $region9
    $region8: #{tpu_custom_call.1} parent=1 // pred_region
      _
    $region9: #{tpu_custom_call.1} parent=1 // pred_fallthru
      _
    // Predicated region
    $region10: #{tpu_custom_call.1} parent=1 // pred_check
      _
    $region11: #{tpu_custom_call.1} parent=1 // pred_check_branch
      %38 = sbr.rel (0) target = $region13
    $region12: #{tpu_custom_call.1} parent=1 // pred_region
      _
    $region13: #{tpu_custom_call.1} parent=1 // pred_fallthru
      _
    // Predicated region
    $region14: #{tpu_custom_call.1} parent=1 // pred_check
      _
    $region15: #{tpu_custom_call.1} parent=1 // pred_check_branch
      %40 = sbr.rel (0) target = $region17
    $region16: #{tpu_custom_call.1} parent=1 // pred_region
      %42 = vsyncadd [#allocation8], 0
      %s43 = sshll.u32 %s3, 4
      %s44 = int_to_ptr.hbm [resolvable:$true] %s43
      %s45 = sshll.u32 [#allocation7], 4
      %s46 = int_to_ptr.vmem [resolvable:$true] %s45
      %51 = dma.hbm_to_vmem [thread:$0]  %s44, 128, %s46, [#allocation8], 16, 16, 1
    $region17: #{tpu_custom_call.1} parent=1 // pred_fallthru
      _
    // Predicated region
    $region18: #{tpu_custom_call.1} parent=1 // pred_check
      _
    $region19: #{tpu_custom_call.1} parent=1 // pred_check_branch
      %53 = sbr.rel (0) target = $region21
    $region20: #{tpu_custom_call.1} parent=1 // pred_region
      %55 = vsyncadd [#allocation8], 0
      %s56 = sshll.u32 %s4, 4
      %s57 = int_to_ptr.hbm [resolvable:$true] %s56
      %s58 = sshll.u32 [#allocation9], 4
      %s59 = int_to_ptr.vmem [resolvable:$true] %s58
      %64 = dma.hbm_to_vmem [thread:$0]  %s57, 6144, %s59, [#allocation8], 256, 256, 16
    $region21: #{tpu_custom_call.1} parent=1 // pred_fallthru
      _
    // Predicated region
    $region22: #{tpu_custom_call.1} parent=1 // pred_check
      _
    $region23: #{tpu_custom_call.1} parent=1 // pred_check_branch
      %66 = sbr.rel (0) target = $region25
    $region24: #{tpu_custom_call.1} parent=1 // pred_region
      %68 = vsyncadd [#allocation11], 0
      %s69 = sshll.u32 %s5, 4
      %s70 = int_to_ptr.hbm [resolvable:$true] %s69
      %s71 = sshll.u32 [#allocation10], 4
      %s72 = int_to_ptr.vmem [resolvable:$true] %s71
      %77 = dma.hbm_to_vmem [thread:$0]  %s70, 96, %s72, [#allocation11], 32, 32, 2
    $region25: #{tpu_custom_call.1} parent=1 // pred_fallthru
      _
    // Predicated region
    $region26: #{tpu_custom_call.1} parent=1 // pred_check
      _
    $region27: #{tpu_custom_call.1} parent=1 // pred_check_branch
      %79 = sbr.rel (0) target = $region29
    $region28: #{tpu_custom_call.1} parent=1 // pred_region
      _
    $region29: #{tpu_custom_call.1} parent=1 // pred_fallthru
      _
    // Predicated region
    $region30: #{tpu_custom_call.1} parent=1 // pred_check
      _
    $region31: #{tpu_custom_call.1} parent=1 // pred_check_branch
      %81 = sbr.rel (0) target = $region33
    $region32: #{tpu_custom_call.1} parent=1 // pred_region
      %83 = vsyncadd [#allocation11], 0
      %s84 = sshll.u32 %s7, 4
      %s85 = int_to_ptr.hbm [resolvable:$true] %s84
      %s86 = sshll.u32 [#allocation12], 4
      %s87 = int_to_ptr.vmem [resolvable:$true] %s86
      %92 = dma.hbm_to_vmem [thread:$0]  %s85, 192, %s87, [#allocation11], 64, 64, 4
    $region33: #{tpu_custom_call.1} parent=1 // pred_fallthru
      _
    // Predicated region
    $region34: #{tpu_custom_call.1} parent=1 // pred_check
      _
    $region35: #{tpu_custom_call.1} parent=1 // pred_check_branch
      %94 = sbr.rel (0) target = $region37
    $region36: #{tpu_custom_call.1} parent=1 // pred_region
      %96 = vsyncadd [#allocation14], 0
      %s97 = sshll.u32 %s8, 4
      %s98 = int_to_ptr.hbm [resolvable:$true] %s97
      %s99 = sshll.u32 [#allocation13], 4
      %s100 = int_to_ptr.vmem [resolvable:$true] %s99
      %105 = dma.hbm_to_vmem [thread:$0]  %s98, 1024, %s100, [#allocation14], 128, 128, 8
    $region37: #{tpu_custom_call.1} parent=1 // pred_fallthru
      _
    // Predicated region
    $region38: #{tpu_custom_call.1} parent=1 // pred_check
      _
    $region39: #{tpu_custom_call.1} parent=1 // pred_check_branch
      %107 = sbr.rel (0) target = $region41
    $region40: #{tpu_custom_call.1} parent=1 // pred_region
      _
    $region41: #{tpu_custom_call.1} parent=1 // pred_fallthru
      _
    // Predicated region
    $region42: #{tpu_custom_call.1} parent=1 // pred_check
      _
    $region43: #{tpu_custom_call.1} parent=1 // pred_check_branch
      %109 = sbr.rel (0) target = $region45
    $region44: #{tpu_custom_call.1} parent=1 // pred_region
      %111 = dma.done [#allocation5], 512
    $region45: #{tpu_custom_call.1} parent=1 // pred_fallthru
      _
    // Predicated region
    $region46: #{tpu_custom_call.1} parent=1 // pred_check
      _
    $region47: #{tpu_custom_call.1} parent=1 // pred_check_branch
      %113 = sbr.rel (0) target = $region49
    $region48: #{tpu_custom_call.1} parent=1 // pred_region
      %115 = dma.done [#allocation8], 128
    $region49: #{tpu_custom_call.1} parent=1 // pred_fallthru
      _
    // Predicated region
    $region50: #{tpu_custom_call.1} parent=1 // pred_check
      _
    $region51: #{tpu_custom_call.1} parent=1 // pred_check_branch
      %117 = sbr.rel (0) target = $region53
    $region52: #{tpu_custom_call.1} parent=1 // pred_region
      %119 = dma.done [#allocation8], 6144
    $region53: #{tpu_custom_call.1} parent=1 // pred_fallthru
      _
    // Predicated region
    $region54: #{tpu_custom_call.1} parent=1 // pred_check
      _
    $region55: #{tpu_custom_call.1} parent=1 // pred_check_branch
      %121 = sbr.rel (0) target = $region57
    $region56: #{tpu_custom_call.1} parent=1 // pred_region
      %123 = dma.done [#allocation11], 96
    $region57: #{tpu_custom_call.1} parent=1 // pred_fallthru
      _
    // Predicated region
    $region58: #{tpu_custom_call.1} parent=1 // pred_check
      _
    $region59: #{tpu_custom_call.1} parent=1 // pred_check_branch
      %125 = sbr.rel (0) target = $region61
    $region60: #{tpu_custom_call.1} parent=1 // pred_region
      %127 = dma.done [#allocation11], 192
    $region61: #{tpu_custom_call.1} parent=1 // pred_fallthru
      _
    // Predicated region
    $region62: #{tpu_custom_call.1} parent=1 // pred_check
      _
    $region63: #{tpu_custom_call.1} parent=1 // pred_check_branch
      %129 = sbr.rel (0) target = $region65
    $region64: #{tpu_custom_call.1} parent=1 // pred_region
      %131 = dma.done [#allocation14], 1024
    $region65: #{tpu_custom_call.1} parent=1 // pred_fallthru
      _
    %v132 = vld [vmem:[#allocation7] sm:$0x1]
    %v133 = vld [vmem:[#allocation7 + $0x1] sm:$0x1]
    %v134 = vld [vmem:[#allocation7 + $0x2] sm:$0x1]
    %v135 = vld [vmem:[#allocation7 + $0x3] sm:$0x1]
    %v136 = vld [vmem:[#allocation7 + $0x4] sm:$0x1]
    %v137 = vld [vmem:[#allocation7 + $0x5] sm:$0x1]
    %v138 = vld [vmem:[#allocation7 + $0x6] sm:$0x1]
    %v139 = vld [vmem:[#allocation7 + $0x7] sm:$0x1]
    %v140 = vld [vmem:[%s2] sm:$0x7]
    %v141 = vld [vmem:[#allocation4] sm:$0xff]
    %v142 = vld [vmem:[#allocation4 + $0x8] sm:$0xff]
    %v143 = vld [vmem:[#allocation4 + $0x10] sm:$0xff]
    %v144 = vld [vmem:[#allocation4 + $0x18] sm:$0xf]
    %v145 = vld [vmem:[%s1] sm:$0xff]
    %v146 = vld [vmem:[%s1 + $0x8] sm:$0xff]
    %v147 = vld [vmem:[%s1 + $0x10] sm:$0xff]
    %v148 = vld [vmem:[%s1 + $0x18] sm:$0xff]
    %v149 = vld [vmem:[%s1 + $0x20] sm:$0xff]
    %v150 = vld [vmem:[%s1 + $0x28] sm:$0xff]
    %v151 = vld [vmem:[%s1 + $0x30] sm:$0xff]
    %v152 = vld [vmem:[%s1 + $0x38] sm:$0xff]
    %v153 = vld [vmem:[%s1 + $0x40] sm:$0xff]
    %v154 = vld [vmem:[%s1 + $0x48] sm:$0xff]
    %v155 = vld [vmem:[%s1 + $0x50] sm:$0xff]
    %v156 = vld [vmem:[%s1 + $0x58] sm:$0xff]
    %v157 = vld [vmem:[%s1 + $0x60] sm:$0xff]
    %v158 = vld [vmem:[%s1 + $0x68] sm:$0xff]
    %v159 = vld [vmem:[%s1 + $0x70] sm:$0xff]
    %v160 = vld [vmem:[%s1 + $0x78] sm:$0xff]
    %v161 = vperm.slane %v140, 0
    %162 = vmatpush.msra.mxu0 %v160
    %163 = vmatpush.msra.mxu0 %v159
    %164 = vmatpush.msra.mxu0 %v158
    %165 = vmatpush.msra.mxu0 %v157
    %166 = vmatpush.msra.mxu0 %v156
    %167 = vmatpush.msra.mxu0 %v155
    %168 = vmatpush.msra.mxu0 %v154
    %169 = vmatpush.msra.mxu0 %v153
    %170 = vmatpush.msra.mxu0 %v152
    %171 = vmatpush.msra.mxu0 %v151
    %172 = vmatpush.msra.mxu0 %v150
    %173 = vmatpush.msra.mxu0 %v149
    %174 = vmatpush.msra.mxu0 %v148
    %175 = vmatpush.msra.mxu0 %v147
    %176 = vmatpush.msra.mxu0 %v146
    %177 = vmatpush.msra.mxu0 %v145
    %178 = vmatmul.f32.gmra.mxu0 %v141
    %v179 = vpop.f32.mrf.mxu0
    %v180 = vadd.f32 %v161, %v179
    %181 = vmatmul.f32.gmra.mxu0 %v142
    %v182 = vpop.f32.mrf.mxu0
    %v183 = vadd.f32 %v161, %v182
    %184 = vmatmul.f32.gmra.mxu0 %v143
    %v185 = vpop.f32.mrf.mxu0
    %v186 = vadd.f32 %v161, %v185
    %187 = vmatmul.f32.gmra.mxu0 %v144
    %v188 = vpop.f32.mrf.mxu0
    %v189 = vadd.f32 %v161, %v188
    %190 = vdwg.mxu0
    %vm191 = vcmask 523264
    %v192 = vsel %vm191, %v180, 0.0
    %193 = vadd.xlane.f32.xlu0 %v192
    %v194 = vpop.xlane.xlu0 %193
    %v195 = vsel %vm191, %v183, 0.0
    %196 = vadd.xlane.f32.xlu0 %v195
    %v197 = vpop.xlane.xlu0 %196
    %v198 = vsel %vm191, %v186, 0.0
    %199 = vadd.xlane.f32.xlu0 %v198
    %v200 = vpop.xlane.xlu0 %199
    %vm201 = vcmask 519168
    %v202 = vsel %vm201, %v189, 0.0
    %203 = vadd.xlane.f32.xlu0 %v202
    %v204 = vpop.xlane.xlu0 %203
    %v205 = vrcp.pop 64.0
    %v206 = vmul.f32 64.0, %v205
    %v207 = vsub.f32 1.0, %v206
    %v208 = vmul.f32 %v205, %v207
    %v209 = vadd.f32 %v205, %v208
    %vm210 = vweird.f32 %v205
    %v211 = vsel %vm210, %v205, %v209
    %v212 = vmul.f32 %v194, %v211
    %v213 = vmul.f32 %v197, %v211
    %v214 = vmul.f32 %v200, %v211
    %v215 = vmul.f32 %v204, %v211
    %v216 = vsub.f32 %v180, %v212
    %v217 = vsub.f32 %v183, %v213
    %v218 = vsub.f32 %v186, %v214
    %v219 = vsub.f32 %v189, %v215
    %v220 = vmul.f32 %v216, %v216
    %v221 = vmul.f32 %v217, %v217
    %v222 = vmul.f32 %v218, %v218
    %v223 = vmul.f32 %v219, %v219
    %v224 = vsel %vm191, %v220, 0.0
    %225 = vadd.xlane.f32.xlu0 %v224
    %v226 = vpop.xlane.xlu0 %225
    %v227 = vsel %vm191, %v221, 0.0
    %228 = vadd.xlane.f32.xlu0 %v227
    %v229 = vpop.xlane.xlu0 %228
    %v230 = vsel %vm191, %v222, 0.0
    %231 = vadd.xlane.f32.xlu0 %v230
    %v232 = vpop.xlane.xlu0 %231
    %v233 = vsel %vm201, %v223, 0.0
    %234 = vadd.xlane.f32.xlu0 %v233
    %v235 = vpop.xlane.xlu0 %234
    %v236 = vmul.f32 %v226, %v211
    %v237 = vmul.f32 %v229, %v211
    %v238 = vmul.f32 %v232, %v211
    %v239 = vmul.f32 %v235, %v211
    %v240 = vadd.f32 %v236, 1e-05
    %v241 = vadd.f32 %v237, 1e-05
    %v242 = vadd.f32 %v238, 1e-05
    %v243 = vadd.f32 %v239, 1e-05
    %v244 = vrsqrt.pop %v240
    %v245 = vmul.f32 %v244, %v240
    %v246 = vmul.f32 %v245, %v244
    %v247 = vmul.f32 0.5, %v246
    %v248 = vsub.f32 1.5, %v247
    %v249 = vmul.f32 %v244, %v248
    %vm250 = vweird.f32 %v240
    %vm251 = vweird.f32 %v244
    %vm252 = vmor %vm250, %vm251
    %v253 = vsel %vm252, %v244, %v249
    %v254 = vrsqrt.pop %v241
    %v255 = vmul.f32 %v254, %v241
    %v256 = vmul.f32 %v255, %v254
    %v257 = vmul.f32 0.5, %v256
    %v258 = vsub.f32 1.5, %v257
    %v259 = vmul.f32 %v254, %v258
    %vm260 = vweird.f32 %v241
    %vm261 = vweird.f32 %v254
    %vm262 = vmor %vm260, %vm261
    %v263 = vsel %vm262, %v254, %v259
    %v264 = vrsqrt.pop %v242
    %v265 = vmul.f32 %v264, %v242
    %v266 = vmul.f32 %v265, %v264
    %v267 = vmul.f32 0.5, %v266
    %v268 = vsub.f32 1.5, %v267
    %v269 = vmul.f32 %v264, %v268
    %vm270 = vweird.f32 %v242
    %vm271 = vweird.f32 %v264
    %vm272 = vmor %vm270, %vm271
    %v273 = vsel %vm272, %v264, %v269
    %v274 = vrsqrt.pop %v243
    %v275 = vmul.f32 %v274, %v243
    %v276 = vmul.f32 %v275, %v274
    %v277 = vmul.f32 0.5, %v276
    %v278 = vsub.f32 1.5, %v277
    %v279 = vmul.f32 %v274, %v278
    %vm280 = vweird.f32 %v243
    %vm281 = vweird.f32 %v274
    %vm282 = vmor %vm280, %vm281
    %v283 = vsel %vm282, %v274, %v279
    %v284 = vmul.f32 %v216, %v253
    %v285 = vmul.f32 %v217, %v263
    %v286 = vmul.f32 %v218, %v273
    %v287 = vmul.f32 %v219, %v283
    %v288 = vperm.slane %v140, 1
    %v289 = vmul.f32 %v284, %v288
    %v290 = vmul.f32 %v285, %v288
    %v291 = vmul.f32 %v286, %v288
    %v292 = vmul.f32 %v287, %v288
    %v293 = vperm.slane %v140, 2
    %v294 = vadd.f32 %v289, %v293
    %v295 = vadd.f32 %v290, %v293
    %v296 = vadd.f32 %v291, %v293
    %v297 = vadd.f32 %v292, %v293
    %v298 = vld [vmem:[#allocation12] sm:$0x7]
    %v299 = vld [vmem:[#allocation9] sm:$0xff]
    %v300 = vld [vmem:[#allocation9 + $0x8] sm:$0xff]
    %v301 = vld [vmem:[#allocation9 + $0x10] sm:$0xff]
    %v302 = vld [vmem:[#allocation9 + $0x18] sm:$0xff]
    %v303 = vld [vmem:[#allocation9 + $0x20] sm:$0xff]
    %v304 = vld [vmem:[#allocation9 + $0x28] sm:$0xff]
    %v305 = vld [vmem:[#allocation9 + $0x30] sm:$0xff]
    %v306 = vld [vmem:[#allocation9 + $0x38] sm:$0xff]
    %v307 = vld [vmem:[#allocation9 + $0x40] sm:$0xff]
    %v308 = vld [vmem:[#allocation9 + $0x48] sm:$0xff]
    %v309 = vld [vmem:[#allocation9 + $0x50] sm:$0xff]
    %v310 = vld [vmem:[#allocation9 + $0x58] sm:$0xff]
    %v311 = vld [vmem:[#allocation9 + $0x60] sm:$0xff]
    %v312 = vld [vmem:[#allocation9 + $0x68] sm:$0xff]
    %v313 = vld [vmem:[#allocation9 + $0x70] sm:$0xff]
    %v314 = vld [vmem:[#allocation9 + $0x78] sm:$0xff]
    %v315 = vld [vmem:[#allocation10] sm:$0x3]
    %v317 = vperm.slane %v315, 0
    %v318 = vperm.slane %v315, 1
    %v322 = vsel %vm191, %v294, 0
    %v325 = vsel %vm191, %v295, 0
    %v328 = vsel %vm191, %v296, 0
    %v331 = vsel %vm191, %v297, 0
    %333 = vmatpush.msra.mxu0 0.0
    %334 = vmatpush.msra.mxu0 0.0
    %335 = vmatpush.msra.mxu0 0.0
    %336 = vmatpush.msra.mxu0 0.0
    %337 = vmatpush.msra.mxu0 0.0
    %338 = vmatpush.msra.mxu0 0.0
    %339 = vmatpush.msra.mxu0 0.0
    %340 = vmatpush.msra.mxu0 0.0
    %341 = vmatpush.msra.mxu0 %v313
    %342 = vmatpush.msra.mxu0 %v311
    %343 = vmatpush.msra.mxu0 %v309
    %344 = vmatpush.msra.mxu0 %v307
    %345 = vmatpush.msra.mxu0 %v305
    %346 = vmatpush.msra.mxu0 %v303
    %347 = vmatpush.msra.mxu0 %v301
    %348 = vmatpush.msra.mxu0 %v299
    %349 = vmatmul.f32.gmra.mxu0 %v322
    %v350 = vpop.f32.mrf.mxu0
    %v351 = vadd.f32 %v317, %v350
    %352 = vmatmul.f32.gmra.mxu0 %v325
    %v353 = vpop.f32.mrf.mxu0
    %v354 = vadd.f32 %v317, %v353
    %355 = vmatmul.f32.gmra.mxu0 %v328
    %v356 = vpop.f32.mrf.mxu0
    %v357 = vadd.f32 %v317, %v356
    %358 = vmatmul.f32.gmra.mxu0 %v331
    %v359 = vpop.f32.mrf.mxu0
    %v360 = vadd.f32 %v317, %v359
    %361 = vdwg.mxu0
    %362 = vmatpush.msra.mxu0 0.0
    %363 = vmatpush.msra.mxu0 0.0
    %364 = vmatpush.msra.mxu0 0.0
    %365 = vmatpush.msra.mxu0 0.0
    %366 = vmatpush.msra.mxu0 0.0
    %367 = vmatpush.msra.mxu0 0.0
    %368 = vmatpush.msra.mxu0 0.0
    %369 = vmatpush.msra.mxu0 0.0
    %370 = vmatpush.msra.mxu0 %v314
    %371 = vmatpush.msra.mxu0 %v312
    %372 = vmatpush.msra.mxu0 %v310
    %373 = vmatpush.msra.mxu0 %v308
    %374 = vmatpush.msra.mxu0 %v306
    %375 = vmatpush.msra.mxu0 %v304
    %376 = vmatpush.msra.mxu0 %v302
    %377 = vmatpush.msra.mxu0 %v300
    %378 = vmatmul.f32.gmra.mxu0 %v322
    %v379 = vpop.f32.mrf.mxu0
    %v380 = vadd.f32 %v318, %v379
    %381 = vmatmul.f32.gmra.mxu0 %v325
    %v382 = vpop.f32.mrf.mxu0
    %v383 = vadd.f32 %v318, %v382
    %384 = vmatmul.f32.gmra.mxu0 %v328
    %v385 = vpop.f32.mrf.mxu0
    %v386 = vadd.f32 %v318, %v385
    %387 = vmatmul.f32.gmra.mxu0 %v331
    %v388 = vpop.f32.mrf.mxu0
    %v389 = vadd.f32 %v318, %v388
    %390 = vdwg.mxu0
    %391 = vst [vmem:[#allocation2] sm:$0xff] %v351
    %392 = vst.msk [vmem:[#allocation2 + $0x8] sm:$0xff] %vm191, %v380
    %393 = vst [vmem:[#allocation2 + $0x10] sm:$0xff] %v354
    %394 = vst.msk [vmem:[#allocation2 + $0x18] sm:$0xff] %vm191, %v383
    %395 = vst [vmem:[#allocation2 + $0x20] sm:$0xff] %v357
    %396 = vst.msk [vmem:[#allocation2 + $0x28] sm:$0xff] %vm191, %v386
    %397 = vst [vmem:[#allocation2 + $0x30] sm:$0xf] %v360
    %398 = vst.msk [vmem:[#allocation2 + $0x38] sm:$0xf] %vm201, %v389
    %v399 = vld [vmem:[#allocation2] sm:$0xff]
    %v400 = vld [vmem:[#allocation2 + $0x10] sm:$0x3f]
    %v401 = vld [vmem:[#allocation2 + $0x8] sm:$0xff]
    %v402 = vld [vmem:[#allocation2 + $0x18] sm:$0x3f]
    %v411 = vperm.slane %v132, 0
    %v412 = vperm.slane %v133, 0
    %v413 = vperm.slane %v134, 0
    %v414 = vperm.slane %v135, 0
    %v415 = vperm.slane %v136, 0
    %v416 = vperm.slane %v137, 0
    %v417 = vperm.slane %v138, 0
    %v418 = vperm.slane %v139, 0
    %v427 = vmul.f32 %v399, %v411
    %v428 = vmul.f32 %v400, %v411
    %v429 = vmul.f32 %v399, %v412
    %v430 = vmul.f32 %v400, %v412
    %v431 = vmul.f32 %v399, %v413
    %v432 = vmul.f32 %v400, %v413
    %v433 = vmul.f32 %v399, %v414
    %v434 = vmul.f32 %v400, %v414
    %v435 = vmul.f32 %v399, %v415
    %v436 = vmul.f32 %v400, %v415
    %v437 = vmul.f32 %v399, %v416
    %v438 = vmul.f32 %v400, %v416
    %v439 = vmul.f32 %v399, %v417
    %v440 = vmul.f32 %v400, %v417
    %v441 = vmul.f32 %v399, %v418
    %v442 = vmul.f32 %v400, %v418
    %v443 = vmul.f32 %v401, %v411
    %v444 = vmul.f32 %v402, %v411
    %v445 = vmul.f32 %v401, %v412
    %v446 = vmul.f32 %v402, %v412
    %v447 = vmul.f32 %v401, %v413
    %v448 = vmul.f32 %v402, %v413
    %v449 = vmul.f32 %v401, %v414
    %v450 = vmul.f32 %v402, %v414
    %v451 = vmul.f32 %v401, %v415
    %v452 = vmul.f32 %v402, %v415
    %v453 = vmul.f32 %v401, %v416
    %v454 = vmul.f32 %v402, %v416
    %v455 = vmul.f32 %v401, %v417
    %v456 = vmul.f32 %v402, %v417
    %v457 = vmul.f32 %v401, %v418
    %v458 = vmul.f32 %v402, %v418
    %461 = vrot.lane.b32.xlu0 %v399, 64
    %v462 = vpop.permute.xlu0 %461
    %463 = vrot.lane.b32.xlu0 %v400, 64
    %v464 = vpop.permute.xlu0 %463
    %v466 = vsel %vm191, %v427, 0
    %v469 = vsel %vm191, %v428, 0
    %v471 = vsel %vm191, %v462, 0
    %v473 = vsel %vm191, %v464, 0
    %475 = vmatpush.xpose.msra.mxu0 0.0
    %476 = vmatpush.xpose.msra.mxu0 0.0
    %477 = vmatpush.xpose.msra.mxu0 0.0
    %478 = vmatpush.xpose.msra.mxu0 0.0
    %479 = vmatpush.xpose.msra.mxu0 0.0
    %480 = vmatpush.xpose.msra.mxu0 0.0
    %481 = vmatpush.xpose.msra.mxu0 0.0
    %482 = vmatpush.xpose.msra.mxu0 0.0
    %483 = vmatpush.xpose.msra.mxu0 0.0
    %484 = vmatpush.xpose.msra.mxu0 0.0
    %485 = vmatpush.xpose.msra.mxu0 0.0
    %486 = vmatpush.xpose.msra.mxu0 0.0
    %487 = vmatpush.xpose.msra.mxu0 0.0
    %488 = vmatpush.xpose.msra.mxu0 0.0
    %489 = vmatpush.xpose.msra.mxu0 %v473
    %490 = vmatpush.xpose.msra.mxu0 %v471
    %491 = vmatmul.f32.gmra.mxu0 %v466
    %v492 = vpop.f32.mrf.mxu0
    %v493 = vadd.f32 0.0, %v492
    %494 = vmatmul.f32.gmra.mxu0 %v469
    %v495 = vpop.f32.mrf.mxu0
    %v496 = vadd.f32 0.0, %v495
    %497 = vdwg.mxu0
    %v499 = vsel %vm191, %v429, 0
    %v502 = vsel %vm191, %v430, 0
    %504 = vmatpush.xpose.msra.mxu0 0.0
    %505 = vmatpush.xpose.msra.mxu0 0.0
    %506 = vmatpush.xpose.msra.mxu0 0.0
    %507 = vmatpush.xpose.msra.mxu0 0.0
    %508 = vmatpush.xpose.msra.mxu0 0.0
    %509 = vmatpush.xpose.msra.mxu0 0.0
    %510 = vmatpush.xpose.msra.mxu0 0.0
    %511 = vmatpush.xpose.msra.mxu0 0.0
    %512 = vmatpush.xpose.msra.mxu0 0.0
    %513 = vmatpush.xpose.msra.mxu0 0.0
    %514 = vmatpush.xpose.msra.mxu0 0.0
    %515 = vmatpush.xpose.msra.mxu0 0.0
    %516 = vmatpush.xpose.msra.mxu0 0.0
    %517 = vmatpush.xpose.msra.mxu0 0.0
    %518 = vmatpush.xpose.msra.mxu0 %v473
    %519 = vmatpush.xpose.msra.mxu0 %v471
    %520 = vmatmul.f32.gmra.mxu0 %v499
    %v521 = vpop.f32.mrf.mxu0
    %v522 = vadd.f32 0.0, %v521
    %523 = vmatmul.f32.gmra.mxu0 %v502
    %v524 = vpop.f32.mrf.mxu0
    %v525 = vadd.f32 0.0, %v524
    %526 = vdwg.mxu0
    %v528 = vsel %vm191, %v431, 0
    %v531 = vsel %vm191, %v432, 0
    %533 = vmatpush.xpose.msra.mxu0 0.0
    %534 = vmatpush.xpose.msra.mxu0 0.0
    %535 = vmatpush.xpose.msra.mxu0 0.0
    %536 = vmatpush.xpose.msra.mxu0 0.0
    %537 = vmatpush.xpose.msra.mxu0 0.0
    %538 = vmatpush.xpose.msra.mxu0 0.0
    %539 = vmatpush.xpose.msra.mxu0 0.0
    %540 = vmatpush.xpose.msra.mxu0 0.0
    %541 = vmatpush.xpose.msra.mxu0 0.0
    %542 = vmatpush.xpose.msra.mxu0 0.0
    %543 = vmatpush.xpose.msra.mxu0 0.0
    %544 = vmatpush.xpose.msra.mxu0 0.0
    %545 = vmatpush.xpose.msra.mxu0 0.0
    %546 = vmatpush.xpose.msra.mxu0 0.0
    %547 = vmatpush.xpose.msra.mxu0 %v473
    %548 = vmatpush.xpose.msra.mxu0 %v471
    %549 = vmatmul.f32.gmra.mxu0 %v528
    %v550 = vpop.f32.mrf.mxu0
    %v551 = vadd.f32 0.0, %v550
    %552 = vmatmul.f32.gmra.mxu0 %v531
    %v553 = vpop.f32.mrf.mxu0
    %v554 = vadd.f32 0.0, %v553
    %555 = vdwg.mxu0
    %v557 = vsel %vm191, %v433, 0
    %v560 = vsel %vm191, %v434, 0
    %562 = vmatpush.xpose.msra.mxu0 0.0
    %563 = vmatpush.xpose.msra.mxu0 0.0
    %564 = vmatpush.xpose.msra.mxu0 0.0
    %565 = vmatpush.xpose.msra.mxu0 0.0
    %566 = vmatpush.xpose.msra.mxu0 0.0
    %567 = vmatpush.xpose.msra.mxu0 0.0
    %568 = vmatpush.xpose.msra.mxu0 0.0
    %569 = vmatpush.xpose.msra.mxu0 0.0
    %570 = vmatpush.xpose.msra.mxu0 0.0
    %571 = vmatpush.xpose.msra.mxu0 0.0
    %572 = vmatpush.xpose.msra.mxu0 0.0
    %573 = vmatpush.xpose.msra.mxu0 0.0
    %574 = vmatpush.xpose.msra.mxu0 0.0
    %575 = vmatpush.xpose.msra.mxu0 0.0
    %576 = vmatpush.xpose.msra.mxu0 %v473
    %577 = vmatpush.xpose.msra.mxu0 %v471
    %578 = vmatmul.f32.gmra.mxu0 %v557
    %v579 = vpop.f32.mrf.mxu0
    %v580 = vadd.f32 0.0, %v579
    %581 = vmatmul.f32.gmra.mxu0 %v560
    %v582 = vpop.f32.mrf.mxu0
    %v583 = vadd.f32 0.0, %v582
    %584 = vdwg.mxu0
    %v586 = vsel %vm191, %v435, 0
    %v589 = vsel %vm191, %v436, 0
    %591 = vmatpush.xpose.msra.mxu0 0.0
    %592 = vmatpush.xpose.msra.mxu0 0.0
    %593 = vmatpush.xpose.msra.mxu0 0.0
    %594 = vmatpush.xpose.msra.mxu0 0.0
    %595 = vmatpush.xpose.msra.mxu0 0.0
    %596 = vmatpush.xpose.msra.mxu0 0.0
    %597 = vmatpush.xpose.msra.mxu0 0.0
    %598 = vmatpush.xpose.msra.mxu0 0.0
    %599 = vmatpush.xpose.msra.mxu0 0.0
    %600 = vmatpush.xpose.msra.mxu0 0.0
    %601 = vmatpush.xpose.msra.mxu0 0.0
    %602 = vmatpush.xpose.msra.mxu0 0.0
    %603 = vmatpush.xpose.msra.mxu0 0.0
    %604 = vmatpush.xpose.msra.mxu0 0.0
    %605 = vmatpush.xpose.msra.mxu0 %v473
    %606 = vmatpush.xpose.msra.mxu0 %v471
    %607 = vmatmul.f32.gmra.mxu0 %v586
    %v608 = vpop.f32.mrf.mxu0
    %v609 = vadd.f32 0.0, %v608
    %610 = vmatmul.f32.gmra.mxu0 %v589
    %v611 = vpop.f32.mrf.mxu0
    %v612 = vadd.f32 0.0, %v611
    %613 = vdwg.mxu0
    %v615 = vsel %vm191, %v437, 0
    %v618 = vsel %vm191, %v438, 0
    %620 = vmatpush.xpose.msra.mxu0 0.0
    %621 = vmatpush.xpose.msra.mxu0 0.0
    %622 = vmatpush.xpose.msra.mxu0 0.0
    %623 = vmatpush.xpose.msra.mxu0 0.0
    %624 = vmatpush.xpose.msra.mxu0 0.0
    %625 = vmatpush.xpose.msra.mxu0 0.0
    %626 = vmatpush.xpose.msra.mxu0 0.0
    %627 = vmatpush.xpose.msra.mxu0 0.0
    %628 = vmatpush.xpose.msra.mxu0 0.0
    %629 = vmatpush.xpose.msra.mxu0 0.0
    %630 = vmatpush.xpose.msra.mxu0 0.0
    %631 = vmatpush.xpose.msra.mxu0 0.0
    %632 = vmatpush.xpose.msra.mxu0 0.0
    %633 = vmatpush.xpose.msra.mxu0 0.0
    %634 = vmatpush.xpose.msra.mxu0 %v473
    %635 = vmatpush.xpose.msra.mxu0 %v471
    %636 = vmatmul.f32.gmra.mxu0 %v615
    %v637 = vpop.f32.mrf.mxu0
    %v638 = vadd.f32 0.0, %v637
    %639 = vmatmul.f32.gmra.mxu0 %v618
    %v640 = vpop.f32.mrf.mxu0
    %v641 = vadd.f32 0.0, %v640
    %642 = vdwg.mxu0
    %v644 = vsel %vm191, %v439, 0
    %v647 = vsel %vm191, %v440, 0
    %649 = vmatpush.xpose.msra.mxu0 0.0
    %650 = vmatpush.xpose.msra.mxu0 0.0
    %651 = vmatpush.xpose.msra.mxu0 0.0
    %652 = vmatpush.xpose.msra.mxu0 0.0
    %653 = vmatpush.xpose.msra.mxu0 0.0
    %654 = vmatpush.xpose.msra.mxu0 0.0
    %655 = vmatpush.xpose.msra.mxu0 0.0
    %656 = vmatpush.xpose.msra.mxu0 0.0
    %657 = vmatpush.xpose.msra.mxu0 0.0
    %658 = vmatpush.xpose.msra.mxu0 0.0
    %659 = vmatpush.xpose.msra.mxu0 0.0
    %660 = vmatpush.xpose.msra.mxu0 0.0
    %661 = vmatpush.xpose.msra.mxu0 0.0
    %662 = vmatpush.xpose.msra.mxu0 0.0
    %663 = vmatpush.xpose.msra.mxu0 %v473
    %664 = vmatpush.xpose.msra.mxu0 %v471
    %665 = vmatmul.f32.gmra.mxu0 %v644
    %v666 = vpop.f32.mrf.mxu0
    %v667 = vadd.f32 0.0, %v666
    %668 = vmatmul.f32.gmra.mxu0 %v647
    %v669 = vpop.f32.mrf.mxu0
    %v670 = vadd.f32 0.0, %v669
    %671 = vdwg.mxu0
    %v673 = vsel %vm191, %v441, 0
    %v676 = vsel %vm191, %v442, 0
    %678 = vmatpush.xpose.msra.mxu0 0.0
    %679 = vmatpush.xpose.msra.mxu0 0.0
    %680 = vmatpush.xpose.msra.mxu0 0.0
    %681 = vmatpush.xpose.msra.mxu0 0.0
    %682 = vmatpush.xpose.msra.mxu0 0.0
    %683 = vmatpush.xpose.msra.mxu0 0.0
    %684 = vmatpush.xpose.msra.mxu0 0.0
    %685 = vmatpush.xpose.msra.mxu0 0.0
    %686 = vmatpush.xpose.msra.mxu0 0.0
    %687 = vmatpush.xpose.msra.mxu0 0.0
    %688 = vmatpush.xpose.msra.mxu0 0.0
    %689 = vmatpush.xpose.msra.mxu0 0.0
    %690 = vmatpush.xpose.msra.mxu0 0.0
    %691 = vmatpush.xpose.msra.mxu0 0.0
    %692 = vmatpush.xpose.msra.mxu0 %v473
    %693 = vmatpush.xpose.msra.mxu0 %v471
    %694 = vmatmul.f32.gmra.mxu0 %v673
    %v695 = vpop.f32.mrf.mxu0
    %v696 = vadd.f32 0.0, %v695
    %697 = vmatmul.f32.gmra.mxu0 %v676
    %v698 = vpop.f32.mrf.mxu0
    %v699 = vadd.f32 0.0, %v698
    %700 = vdwg.mxu0
    %v701 = vmul.f32 %v493, 0.35355338
    %v702 = vmul.f32 %v496, 0.35355338
    %v703 = vmul.f32 %v522, 0.35355338
    %v704 = vmul.f32 %v525, 0.35355338
    %v705 = vmul.f32 %v551, 0.35355338
    %v706 = vmul.f32 %v554, 0.35355338
    %v707 = vmul.f32 %v580, 0.35355338
    %v708 = vmul.f32 %v583, 0.35355338
    %v709 = vmul.f32 %v609, 0.35355338
    %v710 = vmul.f32 %v612, 0.35355338
    %v711 = vmul.f32 %v638, 0.35355338
    %v712 = vmul.f32 %v641, 0.35355338
    %v713 = vmul.f32 %v667, 0.35355338
    %v714 = vmul.f32 %v670, 0.35355338
    %v715 = vmul.f32 %v696, 0.35355338
    %v716 = vmul.f32 %v699, 0.35355338
    %vm717 = vcmask 113664
    %v718 = vsel %vm717, %v701, -inf
    %719 = vmax.xlane.f32.xlu0 %v718
    %v720 = vpop.xlane.xlu0 %719
    %vm721 = vcmask 111616
    %v722 = vsel %vm721, %v702, -inf
    %723 = vmax.xlane.f32.xlu0 %v722
    %v724 = vpop.xlane.xlu0 %723
    %v725 = vsel %vm717, %v703, -inf
    %726 = vmax.xlane.f32.xlu0 %v725
    %v727 = vpop.xlane.xlu0 %726
    %v728 = vsel %vm721, %v704, -inf
    %729 = vmax.xlane.f32.xlu0 %v728
    %v730 = vpop.xlane.xlu0 %729
    %v731 = vsel %vm717, %v705, -inf
    %732 = vmax.xlane.f32.xlu0 %v731
    %v733 = vpop.xlane.xlu0 %732
    %v734 = vsel %vm721, %v706, -inf
    %735 = vmax.xlane.f32.xlu0 %v734
    %v736 = vpop.xlane.xlu0 %735
    %v737 = vsel %vm717, %v707, -inf
    %738 = vmax.xlane.f32.xlu0 %v737
    %v739 = vpop.xlane.xlu0 %738
    %v740 = vsel %vm721, %v708, -inf
    %741 = vmax.xlane.f32.xlu0 %v740
    %v742 = vpop.xlane.xlu0 %741
    %v743 = vsel %vm717, %v709, -inf
    %744 = vmax.xlane.f32.xlu0 %v743
    %v745 = vpop.xlane.xlu0 %744
    %v746 = vsel %vm721, %v710, -inf
    %747 = vmax.xlane.f32.xlu0 %v746
    %v748 = vpop.xlane.xlu0 %747
    %v749 = vsel %vm717, %v711, -inf
    %750 = vmax.xlane.f32.xlu0 %v749
    %v751 = vpop.xlane.xlu0 %750
    %v752 = vsel %vm721, %v712, -inf
    %753 = vmax.xlane.f32.xlu0 %v752
    %v754 = vpop.xlane.xlu0 %753
    %v755 = vsel %vm717, %v713, -inf
    %756 = vmax.xlane.f32.xlu0 %v755
    %v757 = vpop.xlane.xlu0 %756
    %v758 = vsel %vm721, %v714, -inf
    %759 = vmax.xlane.f32.xlu0 %v758
    %v760 = vpop.xlane.xlu0 %759
    %v761 = vsel %vm717, %v715, -inf
    %762 = vmax.xlane.f32.xlu0 %v761
    %v763 = vpop.xlane.xlu0 %762
    %v764 = vsel %vm721, %v716, -inf
    %765 = vmax.xlane.f32.xlu0 %v764
    %v766 = vpop.xlane.xlu0 %765
    %v767 = vsub.f32 %v701, %v720
    %v768 = vsub.f32 %v702, %v724
    %v769 = vsub.f32 %v703, %v727
    %v770 = vsub.f32 %v704, %v730
    %v771 = vsub.f32 %v705, %v733
    %v772 = vsub.f32 %v706, %v736
    %v773 = vsub.f32 %v707, %v739
    %v774 = vsub.f32 %v708, %v742
    %v775 = vsub.f32 %v709, %v745
    %v776 = vsub.f32 %v710, %v748
    %v777 = vsub.f32 %v711, %v751
    %v778 = vsub.f32 %v712, %v754
    %v779 = vsub.f32 %v713, %v757
    %v780 = vsub.f32 %v714, %v760
    %v781 = vsub.f32 %v715, %v763
    %v782 = vsub.f32 %v716, %v766
    %v783 = vmul.f32 %v767, 1.442695
    %v784 = vpow.pop %v783
    %v785 = vmul.f32 %v768, 1.442695
    %v786 = vpow.pop %v785
    %v787 = vmul.f32 %v769, 1.442695
    %v788 = vpow.pop %v787
    %v789 = vmul.f32 %v770, 1.442695
    %v790 = vpow.pop %v789
    %v791 = vmul.f32 %v771, 1.442695
    %v792 = vpow.pop %v791
    %v793 = vmul.f32 %v772, 1.442695
    %v794 = vpow.pop %v793
    %v795 = vmul.f32 %v773, 1.442695
    %v796 = vpow.pop %v795
    %v797 = vmul.f32 %v774, 1.442695
    %v798 = vpow.pop %v797
    %v799 = vmul.f32 %v775, 1.442695
    %v800 = vpow.pop %v799
    %v801 = vmul.f32 %v776, 1.442695
    %v802 = vpow.pop %v801
    %v803 = vmul.f32 %v777, 1.442695
    %v804 = vpow.pop %v803
    %v805 = vmul.f32 %v778, 1.442695
    %v806 = vpow.pop %v805
    %v807 = vmul.f32 %v779, 1.442695
    %v808 = vpow.pop %v807
    %v809 = vmul.f32 %v780, 1.442695
    %v810 = vpow.pop %v809
    %v811 = vmul.f32 %v781, 1.442695
    %v812 = vpow.pop %v811
    %v813 = vmul.f32 %v782, 1.442695
    %v814 = vpow.pop %v813
    %v815 = vsel %vm717, %v784, 0.0
    %816 = vadd.xlane.f32.xlu0 %v815
    %v817 = vpop.xlane.xlu0 %816
    %v818 = vsel %vm721, %v786, 0.0
    %819 = vadd.xlane.f32.xlu0 %v818
    %v820 = vpop.xlane.xlu0 %819
    %v821 = vsel %vm717, %v788, 0.0
    %822 = vadd.xlane.f32.xlu0 %v821
    %v823 = vpop.xlane.xlu0 %822
    %v824 = vsel %vm721, %v790, 0.0
    %825 = vadd.xlane.f32.xlu0 %v824
    %v826 = vpop.xlane.xlu0 %825
    %v827 = vsel %vm717, %v792, 0.0
    %828 = vadd.xlane.f32.xlu0 %v827
    %v829 = vpop.xlane.xlu0 %828
    %v830 = vsel %vm721, %v794, 0.0
    %831 = vadd.xlane.f32.xlu0 %v830
    %v832 = vpop.xlane.xlu0 %831
    %v833 = vsel %vm717, %v796, 0.0
    %834 = vadd.xlane.f32.xlu0 %v833
    %v835 = vpop.xlane.xlu0 %834
    %v836 = vsel %vm721, %v798, 0.0
    %837 = vadd.xlane.f32.xlu0 %v836
    %v838 = vpop.xlane.xlu0 %837
    %v839 = vsel %vm717, %v800, 0.0
    %840 = vadd.xlane.f32.xlu0 %v839
    %v841 = vpop.xlane.xlu0 %840
    %v842 = vsel %vm721, %v802, 0.0
    %843 = vadd.xlane.f32.xlu0 %v842
    %v844 = vpop.xlane.xlu0 %843
    %v845 = vsel %vm717, %v804, 0.0
    %846 = vadd.xlane.f32.xlu0 %v845
    %v847 = vpop.xlane.xlu0 %846
    %v848 = vsel %vm721, %v806, 0.0
    %849 = vadd.xlane.f32.xlu0 %v848
    %v850 = vpop.xlane.xlu0 %849
    %v851 = vsel %vm717, %v808, 0.0
    %852 = vadd.xlane.f32.xlu0 %v851
    %v853 = vpop.xlane.xlu0 %852
    %v854 = vsel %vm721, %v810, 0.0
    %855 = vadd.xlane.f32.xlu0 %v854
    %v856 = vpop.xlane.xlu0 %855
    %v857 = vsel %vm717, %v812, 0.0
    %858 = vadd.xlane.f32.xlu0 %v857
    %v859 = vpop.xlane.xlu0 %858
    %v860 = vsel %vm721, %v814, 0.0
    %861 = vadd.xlane.f32.xlu0 %v860
    %v862 = vpop.xlane.xlu0 %861
    %v863 = vrcp.pop %v817
    %v864 = vrcp.pop %v820
    %v865 = vrcp.pop %v823
    %v866 = vrcp.pop %v826
    %v867 = vrcp.pop %v829
    %v868 = vrcp.pop %v832
    %v869 = vrcp.pop %v835
    %v870 = vrcp.pop %v838
    %v871 = vrcp.pop %v841
    %v872 = vrcp.pop %v844
    %v873 = vrcp.pop %v847
    %v874 = vrcp.pop %v850
    %v875 = vrcp.pop %v853
    %v876 = vrcp.pop %v856
    %v877 = vrcp.pop %v859
    %v878 = vrcp.pop %v862
    %v879 = vmul.f32 %v784, %v863
    %v880 = vmul.f32 %v786, %v864
    %v881 = vmul.f32 %v788, %v865
    %v882 = vmul.f32 %v790, %v866
    %v883 = vmul.f32 %v792, %v867
    %v884 = vmul.f32 %v794, %v868
    %v885 = vmul.f32 %v796, %v869
    %v886 = vmul.f32 %v798, %v870
    %v887 = vmul.f32 %v800, %v871
    %v888 = vmul.f32 %v802, %v872
    %v889 = vmul.f32 %v804, %v873
    %v890 = vmul.f32 %v806, %v874
    %v891 = vmul.f32 %v808, %v875
    %v892 = vmul.f32 %v810, %v876
    %v893 = vmul.f32 %v812, %v877
    %v894 = vmul.f32 %v814, %v878
    %v895 = vsel %vm717, %v879, 0.0
    %v896 = vsel %vm717, %v881, 0.0
    %v897 = vadd.f32 %v895, %v896
    %v898 = vsel %vm717, %v883, 0.0
    %v899 = vadd.f32 %v897, %v898
    %v900 = vsel %vm717, %v885, 0.0
    %v901 = vadd.f32 %v899, %v900
    %v902 = vsel %vm717, %v887, 0.0
    %v903 = vadd.f32 %v901, %v902
    %v904 = vsel %vm717, %v889, 0.0
    %v905 = vadd.f32 %v903, %v904
    %v906 = vsel %vm717, %v891, 0.0
    %v907 = vadd.f32 %v905, %v906
    %v908 = vsel %vm717, %v893, 0.0
    %v909 = vadd.f32 %v907, %v908
    %v910 = vsel %vm721, %v880, 0.0
    %v911 = vsel %vm721, %v882, 0.0
    %v912 = vadd.f32 %v910, %v911
    %v913 = vsel %vm721, %v884, 0.0
    %v914 = vadd.f32 %v912, %v913
    %v915 = vsel %vm721, %v886, 0.0
    %v916 = vadd.f32 %v914, %v915
    %v917 = vsel %vm721, %v888, 0.0
    %v918 = vadd.f32 %v916, %v917
    %v919 = vsel %vm721, %v890, 0.0
    %v920 = vadd.f32 %v918, %v919
    %v921 = vsel %vm721, %v892, 0.0
    %v922 = vadd.f32 %v920, %v921
    %v923 = vsel %vm721, %v894, 0.0
    %v924 = vadd.f32 %v922, %v923
    %v925 = vadd.f32 %v909, 0.0
    %v926 = vadd.f32 %v924, 0.0
    %v928 = vsel %vm717, %v879, 0
    %v931 = vsel %vm717, %v880, 0
    %vm933 = vcmask 1045504
    %v935 = vsel %vm933, %v444, 0
    %937 = vmatpush.msra.mxu0 0.0
    %938 = vmatpush.msra.mxu0 0.0
    %939 = vmatpush.msra.mxu0 0.0
    %940 = vmatpush.msra.mxu0 0.0
    %941 = vmatpush.msra.mxu0 0.0
    %942 = vmatpush.msra.mxu0 0.0
    %943 = vmatpush.msra.mxu0 0.0
    %944 = vmatpush.msra.mxu0 0.0
    %945 = vmatpush.msra.mxu0 0.0
    %946 = vmatpush.msra.mxu0 0.0
    %947 = vmatpush.msra.mxu0 0.0
    %948 = vmatpush.msra.mxu0 0.0
    %949 = vmatpush.msra.mxu0 0.0
    %950 = vmatpush.msra.mxu0 0.0
    %951 = vmatpush.msra.mxu0 %v935
    %952 = vmatpush.msra.mxu0 %v443
    %953 = vmatmul.f32.gmra.mxu0 %v928
    %v954 = vpop.f32.mrf.mxu0
    %v955 = vadd.f32 0.0, %v954
    %956 = vmatmul.f32.gmra.mxu0 %v931
    %v957 = vpop.f32.mrf.mxu0
    %v958 = vadd.f32 0.0, %v957
    %959 = vdwg.mxu0
    %v961 = vsel %vm717, %v881, 0
    %v964 = vsel %vm717, %v882, 0
    %v967 = vsel %vm933, %v446, 0
    %969 = vmatpush.msra.mxu0 0.0
    %970 = vmatpush.msra.mxu0 0.0
    %971 = vmatpush.msra.mxu0 0.0
    %972 = vmatpush.msra.mxu0 0.0
    %973 = vmatpush.msra.mxu0 0.0
    %974 = vmatpush.msra.mxu0 0.0
    %975 = vmatpush.msra.mxu0 0.0
    %976 = vmatpush.msra.mxu0 0.0
    %977 = vmatpush.msra.mxu0 0.0
    %978 = vmatpush.msra.mxu0 0.0
    %979 = vmatpush.msra.mxu0 0.0
    %980 = vmatpush.msra.mxu0 0.0
    %981 = vmatpush.msra.mxu0 0.0
    %982 = vmatpush.msra.mxu0 0.0
    %983 = vmatpush.msra.mxu0 %v967
    %984 = vmatpush.msra.mxu0 %v445
    %985 = vmatmul.f32.gmra.mxu0 %v961
    %v986 = vpop.f32.mrf.mxu0
    %v987 = vadd.f32 0.0, %v986
    %988 = vmatmul.f32.gmra.mxu0 %v964
    %v989 = vpop.f32.mrf.mxu0
    %v990 = vadd.f32 0.0, %v989
    %991 = vdwg.mxu0
    %v993 = vsel %vm717, %v883, 0
    %v996 = vsel %vm717, %v884, 0
    %v999 = vsel %vm933, %v448, 0
    %1001 = vmatpush.msra.mxu0 0.0
    %1002 = vmatpush.msra.mxu0 0.0
    %1003 = vmatpush.msra.mxu0 0.0
    %1004 = vmatpush.msra.mxu0 0.0
    %1005 = vmatpush.msra.mxu0 0.0
    %1006 = vmatpush.msra.mxu0 0.0
    %1007 = vmatpush.msra.mxu0 0.0
    %1008 = vmatpush.msra.mxu0 0.0
    %1009 = vmatpush.msra.mxu0 0.0
    %1010 = vmatpush.msra.mxu0 0.0
    %1011 = vmatpush.msra.mxu0 0.0
    %1012 = vmatpush.msra.mxu0 0.0
    %1013 = vmatpush.msra.mxu0 0.0
    %1014 = vmatpush.msra.mxu0 0.0
    %1015 = vmatpush.msra.mxu0 %v999
    %1016 = vmatpush.msra.mxu0 %v447
    %1017 = vmatmul.f32.gmra.mxu0 %v993
    %v1018 = vpop.f32.mrf.mxu0
    %v1019 = vadd.f32 0.0, %v1018
    %1020 = vmatmul.f32.gmra.mxu0 %v996
    %v1021 = vpop.f32.mrf.mxu0
    %v1022 = vadd.f32 0.0, %v1021
    %1023 = vdwg.mxu0
    %v1025 = vsel %vm717, %v885, 0
    %v1028 = vsel %vm717, %v886, 0
    %v1031 = vsel %vm933, %v450, 0
    %1033 = vmatpush.msra.mxu0 0.0
    %1034 = vmatpush.msra.mxu0 0.0
    %1035 = vmatpush.msra.mxu0 0.0
    %1036 = vmatpush.msra.mxu0 0.0
    %1037 = vmatpush.msra.mxu0 0.0
    %1038 = vmatpush.msra.mxu0 0.0
    %1039 = vmatpush.msra.mxu0 0.0
    %1040 = vmatpush.msra.mxu0 0.0
    %1041 = vmatpush.msra.mxu0 0.0
    %1042 = vmatpush.msra.mxu0 0.0
    %1043 = vmatpush.msra.mxu0 0.0
    %1044 = vmatpush.msra.mxu0 0.0
    %1045 = vmatpush.msra.mxu0 0.0
    %1046 = vmatpush.msra.mxu0 0.0
    %1047 = vmatpush.msra.mxu0 %v1031
    %1048 = vmatpush.msra.mxu0 %v449
    %1049 = vmatmul.f32.gmra.mxu0 %v1025
    %v1050 = vpop.f32.mrf.mxu0
    %v1051 = vadd.f32 0.0, %v1050
    %1052 = vmatmul.f32.gmra.mxu0 %v1028
    %v1053 = vpop.f32.mrf.mxu0
    %v1054 = vadd.f32 0.0, %v1053
    %1055 = vdwg.mxu0
    %v1057 = vsel %vm717, %v887, 0
    %v1060 = vsel %vm717, %v888, 0
    %v1063 = vsel %vm933, %v452, 0
    %1065 = vmatpush.msra.mxu0 0.0
    %1066 = vmatpush.msra.mxu0 0.0
    %1067 = vmatpush.msra.mxu0 0.0
    %1068 = vmatpush.msra.mxu0 0.0
    %1069 = vmatpush.msra.mxu0 0.0
    %1070 = vmatpush.msra.mxu0 0.0
    %1071 = vmatpush.msra.mxu0 0.0
    %1072 = vmatpush.msra.mxu0 0.0
    %1073 = vmatpush.msra.mxu0 0.0
    %1074 = vmatpush.msra.mxu0 0.0
    %1075 = vmatpush.msra.mxu0 0.0
    %1076 = vmatpush.msra.mxu0 0.0
    %1077 = vmatpush.msra.mxu0 0.0
    %1078 = vmatpush.msra.mxu0 0.0
    %1079 = vmatpush.msra.mxu0 %v1063
    %1080 = vmatpush.msra.mxu0 %v451
    %1081 = vmatmul.f32.gmra.mxu0 %v1057
    %v1082 = vpop.f32.mrf.mxu0
    %v1083 = vadd.f32 0.0, %v1082
    %1084 = vmatmul.f32.gmra.mxu0 %v1060
    %v1085 = vpop.f32.mrf.mxu0
    %v1086 = vadd.f32 0.0, %v1085
    %1087 = vdwg.mxu0
    %v1089 = vsel %vm717, %v889, 0
    %v1092 = vsel %vm717, %v890, 0
    %v1095 = vsel %vm933, %v454, 0
    %1097 = vmatpush.msra.mxu0 0.0
    %1098 = vmatpush.msra.mxu0 0.0
    %1099 = vmatpush.msra.mxu0 0.0
    %1100 = vmatpush.msra.mxu0 0.0
    %1101 = vmatpush.msra.mxu0 0.0
    %1102 = vmatpush.msra.mxu0 0.0
    %1103 = vmatpush.msra.mxu0 0.0
    %1104 = vmatpush.msra.mxu0 0.0
    %1105 = vmatpush.msra.mxu0 0.0
    %1106 = vmatpush.msra.mxu0 0.0
    %1107 = vmatpush.msra.mxu0 0.0
    %1108 = vmatpush.msra.mxu0 0.0
    %1109 = vmatpush.msra.mxu0 0.0
    %1110 = vmatpush.msra.mxu0 0.0
    %1111 = vmatpush.msra.mxu0 %v1095
    %1112 = vmatpush.msra.mxu0 %v453
    %1113 = vmatmul.f32.gmra.mxu0 %v1089
    %v1114 = vpop.f32.mrf.mxu0
    %v1115 = vadd.f32 0.0, %v1114
    %1116 = vmatmul.f32.gmra.mxu0 %v1092
    %v1117 = vpop.f32.mrf.mxu0
    %v1118 = vadd.f32 0.0, %v1117
    %1119 = vdwg.mxu0
    %v1121 = vsel %vm717, %v891, 0
    %v1124 = vsel %vm717, %v892, 0
    %v1127 = vsel %vm933, %v456, 0
    %1129 = vmatpush.msra.mxu0 0.0
    %1130 = vmatpush.msra.mxu0 0.0
    %1131 = vmatpush.msra.mxu0 0.0
    %1132 = vmatpush.msra.mxu0 0.0
    %1133 = vmatpush.msra.mxu0 0.0
    %1134 = vmatpush.msra.mxu0 0.0
    %1135 = vmatpush.msra.mxu0 0.0
    %1136 = vmatpush.msra.mxu0 0.0
    %1137 = vmatpush.msra.mxu0 0.0
    %1138 = vmatpush.msra.mxu0 0.0
    %1139 = vmatpush.msra.mxu0 0.0
    %1140 = vmatpush.msra.mxu0 0.0
    %1141 = vmatpush.msra.mxu0 0.0
    %1142 = vmatpush.msra.mxu0 0.0
    %1143 = vmatpush.msra.mxu0 %v1127
    %1144 = vmatpush.msra.mxu0 %v455
    %1145 = vmatmul.f32.gmra.mxu0 %v1121
    %v1146 = vpop.f32.mrf.mxu0
    %v1147 = vadd.f32 0.0, %v1146
    %1148 = vmatmul.f32.gmra.mxu0 %v1124
    %v1149 = vpop.f32.mrf.mxu0
    %v1150 = vadd.f32 0.0, %v1149
    %1151 = vdwg.mxu0
    %v1153 = vsel %vm717, %v893, 0
    %v1156 = vsel %vm717, %v894, 0
    %v1159 = vsel %vm933, %v458, 0
    %1161 = vmatpush.msra.mxu0 0.0
    %1162 = vmatpush.msra.mxu0 0.0
    %1163 = vmatpush.msra.mxu0 0.0
    %1164 = vmatpush.msra.mxu0 0.0
    %1165 = vmatpush.msra.mxu0 0.0
    %1166 = vmatpush.msra.mxu0 0.0
    %1167 = vmatpush.msra.mxu0 0.0
    %1168 = vmatpush.msra.mxu0 0.0
    %1169 = vmatpush.msra.mxu0 0.0
    %1170 = vmatpush.msra.mxu0 0.0
    %1171 = vmatpush.msra.mxu0 0.0
    %1172 = vmatpush.msra.mxu0 0.0
    %1173 = vmatpush.msra.mxu0 0.0
    %1174 = vmatpush.msra.mxu0 0.0
    %1175 = vmatpush.msra.mxu0 %v1159
    %1176 = vmatpush.msra.mxu0 %v457
    %1177 = vmatmul.f32.gmra.mxu0 %v1153
    %v1178 = vpop.f32.mrf.mxu0
    %v1179 = vadd.f32 0.0, %v1178
    %1180 = vmatmul.f32.gmra.mxu0 %v1156
    %v1181 = vpop.f32.mrf.mxu0
    %v1182 = vadd.f32 0.0, %v1181
    %1183 = vdwg.mxu0
    %v1184 = vsel %vm191, %v955, 0.0
    %v1185 = vsel %vm191, %v987, 0.0
    %v1186 = vadd.f32 %v1184, %v1185
    %v1187 = vsel %vm191, %v1019, 0.0
    %v1188 = vadd.f32 %v1186, %v1187
    %v1189 = vsel %vm191, %v1051, 0.0
    %v1190 = vadd.f32 %v1188, %v1189
    %v1191 = vsel %vm191, %v1083, 0.0
    %v1192 = vadd.f32 %v1190, %v1191
    %v1193 = vsel %vm191, %v1115, 0.0
    %v1194 = vadd.f32 %v1192, %v1193
    %v1195 = vsel %vm191, %v1147, 0.0
    %v1196 = vadd.f32 %v1194, %v1195
    %v1197 = vsel %vm191, %v1179, 0.0
    %v1198 = vadd.f32 %v1196, %v1197
    %vm1199 = vcmask 521216
    %v1200 = vsel %vm1199, %v958, 0.0
    %v1201 = vsel %vm1199, %v990, 0.0
    %v1202 = vadd.f32 %v1200, %v1201
    %v1203 = vsel %vm1199, %v1022, 0.0
    %v1204 = vadd.f32 %v1202, %v1203
    %v1205 = vsel %vm1199, %v1054, 0.0
    %v1206 = vadd.f32 %v1204, %v1205
    %v1207 = vsel %vm1199, %v1086, 0.0
    %v1208 = vadd.f32 %v1206, %v1207
    %v1209 = vsel %vm1199, %v1118, 0.0
    %v1210 = vadd.f32 %v1208, %v1209
    %v1211 = vsel %vm1199, %v1150, 0.0
    %v1212 = vadd.f32 %v1210, %v1211
    %v1213 = vsel %vm1199, %v1182, 0.0
    %v1214 = vadd.f32 %v1212, %v1213
    %1215 = vst.msk [vmem:[#allocation3] sm:$0xff] %vm191, %v1198
    %1216 = vst.msk [vmem:[#allocation3 + $0x8] sm:$0x3f] %vm1199, %v1214
    %v1217 = vld [vmem:[#allocation2 + $0x10] sm:$0xc0]
    %v1218 = vld [vmem:[#allocation2 + $0x20] sm:$0xff]
    %v1219 = vld [vmem:[#allocation2 + $0x30] sm:$0xf]
    %v1220 = vld [vmem:[#allocation2 + $0x18] sm:$0xc0]
    %v1221 = vld [vmem:[#allocation2 + $0x28] sm:$0xff]
    %v1222 = vld [vmem:[#allocation2 + $0x38] sm:$0xf]
    %v1223 = vmul.f32 %v1217, %v411
    %v1224 = vmul.f32 %v1218, %v411
    %v1225 = vmul.f32 %v1219, %v411
    %v1226 = vmul.f32 %v1217, %v412
    %v1227 = vmul.f32 %v1218, %v412
    %v1228 = vmul.f32 %v1219, %v412
    %v1229 = vmul.f32 %v1217, %v413
    %v1230 = vmul.f32 %v1218, %v413
    %v1231 = vmul.f32 %v1219, %v413
    %v1232 = vmul.f32 %v1217, %v414
    %v1233 = vmul.f32 %v1218, %v414
    %v1234 = vmul.f32 %v1219, %v414
    %v1235 = vmul.f32 %v1217, %v415
    %v1236 = vmul.f32 %v1218, %v415
    %v1237 = vmul.f32 %v1219, %v415
    %v1238 = vmul.f32 %v1217, %v416
    %v1239 = vmul.f32 %v1218, %v416
    %v1240 = vmul.f32 %v1219, %v416
    %v1241 = vmul.f32 %v1217, %v417
    %v1242 = vmul.f32 %v1218, %v417
    %v1243 = vmul.f32 %v1219, %v417
    %v1244 = vmul.f32 %v1217, %v418
    %v1245 = vmul.f32 %v1218, %v418
    %v1246 = vmul.f32 %v1219, %v418
    %v1247 = vmul.f32 %v1220, %v411
    %v1248 = vmul.f32 %v1221, %v411
    %v1249 = vmul.f32 %v1222, %v411
    %v1250 = vmul.f32 %v1220, %v412
    %v1251 = vmul.f32 %v1221, %v412
    %v1252 = vmul.f32 %v1222, %v412
    %v1253 = vmul.f32 %v1220, %v413
    %v1254 = vmul.f32 %v1221, %v413
    %v1255 = vmul.f32 %v1222, %v413
    %v1256 = vmul.f32 %v1220, %v414
    %v1257 = vmul.f32 %v1221, %v414
    %v1258 = vmul.f32 %v1222, %v414
    %v1259 = vmul.f32 %v1220, %v415
    %v1260 = vmul.f32 %v1221, %v415
    %v1261 = vmul.f32 %v1222, %v415
    %v1262 = vmul.f32 %v1220, %v416
    %v1263 = vmul.f32 %v1221, %v416
    %v1264 = vmul.f32 %v1222, %v416
    %v1265 = vmul.f32 %v1220, %v417
    %v1266 = vmul.f32 %v1221, %v417
    %v1267 = vmul.f32 %v1222, %v417
    %v1268 = vmul.f32 %v1220, %v418
    %v1269 = vmul.f32 %v1221, %v418
    %v1270 = vmul.f32 %v1222, %v418
    %vm1274 = vcmask 1041408
    %v1275 = vrot.slane %v1223, 6
    %v1276 = vrot.slane %v1224, 6
    %v1277 = vsel %vm1274, %v1275, %v1276
    %v1278 = vrot.slane %v1225, 6
    %v1279 = vsel %vm1274, %v1276, %v1278
    %v1283 = vrot.slane %v1217, 6
    %v1284 = vrot.slane %v1218, 6
    %v1285 = vsel %vm1274, %v1283, %v1284
    %v1286 = vrot.slane %v1219, 6
    %v1287 = vsel %vm1274, %v1284, %v1286
    %1288 = vrot.lane.b32.xlu0 %v1285, 64
    %v1289 = vpop.permute.xlu0 %1288
    %1290 = vrot.lane.b32.xlu0 %v1287, 64
    %v1291 = vpop.permute.xlu0 %1290
    %v1292 = vsel %vm191, %v1277, 0
    %v1294 = vsel %vm191, %v1279, 0
    %v1296 = vsel %vm191, %v1289, 0
    %v1298 = vsel %vm191, %v1291, 0
    %1300 = vmatpush.xpose.msra.mxu0 0.0
    %1301 = vmatpush.xpose.msra.mxu0 0.0
    %1302 = vmatpush.xpose.msra.mxu0 0.0
    %1303 = vmatpush.xpose.msra.mxu0 0.0
    %1304 = vmatpush.xpose.msra.mxu0 0.0
    %1305 = vmatpush.xpose.msra.mxu0 0.0
    %1306 = vmatpush.xpose.msra.mxu0 0.0
    %1307 = vmatpush.xpose.msra.mxu0 0.0
    %1308 = vmatpush.xpose.msra.mxu0 0.0
    %1309 = vmatpush.xpose.msra.mxu0 0.0
    %1310 = vmatpush.xpose.msra.mxu0 0.0
    %1311 = vmatpush.xpose.msra.mxu0 0.0
    %1312 = vmatpush.xpose.msra.mxu0 0.0
    %1313 = vmatpush.xpose.msra.mxu0 0.0
    %1314 = vmatpush.xpose.msra.mxu0 %v1298
    %1315 = vmatpush.xpose.msra.mxu0 %v1296
    %1316 = vmatmul.f32.gmra.mxu0 %v1292
    %v1317 = vpop.f32.mrf.mxu0
    %v1318 = vadd.f32 0.0, %v1317
    %1319 = vmatmul.f32.gmra.mxu0 %v1294
    %v1320 = vpop.f32.mrf.mxu0
    %v1321 = vadd.f32 0.0, %v1320
    %1322 = vdwg.mxu0
    %v1326 = vrot.slane %v1226, 6
    %v1327 = vrot.slane %v1227, 6
    %v1328 = vsel %vm1274, %v1326, %v1327
    %v1329 = vrot.slane %v1228, 6
    %v1330 = vsel %vm1274, %v1327, %v1329
    %v1331 = vsel %vm191, %v1328, 0
    %v1333 = vsel %vm191, %v1330, 0
    %1335 = vmatpush.xpose.msra.mxu0 0.0
    %1336 = vmatpush.xpose.msra.mxu0 0.0
    %1337 = vmatpush.xpose.msra.mxu0 0.0
    %1338 = vmatpush.xpose.msra.mxu0 0.0
    %1339 = vmatpush.xpose.msra.mxu0 0.0
    %1340 = vmatpush.xpose.msra.mxu0 0.0
    %1341 = vmatpush.xpose.msra.mxu0 0.0
    %1342 = vmatpush.xpose.msra.mxu0 0.0
    %1343 = vmatpush.xpose.msra.mxu0 0.0
    %1344 = vmatpush.xpose.msra.mxu0 0.0
    %1345 = vmatpush.xpose.msra.mxu0 0.0
    %1346 = vmatpush.xpose.msra.mxu0 0.0
    %1347 = vmatpush.xpose.msra.mxu0 0.0
    %1348 = vmatpush.xpose.msra.mxu0 0.0
    %1349 = vmatpush.xpose.msra.mxu0 %v1298
    %1350 = vmatpush.xpose.msra.mxu0 %v1296
    %1351 = vmatmul.f32.gmra.mxu0 %v1331
    %v1352 = vpop.f32.mrf.mxu0
    %v1353 = vadd.f32 0.0, %v1352
    %1354 = vmatmul.f32.gmra.mxu0 %v1333
    %v1355 = vpop.f32.mrf.mxu0
    %v1356 = vadd.f32 0.0, %v1355
    %1357 = vdwg.mxu0
    %v1361 = vrot.slane %v1229, 6
    %v1362 = vrot.slane %v1230, 6
    %v1363 = vsel %vm1274, %v1361, %v1362
    %v1364 = vrot.slane %v1231, 6
    %v1365 = vsel %vm1274, %v1362, %v1364
    %v1366 = vsel %vm191, %v1363, 0
    %v1368 = vsel %vm191, %v1365, 0
    %1370 = vmatpush.xpose.msra.mxu0 0.0
    %1371 = vmatpush.xpose.msra.mxu0 0.0
    %1372 = vmatpush.xpose.msra.mxu0 0.0
    %1373 = vmatpush.xpose.msra.mxu0 0.0
    %1374 = vmatpush.xpose.msra.mxu0 0.0
    %1375 = vmatpush.xpose.msra.mxu0 0.0
    %1376 = vmatpush.xpose.msra.mxu0 0.0
    %1377 = vmatpush.xpose.msra.mxu0 0.0
    %1378 = vmatpush.xpose.msra.mxu0 0.0
    %1379 = vmatpush.xpose.msra.mxu0 0.0
    %1380 = vmatpush.xpose.msra.mxu0 0.0
    %1381 = vmatpush.xpose.msra.mxu0 0.0
    %1382 = vmatpush.xpose.msra.mxu0 0.0
    %1383 = vmatpush.xpose.msra.mxu0 0.0
    %1384 = vmatpush.xpose.msra.mxu0 %v1298
    %1385 = vmatpush.xpose.msra.mxu0 %v1296
    %1386 = vmatmul.f32.gmra.mxu0 %v1366
    %v1387 = vpop.f32.mrf.mxu0
    %v1388 = vadd.f32 0.0, %v1387
    %1389 = vmatmul.f32.gmra.mxu0 %v1368
    %v1390 = vpop.f32.mrf.mxu0
    %v1391 = vadd.f32 0.0, %v1390
    %1392 = vdwg.mxu0
    %v1396 = vrot.slane %v1232, 6
    %v1397 = vrot.slane %v1233, 6
    %v1398 = vsel %vm1274, %v1396, %v1397
    %v1399 = vrot.slane %v1234, 6
    %v1400 = vsel %vm1274, %v1397, %v1399
    %v1401 = vsel %vm191, %v1398, 0
    %v1403 = vsel %vm191, %v1400, 0
    %1405 = vmatpush.xpose.msra.mxu0 0.0
    %1406 = vmatpush.xpose.msra.mxu0 0.0
    %1407 = vmatpush.xpose.msra.mxu0 0.0
    %1408 = vmatpush.xpose.msra.mxu0 0.0
    %1409 = vmatpush.xpose.msra.mxu0 0.0
    %1410 = vmatpush.xpose.msra.mxu0 0.0
    %1411 = vmatpush.xpose.msra.mxu0 0.0
    %1412 = vmatpush.xpose.msra.mxu0 0.0
    %1413 = vmatpush.xpose.msra.mxu0 0.0
    %1414 = vmatpush.xpose.msra.mxu0 0.0
    %1415 = vmatpush.xpose.msra.mxu0 0.0
    %1416 = vmatpush.xpose.msra.mxu0 0.0
    %1417 = vmatpush.xpose.msra.mxu0 0.0
    %1418 = vmatpush.xpose.msra.mxu0 0.0
    %1419 = vmatpush.xpose.msra.mxu0 %v1298
    %1420 = vmatpush.xpose.msra.mxu0 %v1296
    %1421 = vmatmul.f32.gmra.mxu0 %v1401
    %v1422 = vpop.f32.mrf.mxu0
    %v1423 = vadd.f32 0.0, %v1422
    %1424 = vmatmul.f32.gmra.mxu0 %v1403
    %v1425 = vpop.f32.mrf.mxu0
    %v1426 = vadd.f32 0.0, %v1425
    %1427 = vdwg.mxu0
    %v1431 = vrot.slane %v1235, 6
    %v1432 = vrot.slane %v1236, 6
    %v1433 = vsel %vm1274, %v1431, %v1432
    %v1434 = vrot.slane %v1237, 6
    %v1435 = vsel %vm1274, %v1432, %v1434
    %v1436 = vsel %vm191, %v1433, 0
    %v1438 = vsel %vm191, %v1435, 0
    %1440 = vmatpush.xpose.msra.mxu0 0.0
    %1441 = vmatpush.xpose.msra.mxu0 0.0
    %1442 = vmatpush.xpose.msra.mxu0 0.0
    %1443 = vmatpush.xpose.msra.mxu0 0.0
    %1444 = vmatpush.xpose.msra.mxu0 0.0
    %1445 = vmatpush.xpose.msra.mxu0 0.0
    %1446 = vmatpush.xpose.msra.mxu0 0.0
    %1447 = vmatpush.xpose.msra.mxu0 0.0
    %1448 = vmatpush.xpose.msra.mxu0 0.0
    %1449 = vmatpush.xpose.msra.mxu0 0.0
    %1450 = vmatpush.xpose.msra.mxu0 0.0
    %1451 = vmatpush.xpose.msra.mxu0 0.0
    %1452 = vmatpush.xpose.msra.mxu0 0.0
    %1453 = vmatpush.xpose.msra.mxu0 0.0
    %1454 = vmatpush.xpose.msra.mxu0 %v1298
    %1455 = vmatpush.xpose.msra.mxu0 %v1296
    %1456 = vmatmul.f32.gmra.mxu0 %v1436
    %v1457 = vpop.f32.mrf.mxu0
    %v1458 = vadd.f32 0.0, %v1457
    %1459 = vmatmul.f32.gmra.mxu0 %v1438
    %v1460 = vpop.f32.mrf.mxu0
    %v1461 = vadd.f32 0.0, %v1460
    %1462 = vdwg.mxu0
    %v1466 = vrot.slane %v1238, 6
    %v1467 = vrot.slane %v1239, 6
    %v1468 = vsel %vm1274, %v1466, %v1467
    %v1469 = vrot.slane %v1240, 6
    %v1470 = vsel %vm1274, %v1467, %v1469
    %v1471 = vsel %vm191, %v1468, 0
    %v1473 = vsel %vm191, %v1470, 0
    %1475 = vmatpush.xpose.msra.mxu0 0.0
    %1476 = vmatpush.xpose.msra.mxu0 0.0
    %1477 = vmatpush.xpose.msra.mxu0 0.0
    %1478 = vmatpush.xpose.msra.mxu0 0.0
    %1479 = vmatpush.xpose.msra.mxu0 0.0
    %1480 = vmatpush.xpose.msra.mxu0 0.0
    %1481 = vmatpush.xpose.msra.mxu0 0.0
    %1482 = vmatpush.xpose.msra.mxu0 0.0
    %1483 = vmatpush.xpose.msra.mxu0 0.0
    %1484 = vmatpush.xpose.msra.mxu0 0.0
    %1485 = vmatpush.xpose.msra.mxu0 0.0
    %1486 = vmatpush.xpose.msra.mxu0 0.0
    %1487 = vmatpush.xpose.msra.mxu0 0.0
    %1488 = vmatpush.xpose.msra.mxu0 0.0
    %1489 = vmatpush.xpose.msra.mxu0 %v1298
    %1490 = vmatpush.xpose.msra.mxu0 %v1296
    %1491 = vmatmul.f32.gmra.mxu0 %v1471
    %v1492 = vpop.f32.mrf.mxu0
    %v1493 = vadd.f32 0.0, %v1492
    %1494 = vmatmul.f32.gmra.mxu0 %v1473
    %v1495 = vpop.f32.mrf.mxu0
    %v1496 = vadd.f32 0.0, %v1495
    %1497 = vdwg.mxu0
    %v1501 = vrot.slane %v1241, 6
    %v1502 = vrot.slane %v1242, 6
    %v1503 = vsel %vm1274, %v1501, %v1502
    %v1504 = vrot.slane %v1243, 6
    %v1505 = vsel %vm1274, %v1502, %v1504
    %v1506 = vsel %vm191, %v1503, 0
    %v1508 = vsel %vm191, %v1505, 0
    %1510 = vmatpush.xpose.msra.mxu0 0.0
    %1511 = vmatpush.xpose.msra.mxu0 0.0
    %1512 = vmatpush.xpose.msra.mxu0 0.0
    %1513 = vmatpush.xpose.msra.mxu0 0.0
    %1514 = vmatpush.xpose.msra.mxu0 0.0
    %1515 = vmatpush.xpose.msra.mxu0 0.0
    %1516 = vmatpush.xpose.msra.mxu0 0.0
    %1517 = vmatpush.xpose.msra.mxu0 0.0
    %1518 = vmatpush.xpose.msra.mxu0 0.0
    %1519 = vmatpush.xpose.msra.mxu0 0.0
    %1520 = vmatpush.xpose.msra.mxu0 0.0
    %1521 = vmatpush.xpose.msra.mxu0 0.0
    %1522 = vmatpush.xpose.msra.mxu0 0.0
    %1523 = vmatpush.xpose.msra.mxu0 0.0
    %1524 = vmatpush.xpose.msra.mxu0 %v1298
    %1525 = vmatpush.xpose.msra.mxu0 %v1296
    %1526 = vmatmul.f32.gmra.mxu0 %v1506
    %v1527 = vpop.f32.mrf.mxu0
    %v1528 = vadd.f32 0.0, %v1527
    %1529 = vmatmul.f32.gmra.mxu0 %v1508
    %v1530 = vpop.f32.mrf.mxu0
    %v1531 = vadd.f32 0.0, %v1530
    %1532 = vdwg.mxu0
    %v1536 = vrot.slane %v1244, 6
    %v1537 = vrot.slane %v1245, 6
    %v1538 = vsel %vm1274, %v1536, %v1537
    %v1539 = vrot.slane %v1246, 6
    %v1540 = vsel %vm1274, %v1537, %v1539
    %v1541 = vsel %vm191, %v1538, 0
    %v1543 = vsel %vm191, %v1540, 0
    %1545 = vmatpush.xpose.msra.mxu0 0.0
    %1546 = vmatpush.xpose.msra.mxu0 0.0
    %1547 = vmatpush.xpose.msra.mxu0 0.0
    %1548 = vmatpush.xpose.msra.mxu0 0.0
    %1549 = vmatpush.xpose.msra.mxu0 0.0
    %1550 = vmatpush.xpose.msra.mxu0 0.0
    %1551 = vmatpush.xpose.msra.mxu0 0.0
    %1552 = vmatpush.xpose.msra.mxu0 0.0
    %1553 = vmatpush.xpose.msra.mxu0 0.0
    %1554 = vmatpush.xpose.msra.mxu0 0.0
    %1555 = vmatpush.xpose.msra.mxu0 0.0
    %1556 = vmatpush.xpose.msra.mxu0 0.0
    %1557 = vmatpush.xpose.msra.mxu0 0.0
    %1558 = vmatpush.xpose.msra.mxu0 0.0
    %1559 = vmatpush.xpose.msra.mxu0 %v1298
    %1560 = vmatpush.xpose.msra.mxu0 %v1296
    %1561 = vmatmul.f32.gmra.mxu0 %v1541
    %v1562 = vpop.f32.mrf.mxu0
    %v1563 = vadd.f32 0.0, %v1562
    %1564 = vmatmul.f32.gmra.mxu0 %v1543
    %v1565 = vpop.f32.mrf.mxu0
    %v1566 = vadd.f32 0.0, %v1565
    %1567 = vdwg.mxu0
    %v1568 = vmul.f32 %v1318, 0.35355338
    %v1569 = vmul.f32 %v1321, 0.35355338
    %v1570 = vmul.f32 %v1353, 0.35355338
    %v1571 = vmul.f32 %v1356, 0.35355338
    %v1572 = vmul.f32 %v1388, 0.35355338
    %v1573 = vmul.f32 %v1391, 0.35355338
    %v1574 = vmul.f32 %v1423, 0.35355338
    %v1575 = vmul.f32 %v1426, 0.35355338
    %v1576 = vmul.f32 %v1458, 0.35355338
    %v1577 = vmul.f32 %v1461, 0.35355338
    %v1578 = vmul.f32 %v1493, 0.35355338
    %v1579 = vmul.f32 %v1496, 0.35355338
    %v1580 = vmul.f32 %v1528, 0.35355338
    %v1581 = vmul.f32 %v1531, 0.35355338
    %v1582 = vmul.f32 %v1563, 0.35355338
    %v1583 = vmul.f32 %v1566, 0.35355338
    %v1584 = vsel %vm717, %v1568, -inf
    %1585 = vmax.xlane.f32.xlu0 %v1584
    %v1586 = vpop.xlane.xlu0 %1585
    %v1587 = vsel %vm721, %v1569, -inf
    %1588 = vmax.xlane.f32.xlu0 %v1587
    %v1589 = vpop.xlane.xlu0 %1588
    %v1590 = vsel %vm717, %v1570, -inf
    %1591 = vmax.xlane.f32.xlu0 %v1590
    %v1592 = vpop.xlane.xlu0 %1591
    %v1593 = vsel %vm721, %v1571, -inf
    %1594 = vmax.xlane.f32.xlu0 %v1593
    %v1595 = vpop.xlane.xlu0 %1594
    %v1596 = vsel %vm717, %v1572, -inf
    %1597 = vmax.xlane.f32.xlu0 %v1596
    %v1598 = vpop.xlane.xlu0 %1597
    %v1599 = vsel %vm721, %v1573, -inf
    %1600 = vmax.xlane.f32.xlu0 %v1599
    %v1601 = vpop.xlane.xlu0 %1600
    %v1602 = vsel %vm717, %v1574, -inf
    %1603 = vmax.xlane.f32.xlu0 %v1602
    %v1604 = vpop.xlane.xlu0 %1603
    %v1605 = vsel %vm721, %v1575, -inf
    %1606 = vmax.xlane.f32.xlu0 %v1605
    %v1607 = vpop.xlane.xlu0 %1606
    %v1608 = vsel %vm717, %v1576, -inf
    %1609 = vmax.xlane.f32.xlu0 %v1608
    %v1610 = vpop.xlane.xlu0 %1609
    %v1611 = vsel %vm721, %v1577, -inf
    %1612 = vmax.xlane.f32.xlu0 %v1611
    %v1613 = vpop.xlane.xlu0 %1612
    %v1614 = vsel %vm717, %v1578, -inf
    %1615 = vmax.xlane.f32.xlu0 %v1614
    %v1616 = vpop.xlane.xlu0 %1615
    %v1617 = vsel %vm721, %v1579, -inf
    %1618 = vmax.xlane.f32.xlu0 %v1617
    %v1619 = vpop.xlane.xlu0 %1618
    %v1620 = vsel %vm717, %v1580, -inf
    %1621 = vmax.xlane.f32.xlu0 %v1620
    %v1622 = vpop.xlane.xlu0 %1621
    %v1623 = vsel %vm721, %v1581, -inf
    %1624 = vmax.xlane.f32.xlu0 %v1623
    %v1625 = vpop.xlane.xlu0 %1624
    %v1626 = vsel %vm717, %v1582, -inf
    %1627 = vmax.xlane.f32.xlu0 %v1626
    %v1628 = vpop.xlane.xlu0 %1627
    %v1629 = vsel %vm721, %v1583, -inf
    %1630 = vmax.xlane.f32.xlu0 %v1629
    %v1631 = vpop.xlane.xlu0 %1630
    %v1632 = vsub.f32 %v1568, %v1586
    %v1633 = vsub.f32 %v1569, %v1589
    %v1634 = vsub.f32 %v1570, %v1592
    %v1635 = vsub.f32 %v1571, %v1595
    %v1636 = vsub.f32 %v1572, %v1598
    %v1637 = vsub.f32 %v1573, %v1601
    %v1638 = vsub.f32 %v1574, %v1604
    %v1639 = vsub.f32 %v1575, %v1607
    %v1640 = vsub.f32 %v1576, %v1610
    %v1641 = vsub.f32 %v1577, %v1613
    %v1642 = vsub.f32 %v1578, %v1616
    %v1643 = vsub.f32 %v1579, %v1619
    %v1644 = vsub.f32 %v1580, %v1622
    %v1645 = vsub.f32 %v1581, %v1625
    %v1646 = vsub.f32 %v1582, %v1628
    %v1647 = vsub.f32 %v1583, %v1631
    %v1648 = vmul.f32 %v1632, 1.442695
    %v1649 = vpow.pop %v1648
    %v1650 = vmul.f32 %v1633, 1.442695
    %v1651 = vpow.pop %v1650
    %v1652 = vmul.f32 %v1634, 1.442695
    %v1653 = vpow.pop %v1652
    %v1654 = vmul.f32 %v1635, 1.442695
    %v1655 = vpow.pop %v1654
    %v1656 = vmul.f32 %v1636, 1.442695
    %v1657 = vpow.pop %v1656
    %v1658 = vmul.f32 %v1637, 1.442695
    %v1659 = vpow.pop %v1658
    %v1660 = vmul.f32 %v1638, 1.442695
    %v1661 = vpow.pop %v1660
    %v1662 = vmul.f32 %v1639, 1.442695
    %v1663 = vpow.pop %v1662
    %v1664 = vmul.f32 %v1640, 1.442695
    %v1665 = vpow.pop %v1664
    %v1666 = vmul.f32 %v1641, 1.442695
    %v1667 = vpow.pop %v1666
    %v1668 = vmul.f32 %v1642, 1.442695
    %v1669 = vpow.pop %v1668
    %v1670 = vmul.f32 %v1643, 1.442695
    %v1671 = vpow.pop %v1670
    %v1672 = vmul.f32 %v1644, 1.442695
    %v1673 = vpow.pop %v1672
    %v1674 = vmul.f32 %v1645, 1.442695
    %v1675 = vpow.pop %v1674
    %v1676 = vmul.f32 %v1646, 1.442695
    %v1677 = vpow.pop %v1676
    %v1678 = vmul.f32 %v1647, 1.442695
    %v1679 = vpow.pop %v1678
    %v1680 = vsel %vm717, %v1649, 0.0
    %1681 = vadd.xlane.f32.xlu0 %v1680
    %v1682 = vpop.xlane.xlu0 %1681
    %v1683 = vsel %vm721, %v1651, 0.0
    %1684 = vadd.xlane.f32.xlu0 %v1683
    %v1685 = vpop.xlane.xlu0 %1684
    %v1686 = vsel %vm717, %v1653, 0.0
    %1687 = vadd.xlane.f32.xlu0 %v1686
    %v1688 = vpop.xlane.xlu0 %1687
    %v1689 = vsel %vm721, %v1655, 0.0
    %1690 = vadd.xlane.f32.xlu0 %v1689
    %v1691 = vpop.xlane.xlu0 %1690
    %v1692 = vsel %vm717, %v1657, 0.0
    %1693 = vadd.xlane.f32.xlu0 %v1692
    %v1694 = vpop.xlane.xlu0 %1693
    %v1695 = vsel %vm721, %v1659, 0.0
    %1696 = vadd.xlane.f32.xlu0 %v1695
    %v1697 = vpop.xlane.xlu0 %1696
    %v1698 = vsel %vm717, %v1661, 0.0
    %1699 = vadd.xlane.f32.xlu0 %v1698
    %v1700 = vpop.xlane.xlu0 %1699
    %v1701 = vsel %vm721, %v1663, 0.0
    %1702 = vadd.xlane.f32.xlu0 %v1701
    %v1703 = vpop.xlane.xlu0 %1702
    %v1704 = vsel %vm717, %v1665, 0.0
    %1705 = vadd.xlane.f32.xlu0 %v1704
    %v1706 = vpop.xlane.xlu0 %1705
    %v1707 = vsel %vm721, %v1667, 0.0
    %1708 = vadd.xlane.f32.xlu0 %v1707
    %v1709 = vpop.xlane.xlu0 %1708
    %v1710 = vsel %vm717, %v1669, 0.0
    %1711 = vadd.xlane.f32.xlu0 %v1710
    %v1712 = vpop.xlane.xlu0 %1711
    %v1713 = vsel %vm721, %v1671, 0.0
    %1714 = vadd.xlane.f32.xlu0 %v1713
    %v1715 = vpop.xlane.xlu0 %1714
    %v1716 = vsel %vm717, %v1673, 0.0
    %1717 = vadd.xlane.f32.xlu0 %v1716
    %v1718 = vpop.xlane.xlu0 %1717
    %v1719 = vsel %vm721, %v1675, 0.0
    %1720 = vadd.xlane.f32.xlu0 %v1719
    %v1721 = vpop.xlane.xlu0 %1720
    %v1722 = vsel %vm717, %v1677, 0.0
    %1723 = vadd.xlane.f32.xlu0 %v1722
    %v1724 = vpop.xlane.xlu0 %1723
    %v1725 = vsel %vm721, %v1679, 0.0
    %1726 = vadd.xlane.f32.xlu0 %v1725
    %v1727 = vpop.xlane.xlu0 %1726
    %v1728 = vrcp.pop %v1682
    %v1729 = vrcp.pop %v1685
    %v1730 = vrcp.pop %v1688
    %v1731 = vrcp.pop %v1691
    %v1732 = vrcp.pop %v1694
    %v1733 = vrcp.pop %v1697
    %v1734 = vrcp.pop %v1700
    %v1735 = vrcp.pop %v1703
    %v1736 = vrcp.pop %v1706
    %v1737 = vrcp.pop %v1709
    %v1738 = vrcp.pop %v1712
    %v1739 = vrcp.pop %v1715
    %v1740 = vrcp.pop %v1718
    %v1741 = vrcp.pop %v1721
    %v1742 = vrcp.pop %v1724
    %v1743 = vrcp.pop %v1727
    %v1744 = vmul.f32 %v1649, %v1728
    %v1745 = vmul.f32 %v1651, %v1729
    %v1746 = vmul.f32 %v1653, %v1730
    %v1747 = vmul.f32 %v1655, %v1731
    %v1748 = vmul.f32 %v1657, %v1732
    %v1749 = vmul.f32 %v1659, %v1733
    %v1750 = vmul.f32 %v1661, %v1734
    %v1751 = vmul.f32 %v1663, %v1735
    %v1752 = vmul.f32 %v1665, %v1736
    %v1753 = vmul.f32 %v1667, %v1737
    %v1754 = vmul.f32 %v1669, %v1738
    %v1755 = vmul.f32 %v1671, %v1739
    %v1756 = vmul.f32 %v1673, %v1740
    %v1757 = vmul.f32 %v1675, %v1741
    %v1758 = vmul.f32 %v1677, %v1742
    %v1759 = vmul.f32 %v1679, %v1743
    %v1760 = vsel %vm717, %v1744, 0.0
    %v1761 = vsel %vm717, %v1746, 0.0
    %v1762 = vadd.f32 %v1760, %v1761
    %v1763 = vsel %vm717, %v1748, 0.0
    %v1764 = vadd.f32 %v1762, %v1763
    %v1765 = vsel %vm717, %v1750, 0.0
    %v1766 = vadd.f32 %v1764, %v1765
    %v1767 = vsel %vm717, %v1752, 0.0
    %v1768 = vadd.f32 %v1766, %v1767
    %v1769 = vsel %vm717, %v1754, 0.0
    %v1770 = vadd.f32 %v1768, %v1769
    %v1771 = vsel %vm717, %v1756, 0.0
    %v1772 = vadd.f32 %v1770, %v1771
    %v1773 = vsel %vm717, %v1758, 0.0
    %v1774 = vadd.f32 %v1772, %v1773
    %v1775 = vsel %vm721, %v1745, 0.0
    %v1776 = vsel %vm721, %v1747, 0.0
    %v1777 = vadd.f32 %v1775, %v1776
    %v1778 = vsel %vm721, %v1749, 0.0
    %v1779 = vadd.f32 %v1777, %v1778
    %v1780 = vsel %vm721, %v1751, 0.0
    %v1781 = vadd.f32 %v1779, %v1780
    %v1782 = vsel %vm721, %v1753, 0.0
    %v1783 = vadd.f32 %v1781, %v1782
    %v1784 = vsel %vm721, %v1755, 0.0
    %v1785 = vadd.f32 %v1783, %v1784
    %v1786 = vsel %vm721, %v1757, 0.0
    %v1787 = vadd.f32 %v1785, %v1786
    %v1788 = vsel %vm721, %v1759, 0.0
    %v1789 = vadd.f32 %v1787, %v1788
    %v1790 = vadd.f32 %v1774, 0.0
    %v1791 = vadd.f32 %v1789, 0.0
    %v1795 = vrot.slane %v1247, 6
    %v1796 = vrot.slane %v1248, 6
    %v1797 = vsel %vm1274, %v1795, %v1796
    %v1798 = vrot.slane %v1249, 6
    %v1799 = vsel %vm1274, %v1796, %v1798
    %v1802 = vsel %vm717, %v1744, 0
    %v1805 = vsel %vm717, %v1745, 0
    %v1807 = vsel %vm933, %v1799, 0
    %1809 = vmatpush.msra.mxu0 0.0
    %1810 = vmatpush.msra.mxu0 0.0
    %1811 = vmatpush.msra.mxu0 0.0
    %1812 = vmatpush.msra.mxu0 0.0
    %1813 = vmatpush.msra.mxu0 0.0
    %1814 = vmatpush.msra.mxu0 0.0
    %1815 = vmatpush.msra.mxu0 0.0
    %1816 = vmatpush.msra.mxu0 0.0
    %1817 = vmatpush.msra.mxu0 0.0
    %1818 = vmatpush.msra.mxu0 0.0
    %1819 = vmatpush.msra.mxu0 0.0
    %1820 = vmatpush.msra.mxu0 0.0
    %1821 = vmatpush.msra.mxu0 0.0
    %1822 = vmatpush.msra.mxu0 0.0
    %1823 = vmatpush.msra.mxu0 %v1807
    %1824 = vmatpush.msra.mxu0 %v1797
    %1825 = vmatmul.f32.gmra.mxu0 %v1802
    %v1826 = vpop.f32.mrf.mxu0
    %v1827 = vadd.f32 0.0, %v1826
    %1828 = vmatmul.f32.gmra.mxu0 %v1805
    %v1829 = vpop.f32.mrf.mxu0
    %v1830 = vadd.f32 0.0, %v1829
    %1831 = vdwg.mxu0
    %v1835 = vrot.slane %v1250, 6
    %v1836 = vrot.slane %v1251, 6
    %v1837 = vsel %vm1274, %v1835, %v1836
    %v1838 = vrot.slane %v1252, 6
    %v1839 = vsel %vm1274, %v1836, %v1838
    %v1842 = vsel %vm717, %v1746, 0
    %v1845 = vsel %vm717, %v1747, 0
    %v1847 = vsel %vm933, %v1839, 0
    %1849 = vmatpush.msra.mxu0 0.0
    %1850 = vmatpush.msra.mxu0 0.0
    %1851 = vmatpush.msra.mxu0 0.0
    %1852 = vmatpush.msra.mxu0 0.0
    %1853 = vmatpush.msra.mxu0 0.0
    %1854 = vmatpush.msra.mxu0 0.0
    %1855 = vmatpush.msra.mxu0 0.0
    %1856 = vmatpush.msra.mxu0 0.0
    %1857 = vmatpush.msra.mxu0 0.0
    %1858 = vmatpush.msra.mxu0 0.0
    %1859 = vmatpush.msra.mxu0 0.0
    %1860 = vmatpush.msra.mxu0 0.0
    %1861 = vmatpush.msra.mxu0 0.0
    %1862 = vmatpush.msra.mxu0 0.0
    %1863 = vmatpush.msra.mxu0 %v1847
    %1864 = vmatpush.msra.mxu0 %v1837
    %1865 = vmatmul.f32.gmra.mxu0 %v1842
    %v1866 = vpop.f32.mrf.mxu0
    %v1867 = vadd.f32 0.0, %v1866
    %1868 = vmatmul.f32.gmra.mxu0 %v1845
    %v1869 = vpop.f32.mrf.mxu0
    %v1870 = vadd.f32 0.0, %v1869
    %1871 = vdwg.mxu0
    %v1875 = vrot.slane %v1253, 6
    %v1876 = vrot.slane %v1254, 6
    %v1877 = vsel %vm1274, %v1875, %v1876
    %v1878 = vrot.slane %v1255, 6
    %v1879 = vsel %vm1274, %v1876, %v1878
    %v1882 = vsel %vm717, %v1748, 0
    %v1885 = vsel %vm717, %v1749, 0
    %v1887 = vsel %vm933, %v1879, 0
    %1889 = vmatpush.msra.mxu0 0.0
    %1890 = vmatpush.msra.mxu0 0.0
    %1891 = vmatpush.msra.mxu0 0.0
    %1892 = vmatpush.msra.mxu0 0.0
    %1893 = vmatpush.msra.mxu0 0.0
    %1894 = vmatpush.msra.mxu0 0.0
    %1895 = vmatpush.msra.mxu0 0.0
    %1896 = vmatpush.msra.mxu0 0.0
    %1897 = vmatpush.msra.mxu0 0.0
    %1898 = vmatpush.msra.mxu0 0.0
    %1899 = vmatpush.msra.mxu0 0.0
    %1900 = vmatpush.msra.mxu0 0.0
    %1901 = vmatpush.msra.mxu0 0.0
    %1902 = vmatpush.msra.mxu0 0.0
    %1903 = vmatpush.msra.mxu0 %v1887
    %1904 = vmatpush.msra.mxu0 %v1877
    %1905 = vmatmul.f32.gmra.mxu0 %v1882
    %v1906 = vpop.f32.mrf.mxu0
    %v1907 = vadd.f32 0.0, %v1906
    %1908 = vmatmul.f32.gmra.mxu0 %v1885
    %v1909 = vpop.f32.mrf.mxu0
    %v1910 = vadd.f32 0.0, %v1909
    %1911 = vdwg.mxu0
    %v1915 = vrot.slane %v1256, 6
    %v1916 = vrot.slane %v1257, 6
    %v1917 = vsel %vm1274, %v1915, %v1916
    %v1918 = vrot.slane %v1258, 6
    %v1919 = vsel %vm1274, %v1916, %v1918
    %v1922 = vsel %vm717, %v1750, 0
    %v1925 = vsel %vm717, %v1751, 0
    %v1927 = vsel %vm933, %v1919, 0
    %1929 = vmatpush.msra.mxu0 0.0
    %1930 = vmatpush.msra.mxu0 0.0
    %1931 = vmatpush.msra.mxu0 0.0
    %1932 = vmatpush.msra.mxu0 0.0
    %1933 = vmatpush.msra.mxu0 0.0
    %1934 = vmatpush.msra.mxu0 0.0
    %1935 = vmatpush.msra.mxu0 0.0
    %1936 = vmatpush.msra.mxu0 0.0
    %1937 = vmatpush.msra.mxu0 0.0
    %1938 = vmatpush.msra.mxu0 0.0
    %1939 = vmatpush.msra.mxu0 0.0
    %1940 = vmatpush.msra.mxu0 0.0
    %1941 = vmatpush.msra.mxu0 0.0
    %1942 = vmatpush.msra.mxu0 0.0
    %1943 = vmatpush.msra.mxu0 %v1927
    %1944 = vmatpush.msra.mxu0 %v1917
    %1945 = vmatmul.f32.gmra.mxu0 %v1922
    %v1946 = vpop.f32.mrf.mxu0
    %v1947 = vadd.f32 0.0, %v1946
    %1948 = vmatmul.f32.gmra.mxu0 %v1925
    %v1949 = vpop.f32.mrf.mxu0
    %v1950 = vadd.f32 0.0, %v1949
    %1951 = vdwg.mxu0
    %v1955 = vrot.slane %v1259, 6
    %v1956 = vrot.slane %v1260, 6
    %v1957 = vsel %vm1274, %v1955, %v1956
    %v1958 = vrot.slane %v1261, 6
    %v1959 = vsel %vm1274, %v1956, %v1958
    %v1962 = vsel %vm717, %v1752, 0
    %v1965 = vsel %vm717, %v1753, 0
    %v1967 = vsel %vm933, %v1959, 0
    %1969 = vmatpush.msra.mxu0 0.0
    %1970 = vmatpush.msra.mxu0 0.0
    %1971 = vmatpush.msra.mxu0 0.0
    %1972 = vmatpush.msra.mxu0 0.0
    %1973 = vmatpush.msra.mxu0 0.0
    %1974 = vmatpush.msra.mxu0 0.0
    %1975 = vmatpush.msra.mxu0 0.0
    %1976 = vmatpush.msra.mxu0 0.0
    %1977 = vmatpush.msra.mxu0 0.0
    %1978 = vmatpush.msra.mxu0 0.0
    %1979 = vmatpush.msra.mxu0 0.0
    %1980 = vmatpush.msra.mxu0 0.0
    %1981 = vmatpush.msra.mxu0 0.0
    %1982 = vmatpush.msra.mxu0 0.0
    %1983 = vmatpush.msra.mxu0 %v1967
    %1984 = vmatpush.msra.mxu0 %v1957
    %1985 = vmatmul.f32.gmra.mxu0 %v1962
    %v1986 = vpop.f32.mrf.mxu0
    %v1987 = vadd.f32 0.0, %v1986
    %1988 = vmatmul.f32.gmra.mxu0 %v1965
    %v1989 = vpop.f32.mrf.mxu0
    %v1990 = vadd.f32 0.0, %v1989
    %1991 = vdwg.mxu0
    %v1995 = vrot.slane %v1262, 6
    %v1996 = vrot.slane %v1263, 6
    %v1997 = vsel %vm1274, %v1995, %v1996
    %v1998 = vrot.slane %v1264, 6
    %v1999 = vsel %vm1274, %v1996, %v1998
    %v2002 = vsel %vm717, %v1754, 0
    %v2005 = vsel %vm717, %v1755, 0
    %v2007 = vsel %vm933, %v1999, 0
    %2009 = vmatpush.msra.mxu0 0.0
    %2010 = vmatpush.msra.mxu0 0.0
    %2011 = vmatpush.msra.mxu0 0.0
    %2012 = vmatpush.msra.mxu0 0.0
    %2013 = vmatpush.msra.mxu0 0.0
    %2014 = vmatpush.msra.mxu0 0.0
    %2015 = vmatpush.msra.mxu0 0.0
    %2016 = vmatpush.msra.mxu0 0.0
    %2017 = vmatpush.msra.mxu0 0.0
    %2018 = vmatpush.msra.mxu0 0.0
    %2019 = vmatpush.msra.mxu0 0.0
    %2020 = vmatpush.msra.mxu0 0.0
    %2021 = vmatpush.msra.mxu0 0.0
    %2022 = vmatpush.msra.mxu0 0.0
    %2023 = vmatpush.msra.mxu0 %v2007
    %2024 = vmatpush.msra.mxu0 %v1997
    %2025 = vmatmul.f32.gmra.mxu0 %v2002
    %v2026 = vpop.f32.mrf.mxu0
    %v2027 = vadd.f32 0.0, %v2026
    %2028 = vmatmul.f32.gmra.mxu0 %v2005
    %v2029 = vpop.f32.mrf.mxu0
    %v2030 = vadd.f32 0.0, %v2029
    %2031 = vdwg.mxu0
    %v2035 = vrot.slane %v1265, 6
    %v2036 = vrot.slane %v1266, 6
    %v2037 = vsel %vm1274, %v2035, %v2036
    %v2038 = vrot.slane %v1267, 6
    %v2039 = vsel %vm1274, %v2036, %v2038
    %v2042 = vsel %vm717, %v1756, 0
    %v2045 = vsel %vm717, %v1757, 0
    %v2047 = vsel %vm933, %v2039, 0
    %2049 = vmatpush.msra.mxu0 0.0
    %2050 = vmatpush.msra.mxu0 0.0
    %2051 = vmatpush.msra.mxu0 0.0
    %2052 = vmatpush.msra.mxu0 0.0
    %2053 = vmatpush.msra.mxu0 0.0
    %2054 = vmatpush.msra.mxu0 0.0
    %2055 = vmatpush.msra.mxu0 0.0
    %2056 = vmatpush.msra.mxu0 0.0
    %2057 = vmatpush.msra.mxu0 0.0
    %2058 = vmatpush.msra.mxu0 0.0
    %2059 = vmatpush.msra.mxu0 0.0
    %2060 = vmatpush.msra.mxu0 0.0
    %2061 = vmatpush.msra.mxu0 0.0
    %2062 = vmatpush.msra.mxu0 0.0
    %2063 = vmatpush.msra.mxu0 %v2047
    %2064 = vmatpush.msra.mxu0 %v2037
    %2065 = vmatmul.f32.gmra.mxu0 %v2042
    %v2066 = vpop.f32.mrf.mxu0
    %v2067 = vadd.f32 0.0, %v2066
    %2068 = vmatmul.f32.gmra.mxu0 %v2045
    %v2069 = vpop.f32.mrf.mxu0
    %v2070 = vadd.f32 0.0, %v2069
    %2071 = vdwg.mxu0
    %v2075 = vrot.slane %v1268, 6
    %v2076 = vrot.slane %v1269, 6
    %v2077 = vsel %vm1274, %v2075, %v2076
    %v2078 = vrot.slane %v1270, 6
    %v2079 = vsel %vm1274, %v2076, %v2078
    %v2082 = vsel %vm717, %v1758, 0
    %v2085 = vsel %vm717, %v1759, 0
    %v2087 = vsel %vm933, %v2079, 0
    %2089 = vmatpush.msra.mxu0 0.0
    %2090 = vmatpush.msra.mxu0 0.0
    %2091 = vmatpush.msra.mxu0 0.0
    %2092 = vmatpush.msra.mxu0 0.0
    %2093 = vmatpush.msra.mxu0 0.0
    %2094 = vmatpush.msra.mxu0 0.0
    %2095 = vmatpush.msra.mxu0 0.0
    %2096 = vmatpush.msra.mxu0 0.0
    %2097 = vmatpush.msra.mxu0 0.0
    %2098 = vmatpush.msra.mxu0 0.0
    %2099 = vmatpush.msra.mxu0 0.0
    %2100 = vmatpush.msra.mxu0 0.0
    %2101 = vmatpush.msra.mxu0 0.0
    %2102 = vmatpush.msra.mxu0 0.0
    %2103 = vmatpush.msra.mxu0 %v2087
    %2104 = vmatpush.msra.mxu0 %v2077
    %2105 = vmatmul.f32.gmra.mxu0 %v2082
    %v2106 = vpop.f32.mrf.mxu0
    %v2107 = vadd.f32 0.0, %v2106
    %2108 = vmatmul.f32.gmra.mxu0 %v2085
    %v2109 = vpop.f32.mrf.mxu0
    %v2110 = vadd.f32 0.0, %v2109
    %2111 = vdwg.mxu0
    %v2112 = vsel %vm191, %v1827, 0.0
    %v2113 = vsel %vm191, %v1867, 0.0
    %v2114 = vadd.f32 %v2112, %v2113
    %v2115 = vsel %vm191, %v1907, 0.0
    %v2116 = vadd.f32 %v2114, %v2115
    %v2117 = vsel %vm191, %v1947, 0.0
    %v2118 = vadd.f32 %v2116, %v2117
    %v2119 = vsel %vm191, %v1987, 0.0
    %v2120 = vadd.f32 %v2118, %v2119
    %v2121 = vsel %vm191, %v2027, 0.0
    %v2122 = vadd.f32 %v2120, %v2121
    %v2123 = vsel %vm191, %v2067, 0.0
    %v2124 = vadd.f32 %v2122, %v2123
    %v2125 = vsel %vm191, %v2107, 0.0
    %v2126 = vadd.f32 %v2124, %v2125
    %v2127 = vsel %vm1199, %v1830, 0.0
    %v2128 = vsel %vm1199, %v1870, 0.0
    %v2129 = vadd.f32 %v2127, %v2128
    %v2130 = vsel %vm1199, %v1910, 0.0
    %v2131 = vadd.f32 %v2129, %v2130
    %v2132 = vsel %vm1199, %v1950, 0.0
    %v2133 = vadd.f32 %v2131, %v2132
    %v2134 = vsel %vm1199, %v1990, 0.0
    %v2135 = vadd.f32 %v2133, %v2134
    %v2136 = vsel %vm1199, %v2030, 0.0
    %v2137 = vadd.f32 %v2135, %v2136
    %v2138 = vsel %vm1199, %v2070, 0.0
    %v2139 = vadd.f32 %v2137, %v2138
    %v2140 = vsel %vm1199, %v2110, 0.0
    %v2141 = vadd.f32 %v2139, %v2140
    %2142 = vst.msk [vmem:[#allocation3 + $0xe] sm:$0xff] %vm191, %v2126
    %2143 = vst.msk [vmem:[#allocation3 + $0x16] sm:$0x3f] %vm1199, %v2141
    %v2144 = vld [vmem:[#allocation3] sm:$0xff]
    %v2145 = vld [vmem:[#allocation3 + $0x8] sm:$0xff]
    %v2146 = vld [vmem:[#allocation3 + $0x10] sm:$0xff]
    %v2147 = vld [vmem:[#allocation3 + $0x18] sm:$0xf]
    %v2148 = vld [vmem:[%s6] sm:$0xff]
    %v2149 = vld [vmem:[%s6 + $0x8] sm:$0xff]
    %v2150 = vld [vmem:[%s6 + $0x10] sm:$0xff]
    %v2151 = vld [vmem:[%s6 + $0x18] sm:$0xff]
    %v2152 = vld [vmem:[%s6 + $0x20] sm:$0xff]
    %v2153 = vld [vmem:[%s6 + $0x28] sm:$0xff]
    %v2154 = vld [vmem:[%s6 + $0x30] sm:$0xff]
    %v2155 = vld [vmem:[%s6 + $0x38] sm:$0xff]
    %v2156 = vperm.slane %v298, 0
    %v2158 = vsel %vm191, %v2144, 0
    %v2161 = vsel %vm191, %v2145, 0
    %v2164 = vsel %vm191, %v2146, 0
    %v2167 = vsel %vm191, %v2147, 0
    %2169 = vmatpush.msra.mxu0 0.0
    %2170 = vmatpush.msra.mxu0 0.0
    %2171 = vmatpush.msra.mxu0 0.0
    %2172 = vmatpush.msra.mxu0 0.0
    %2173 = vmatpush.msra.mxu0 0.0
    %2174 = vmatpush.msra.mxu0 0.0
    %2175 = vmatpush.msra.mxu0 0.0
    %2176 = vmatpush.msra.mxu0 0.0
    %2177 = vmatpush.msra.mxu0 %v2155
    %2178 = vmatpush.msra.mxu0 %v2154
    %2179 = vmatpush.msra.mxu0 %v2153
    %2180 = vmatpush.msra.mxu0 %v2152
    %2181 = vmatpush.msra.mxu0 %v2151
    %2182 = vmatpush.msra.mxu0 %v2150
    %2183 = vmatpush.msra.mxu0 %v2149
    %2184 = vmatpush.msra.mxu0 %v2148
    %2185 = vmatmul.f32.gmra.mxu0 %v2158
    %v2186 = vpop.f32.mrf.mxu0
    %v2187 = vadd.f32 %v2156, %v2186
    %2188 = vmatmul.f32.gmra.mxu0 %v2161
    %v2189 = vpop.f32.mrf.mxu0
    %v2190 = vadd.f32 %v2156, %v2189
    %2191 = vmatmul.f32.gmra.mxu0 %v2164
    %v2192 = vpop.f32.mrf.mxu0
    %v2193 = vadd.f32 %v2156, %v2192
    %2194 = vmatmul.f32.gmra.mxu0 %v2167
    %v2195 = vpop.f32.mrf.mxu0
    %v2196 = vadd.f32 %v2156, %v2195
    %2197 = vdwg.mxu0
    %v2198 = vsel %vm191, %v2187, 0.0
    %2199 = vadd.xlane.f32.xlu0 %v2198
    %v2200 = vpop.xlane.xlu0 %2199
    %v2201 = vsel %vm191, %v2190, 0.0
    %2202 = vadd.xlane.f32.xlu0 %v2201
    %v2203 = vpop.xlane.xlu0 %2202
    %v2204 = vsel %vm191, %v2193, 0.0
    %2205 = vadd.xlane.f32.xlu0 %v2204
    %v2206 = vpop.xlane.xlu0 %2205
    %v2207 = vsel %vm201, %v2196, 0.0
    %2208 = vadd.xlane.f32.xlu0 %v2207
    %v2209 = vpop.xlane.xlu0 %2208
    %v2210 = vmul.f32 %v2200, %v211
    %v2211 = vmul.f32 %v2203, %v211
    %v2212 = vmul.f32 %v2206, %v211
    %v2213 = vmul.f32 %v2209, %v211
    %v2214 = vsub.f32 %v2187, %v2210
    %v2215 = vsub.f32 %v2190, %v2211
    %v2216 = vsub.f32 %v2193, %v2212
    %v2217 = vsub.f32 %v2196, %v2213
    %v2218 = vmul.f32 %v2214, %v2214
    %v2219 = vmul.f32 %v2215, %v2215
    %v2220 = vmul.f32 %v2216, %v2216
    %v2221 = vmul.f32 %v2217, %v2217
    %v2222 = vsel %vm191, %v2218, 0.0
    %2223 = vadd.xlane.f32.xlu0 %v2222
    %v2224 = vpop.xlane.xlu0 %2223
    %v2225 = vsel %vm191, %v2219, 0.0
    %2226 = vadd.xlane.f32.xlu0 %v2225
    %v2227 = vpop.xlane.xlu0 %2226
    %v2228 = vsel %vm191, %v2220, 0.0
    %2229 = vadd.xlane.f32.xlu0 %v2228
    %v2230 = vpop.xlane.xlu0 %2229
    %v2231 = vsel %vm201, %v2221, 0.0
    %2232 = vadd.xlane.f32.xlu0 %v2231
    %v2233 = vpop.xlane.xlu0 %2232
    %v2234 = vmul.f32 %v2224, %v211
    %v2235 = vmul.f32 %v2227, %v211
    %v2236 = vmul.f32 %v2230, %v211
    %v2237 = vmul.f32 %v2233, %v211
    %v2238 = vadd.f32 %v2234, 1e-05
    %v2239 = vadd.f32 %v2235, 1e-05
    %v2240 = vadd.f32 %v2236, 1e-05
    %v2241 = vadd.f32 %v2237, 1e-05
    %v2242 = vrsqrt.pop %v2238
    %v2243 = vmul.f32 %v2242, %v2238
    %v2244 = vmul.f32 %v2243, %v2242
    %v2245 = vmul.f32 0.5, %v2244
    %v2246 = vsub.f32 1.5, %v2245
    %v2247 = vmul.f32 %v2242, %v2246
    %vm2248 = vweird.f32 %v2238
    %vm2249 = vweird.f32 %v2242
    %vm2250 = vmor %vm2248, %vm2249
    %v2251 = vsel %vm2250, %v2242, %v2247
    %v2252 = vrsqrt.pop %v2239
    %v2253 = vmul.f32 %v2252, %v2239
    %v2254 = vmul.f32 %v2253, %v2252
    %v2255 = vmul.f32 0.5, %v2254
    %v2256 = vsub.f32 1.5, %v2255
    %v2257 = vmul.f32 %v2252, %v2256
    %vm2258 = vweird.f32 %v2239
    %vm2259 = vweird.f32 %v2252
    %vm2260 = vmor %vm2258, %vm2259
    %v2261 = vsel %vm2260, %v2252, %v2257
    %v2262 = vrsqrt.pop %v2240
    %v2263 = vmul.f32 %v2262, %v2240
    %v2264 = vmul.f32 %v2263, %v2262
    %v2265 = vmul.f32 0.5, %v2264
    %v2266 = vsub.f32 1.5, %v2265
    %v2267 = vmul.f32 %v2262, %v2266
    %vm2268 = vweird.f32 %v2240
    %vm2269 = vweird.f32 %v2262
    %vm2270 = vmor %vm2268, %vm2269
    %v2271 = vsel %vm2270, %v2262, %v2267
    %v2272 = vrsqrt.pop %v2241
    %v2273 = vmul.f32 %v2272, %v2241
    %v2274 = vmul.f32 %v2273, %v2272
    %v2275 = vmul.f32 0.5, %v2274
    %v2276 = vsub.f32 1.5, %v2275
    %v2277 = vmul.f32 %v2272, %v2276
    %vm2278 = vweird.f32 %v2241
    %vm2279 = vweird.f32 %v2272
    %vm2280 = vmor %vm2278, %vm2279
    %v2281 = vsel %vm2280, %v2272, %v2277
    %v2282 = vmul.f32 %v2214, %v2251
    %v2283 = vmul.f32 %v2215, %v2261
    %v2284 = vmul.f32 %v2216, %v2271
    %v2285 = vmul.f32 %v2217, %v2281
    %v2286 = vperm.slane %v298, 1
    %v2287 = vmul.f32 %v2282, %v2286
    %v2288 = vmul.f32 %v2283, %v2286
    %v2289 = vmul.f32 %v2284, %v2286
    %v2290 = vmul.f32 %v2285, %v2286
    %v2291 = vperm.slane %v298, 2
    %v2292 = vadd.f32 %v2287, %v2291
    %v2293 = vadd.f32 %v2288, %v2291
    %v2294 = vadd.f32 %v2289, %v2291
    %v2295 = vadd.f32 %v2290, %v2291
    %vm2296 = vcmp.gt.f32.partialorder %v2292, 0.0
    %vm2297 = vcmp.gt.f32.partialorder %v2293, 0.0
    %vm2298 = vcmp.gt.f32.partialorder %v2294, 0.0
    %vm2299 = vcmp.gt.f32.partialorder %v2295, 0.0
    %v2300 = vmin.f32 %v2292, 0.0
    %v2301 = vmin.f32 %v2293, 0.0
    %v2302 = vmin.f32 %v2294, 0.0
    %v2303 = vmin.f32 %v2295, 0.0
    %v2304 = vmul.f32 %v2300, 1.442695
    %v2305 = vpow.pop %v2304
    %v2306 = vmul.f32 %v2301, 1.442695
    %v2307 = vpow.pop %v2306
    %v2308 = vmul.f32 %v2302, 1.442695
    %v2309 = vpow.pop %v2308
    %v2310 = vmul.f32 %v2303, 1.442695
    %v2311 = vpow.pop %v2310
    %v2312 = vsub.f32 %v2305, 1.0
    %v2313 = vsub.f32 %v2307, 1.0
    %v2314 = vsub.f32 %v2309, 1.0
    %v2315 = vsub.f32 %v2311, 1.0
    %v2316 = vsel %vm2296, %v2292, %v2312
    %v2317 = vsel %vm2297, %v2293, %v2313
    %v2318 = vsel %vm2298, %v2294, %v2314
    %v2319 = vsel %vm2299, %v2295, %v2315
    %s2320 = scalar_lea.vmem [#allocation12], 4
    %v2321 = vld [vmem:[%s2320] sm:$0x7]
    %s2322 = scalar_lea.vmem [#allocation9], 128
    %v2323 = vld [vmem:[%s2322] sm:$0xff]
    %v2324 = vld [vmem:[%s2322 + $0x8] sm:$0xff]
    %v2325 = vld [vmem:[%s2322 + $0x10] sm:$0xff]
    %v2326 = vld [vmem:[%s2322 + $0x18] sm:$0xff]
    %v2327 = vld [vmem:[%s2322 + $0x20] sm:$0xff]
    %v2328 = vld [vmem:[%s2322 + $0x28] sm:$0xff]
    %v2329 = vld [vmem:[%s2322 + $0x30] sm:$0xff]
    %v2330 = vld [vmem:[%s2322 + $0x38] sm:$0xff]
    %v2331 = vld [vmem:[%s2322 + $0x40] sm:$0xff]
    %v2332 = vld [vmem:[%s2322 + $0x48] sm:$0xff]
    %v2333 = vld [vmem:[%s2322 + $0x50] sm:$0xff]
    %v2334 = vld [vmem:[%s2322 + $0x58] sm:$0xff]
    %v2335 = vld [vmem:[%s2322 + $0x60] sm:$0xff]
    %v2336 = vld [vmem:[%s2322 + $0x68] sm:$0xff]
    %v2337 = vld [vmem:[%s2322 + $0x70] sm:$0xff]
    %v2338 = vld [vmem:[%s2322 + $0x78] sm:$0xff]
    %s2339 = scalar_lea.vmem [#allocation10], 2
    %v2340 = vld [vmem:[%s2339] sm:$0x3]
    %v2342 = vperm.slane %v2340, 0
    %v2343 = vperm.slane %v2340, 1
    %v2347 = vsel %vm191, %v2316, 0
    %v2350 = vsel %vm191, %v2317, 0
    %v2353 = vsel %vm191, %v2318, 0
    %v2356 = vsel %vm191, %v2319, 0
    %2358 = vmatpush.msra.mxu0 0.0
    %2359 = vmatpush.msra.mxu0 0.0
    %2360 = vmatpush.msra.mxu0 0.0
    %2361 = vmatpush.msra.mxu0 0.0
    %2362 = vmatpush.msra.mxu0 0.0
    %2363 = vmatpush.msra.mxu0 0.0
    %2364 = vmatpush.msra.mxu0 0.0
    %2365 = vmatpush.msra.mxu0 0.0
    %2366 = vmatpush.msra.mxu0 %v2337
    %2367 = vmatpush.msra.mxu0 %v2335
    %2368 = vmatpush.msra.mxu0 %v2333
    %2369 = vmatpush.msra.mxu0 %v2331
    %2370 = vmatpush.msra.mxu0 %v2329
    %2371 = vmatpush.msra.mxu0 %v2327
    %2372 = vmatpush.msra.mxu0 %v2325
    %2373 = vmatpush.msra.mxu0 %v2323
    %2374 = vmatmul.f32.gmra.mxu0 %v2347
    %v2375 = vpop.f32.mrf.mxu0
    %v2376 = vadd.f32 %v2342, %v2375
    %2377 = vmatmul.f32.gmra.mxu0 %v2350
    %v2378 = vpop.f32.mrf.mxu0
    %v2379 = vadd.f32 %v2342, %v2378
    %2380 = vmatmul.f32.gmra.mxu0 %v2353
    %v2381 = vpop.f32.mrf.mxu0
    %v2382 = vadd.f32 %v2342, %v2381
    %2383 = vmatmul.f32.gmra.mxu0 %v2356
    %v2384 = vpop.f32.mrf.mxu0
    %v2385 = vadd.f32 %v2342, %v2384
    %2386 = vdwg.mxu0
    %2387 = vmatpush.msra.mxu0 0.0
    %2388 = vmatpush.msra.mxu0 0.0
    %2389 = vmatpush.msra.mxu0 0.0
    %2390 = vmatpush.msra.mxu0 0.0
    %2391 = vmatpush.msra.mxu0 0.0
    %2392 = vmatpush.msra.mxu0 0.0
    %2393 = vmatpush.msra.mxu0 0.0
    %2394 = vmatpush.msra.mxu0 0.0
    %2395 = vmatpush.msra.mxu0 %v2338
    %2396 = vmatpush.msra.mxu0 %v2336
    %2397 = vmatpush.msra.mxu0 %v2334
    %2398 = vmatpush.msra.mxu0 %v2332
    %2399 = vmatpush.msra.mxu0 %v2330
    %2400 = vmatpush.msra.mxu0 %v2328
    %2401 = vmatpush.msra.mxu0 %v2326
    %2402 = vmatpush.msra.mxu0 %v2324
    %2403 = vmatmul.f32.gmra.mxu0 %v2347
    %v2404 = vpop.f32.mrf.mxu0
    %v2405 = vadd.f32 %v2343, %v2404
    %2406 = vmatmul.f32.gmra.mxu0 %v2350
    %v2407 = vpop.f32.mrf.mxu0
    %v2408 = vadd.f32 %v2343, %v2407
    %2409 = vmatmul.f32.gmra.mxu0 %v2353
    %v2410 = vpop.f32.mrf.mxu0
    %v2411 = vadd.f32 %v2343, %v2410
    %2412 = vmatmul.f32.gmra.mxu0 %v2356
    %v2413 = vpop.f32.mrf.mxu0
    %v2414 = vadd.f32 %v2343, %v2413
    %2415 = vdwg.mxu0
    %2416 = vst [vmem:[#allocation2] sm:$0xff] %v2376
    %2417 = vst.msk [vmem:[#allocation2 + $0x8] sm:$0xff] %vm191, %v2405
    %2418 = vst [vmem:[#allocation2 + $0x10] sm:$0xff] %v2379
    %2419 = vst.msk [vmem:[#allocation2 + $0x18] sm:$0xff] %vm191, %v2408
    %2420 = vst [vmem:[#allocation2 + $0x20] sm:$0xff] %v2382
    %2421 = vst.msk [vmem:[#allocation2 + $0x28] sm:$0xff] %vm191, %v2411
    %2422 = vst [vmem:[#allocation2 + $0x30] sm:$0xf] %v2385
    %2423 = vst.msk [vmem:[#allocation2 + $0x38] sm:$0xf] %vm201, %v2414
    %v2424 = vld [vmem:[#allocation2] sm:$0xff]
    %v2425 = vld [vmem:[#allocation2 + $0x10] sm:$0x3f]
    %v2426 = vld [vmem:[#allocation2 + $0x8] sm:$0xff]
    %v2427 = vld [vmem:[#allocation2 + $0x18] sm:$0x3f]
    %v2428 = vmul.f32 %v2424, %v411
    %v2429 = vmul.f32 %v2425, %v411
    %v2430 = vmul.f32 %v2424, %v412
    %v2431 = vmul.f32 %v2425, %v412
    %v2432 = vmul.f32 %v2424, %v413
    %v2433 = vmul.f32 %v2425, %v413
    %v2434 = vmul.f32 %v2424, %v414
    %v2435 = vmul.f32 %v2425, %v414
    %v2436 = vmul.f32 %v2424, %v415
    %v2437 = vmul.f32 %v2425, %v415
    %v2438 = vmul.f32 %v2424, %v416
    %v2439 = vmul.f32 %v2425, %v416
    %v2440 = vmul.f32 %v2424, %v417
    %v2441 = vmul.f32 %v2425, %v417
    %v2442 = vmul.f32 %v2424, %v418
    %v2443 = vmul.f32 %v2425, %v418
    %v2444 = vmul.f32 %v2426, %v411
    %v2445 = vmul.f32 %v2427, %v411
    %v2446 = vmul.f32 %v2426, %v412
    %v2447 = vmul.f32 %v2427, %v412
    %v2448 = vmul.f32 %v2426, %v413
    %v2449 = vmul.f32 %v2427, %v413
    %v2450 = vmul.f32 %v2426, %v414
    %v2451 = vmul.f32 %v2427, %v414
    %v2452 = vmul.f32 %v2426, %v415
    %v2453 = vmul.f32 %v2427, %v415
    %v2454 = vmul.f32 %v2426, %v416
    %v2455 = vmul.f32 %v2427, %v416
    %v2456 = vmul.f32 %v2426, %v417
    %v2457 = vmul.f32 %v2427, %v417
    %v2458 = vmul.f32 %v2426, %v418
    %v2459 = vmul.f32 %v2427, %v418
    %2462 = vrot.lane.b32.xlu0 %v2424, 64
    %v2463 = vpop.permute.xlu0 %2462
    %2464 = vrot.lane.b32.xlu0 %v2425, 64
    %v2465 = vpop.permute.xlu0 %2464
    %v2467 = vsel %vm191, %v2428, 0
    %v2470 = vsel %vm191, %v2429, 0
    %v2472 = vsel %vm191, %v2463, 0
    %v2474 = vsel %vm191, %v2465, 0
    %2476 = vmatpush.xpose.msra.mxu0 0.0
    %2477 = vmatpush.xpose.msra.mxu0 0.0
    %2478 = vmatpush.xpose.msra.mxu0 0.0
    %2479 = vmatpush.xpose.msra.mxu0 0.0
    %2480 = vmatpush.xpose.msra.mxu0 0.0
    %2481 = vmatpush.xpose.msra.mxu0 0.0
    %2482 = vmatpush.xpose.msra.mxu0 0.0
    %2483 = vmatpush.xpose.msra.mxu0 0.0
    %2484 = vmatpush.xpose.msra.mxu0 0.0
    %2485 = vmatpush.xpose.msra.mxu0 0.0
    %2486 = vmatpush.xpose.msra.mxu0 0.0
    %2487 = vmatpush.xpose.msra.mxu0 0.0
    %2488 = vmatpush.xpose.msra.mxu0 0.0
    %2489 = vmatpush.xpose.msra.mxu0 0.0
    %2490 = vmatpush.xpose.msra.mxu0 %v2474
    %2491 = vmatpush.xpose.msra.mxu0 %v2472
    %2492 = vmatmul.f32.gmra.mxu0 %v2467
    %v2493 = vpop.f32.mrf.mxu0
    %v2494 = vadd.f32 0.0, %v2493
    %2495 = vmatmul.f32.gmra.mxu0 %v2470
    %v2496 = vpop.f32.mrf.mxu0
    %v2497 = vadd.f32 0.0, %v2496
    %2498 = vdwg.mxu0
    %v2500 = vsel %vm191, %v2430, 0
    %v2503 = vsel %vm191, %v2431, 0
    %2505 = vmatpush.xpose.msra.mxu0 0.0
    %2506 = vmatpush.xpose.msra.mxu0 0.0
    %2507 = vmatpush.xpose.msra.mxu0 0.0
    %2508 = vmatpush.xpose.msra.mxu0 0.0
    %2509 = vmatpush.xpose.msra.mxu0 0.0
    %2510 = vmatpush.xpose.msra.mxu0 0.0
    %2511 = vmatpush.xpose.msra.mxu0 0.0
    %2512 = vmatpush.xpose.msra.mxu0 0.0
    %2513 = vmatpush.xpose.msra.mxu0 0.0
    %2514 = vmatpush.xpose.msra.mxu0 0.0
    %2515 = vmatpush.xpose.msra.mxu0 0.0
    %2516 = vmatpush.xpose.msra.mxu0 0.0
    %2517 = vmatpush.xpose.msra.mxu0 0.0
    %2518 = vmatpush.xpose.msra.mxu0 0.0
    %2519 = vmatpush.xpose.msra.mxu0 %v2474
    %2520 = vmatpush.xpose.msra.mxu0 %v2472
    %2521 = vmatmul.f32.gmra.mxu0 %v2500
    %v2522 = vpop.f32.mrf.mxu0
    %v2523 = vadd.f32 0.0, %v2522
    %2524 = vmatmul.f32.gmra.mxu0 %v2503
    %v2525 = vpop.f32.mrf.mxu0
    %v2526 = vadd.f32 0.0, %v2525
    %2527 = vdwg.mxu0
    %v2529 = vsel %vm191, %v2432, 0
    %v2532 = vsel %vm191, %v2433, 0
    %2534 = vmatpush.xpose.msra.mxu0 0.0
    %2535 = vmatpush.xpose.msra.mxu0 0.0
    %2536 = vmatpush.xpose.msra.mxu0 0.0
    %2537 = vmatpush.xpose.msra.mxu0 0.0
    %2538 = vmatpush.xpose.msra.mxu0 0.0
    %2539 = vmatpush.xpose.msra.mxu0 0.0
    %2540 = vmatpush.xpose.msra.mxu0 0.0
    %2541 = vmatpush.xpose.msra.mxu0 0.0
    %2542 = vmatpush.xpose.msra.mxu0 0.0
    %2543 = vmatpush.xpose.msra.mxu0 0.0
    %2544 = vmatpush.xpose.msra.mxu0 0.0
    %2545 = vmatpush.xpose.msra.mxu0 0.0
    %2546 = vmatpush.xpose.msra.mxu0 0.0
    %2547 = vmatpush.xpose.msra.mxu0 0.0
    %2548 = vmatpush.xpose.msra.mxu0 %v2474
    %2549 = vmatpush.xpose.msra.mxu0 %v2472
    %2550 = vmatmul.f32.gmra.mxu0 %v2529
    %v2551 = vpop.f32.mrf.mxu0
    %v2552 = vadd.f32 0.0, %v2551
    %2553 = vmatmul.f32.gmra.mxu0 %v2532
    %v2554 = vpop.f32.mrf.mxu0
    %v2555 = vadd.f32 0.0, %v2554
    %2556 = vdwg.mxu0
    %v2558 = vsel %vm191, %v2434, 0
    %v2561 = vsel %vm191, %v2435, 0
    %2563 = vmatpush.xpose.msra.mxu0 0.0
    %2564 = vmatpush.xpose.msra.mxu0 0.0
    %2565 = vmatpush.xpose.msra.mxu0 0.0
    %2566 = vmatpush.xpose.msra.mxu0 0.0
    %2567 = vmatpush.xpose.msra.mxu0 0.0
    %2568 = vmatpush.xpose.msra.mxu0 0.0
    %2569 = vmatpush.xpose.msra.mxu0 0.0
    %2570 = vmatpush.xpose.msra.mxu0 0.0
    %2571 = vmatpush.xpose.msra.mxu0 0.0
    %2572 = vmatpush.xpose.msra.mxu0 0.0
    %2573 = vmatpush.xpose.msra.mxu0 0.0
    %2574 = vmatpush.xpose.msra.mxu0 0.0
    %2575 = vmatpush.xpose.msra.mxu0 0.0
    %2576 = vmatpush.xpose.msra.mxu0 0.0
    %2577 = vmatpush.xpose.msra.mxu0 %v2474
    %2578 = vmatpush.xpose.msra.mxu0 %v2472
    %2579 = vmatmul.f32.gmra.mxu0 %v2558
    %v2580 = vpop.f32.mrf.mxu0
    %v2581 = vadd.f32 0.0, %v2580
    %2582 = vmatmul.f32.gmra.mxu0 %v2561
    %v2583 = vpop.f32.mrf.mxu0
    %v2584 = vadd.f32 0.0, %v2583
    %2585 = vdwg.mxu0
    %v2587 = vsel %vm191, %v2436, 0
    %v2590 = vsel %vm191, %v2437, 0
    %2592 = vmatpush.xpose.msra.mxu0 0.0
    %2593 = vmatpush.xpose.msra.mxu0 0.0
    %2594 = vmatpush.xpose.msra.mxu0 0.0
    %2595 = vmatpush.xpose.msra.mxu0 0.0
    %2596 = vmatpush.xpose.msra.mxu0 0.0
    %2597 = vmatpush.xpose.msra.mxu0 0.0
    %2598 = vmatpush.xpose.msra.mxu0 0.0
    %2599 = vmatpush.xpose.msra.mxu0 0.0
    %2600 = vmatpush.xpose.msra.mxu0 0.0
    %2601 = vmatpush.xpose.msra.mxu0 0.0
    %2602 = vmatpush.xpose.msra.mxu0 0.0
    %2603 = vmatpush.xpose.msra.mxu0 0.0
    %2604 = vmatpush.xpose.msra.mxu0 0.0
    %2605 = vmatpush.xpose.msra.mxu0 0.0
    %2606 = vmatpush.xpose.msra.mxu0 %v2474
    %2607 = vmatpush.xpose.msra.mxu0 %v2472
    %2608 = vmatmul.f32.gmra.mxu0 %v2587
    %v2609 = vpop.f32.mrf.mxu0
    %v2610 = vadd.f32 0.0, %v2609
    %2611 = vmatmul.f32.gmra.mxu0 %v2590
    %v2612 = vpop.f32.mrf.mxu0
    %v2613 = vadd.f32 0.0, %v2612
    %2614 = vdwg.mxu0
    %v2616 = vsel %vm191, %v2438, 0
    %v2619 = vsel %vm191, %v2439, 0
    %2621 = vmatpush.xpose.msra.mxu0 0.0
    %2622 = vmatpush.xpose.msra.mxu0 0.0
    %2623 = vmatpush.xpose.msra.mxu0 0.0
    %2624 = vmatpush.xpose.msra.mxu0 0.0
    %2625 = vmatpush.xpose.msra.mxu0 0.0
    %2626 = vmatpush.xpose.msra.mxu0 0.0
    %2627 = vmatpush.xpose.msra.mxu0 0.0
    %2628 = vmatpush.xpose.msra.mxu0 0.0
    %2629 = vmatpush.xpose.msra.mxu0 0.0
    %2630 = vmatpush.xpose.msra.mxu0 0.0
    %2631 = vmatpush.xpose.msra.mxu0 0.0
    %2632 = vmatpush.xpose.msra.mxu0 0.0
    %2633 = vmatpush.xpose.msra.mxu0 0.0
    %2634 = vmatpush.xpose.msra.mxu0 0.0
    %2635 = vmatpush.xpose.msra.mxu0 %v2474
    %2636 = vmatpush.xpose.msra.mxu0 %v2472
    %2637 = vmatmul.f32.gmra.mxu0 %v2616
    %v2638 = vpop.f32.mrf.mxu0
    %v2639 = vadd.f32 0.0, %v2638
    %2640 = vmatmul.f32.gmra.mxu0 %v2619
    %v2641 = vpop.f32.mrf.mxu0
    %v2642 = vadd.f32 0.0, %v2641
    %2643 = vdwg.mxu0
    %v2645 = vsel %vm191, %v2440, 0
    %v2648 = vsel %vm191, %v2441, 0
    %2650 = vmatpush.xpose.msra.mxu0 0.0
    %2651 = vmatpush.xpose.msra.mxu0 0.0
    %2652 = vmatpush.xpose.msra.mxu0 0.0
    %2653 = vmatpush.xpose.msra.mxu0 0.0
    %2654 = vmatpush.xpose.msra.mxu0 0.0
    %2655 = vmatpush.xpose.msra.mxu0 0.0
    %2656 = vmatpush.xpose.msra.mxu0 0.0
    %2657 = vmatpush.xpose.msra.mxu0 0.0
    %2658 = vmatpush.xpose.msra.mxu0 0.0
    %2659 = vmatpush.xpose.msra.mxu0 0.0
    %2660 = vmatpush.xpose.msra.mxu0 0.0
    %2661 = vmatpush.xpose.msra.mxu0 0.0
    %2662 = vmatpush.xpose.msra.mxu0 0.0
    %2663 = vmatpush.xpose.msra.mxu0 0.0
    %2664 = vmatpush.xpose.msra.mxu0 %v2474
    %2665 = vmatpush.xpose.msra.mxu0 %v2472
    %2666 = vmatmul.f32.gmra.mxu0 %v2645
    %v2667 = vpop.f32.mrf.mxu0
    %v2668 = vadd.f32 0.0, %v2667
    %2669 = vmatmul.f32.gmra.mxu0 %v2648
    %v2670 = vpop.f32.mrf.mxu0
    %v2671 = vadd.f32 0.0, %v2670
    %2672 = vdwg.mxu0
    %v2674 = vsel %vm191, %v2442, 0
    %v2677 = vsel %vm191, %v2443, 0
    %2679 = vmatpush.xpose.msra.mxu0 0.0
    %2680 = vmatpush.xpose.msra.mxu0 0.0
    %2681 = vmatpush.xpose.msra.mxu0 0.0
    %2682 = vmatpush.xpose.msra.mxu0 0.0
    %2683 = vmatpush.xpose.msra.mxu0 0.0
    %2684 = vmatpush.xpose.msra.mxu0 0.0
    %2685 = vmatpush.xpose.msra.mxu0 0.0
    %2686 = vmatpush.xpose.msra.mxu0 0.0
    %2687 = vmatpush.xpose.msra.mxu0 0.0
    %2688 = vmatpush.xpose.msra.mxu0 0.0
    %2689 = vmatpush.xpose.msra.mxu0 0.0
    %2690 = vmatpush.xpose.msra.mxu0 0.0
    %2691 = vmatpush.xpose.msra.mxu0 0.0
    %2692 = vmatpush.xpose.msra.mxu0 0.0
    %2693 = vmatpush.xpose.msra.mxu0 %v2474
    %2694 = vmatpush.xpose.msra.mxu0 %v2472
    %2695 = vmatmul.f32.gmra.mxu0 %v2674
    %v2696 = vpop.f32.mrf.mxu0
    %v2697 = vadd.f32 0.0, %v2696
    %2698 = vmatmul.f32.gmra.mxu0 %v2677
    %v2699 = vpop.f32.mrf.mxu0
    %v2700 = vadd.f32 0.0, %v2699
    %2701 = vdwg.mxu0
    %v2702 = vmul.f32 %v2494, 0.35355338
    %v2703 = vmul.f32 %v2497, 0.35355338
    %v2704 = vmul.f32 %v2523, 0.35355338
    %v2705 = vmul.f32 %v2526, 0.35355338
    %v2706 = vmul.f32 %v2552, 0.35355338
    %v2707 = vmul.f32 %v2555, 0.35355338
    %v2708 = vmul.f32 %v2581, 0.35355338
    %v2709 = vmul.f32 %v2584, 0.35355338
    %v2710 = vmul.f32 %v2610, 0.35355338
    %v2711 = vmul.f32 %v2613, 0.35355338
    %v2712 = vmul.f32 %v2639, 0.35355338
    %v2713 = vmul.f32 %v2642, 0.35355338
    %v2714 = vmul.f32 %v2668, 0.35355338
    %v2715 = vmul.f32 %v2671, 0.35355338
    %v2716 = vmul.f32 %v2697, 0.35355338
    %v2717 = vmul.f32 %v2700, 0.35355338
    %v2718 = vsel %vm717, %v2702, -inf
    %2719 = vmax.xlane.f32.xlu0 %v2718
    %v2720 = vpop.xlane.xlu0 %2719
    %v2721 = vsel %vm721, %v2703, -inf
    %2722 = vmax.xlane.f32.xlu0 %v2721
    %v2723 = vpop.xlane.xlu0 %2722
    %v2724 = vsel %vm717, %v2704, -inf
    %2725 = vmax.xlane.f32.xlu0 %v2724
    %v2726 = vpop.xlane.xlu0 %2725
    %v2727 = vsel %vm721, %v2705, -inf
    %2728 = vmax.xlane.f32.xlu0 %v2727
    %v2729 = vpop.xlane.xlu0 %2728
    %v2730 = vsel %vm717, %v2706, -inf
    %2731 = vmax.xlane.f32.xlu0 %v2730
    %v2732 = vpop.xlane.xlu0 %2731
    %v2733 = vsel %vm721, %v2707, -inf
    %2734 = vmax.xlane.f32.xlu0 %v2733
    %v2735 = vpop.xlane.xlu0 %2734
    %v2736 = vsel %vm717, %v2708, -inf
    %2737 = vmax.xlane.f32.xlu0 %v2736
    %v2738 = vpop.xlane.xlu0 %2737
    %v2739 = vsel %vm721, %v2709, -inf
    %2740 = vmax.xlane.f32.xlu0 %v2739
    %v2741 = vpop.xlane.xlu0 %2740
    %v2742 = vsel %vm717, %v2710, -inf
    %2743 = vmax.xlane.f32.xlu0 %v2742
    %v2744 = vpop.xlane.xlu0 %2743
    %v2745 = vsel %vm721, %v2711, -inf
    %2746 = vmax.xlane.f32.xlu0 %v2745
    %v2747 = vpop.xlane.xlu0 %2746
    %v2748 = vsel %vm717, %v2712, -inf
    %2749 = vmax.xlane.f32.xlu0 %v2748
    %v2750 = vpop.xlane.xlu0 %2749
    %v2751 = vsel %vm721, %v2713, -inf
    %2752 = vmax.xlane.f32.xlu0 %v2751
    %v2753 = vpop.xlane.xlu0 %2752
    %v2754 = vsel %vm717, %v2714, -inf
    %2755 = vmax.xlane.f32.xlu0 %v2754
    %v2756 = vpop.xlane.xlu0 %2755
    %v2757 = vsel %vm721, %v2715, -inf
    %2758 = vmax.xlane.f32.xlu0 %v2757
    %v2759 = vpop.xlane.xlu0 %2758
    %v2760 = vsel %vm717, %v2716, -inf
    %2761 = vmax.xlane.f32.xlu0 %v2760
    %v2762 = vpop.xlane.xlu0 %2761
    %v2763 = vsel %vm721, %v2717, -inf
    %2764 = vmax.xlane.f32.xlu0 %v2763
    %v2765 = vpop.xlane.xlu0 %2764
    %v2766 = vsub.f32 %v2702, %v2720
    %v2767 = vsub.f32 %v2703, %v2723
    %v2768 = vsub.f32 %v2704, %v2726
    %v2769 = vsub.f32 %v2705, %v2729
    %v2770 = vsub.f32 %v2706, %v2732
    %v2771 = vsub.f32 %v2707, %v2735
    %v2772 = vsub.f32 %v2708, %v2738
    %v2773 = vsub.f32 %v2709, %v2741
    %v2774 = vsub.f32 %v2710, %v2744
    %v2775 = vsub.f32 %v2711, %v2747
    %v2776 = vsub.f32 %v2712, %v2750
    %v2777 = vsub.f32 %v2713, %v2753
    %v2778 = vsub.f32 %v2714, %v2756
    %v2779 = vsub.f32 %v2715, %v2759
    %v2780 = vsub.f32 %v2716, %v2762
    %v2781 = vsub.f32 %v2717, %v2765
    %v2782 = vmul.f32 %v2766, 1.442695
    %v2783 = vpow.pop %v2782
    %v2784 = vmul.f32 %v2767, 1.442695
    %v2785 = vpow.pop %v2784
    %v2786 = vmul.f32 %v2768, 1.442695
    %v2787 = vpow.pop %v2786
    %v2788 = vmul.f32 %v2769, 1.442695
    %v2789 = vpow.pop %v2788
    %v2790 = vmul.f32 %v2770, 1.442695
    %v2791 = vpow.pop %v2790
    %v2792 = vmul.f32 %v2771, 1.442695
    %v2793 = vpow.pop %v2792
    %v2794 = vmul.f32 %v2772, 1.442695
    %v2795 = vpow.pop %v2794
    %v2796 = vmul.f32 %v2773, 1.442695
    %v2797 = vpow.pop %v2796
    %v2798 = vmul.f32 %v2774, 1.442695
    %v2799 = vpow.pop %v2798
    %v2800 = vmul.f32 %v2775, 1.442695
    %v2801 = vpow.pop %v2800
    %v2802 = vmul.f32 %v2776, 1.442695
    %v2803 = vpow.pop %v2802
    %v2804 = vmul.f32 %v2777, 1.442695
    %v2805 = vpow.pop %v2804
    %v2806 = vmul.f32 %v2778, 1.442695
    %v2807 = vpow.pop %v2806
    %v2808 = vmul.f32 %v2779, 1.442695
    %v2809 = vpow.pop %v2808
    %v2810 = vmul.f32 %v2780, 1.442695
    %v2811 = vpow.pop %v2810
    %v2812 = vmul.f32 %v2781, 1.442695
    %v2813 = vpow.pop %v2812
    %v2814 = vsel %vm717, %v2783, 0.0
    %2815 = vadd.xlane.f32.xlu0 %v2814
    %v2816 = vpop.xlane.xlu0 %2815
    %v2817 = vsel %vm721, %v2785, 0.0
    %2818 = vadd.xlane.f32.xlu0 %v2817
    %v2819 = vpop.xlane.xlu0 %2818
    %v2820 = vsel %vm717, %v2787, 0.0
    %2821 = vadd.xlane.f32.xlu0 %v2820
    %v2822 = vpop.xlane.xlu0 %2821
    %v2823 = vsel %vm721, %v2789, 0.0
    %2824 = vadd.xlane.f32.xlu0 %v2823
    %v2825 = vpop.xlane.xlu0 %2824
    %v2826 = vsel %vm717, %v2791, 0.0
    %2827 = vadd.xlane.f32.xlu0 %v2826
    %v2828 = vpop.xlane.xlu0 %2827
    %v2829 = vsel %vm721, %v2793, 0.0
    %2830 = vadd.xlane.f32.xlu0 %v2829
    %v2831 = vpop.xlane.xlu0 %2830
    %v2832 = vsel %vm717, %v2795, 0.0
    %2833 = vadd.xlane.f32.xlu0 %v2832
    %v2834 = vpop.xlane.xlu0 %2833
    %v2835 = vsel %vm721, %v2797, 0.0
    %2836 = vadd.xlane.f32.xlu0 %v2835
    %v2837 = vpop.xlane.xlu0 %2836
    %v2838 = vsel %vm717, %v2799, 0.0
    %2839 = vadd.xlane.f32.xlu0 %v2838
    %v2840 = vpop.xlane.xlu0 %2839
    %v2841 = vsel %vm721, %v2801, 0.0
    %2842 = vadd.xlane.f32.xlu0 %v2841
    %v2843 = vpop.xlane.xlu0 %2842
    %v2844 = vsel %vm717, %v2803, 0.0
    %2845 = vadd.xlane.f32.xlu0 %v2844
    %v2846 = vpop.xlane.xlu0 %2845
    %v2847 = vsel %vm721, %v2805, 0.0
    %2848 = vadd.xlane.f32.xlu0 %v2847
    %v2849 = vpop.xlane.xlu0 %2848
    %v2850 = vsel %vm717, %v2807, 0.0
    %2851 = vadd.xlane.f32.xlu0 %v2850
    %v2852 = vpop.xlane.xlu0 %2851
    %v2853 = vsel %vm721, %v2809, 0.0
    %2854 = vadd.xlane.f32.xlu0 %v2853
    %v2855 = vpop.xlane.xlu0 %2854
    %v2856 = vsel %vm717, %v2811, 0.0
    %2857 = vadd.xlane.f32.xlu0 %v2856
    %v2858 = vpop.xlane.xlu0 %2857
    %v2859 = vsel %vm721, %v2813, 0.0
    %2860 = vadd.xlane.f32.xlu0 %v2859
    %v2861 = vpop.xlane.xlu0 %2860
    %v2862 = vrcp.pop %v2816
    %v2863 = vrcp.pop %v2819
    %v2864 = vrcp.pop %v2822
    %v2865 = vrcp.pop %v2825
    %v2866 = vrcp.pop %v2828
    %v2867 = vrcp.pop %v2831
    %v2868 = vrcp.pop %v2834
    %v2869 = vrcp.pop %v2837
    %v2870 = vrcp.pop %v2840
    %v2871 = vrcp.pop %v2843
    %v2872 = vrcp.pop %v2846
    %v2873 = vrcp.pop %v2849
    %v2874 = vrcp.pop %v2852
    %v2875 = vrcp.pop %v2855
    %v2876 = vrcp.pop %v2858
    %v2877 = vrcp.pop %v2861
    %v2878 = vmul.f32 %v2783, %v2862
    %v2879 = vmul.f32 %v2785, %v2863
    %v2880 = vmul.f32 %v2787, %v2864
    %v2881 = vmul.f32 %v2789, %v2865
    %v2882 = vmul.f32 %v2791, %v2866
    %v2883 = vmul.f32 %v2793, %v2867
    %v2884 = vmul.f32 %v2795, %v2868
    %v2885 = vmul.f32 %v2797, %v2869
    %v2886 = vmul.f32 %v2799, %v2870
    %v2887 = vmul.f32 %v2801, %v2871
    %v2888 = vmul.f32 %v2803, %v2872
    %v2889 = vmul.f32 %v2805, %v2873
    %v2890 = vmul.f32 %v2807, %v2874
    %v2891 = vmul.f32 %v2809, %v2875
    %v2892 = vmul.f32 %v2811, %v2876
    %v2893 = vmul.f32 %v2813, %v2877
    %v2894 = vsel %vm717, %v2878, 0.0
    %v2895 = vsel %vm717, %v2880, 0.0
    %v2896 = vadd.f32 %v2894, %v2895
    %v2897 = vsel %vm717, %v2882, 0.0
    %v2898 = vadd.f32 %v2896, %v2897
    %v2899 = vsel %vm717, %v2884, 0.0
    %v2900 = vadd.f32 %v2898, %v2899
    %v2901 = vsel %vm717, %v2886, 0.0
    %v2902 = vadd.f32 %v2900, %v2901
    %v2903 = vsel %vm717, %v2888, 0.0
    %v2904 = vadd.f32 %v2902, %v2903
    %v2905 = vsel %vm717, %v2890, 0.0
    %v2906 = vadd.f32 %v2904, %v2905
    %v2907 = vsel %vm717, %v2892, 0.0
    %v2908 = vadd.f32 %v2906, %v2907
    %v2909 = vsel %vm721, %v2879, 0.0
    %v2910 = vsel %vm721, %v2881, 0.0
    %v2911 = vadd.f32 %v2909, %v2910
    %v2912 = vsel %vm721, %v2883, 0.0
    %v2913 = vadd.f32 %v2911, %v2912
    %v2914 = vsel %vm721, %v2885, 0.0
    %v2915 = vadd.f32 %v2913, %v2914
    %v2916 = vsel %vm721, %v2887, 0.0
    %v2917 = vadd.f32 %v2915, %v2916
    %v2918 = vsel %vm721, %v2889, 0.0
    %v2919 = vadd.f32 %v2917, %v2918
    %v2920 = vsel %vm721, %v2891, 0.0
    %v2921 = vadd.f32 %v2919, %v2920
    %v2922 = vsel %vm721, %v2893, 0.0
    %v2923 = vadd.f32 %v2921, %v2922
    %v2924 = vadd.f32 %v925, %v2908
    %v2925 = vadd.f32 %v926, %v2923
    %v2927 = vsel %vm717, %v2878, 0
    %v2930 = vsel %vm717, %v2879, 0
    %v2933 = vsel %vm933, %v2445, 0
    %2935 = vmatpush.msra.mxu0 0.0
    %2936 = vmatpush.msra.mxu0 0.0
    %2937 = vmatpush.msra.mxu0 0.0
    %2938 = vmatpush.msra.mxu0 0.0
    %2939 = vmatpush.msra.mxu0 0.0
    %2940 = vmatpush.msra.mxu0 0.0
    %2941 = vmatpush.msra.mxu0 0.0
    %2942 = vmatpush.msra.mxu0 0.0
    %2943 = vmatpush.msra.mxu0 0.0
    %2944 = vmatpush.msra.mxu0 0.0
    %2945 = vmatpush.msra.mxu0 0.0
    %2946 = vmatpush.msra.mxu0 0.0
    %2947 = vmatpush.msra.mxu0 0.0
    %2948 = vmatpush.msra.mxu0 0.0
    %2949 = vmatpush.msra.mxu0 %v2933
    %2950 = vmatpush.msra.mxu0 %v2444
    %2951 = vmatmul.f32.gmra.mxu0 %v2927
    %v2952 = vpop.f32.mrf.mxu0
    %v2953 = vadd.f32 0.0, %v2952
    %2954 = vmatmul.f32.gmra.mxu0 %v2930
    %v2955 = vpop.f32.mrf.mxu0
    %v2956 = vadd.f32 0.0, %v2955
    %2957 = vdwg.mxu0
    %v2959 = vsel %vm717, %v2880, 0
    %v2962 = vsel %vm717, %v2881, 0
    %v2965 = vsel %vm933, %v2447, 0
    %2967 = vmatpush.msra.mxu0 0.0
    %2968 = vmatpush.msra.mxu0 0.0
    %2969 = vmatpush.msra.mxu0 0.0
    %2970 = vmatpush.msra.mxu0 0.0
    %2971 = vmatpush.msra.mxu0 0.0
    %2972 = vmatpush.msra.mxu0 0.0
    %2973 = vmatpush.msra.mxu0 0.0
    %2974 = vmatpush.msra.mxu0 0.0
    %2975 = vmatpush.msra.mxu0 0.0
    %2976 = vmatpush.msra.mxu0 0.0
    %2977 = vmatpush.msra.mxu0 0.0
    %2978 = vmatpush.msra.mxu0 0.0
    %2979 = vmatpush.msra.mxu0 0.0
    %2980 = vmatpush.msra.mxu0 0.0
    %2981 = vmatpush.msra.mxu0 %v2965
    %2982 = vmatpush.msra.mxu0 %v2446
    %2983 = vmatmul.f32.gmra.mxu0 %v2959
    %v2984 = vpop.f32.mrf.mxu0
    %v2985 = vadd.f32 0.0, %v2984
    %2986 = vmatmul.f32.gmra.mxu0 %v2962
    %v2987 = vpop.f32.mrf.mxu0
    %v2988 = vadd.f32 0.0, %v2987
    %2989 = vdwg.mxu0
    %v2991 = vsel %vm717, %v2882, 0
    %v2994 = vsel %vm717, %v2883, 0
    %v2997 = vsel %vm933, %v2449, 0
    %2999 = vmatpush.msra.mxu0 0.0
    %3000 = vmatpush.msra.mxu0 0.0
    %3001 = vmatpush.msra.mxu0 0.0
    %3002 = vmatpush.msra.mxu0 0.0
    %3003 = vmatpush.msra.mxu0 0.0
    %3004 = vmatpush.msra.mxu0 0.0
    %3005 = vmatpush.msra.mxu0 0.0
    %3006 = vmatpush.msra.mxu0 0.0
    %3007 = vmatpush.msra.mxu0 0.0
    %3008 = vmatpush.msra.mxu0 0.0
    %3009 = vmatpush.msra.mxu0 0.0
    %3010 = vmatpush.msra.mxu0 0.0
    %3011 = vmatpush.msra.mxu0 0.0
    %3012 = vmatpush.msra.mxu0 0.0
    %3013 = vmatpush.msra.mxu0 %v2997
    %3014 = vmatpush.msra.mxu0 %v2448
    %3015 = vmatmul.f32.gmra.mxu0 %v2991
    %v3016 = vpop.f32.mrf.mxu0
    %v3017 = vadd.f32 0.0, %v3016
    %3018 = vmatmul.f32.gmra.mxu0 %v2994
    %v3019 = vpop.f32.mrf.mxu0
    %v3020 = vadd.f32 0.0, %v3019
    %3021 = vdwg.mxu0
    %v3023 = vsel %vm717, %v2884, 0
    %v3026 = vsel %vm717, %v2885, 0
    %v3029 = vsel %vm933, %v2451, 0
    %3031 = vmatpush.msra.mxu0 0.0
    %3032 = vmatpush.msra.mxu0 0.0
    %3033 = vmatpush.msra.mxu0 0.0
    %3034 = vmatpush.msra.mxu0 0.0
    %3035 = vmatpush.msra.mxu0 0.0
    %3036 = vmatpush.msra.mxu0 0.0
    %3037 = vmatpush.msra.mxu0 0.0
    %3038 = vmatpush.msra.mxu0 0.0
    %3039 = vmatpush.msra.mxu0 0.0
    %3040 = vmatpush.msra.mxu0 0.0
    %3041 = vmatpush.msra.mxu0 0.0
    %3042 = vmatpush.msra.mxu0 0.0
    %3043 = vmatpush.msra.mxu0 0.0
    %3044 = vmatpush.msra.mxu0 0.0
    %3045 = vmatpush.msra.mxu0 %v3029
    %3046 = vmatpush.msra.mxu0 %v2450
    %3047 = vmatmul.f32.gmra.mxu0 %v3023
    %v3048 = vpop.f32.mrf.mxu0
    %v3049 = vadd.f32 0.0, %v3048
    %3050 = vmatmul.f32.gmra.mxu0 %v3026
    %v3051 = vpop.f32.mrf.mxu0
    %v3052 = vadd.f32 0.0, %v3051
    %3053 = vdwg.mxu0
    %v3055 = vsel %vm717, %v2886, 0
    %v3058 = vsel %vm717, %v2887, 0
    %v3061 = vsel %vm933, %v2453, 0
    %3063 = vmatpush.msra.mxu0 0.0
    %3064 = vmatpush.msra.mxu0 0.0
    %3065 = vmatpush.msra.mxu0 0.0
    %3066 = vmatpush.msra.mxu0 0.0
    %3067 = vmatpush.msra.mxu0 0.0
    %3068 = vmatpush.msra.mxu0 0.0
    %3069 = vmatpush.msra.mxu0 0.0
    %3070 = vmatpush.msra.mxu0 0.0
    %3071 = vmatpush.msra.mxu0 0.0
    %3072 = vmatpush.msra.mxu0 0.0
    %3073 = vmatpush.msra.mxu0 0.0
    %3074 = vmatpush.msra.mxu0 0.0
    %3075 = vmatpush.msra.mxu0 0.0
    %3076 = vmatpush.msra.mxu0 0.0
    %3077 = vmatpush.msra.mxu0 %v3061
    %3078 = vmatpush.msra.mxu0 %v2452
    %3079 = vmatmul.f32.gmra.mxu0 %v3055
    %v3080 = vpop.f32.mrf.mxu0
    %v3081 = vadd.f32 0.0, %v3080
    %3082 = vmatmul.f32.gmra.mxu0 %v3058
    %v3083 = vpop.f32.mrf.mxu0
    %v3084 = vadd.f32 0.0, %v3083
    %3085 = vdwg.mxu0
    %v3087 = vsel %vm717, %v2888, 0
    %v3090 = vsel %vm717, %v2889, 0
    %v3093 = vsel %vm933, %v2455, 0
    %3095 = vmatpush.msra.mxu0 0.0
    %3096 = vmatpush.msra.mxu0 0.0
    %3097 = vmatpush.msra.mxu0 0.0
    %3098 = vmatpush.msra.mxu0 0.0
    %3099 = vmatpush.msra.mxu0 0.0
    %3100 = vmatpush.msra.mxu0 0.0
    %3101 = vmatpush.msra.mxu0 0.0
    %3102 = vmatpush.msra.mxu0 0.0
    %3103 = vmatpush.msra.mxu0 0.0
    %3104 = vmatpush.msra.mxu0 0.0
    %3105 = vmatpush.msra.mxu0 0.0
    %3106 = vmatpush.msra.mxu0 0.0
    %3107 = vmatpush.msra.mxu0 0.0
    %3108 = vmatpush.msra.mxu0 0.0
    %3109 = vmatpush.msra.mxu0 %v3093
    %3110 = vmatpush.msra.mxu0 %v2454
    %3111 = vmatmul.f32.gmra.mxu0 %v3087
    %v3112 = vpop.f32.mrf.mxu0
    %v3113 = vadd.f32 0.0, %v3112
    %3114 = vmatmul.f32.gmra.mxu0 %v3090
    %v3115 = vpop.f32.mrf.mxu0
    %v3116 = vadd.f32 0.0, %v3115
    %3117 = vdwg.mxu0
    %v3119 = vsel %vm717, %v2890, 0
    %v3122 = vsel %vm717, %v2891, 0
    %v3125 = vsel %vm933, %v2457, 0
    %3127 = vmatpush.msra.mxu0 0.0
    %3128 = vmatpush.msra.mxu0 0.0
    %3129 = vmatpush.msra.mxu0 0.0
    %3130 = vmatpush.msra.mxu0 0.0
    %3131 = vmatpush.msra.mxu0 0.0
    %3132 = vmatpush.msra.mxu0 0.0
    %3133 = vmatpush.msra.mxu0 0.0
    %3134 = vmatpush.msra.mxu0 0.0
    %3135 = vmatpush.msra.mxu0 0.0
    %3136 = vmatpush.msra.mxu0 0.0
    %3137 = vmatpush.msra.mxu0 0.0
    %3138 = vmatpush.msra.mxu0 0.0
    %3139 = vmatpush.msra.mxu0 0.0
    %3140 = vmatpush.msra.mxu0 0.0
    %3141 = vmatpush.msra.mxu0 %v3125
    %3142 = vmatpush.msra.mxu0 %v2456
    %3143 = vmatmul.f32.gmra.mxu0 %v3119
    %v3144 = vpop.f32.mrf.mxu0
    %v3145 = vadd.f32 0.0, %v3144
    %3146 = vmatmul.f32.gmra.mxu0 %v3122
    %v3147 = vpop.f32.mrf.mxu0
    %v3148 = vadd.f32 0.0, %v3147
    %3149 = vdwg.mxu0
    %v3151 = vsel %vm717, %v2892, 0
    %v3154 = vsel %vm717, %v2893, 0
    %v3157 = vsel %vm933, %v2459, 0
    %3159 = vmatpush.msra.mxu0 0.0
    %3160 = vmatpush.msra.mxu0 0.0
    %3161 = vmatpush.msra.mxu0 0.0
    %3162 = vmatpush.msra.mxu0 0.0
    %3163 = vmatpush.msra.mxu0 0.0
    %3164 = vmatpush.msra.mxu0 0.0
    %3165 = vmatpush.msra.mxu0 0.0
    %3166 = vmatpush.msra.mxu0 0.0
    %3167 = vmatpush.msra.mxu0 0.0
    %3168 = vmatpush.msra.mxu0 0.0
    %3169 = vmatpush.msra.mxu0 0.0
    %3170 = vmatpush.msra.mxu0 0.0
    %3171 = vmatpush.msra.mxu0 0.0
    %3172 = vmatpush.msra.mxu0 0.0
    %3173 = vmatpush.msra.mxu0 %v3157
    %3174 = vmatpush.msra.mxu0 %v2458
    %3175 = vmatmul.f32.gmra.mxu0 %v3151
    %v3176 = vpop.f32.mrf.mxu0
    %v3177 = vadd.f32 0.0, %v3176
    %3178 = vmatmul.f32.gmra.mxu0 %v3154
    %v3179 = vpop.f32.mrf.mxu0
    %v3180 = vadd.f32 0.0, %v3179
    %3181 = vdwg.mxu0
    %v3182 = vsel %vm191, %v2953, 0.0
    %v3183 = vsel %vm191, %v2985, 0.0
    %v3184 = vadd.f32 %v3182, %v3183
    %v3185 = vsel %vm191, %v3017, 0.0
    %v3186 = vadd.f32 %v3184, %v3185
    %v3187 = vsel %vm191, %v3049, 0.0
    %v3188 = vadd.f32 %v3186, %v3187
    %v3189 = vsel %vm191, %v3081, 0.0
    %v3190 = vadd.f32 %v3188, %v3189
    %v3191 = vsel %vm191, %v3113, 0.0
    %v3192 = vadd.f32 %v3190, %v3191
    %v3193 = vsel %vm191, %v3145, 0.0
    %v3194 = vadd.f32 %v3192, %v3193
    %v3195 = vsel %vm191, %v3177, 0.0
    %v3196 = vadd.f32 %v3194, %v3195
    %v3197 = vsel %vm1199, %v2956, 0.0
    %v3198 = vsel %vm1199, %v2988, 0.0
    %v3199 = vadd.f32 %v3197, %v3198
    %v3200 = vsel %vm1199, %v3020, 0.0
    %v3201 = vadd.f32 %v3199, %v3200
    %v3202 = vsel %vm1199, %v3052, 0.0
    %v3203 = vadd.f32 %v3201, %v3202
    %v3204 = vsel %vm1199, %v3084, 0.0
    %v3205 = vadd.f32 %v3203, %v3204
    %v3206 = vsel %vm1199, %v3116, 0.0
    %v3207 = vadd.f32 %v3205, %v3206
    %v3208 = vsel %vm1199, %v3148, 0.0
    %v3209 = vadd.f32 %v3207, %v3208
    %v3210 = vsel %vm1199, %v3180, 0.0
    %v3211 = vadd.f32 %v3209, %v3210
    %3212 = vst.msk [vmem:[#allocation3] sm:$0xff] %vm191, %v3196
    %3213 = vst.msk [vmem:[#allocation3 + $0x8] sm:$0x3f] %vm1199, %v3211
    %v3214 = vld [vmem:[#allocation2 + $0x10] sm:$0xc0]
    %v3215 = vld [vmem:[#allocation2 + $0x20] sm:$0xff]
    %v3216 = vld [vmem:[#allocation2 + $0x30] sm:$0xf]
    %v3217 = vld [vmem:[#allocation2 + $0x18] sm:$0xc0]
    %v3218 = vld [vmem:[#allocation2 + $0x28] sm:$0xff]
    %v3219 = vld [vmem:[#allocation2 + $0x38] sm:$0xf]
    %v3220 = vmul.f32 %v3214, %v411
    %v3221 = vmul.f32 %v3215, %v411
    %v3222 = vmul.f32 %v3216, %v411
    %v3223 = vmul.f32 %v3214, %v412
    %v3224 = vmul.f32 %v3215, %v412
    %v3225 = vmul.f32 %v3216, %v412
    %v3226 = vmul.f32 %v3214, %v413
    %v3227 = vmul.f32 %v3215, %v413
    %v3228 = vmul.f32 %v3216, %v413
    %v3229 = vmul.f32 %v3214, %v414
    %v3230 = vmul.f32 %v3215, %v414
    %v3231 = vmul.f32 %v3216, %v414
    %v3232 = vmul.f32 %v3214, %v415
    %v3233 = vmul.f32 %v3215, %v415
    %v3234 = vmul.f32 %v3216, %v415
    %v3235 = vmul.f32 %v3214, %v416
    %v3236 = vmul.f32 %v3215, %v416
    %v3237 = vmul.f32 %v3216, %v416
    %v3238 = vmul.f32 %v3214, %v417
    %v3239 = vmul.f32 %v3215, %v417
    %v3240 = vmul.f32 %v3216, %v417
    %v3241 = vmul.f32 %v3214, %v418
    %v3242 = vmul.f32 %v3215, %v418
    %v3243 = vmul.f32 %v3216, %v418
    %v3244 = vmul.f32 %v3217, %v411
    %v3245 = vmul.f32 %v3218, %v411
    %v3246 = vmul.f32 %v3219, %v411
    %v3247 = vmul.f32 %v3217, %v412
    %v3248 = vmul.f32 %v3218, %v412
    %v3249 = vmul.f32 %v3219, %v412
    %v3250 = vmul.f32 %v3217, %v413
    %v3251 = vmul.f32 %v3218, %v413
    %v3252 = vmul.f32 %v3219, %v413
    %v3253 = vmul.f32 %v3217, %v414
    %v3254 = vmul.f32 %v3218, %v414
    %v3255 = vmul.f32 %v3219, %v414
    %v3256 = vmul.f32 %v3217, %v415
    %v3257 = vmul.f32 %v3218, %v415
    %v3258 = vmul.f32 %v3219, %v415
    %v3259 = vmul.f32 %v3217, %v416
    %v3260 = vmul.f32 %v3218, %v416
    %v3261 = vmul.f32 %v3219, %v416
    %v3262 = vmul.f32 %v3217, %v417
    %v3263 = vmul.f32 %v3218, %v417
    %v3264 = vmul.f32 %v3219, %v417
    %v3265 = vmul.f32 %v3217, %v418
    %v3266 = vmul.f32 %v3218, %v418
    %v3267 = vmul.f32 %v3219, %v418
    %v3271 = vrot.slane %v3220, 6
    %v3272 = vrot.slane %v3221, 6
    %v3273 = vsel %vm1274, %v3271, %v3272
    %v3274 = vrot.slane %v3222, 6
    %v3275 = vsel %vm1274, %v3272, %v3274
    %v3279 = vrot.slane %v3214, 6
    %v3280 = vrot.slane %v3215, 6
    %v3281 = vsel %vm1274, %v3279, %v3280
    %v3282 = vrot.slane %v3216, 6
    %v3283 = vsel %vm1274, %v3280, %v3282
    %3284 = vrot.lane.b32.xlu0 %v3281, 64
    %v3285 = vpop.permute.xlu0 %3284
    %3286 = vrot.lane.b32.xlu0 %v3283, 64
    %v3287 = vpop.permute.xlu0 %3286
    %v3288 = vsel %vm191, %v3273, 0
    %v3290 = vsel %vm191, %v3275, 0
    %v3292 = vsel %vm191, %v3285, 0
    %v3294 = vsel %vm191, %v3287, 0
    %3296 = vmatpush.xpose.msra.mxu0 0.0
    %3297 = vmatpush.xpose.msra.mxu0 0.0
    %3298 = vmatpush.xpose.msra.mxu0 0.0
    %3299 = vmatpush.xpose.msra.mxu0 0.0
    %3300 = vmatpush.xpose.msra.mxu0 0.0
    %3301 = vmatpush.xpose.msra.mxu0 0.0
    %3302 = vmatpush.xpose.msra.mxu0 0.0
    %3303 = vmatpush.xpose.msra.mxu0 0.0
    %3304 = vmatpush.xpose.msra.mxu0 0.0
    %3305 = vmatpush.xpose.msra.mxu0 0.0
    %3306 = vmatpush.xpose.msra.mxu0 0.0
    %3307 = vmatpush.xpose.msra.mxu0 0.0
    %3308 = vmatpush.xpose.msra.mxu0 0.0
    %3309 = vmatpush.xpose.msra.mxu0 0.0
    %3310 = vmatpush.xpose.msra.mxu0 %v3294
    %3311 = vmatpush.xpose.msra.mxu0 %v3292
    %3312 = vmatmul.f32.gmra.mxu0 %v3288
    %v3313 = vpop.f32.mrf.mxu0
    %v3314 = vadd.f32 0.0, %v3313
    %3315 = vmatmul.f32.gmra.mxu0 %v3290
    %v3316 = vpop.f32.mrf.mxu0
    %v3317 = vadd.f32 0.0, %v3316
    %3318 = vdwg.mxu0
    %v3322 = vrot.slane %v3223, 6
    %v3323 = vrot.slane %v3224, 6
    %v3324 = vsel %vm1274, %v3322, %v3323
    %v3325 = vrot.slane %v3225, 6
    %v3326 = vsel %vm1274, %v3323, %v3325
    %v3327 = vsel %vm191, %v3324, 0
    %v3329 = vsel %vm191, %v3326, 0
    %3331 = vmatpush.xpose.msra.mxu0 0.0
    %3332 = vmatpush.xpose.msra.mxu0 0.0
    %3333 = vmatpush.xpose.msra.mxu0 0.0
    %3334 = vmatpush.xpose.msra.mxu0 0.0
    %3335 = vmatpush.xpose.msra.mxu0 0.0
    %3336 = vmatpush.xpose.msra.mxu0 0.0
    %3337 = vmatpush.xpose.msra.mxu0 0.0
    %3338 = vmatpush.xpose.msra.mxu0 0.0
    %3339 = vmatpush.xpose.msra.mxu0 0.0
    %3340 = vmatpush.xpose.msra.mxu0 0.0
    %3341 = vmatpush.xpose.msra.mxu0 0.0
    %3342 = vmatpush.xpose.msra.mxu0 0.0
    %3343 = vmatpush.xpose.msra.mxu0 0.0
    %3344 = vmatpush.xpose.msra.mxu0 0.0
    %3345 = vmatpush.xpose.msra.mxu0 %v3294
    %3346 = vmatpush.xpose.msra.mxu0 %v3292
    %3347 = vmatmul.f32.gmra.mxu0 %v3327
    %v3348 = vpop.f32.mrf.mxu0
    %v3349 = vadd.f32 0.0, %v3348
    %3350 = vmatmul.f32.gmra.mxu0 %v3329
    %v3351 = vpop.f32.mrf.mxu0
    %v3352 = vadd.f32 0.0, %v3351
    %3353 = vdwg.mxu0
    %v3357 = vrot.slane %v3226, 6
    %v3358 = vrot.slane %v3227, 6
    %v3359 = vsel %vm1274, %v3357, %v3358
    %v3360 = vrot.slane %v3228, 6
    %v3361 = vsel %vm1274, %v3358, %v3360
    %v3362 = vsel %vm191, %v3359, 0
    %v3364 = vsel %vm191, %v3361, 0
    %3366 = vmatpush.xpose.msra.mxu0 0.0
    %3367 = vmatpush.xpose.msra.mxu0 0.0
    %3368 = vmatpush.xpose.msra.mxu0 0.0
    %3369 = vmatpush.xpose.msra.mxu0 0.0
    %3370 = vmatpush.xpose.msra.mxu0 0.0
    %3371 = vmatpush.xpose.msra.mxu0 0.0
    %3372 = vmatpush.xpose.msra.mxu0 0.0
    %3373 = vmatpush.xpose.msra.mxu0 0.0
    %3374 = vmatpush.xpose.msra.mxu0 0.0
    %3375 = vmatpush.xpose.msra.mxu0 0.0
    %3376 = vmatpush.xpose.msra.mxu0 0.0
    %3377 = vmatpush.xpose.msra.mxu0 0.0
    %3378 = vmatpush.xpose.msra.mxu0 0.0
    %3379 = vmatpush.xpose.msra.mxu0 0.0
    %3380 = vmatpush.xpose.msra.mxu0 %v3294
    %3381 = vmatpush.xpose.msra.mxu0 %v3292
    %3382 = vmatmul.f32.gmra.mxu0 %v3362
    %v3383 = vpop.f32.mrf.mxu0
    %v3384 = vadd.f32 0.0, %v3383
    %3385 = vmatmul.f32.gmra.mxu0 %v3364
    %v3386 = vpop.f32.mrf.mxu0
    %v3387 = vadd.f32 0.0, %v3386
    %3388 = vdwg.mxu0
    %v3392 = vrot.slane %v3229, 6
    %v3393 = vrot.slane %v3230, 6
    %v3394 = vsel %vm1274, %v3392, %v3393
    %v3395 = vrot.slane %v3231, 6
    %v3396 = vsel %vm1274, %v3393, %v3395
    %v3397 = vsel %vm191, %v3394, 0
    %v3399 = vsel %vm191, %v3396, 0
    %3401 = vmatpush.xpose.msra.mxu0 0.0
    %3402 = vmatpush.xpose.msra.mxu0 0.0
    %3403 = vmatpush.xpose.msra.mxu0 0.0
    %3404 = vmatpush.xpose.msra.mxu0 0.0
    %3405 = vmatpush.xpose.msra.mxu0 0.0
    %3406 = vmatpush.xpose.msra.mxu0 0.0
    %3407 = vmatpush.xpose.msra.mxu0 0.0
    %3408 = vmatpush.xpose.msra.mxu0 0.0
    %3409 = vmatpush.xpose.msra.mxu0 0.0
    %3410 = vmatpush.xpose.msra.mxu0 0.0
    %3411 = vmatpush.xpose.msra.mxu0 0.0
    %3412 = vmatpush.xpose.msra.mxu0 0.0
    %3413 = vmatpush.xpose.msra.mxu0 0.0
    %3414 = vmatpush.xpose.msra.mxu0 0.0
    %3415 = vmatpush.xpose.msra.mxu0 %v3294
    %3416 = vmatpush.xpose.msra.mxu0 %v3292
    %3417 = vmatmul.f32.gmra.mxu0 %v3397
    %v3418 = vpop.f32.mrf.mxu0
    %v3419 = vadd.f32 0.0, %v3418
    %3420 = vmatmul.f32.gmra.mxu0 %v3399
    %v3421 = vpop.f32.mrf.mxu0
    %v3422 = vadd.f32 0.0, %v3421
    %3423 = vdwg.mxu0
    %v3427 = vrot.slane %v3232, 6
    %v3428 = vrot.slane %v3233, 6
    %v3429 = vsel %vm1274, %v3427, %v3428
    %v3430 = vrot.slane %v3234, 6
    %v3431 = vsel %vm1274, %v3428, %v3430
    %v3432 = vsel %vm191, %v3429, 0
    %v3434 = vsel %vm191, %v3431, 0
    %3436 = vmatpush.xpose.msra.mxu0 0.0
    %3437 = vmatpush.xpose.msra.mxu0 0.0
    %3438 = vmatpush.xpose.msra.mxu0 0.0
    %3439 = vmatpush.xpose.msra.mxu0 0.0
    %3440 = vmatpush.xpose.msra.mxu0 0.0
    %3441 = vmatpush.xpose.msra.mxu0 0.0
    %3442 = vmatpush.xpose.msra.mxu0 0.0
    %3443 = vmatpush.xpose.msra.mxu0 0.0
    %3444 = vmatpush.xpose.msra.mxu0 0.0
    %3445 = vmatpush.xpose.msra.mxu0 0.0
    %3446 = vmatpush.xpose.msra.mxu0 0.0
    %3447 = vmatpush.xpose.msra.mxu0 0.0
    %3448 = vmatpush.xpose.msra.mxu0 0.0
    %3449 = vmatpush.xpose.msra.mxu0 0.0
    %3450 = vmatpush.xpose.msra.mxu0 %v3294
    %3451 = vmatpush.xpose.msra.mxu0 %v3292
    %3452 = vmatmul.f32.gmra.mxu0 %v3432
    %v3453 = vpop.f32.mrf.mxu0
    %v3454 = vadd.f32 0.0, %v3453
    %3455 = vmatmul.f32.gmra.mxu0 %v3434
    %v3456 = vpop.f32.mrf.mxu0
    %v3457 = vadd.f32 0.0, %v3456
    %3458 = vdwg.mxu0
    %v3462 = vrot.slane %v3235, 6
    %v3463 = vrot.slane %v3236, 6
    %v3464 = vsel %vm1274, %v3462, %v3463
    %v3465 = vrot.slane %v3237, 6
    %v3466 = vsel %vm1274, %v3463, %v3465
    %v3467 = vsel %vm191, %v3464, 0
    %v3469 = vsel %vm191, %v3466, 0
    %3471 = vmatpush.xpose.msra.mxu0 0.0
    %3472 = vmatpush.xpose.msra.mxu0 0.0
    %3473 = vmatpush.xpose.msra.mxu0 0.0
    %3474 = vmatpush.xpose.msra.mxu0 0.0
    %3475 = vmatpush.xpose.msra.mxu0 0.0
    %3476 = vmatpush.xpose.msra.mxu0 0.0
    %3477 = vmatpush.xpose.msra.mxu0 0.0
    %3478 = vmatpush.xpose.msra.mxu0 0.0
    %3479 = vmatpush.xpose.msra.mxu0 0.0
    %3480 = vmatpush.xpose.msra.mxu0 0.0
    %3481 = vmatpush.xpose.msra.mxu0 0.0
    %3482 = vmatpush.xpose.msra.mxu0 0.0
    %3483 = vmatpush.xpose.msra.mxu0 0.0
    %3484 = vmatpush.xpose.msra.mxu0 0.0
    %3485 = vmatpush.xpose.msra.mxu0 %v3294
    %3486 = vmatpush.xpose.msra.mxu0 %v3292
    %3487 = vmatmul.f32.gmra.mxu0 %v3467
    %v3488 = vpop.f32.mrf.mxu0
    %v3489 = vadd.f32 0.0, %v3488
    %3490 = vmatmul.f32.gmra.mxu0 %v3469
    %v3491 = vpop.f32.mrf.mxu0
    %v3492 = vadd.f32 0.0, %v3491
    %3493 = vdwg.mxu0
    %v3497 = vrot.slane %v3238, 6
    %v3498 = vrot.slane %v3239, 6
    %v3499 = vsel %vm1274, %v3497, %v3498
    %v3500 = vrot.slane %v3240, 6
    %v3501 = vsel %vm1274, %v3498, %v3500
    %v3502 = vsel %vm191, %v3499, 0
    %v3504 = vsel %vm191, %v3501, 0
    %3506 = vmatpush.xpose.msra.mxu0 0.0
    %3507 = vmatpush.xpose.msra.mxu0 0.0
    %3508 = vmatpush.xpose.msra.mxu0 0.0
    %3509 = vmatpush.xpose.msra.mxu0 0.0
    %3510 = vmatpush.xpose.msra.mxu0 0.0
    %3511 = vmatpush.xpose.msra.mxu0 0.0
    %3512 = vmatpush.xpose.msra.mxu0 0.0
    %3513 = vmatpush.xpose.msra.mxu0 0.0
    %3514 = vmatpush.xpose.msra.mxu0 0.0
    %3515 = vmatpush.xpose.msra.mxu0 0.0
    %3516 = vmatpush.xpose.msra.mxu0 0.0
    %3517 = vmatpush.xpose.msra.mxu0 0.0
    %3518 = vmatpush.xpose.msra.mxu0 0.0
    %3519 = vmatpush.xpose.msra.mxu0 0.0
    %3520 = vmatpush.xpose.msra.mxu0 %v3294
    %3521 = vmatpush.xpose.msra.mxu0 %v3292
    %3522 = vmatmul.f32.gmra.mxu0 %v3502
    %v3523 = vpop.f32.mrf.mxu0
    %v3524 = vadd.f32 0.0, %v3523
    %3525 = vmatmul.f32.gmra.mxu0 %v3504
    %v3526 = vpop.f32.mrf.mxu0
    %v3527 = vadd.f32 0.0, %v3526
    %3528 = vdwg.mxu0
    %v3532 = vrot.slane %v3241, 6
    %v3533 = vrot.slane %v3242, 6
    %v3534 = vsel %vm1274, %v3532, %v3533
    %v3535 = vrot.slane %v3243, 6
    %v3536 = vsel %vm1274, %v3533, %v3535
    %v3537 = vsel %vm191, %v3534, 0
    %v3539 = vsel %vm191, %v3536, 0
    %3541 = vmatpush.xpose.msra.mxu0 0.0
    %3542 = vmatpush.xpose.msra.mxu0 0.0
    %3543 = vmatpush.xpose.msra.mxu0 0.0
    %3544 = vmatpush.xpose.msra.mxu0 0.0
    %3545 = vmatpush.xpose.msra.mxu0 0.0
    %3546 = vmatpush.xpose.msra.mxu0 0.0
    %3547 = vmatpush.xpose.msra.mxu0 0.0
    %3548 = vmatpush.xpose.msra.mxu0 0.0
    %3549 = vmatpush.xpose.msra.mxu0 0.0
    %3550 = vmatpush.xpose.msra.mxu0 0.0
    %3551 = vmatpush.xpose.msra.mxu0 0.0
    %3552 = vmatpush.xpose.msra.mxu0 0.0
    %3553 = vmatpush.xpose.msra.mxu0 0.0
    %3554 = vmatpush.xpose.msra.mxu0 0.0
    %3555 = vmatpush.xpose.msra.mxu0 %v3294
    %3556 = vmatpush.xpose.msra.mxu0 %v3292
    %3557 = vmatmul.f32.gmra.mxu0 %v3537
    %v3558 = vpop.f32.mrf.mxu0
    %v3559 = vadd.f32 0.0, %v3558
    %3560 = vmatmul.f32.gmra.mxu0 %v3539
    %v3561 = vpop.f32.mrf.mxu0
    %v3562 = vadd.f32 0.0, %v3561
    %3563 = vdwg.mxu0
    %v3564 = vmul.f32 %v3314, 0.35355338
    %v3565 = vmul.f32 %v3317, 0.35355338
    %v3566 = vmul.f32 %v3349, 0.35355338
    %v3567 = vmul.f32 %v3352, 0.35355338
    %v3568 = vmul.f32 %v3384, 0.35355338
    %v3569 = vmul.f32 %v3387, 0.35355338
    %v3570 = vmul.f32 %v3419, 0.35355338
    %v3571 = vmul.f32 %v3422, 0.35355338
    %v3572 = vmul.f32 %v3454, 0.35355338
    %v3573 = vmul.f32 %v3457, 0.35355338
    %v3574 = vmul.f32 %v3489, 0.35355338
    %v3575 = vmul.f32 %v3492, 0.35355338
    %v3576 = vmul.f32 %v3524, 0.35355338
    %v3577 = vmul.f32 %v3527, 0.35355338
    %v3578 = vmul.f32 %v3559, 0.35355338
    %v3579 = vmul.f32 %v3562, 0.35355338
    %v3580 = vsel %vm717, %v3564, -inf
    %3581 = vmax.xlane.f32.xlu0 %v3580
    %v3582 = vpop.xlane.xlu0 %3581
    %v3583 = vsel %vm721, %v3565, -inf
    %3584 = vmax.xlane.f32.xlu0 %v3583
    %v3585 = vpop.xlane.xlu0 %3584
    %v3586 = vsel %vm717, %v3566, -inf
    %3587 = vmax.xlane.f32.xlu0 %v3586
    %v3588 = vpop.xlane.xlu0 %3587
    %v3589 = vsel %vm721, %v3567, -inf
    %3590 = vmax.xlane.f32.xlu0 %v3589
    %v3591 = vpop.xlane.xlu0 %3590
    %v3592 = vsel %vm717, %v3568, -inf
    %3593 = vmax.xlane.f32.xlu0 %v3592
    %v3594 = vpop.xlane.xlu0 %3593
    %v3595 = vsel %vm721, %v3569, -inf
    %3596 = vmax.xlane.f32.xlu0 %v3595
    %v3597 = vpop.xlane.xlu0 %3596
    %v3598 = vsel %vm717, %v3570, -inf
    %3599 = vmax.xlane.f32.xlu0 %v3598
    %v3600 = vpop.xlane.xlu0 %3599
    %v3601 = vsel %vm721, %v3571, -inf
    %3602 = vmax.xlane.f32.xlu0 %v3601
    %v3603 = vpop.xlane.xlu0 %3602
    %v3604 = vsel %vm717, %v3572, -inf
    %3605 = vmax.xlane.f32.xlu0 %v3604
    %v3606 = vpop.xlane.xlu0 %3605
    %v3607 = vsel %vm721, %v3573, -inf
    %3608 = vmax.xlane.f32.xlu0 %v3607
    %v3609 = vpop.xlane.xlu0 %3608
    %v3610 = vsel %vm717, %v3574, -inf
    %3611 = vmax.xlane.f32.xlu0 %v3610
    %v3612 = vpop.xlane.xlu0 %3611
    %v3613 = vsel %vm721, %v3575, -inf
    %3614 = vmax.xlane.f32.xlu0 %v3613
    %v3615 = vpop.xlane.xlu0 %3614
    %v3616 = vsel %vm717, %v3576, -inf
    %3617 = vmax.xlane.f32.xlu0 %v3616
    %v3618 = vpop.xlane.xlu0 %3617
    %v3619 = vsel %vm721, %v3577, -inf
    %3620 = vmax.xlane.f32.xlu0 %v3619
    %v3621 = vpop.xlane.xlu0 %3620
    %v3622 = vsel %vm717, %v3578, -inf
    %3623 = vmax.xlane.f32.xlu0 %v3622
    %v3624 = vpop.xlane.xlu0 %3623
    %v3625 = vsel %vm721, %v3579, -inf
    %3626 = vmax.xlane.f32.xlu0 %v3625
    %v3627 = vpop.xlane.xlu0 %3626
    %v3628 = vsub.f32 %v3564, %v3582
    %v3629 = vsub.f32 %v3565, %v3585
    %v3630 = vsub.f32 %v3566, %v3588
    %v3631 = vsub.f32 %v3567, %v3591
    %v3632 = vsub.f32 %v3568, %v3594
    %v3633 = vsub.f32 %v3569, %v3597
    %v3634 = vsub.f32 %v3570, %v3600
    %v3635 = vsub.f32 %v3571, %v3603
    %v3636 = vsub.f32 %v3572, %v3606
    %v3637 = vsub.f32 %v3573, %v3609
    %v3638 = vsub.f32 %v3574, %v3612
    %v3639 = vsub.f32 %v3575, %v3615
    %v3640 = vsub.f32 %v3576, %v3618
    %v3641 = vsub.f32 %v3577, %v3621
    %v3642 = vsub.f32 %v3578, %v3624
    %v3643 = vsub.f32 %v3579, %v3627
    %v3644 = vmul.f32 %v3628, 1.442695
    %v3645 = vpow.pop %v3644
    %v3646 = vmul.f32 %v3629, 1.442695
    %v3647 = vpow.pop %v3646
    %v3648 = vmul.f32 %v3630, 1.442695
    %v3649 = vpow.pop %v3648
    %v3650 = vmul.f32 %v3631, 1.442695
    %v3651 = vpow.pop %v3650
    %v3652 = vmul.f32 %v3632, 1.442695
    %v3653 = vpow.pop %v3652
    %v3654 = vmul.f32 %v3633, 1.442695
    %v3655 = vpow.pop %v3654
    %v3656 = vmul.f32 %v3634, 1.442695
    %v3657 = vpow.pop %v3656
    %v3658 = vmul.f32 %v3635, 1.442695
    %v3659 = vpow.pop %v3658
    %v3660 = vmul.f32 %v3636, 1.442695
    %v3661 = vpow.pop %v3660
    %v3662 = vmul.f32 %v3637, 1.442695
    %v3663 = vpow.pop %v3662
    %v3664 = vmul.f32 %v3638, 1.442695
    %v3665 = vpow.pop %v3664
    %v3666 = vmul.f32 %v3639, 1.442695
    %v3667 = vpow.pop %v3666
    %v3668 = vmul.f32 %v3640, 1.442695
    %v3669 = vpow.pop %v3668
    %v3670 = vmul.f32 %v3641, 1.442695
    %v3671 = vpow.pop %v3670
    %v3672 = vmul.f32 %v3642, 1.442695
    %v3673 = vpow.pop %v3672
    %v3674 = vmul.f32 %v3643, 1.442695
    %v3675 = vpow.pop %v3674
    %v3676 = vsel %vm717, %v3645, 0.0
    %3677 = vadd.xlane.f32.xlu0 %v3676
    %v3678 = vpop.xlane.xlu0 %3677
    %v3679 = vsel %vm721, %v3647, 0.0
    %3680 = vadd.xlane.f32.xlu0 %v3679
    %v3681 = vpop.xlane.xlu0 %3680
    %v3682 = vsel %vm717, %v3649, 0.0
    %3683 = vadd.xlane.f32.xlu0 %v3682
    %v3684 = vpop.xlane.xlu0 %3683
    %v3685 = vsel %vm721, %v3651, 0.0
    %3686 = vadd.xlane.f32.xlu0 %v3685
    %v3687 = vpop.xlane.xlu0 %3686
    %v3688 = vsel %vm717, %v3653, 0.0
    %3689 = vadd.xlane.f32.xlu0 %v3688
    %v3690 = vpop.xlane.xlu0 %3689
    %v3691 = vsel %vm721, %v3655, 0.0
    %3692 = vadd.xlane.f32.xlu0 %v3691
    %v3693 = vpop.xlane.xlu0 %3692
    %v3694 = vsel %vm717, %v3657, 0.0
    %3695 = vadd.xlane.f32.xlu0 %v3694
    %v3696 = vpop.xlane.xlu0 %3695
    %v3697 = vsel %vm721, %v3659, 0.0
    %3698 = vadd.xlane.f32.xlu0 %v3697
    %v3699 = vpop.xlane.xlu0 %3698
    %v3700 = vsel %vm717, %v3661, 0.0
    %3701 = vadd.xlane.f32.xlu0 %v3700
    %v3702 = vpop.xlane.xlu0 %3701
    %v3703 = vsel %vm721, %v3663, 0.0
    %3704 = vadd.xlane.f32.xlu0 %v3703
    %v3705 = vpop.xlane.xlu0 %3704
    %v3706 = vsel %vm717, %v3665, 0.0
    %3707 = vadd.xlane.f32.xlu0 %v3706
    %v3708 = vpop.xlane.xlu0 %3707
    %v3709 = vsel %vm721, %v3667, 0.0
    %3710 = vadd.xlane.f32.xlu0 %v3709
    %v3711 = vpop.xlane.xlu0 %3710
    %v3712 = vsel %vm717, %v3669, 0.0
    %3713 = vadd.xlane.f32.xlu0 %v3712
    %v3714 = vpop.xlane.xlu0 %3713
    %v3715 = vsel %vm721, %v3671, 0.0
    %3716 = vadd.xlane.f32.xlu0 %v3715
    %v3717 = vpop.xlane.xlu0 %3716
    %v3718 = vsel %vm717, %v3673, 0.0
    %3719 = vadd.xlane.f32.xlu0 %v3718
    %v3720 = vpop.xlane.xlu0 %3719
    %v3721 = vsel %vm721, %v3675, 0.0
    %3722 = vadd.xlane.f32.xlu0 %v3721
    %v3723 = vpop.xlane.xlu0 %3722
    %v3724 = vrcp.pop %v3678
    %v3725 = vrcp.pop %v3681
    %v3726 = vrcp.pop %v3684
    %v3727 = vrcp.pop %v3687
    %v3728 = vrcp.pop %v3690
    %v3729 = vrcp.pop %v3693
    %v3730 = vrcp.pop %v3696
    %v3731 = vrcp.pop %v3699
    %v3732 = vrcp.pop %v3702
    %v3733 = vrcp.pop %v3705
    %v3734 = vrcp.pop %v3708
    %v3735 = vrcp.pop %v3711
    %v3736 = vrcp.pop %v3714
    %v3737 = vrcp.pop %v3717
    %v3738 = vrcp.pop %v3720
    %v3739 = vrcp.pop %v3723
    %v3740 = vmul.f32 %v3645, %v3724
    %v3741 = vmul.f32 %v3647, %v3725
    %v3742 = vmul.f32 %v3649, %v3726
    %v3743 = vmul.f32 %v3651, %v3727
    %v3744 = vmul.f32 %v3653, %v3728
    %v3745 = vmul.f32 %v3655, %v3729
    %v3746 = vmul.f32 %v3657, %v3730
    %v3747 = vmul.f32 %v3659, %v3731
    %v3748 = vmul.f32 %v3661, %v3732
    %v3749 = vmul.f32 %v3663, %v3733
    %v3750 = vmul.f32 %v3665, %v3734
    %v3751 = vmul.f32 %v3667, %v3735
    %v3752 = vmul.f32 %v3669, %v3736
    %v3753 = vmul.f32 %v3671, %v3737
    %v3754 = vmul.f32 %v3673, %v3738
    %v3755 = vmul.f32 %v3675, %v3739
    %v3756 = vsel %vm717, %v3740, 0.0
    %v3757 = vsel %vm717, %v3742, 0.0
    %v3758 = vadd.f32 %v3756, %v3757
    %v3759 = vsel %vm717, %v3744, 0.0
    %v3760 = vadd.f32 %v3758, %v3759
    %v3761 = vsel %vm717, %v3746, 0.0
    %v3762 = vadd.f32 %v3760, %v3761
    %v3763 = vsel %vm717, %v3748, 0.0
    %v3764 = vadd.f32 %v3762, %v3763
    %v3765 = vsel %vm717, %v3750, 0.0
    %v3766 = vadd.f32 %v3764, %v3765
    %v3767 = vsel %vm717, %v3752, 0.0
    %v3768 = vadd.f32 %v3766, %v3767
    %v3769 = vsel %vm717, %v3754, 0.0
    %v3770 = vadd.f32 %v3768, %v3769
    %v3771 = vsel %vm721, %v3741, 0.0
    %v3772 = vsel %vm721, %v3743, 0.0
    %v3773 = vadd.f32 %v3771, %v3772
    %v3774 = vsel %vm721, %v3745, 0.0
    %v3775 = vadd.f32 %v3773, %v3774
    %v3776 = vsel %vm721, %v3747, 0.0
    %v3777 = vadd.f32 %v3775, %v3776
    %v3778 = vsel %vm721, %v3749, 0.0
    %v3779 = vadd.f32 %v3777, %v3778
    %v3780 = vsel %vm721, %v3751, 0.0
    %v3781 = vadd.f32 %v3779, %v3780
    %v3782 = vsel %vm721, %v3753, 0.0
    %v3783 = vadd.f32 %v3781, %v3782
    %v3784 = vsel %vm721, %v3755, 0.0
    %v3785 = vadd.f32 %v3783, %v3784
    %v3786 = vadd.f32 %v1790, %v3770
    %v3787 = vadd.f32 %v1791, %v3785
    %v3791 = vrot.slane %v3244, 6
    %v3792 = vrot.slane %v3245, 6
    %v3793 = vsel %vm1274, %v3791, %v3792
    %v3794 = vrot.slane %v3246, 6
    %v3795 = vsel %vm1274, %v3792, %v3794
    %v3798 = vsel %vm717, %v3740, 0
    %v3801 = vsel %vm717, %v3741, 0
    %v3803 = vsel %vm933, %v3795, 0
    %3805 = vmatpush.msra.mxu0 0.0
    %3806 = vmatpush.msra.mxu0 0.0
    %3807 = vmatpush.msra.mxu0 0.0
    %3808 = vmatpush.msra.mxu0 0.0
    %3809 = vmatpush.msra.mxu0 0.0
    %3810 = vmatpush.msra.mxu0 0.0
    %3811 = vmatpush.msra.mxu0 0.0
    %3812 = vmatpush.msra.mxu0 0.0
    %3813 = vmatpush.msra.mxu0 0.0
    %3814 = vmatpush.msra.mxu0 0.0
    %3815 = vmatpush.msra.mxu0 0.0
    %3816 = vmatpush.msra.mxu0 0.0
    %3817 = vmatpush.msra.mxu0 0.0
    %3818 = vmatpush.msra.mxu0 0.0
    %3819 = vmatpush.msra.mxu0 %v3803
    %3820 = vmatpush.msra.mxu0 %v3793
    %3821 = vmatmul.f32.gmra.mxu0 %v3798
    %v3822 = vpop.f32.mrf.mxu0
    %v3823 = vadd.f32 0.0, %v3822
    %3824 = vmatmul.f32.gmra.mxu0 %v3801
    %v3825 = vpop.f32.mrf.mxu0
    %v3826 = vadd.f32 0.0, %v3825
    %3827 = vdwg.mxu0
    %v3831 = vrot.slane %v3247, 6
    %v3832 = vrot.slane %v3248, 6
    %v3833 = vsel %vm1274, %v3831, %v3832
    %v3834 = vrot.slane %v3249, 6
    %v3835 = vsel %vm1274, %v3832, %v3834
    %v3838 = vsel %vm717, %v3742, 0
    %v3841 = vsel %vm717, %v3743, 0
    %v3843 = vsel %vm933, %v3835, 0
    %3845 = vmatpush.msra.mxu0 0.0
    %3846 = vmatpush.msra.mxu0 0.0
    %3847 = vmatpush.msra.mxu0 0.0
    %3848 = vmatpush.msra.mxu0 0.0
    %3849 = vmatpush.msra.mxu0 0.0
    %3850 = vmatpush.msra.mxu0 0.0
    %3851 = vmatpush.msra.mxu0 0.0
    %3852 = vmatpush.msra.mxu0 0.0
    %3853 = vmatpush.msra.mxu0 0.0
    %3854 = vmatpush.msra.mxu0 0.0
    %3855 = vmatpush.msra.mxu0 0.0
    %3856 = vmatpush.msra.mxu0 0.0
    %3857 = vmatpush.msra.mxu0 0.0
    %3858 = vmatpush.msra.mxu0 0.0
    %3859 = vmatpush.msra.mxu0 %v3843
    %3860 = vmatpush.msra.mxu0 %v3833
    %3861 = vmatmul.f32.gmra.mxu0 %v3838
    %v3862 = vpop.f32.mrf.mxu0
    %v3863 = vadd.f32 0.0, %v3862
    %3864 = vmatmul.f32.gmra.mxu0 %v3841
    %v3865 = vpop.f32.mrf.mxu0
    %v3866 = vadd.f32 0.0, %v3865
    %3867 = vdwg.mxu0
    %v3871 = vrot.slane %v3250, 6
    %v3872 = vrot.slane %v3251, 6
    %v3873 = vsel %vm1274, %v3871, %v3872
    %v3874 = vrot.slane %v3252, 6
    %v3875 = vsel %vm1274, %v3872, %v3874
    %v3878 = vsel %vm717, %v3744, 0
    %v3881 = vsel %vm717, %v3745, 0
    %v3883 = vsel %vm933, %v3875, 0
    %3885 = vmatpush.msra.mxu0 0.0
    %3886 = vmatpush.msra.mxu0 0.0
    %3887 = vmatpush.msra.mxu0 0.0
    %3888 = vmatpush.msra.mxu0 0.0
    %3889 = vmatpush.msra.mxu0 0.0
    %3890 = vmatpush.msra.mxu0 0.0
    %3891 = vmatpush.msra.mxu0 0.0
    %3892 = vmatpush.msra.mxu0 0.0
    %3893 = vmatpush.msra.mxu0 0.0
    %3894 = vmatpush.msra.mxu0 0.0
    %3895 = vmatpush.msra.mxu0 0.0
    %3896 = vmatpush.msra.mxu0 0.0
    %3897 = vmatpush.msra.mxu0 0.0
    %3898 = vmatpush.msra.mxu0 0.0
    %3899 = vmatpush.msra.mxu0 %v3883
    %3900 = vmatpush.msra.mxu0 %v3873
    %3901 = vmatmul.f32.gmra.mxu0 %v3878
    %v3902 = vpop.f32.mrf.mxu0
    %v3903 = vadd.f32 0.0, %v3902
    %3904 = vmatmul.f32.gmra.mxu0 %v3881
    %v3905 = vpop.f32.mrf.mxu0
    %v3906 = vadd.f32 0.0, %v3905
    %3907 = vdwg.mxu0
    %v3911 = vrot.slane %v3253, 6
    %v3912 = vrot.slane %v3254, 6
    %v3913 = vsel %vm1274, %v3911, %v3912
    %v3914 = vrot.slane %v3255, 6
    %v3915 = vsel %vm1274, %v3912, %v3914
    %v3918 = vsel %vm717, %v3746, 0
    %v3921 = vsel %vm717, %v3747, 0
    %v3923 = vsel %vm933, %v3915, 0
    %3925 = vmatpush.msra.mxu0 0.0
    %3926 = vmatpush.msra.mxu0 0.0
    %3927 = vmatpush.msra.mxu0 0.0
    %3928 = vmatpush.msra.mxu0 0.0
    %3929 = vmatpush.msra.mxu0 0.0
    %3930 = vmatpush.msra.mxu0 0.0
    %3931 = vmatpush.msra.mxu0 0.0
    %3932 = vmatpush.msra.mxu0 0.0
    %3933 = vmatpush.msra.mxu0 0.0
    %3934 = vmatpush.msra.mxu0 0.0
    %3935 = vmatpush.msra.mxu0 0.0
    %3936 = vmatpush.msra.mxu0 0.0
    %3937 = vmatpush.msra.mxu0 0.0
    %3938 = vmatpush.msra.mxu0 0.0
    %3939 = vmatpush.msra.mxu0 %v3923
    %3940 = vmatpush.msra.mxu0 %v3913
    %3941 = vmatmul.f32.gmra.mxu0 %v3918
    %v3942 = vpop.f32.mrf.mxu0
    %v3943 = vadd.f32 0.0, %v3942
    %3944 = vmatmul.f32.gmra.mxu0 %v3921
    %v3945 = vpop.f32.mrf.mxu0
    %v3946 = vadd.f32 0.0, %v3945
    %3947 = vdwg.mxu0
    %v3951 = vrot.slane %v3256, 6
    %v3952 = vrot.slane %v3257, 6
    %v3953 = vsel %vm1274, %v3951, %v3952
    %v3954 = vrot.slane %v3258, 6
    %v3955 = vsel %vm1274, %v3952, %v3954
    %v3958 = vsel %vm717, %v3748, 0
    %v3961 = vsel %vm717, %v3749, 0
    %v3963 = vsel %vm933, %v3955, 0
    %3965 = vmatpush.msra.mxu0 0.0
    %3966 = vmatpush.msra.mxu0 0.0
    %3967 = vmatpush.msra.mxu0 0.0
    %3968 = vmatpush.msra.mxu0 0.0
    %3969 = vmatpush.msra.mxu0 0.0
    %3970 = vmatpush.msra.mxu0 0.0
    %3971 = vmatpush.msra.mxu0 0.0
    %3972 = vmatpush.msra.mxu0 0.0
    %3973 = vmatpush.msra.mxu0 0.0
    %3974 = vmatpush.msra.mxu0 0.0
    %3975 = vmatpush.msra.mxu0 0.0
    %3976 = vmatpush.msra.mxu0 0.0
    %3977 = vmatpush.msra.mxu0 0.0
    %3978 = vmatpush.msra.mxu0 0.0
    %3979 = vmatpush.msra.mxu0 %v3963
    %3980 = vmatpush.msra.mxu0 %v3953
    %3981 = vmatmul.f32.gmra.mxu0 %v3958
    %v3982 = vpop.f32.mrf.mxu0
    %v3983 = vadd.f32 0.0, %v3982
    %3984 = vmatmul.f32.gmra.mxu0 %v3961
    %v3985 = vpop.f32.mrf.mxu0
    %v3986 = vadd.f32 0.0, %v3985
    %3987 = vdwg.mxu0
    %v3991 = vrot.slane %v3259, 6
    %v3992 = vrot.slane %v3260, 6
    %v3993 = vsel %vm1274, %v3991, %v3992
    %v3994 = vrot.slane %v3261, 6
    %v3995 = vsel %vm1274, %v3992, %v3994
    %v3998 = vsel %vm717, %v3750, 0
    %v4001 = vsel %vm717, %v3751, 0
    %v4003 = vsel %vm933, %v3995, 0
    %4005 = vmatpush.msra.mxu0 0.0
    %4006 = vmatpush.msra.mxu0 0.0
    %4007 = vmatpush.msra.mxu0 0.0
    %4008 = vmatpush.msra.mxu0 0.0
    %4009 = vmatpush.msra.mxu0 0.0
    %4010 = vmatpush.msra.mxu0 0.0
    %4011 = vmatpush.msra.mxu0 0.0
    %4012 = vmatpush.msra.mxu0 0.0
    %4013 = vmatpush.msra.mxu0 0.0
    %4014 = vmatpush.msra.mxu0 0.0
    %4015 = vmatpush.msra.mxu0 0.0
    %4016 = vmatpush.msra.mxu0 0.0
    %4017 = vmatpush.msra.mxu0 0.0
    %4018 = vmatpush.msra.mxu0 0.0
    %4019 = vmatpush.msra.mxu0 %v4003
    %4020 = vmatpush.msra.mxu0 %v3993
    %4021 = vmatmul.f32.gmra.mxu0 %v3998
    %v4022 = vpop.f32.mrf.mxu0
    %v4023 = vadd.f32 0.0, %v4022
    %4024 = vmatmul.f32.gmra.mxu0 %v4001
    %v4025 = vpop.f32.mrf.mxu0
    %v4026 = vadd.f32 0.0, %v4025
    %4027 = vdwg.mxu0
    %v4031 = vrot.slane %v3262, 6
    %v4032 = vrot.slane %v3263, 6
    %v4033 = vsel %vm1274, %v4031, %v4032
    %v4034 = vrot.slane %v3264, 6
    %v4035 = vsel %vm1274, %v4032, %v4034
    %v4038 = vsel %vm717, %v3752, 0
    %v4041 = vsel %vm717, %v3753, 0
    %v4043 = vsel %vm933, %v4035, 0
    %4045 = vmatpush.msra.mxu0 0.0
    %4046 = vmatpush.msra.mxu0 0.0
    %4047 = vmatpush.msra.mxu0 0.0
    %4048 = vmatpush.msra.mxu0 0.0
    %4049 = vmatpush.msra.mxu0 0.0
    %4050 = vmatpush.msra.mxu0 0.0
    %4051 = vmatpush.msra.mxu0 0.0
    %4052 = vmatpush.msra.mxu0 0.0
    %4053 = vmatpush.msra.mxu0 0.0
    %4054 = vmatpush.msra.mxu0 0.0
    %4055 = vmatpush.msra.mxu0 0.0
    %4056 = vmatpush.msra.mxu0 0.0
    %4057 = vmatpush.msra.mxu0 0.0
    %4058 = vmatpush.msra.mxu0 0.0
    %4059 = vmatpush.msra.mxu0 %v4043
    %4060 = vmatpush.msra.mxu0 %v4033
    %4061 = vmatmul.f32.gmra.mxu0 %v4038
    %v4062 = vpop.f32.mrf.mxu0
    %v4063 = vadd.f32 0.0, %v4062
    %4064 = vmatmul.f32.gmra.mxu0 %v4041
    %v4065 = vpop.f32.mrf.mxu0
    %v4066 = vadd.f32 0.0, %v4065
    %4067 = vdwg.mxu0
    %v4071 = vrot.slane %v3265, 6
    %v4072 = vrot.slane %v3266, 6
    %v4073 = vsel %vm1274, %v4071, %v4072
    %v4074 = vrot.slane %v3267, 6
    %v4075 = vsel %vm1274, %v4072, %v4074
    %v4078 = vsel %vm717, %v3754, 0
    %v4081 = vsel %vm717, %v3755, 0
    %v4083 = vsel %vm933, %v4075, 0
    %4085 = vmatpush.msra.mxu0 0.0
    %4086 = vmatpush.msra.mxu0 0.0
    %4087 = vmatpush.msra.mxu0 0.0
    %4088 = vmatpush.msra.mxu0 0.0
    %4089 = vmatpush.msra.mxu0 0.0
    %4090 = vmatpush.msra.mxu0 0.0
    %4091 = vmatpush.msra.mxu0 0.0
    %4092 = vmatpush.msra.mxu0 0.0
    %4093 = vmatpush.msra.mxu0 0.0
    %4094 = vmatpush.msra.mxu0 0.0
    %4095 = vmatpush.msra.mxu0 0.0
    %4096 = vmatpush.msra.mxu0 0.0
    %4097 = vmatpush.msra.mxu0 0.0
    %4098 = vmatpush.msra.mxu0 0.0
    %4099 = vmatpush.msra.mxu0 %v4083
    %4100 = vmatpush.msra.mxu0 %v4073
    %4101 = vmatmul.f32.gmra.mxu0 %v4078
    %v4102 = vpop.f32.mrf.mxu0
    %v4103 = vadd.f32 0.0, %v4102
    %4104 = vmatmul.f32.gmra.mxu0 %v4081
    %v4105 = vpop.f32.mrf.mxu0
    %v4106 = vadd.f32 0.0, %v4105
    %4107 = vdwg.mxu0
    %v4108 = vsel %vm191, %v3823, 0.0
    %v4109 = vsel %vm191, %v3863, 0.0
    %v4110 = vadd.f32 %v4108, %v4109
    %v4111 = vsel %vm191, %v3903, 0.0
    %v4112 = vadd.f32 %v4110, %v4111
    %v4113 = vsel %vm191, %v3943, 0.0
    %v4114 = vadd.f32 %v4112, %v4113
    %v4115 = vsel %vm191, %v3983, 0.0
    %v4116 = vadd.f32 %v4114, %v4115
    %v4117 = vsel %vm191, %v4023, 0.0
    %v4118 = vadd.f32 %v4116, %v4117
    %v4119 = vsel %vm191, %v4063, 0.0
    %v4120 = vadd.f32 %v4118, %v4119
    %v4121 = vsel %vm191, %v4103, 0.0
    %v4122 = vadd.f32 %v4120, %v4121
    %v4123 = vsel %vm1199, %v3826, 0.0
    %v4124 = vsel %vm1199, %v3866, 0.0
    %v4125 = vadd.f32 %v4123, %v4124
    %v4126 = vsel %vm1199, %v3906, 0.0
    %v4127 = vadd.f32 %v4125, %v4126
    %v4128 = vsel %vm1199, %v3946, 0.0
    %v4129 = vadd.f32 %v4127, %v4128
    %v4130 = vsel %vm1199, %v3986, 0.0
    %v4131 = vadd.f32 %v4129, %v4130
    %v4132 = vsel %vm1199, %v4026, 0.0
    %v4133 = vadd.f32 %v4131, %v4132
    %v4134 = vsel %vm1199, %v4066, 0.0
    %v4135 = vadd.f32 %v4133, %v4134
    %v4136 = vsel %vm1199, %v4106, 0.0
    %v4137 = vadd.f32 %v4135, %v4136
    %4138 = vst.msk [vmem:[#allocation3 + $0xe] sm:$0xff] %vm191, %v4122
    %4139 = vst.msk [vmem:[#allocation3 + $0x16] sm:$0x3f] %vm1199, %v4137
    %v4140 = vld [vmem:[#allocation3] sm:$0xff]
    %v4141 = vld [vmem:[#allocation3 + $0x8] sm:$0xff]
    %v4142 = vld [vmem:[#allocation3 + $0x10] sm:$0xff]
    %v4143 = vld [vmem:[#allocation3 + $0x18] sm:$0xf]
    %s4144 = scalar_lea.vmem %s6, 64
    %v4145 = vld [vmem:[%s4144] sm:$0xff]
    %v4146 = vld [vmem:[%s4144 + $0x8] sm:$0xff]
    %v4147 = vld [vmem:[%s4144 + $0x10] sm:$0xff]
    %v4148 = vld [vmem:[%s4144 + $0x18] sm:$0xff]
    %v4149 = vld [vmem:[%s4144 + $0x20] sm:$0xff]
    %v4150 = vld [vmem:[%s4144 + $0x28] sm:$0xff]
    %v4151 = vld [vmem:[%s4144 + $0x30] sm:$0xff]
    %v4152 = vld [vmem:[%s4144 + $0x38] sm:$0xff]
    %v4153 = vperm.slane %v2321, 0
    %v4155 = vsel %vm191, %v4140, 0
    %v4158 = vsel %vm191, %v4141, 0
    %v4161 = vsel %vm191, %v4142, 0
    %v4164 = vsel %vm191, %v4143, 0
    %4166 = vmatpush.msra.mxu0 0.0
    %4167 = vmatpush.msra.mxu0 0.0
    %4168 = vmatpush.msra.mxu0 0.0
    %4169 = vmatpush.msra.mxu0 0.0
    %4170 = vmatpush.msra.mxu0 0.0
    %4171 = vmatpush.msra.mxu0 0.0
    %4172 = vmatpush.msra.mxu0 0.0
    %4173 = vmatpush.msra.mxu0 0.0
    %4174 = vmatpush.msra.mxu0 %v4152
    %4175 = vmatpush.msra.mxu0 %v4151
    %4176 = vmatpush.msra.mxu0 %v4150
    %4177 = vmatpush.msra.mxu0 %v4149
    %4178 = vmatpush.msra.mxu0 %v4148
    %4179 = vmatpush.msra.mxu0 %v4147
    %4180 = vmatpush.msra.mxu0 %v4146
    %4181 = vmatpush.msra.mxu0 %v4145
    %4182 = vmatmul.f32.gmra.mxu0 %v4155
    %v4183 = vpop.f32.mrf.mxu0
    %v4184 = vadd.f32 %v4153, %v4183
    %4185 = vmatmul.f32.gmra.mxu0 %v4158
    %v4186 = vpop.f32.mrf.mxu0
    %v4187 = vadd.f32 %v4153, %v4186
    %4188 = vmatmul.f32.gmra.mxu0 %v4161
    %v4189 = vpop.f32.mrf.mxu0
    %v4190 = vadd.f32 %v4153, %v4189
    %4191 = vmatmul.f32.gmra.mxu0 %v4164
    %v4192 = vpop.f32.mrf.mxu0
    %v4193 = vadd.f32 %v4153, %v4192
    %4194 = vdwg.mxu0
    %v4195 = vsel %vm191, %v4184, 0.0
    %4196 = vadd.xlane.f32.xlu0 %v4195
    %v4197 = vpop.xlane.xlu0 %4196
    %v4198 = vsel %vm191, %v4187, 0.0
    %4199 = vadd.xlane.f32.xlu0 %v4198
    %v4200 = vpop.xlane.xlu0 %4199
    %v4201 = vsel %vm191, %v4190, 0.0
    %4202 = vadd.xlane.f32.xlu0 %v4201
    %v4203 = vpop.xlane.xlu0 %4202
    %v4204 = vsel %vm201, %v4193, 0.0
    %4205 = vadd.xlane.f32.xlu0 %v4204
    %v4206 = vpop.xlane.xlu0 %4205
    %v4207 = vmul.f32 %v4197, %v211
    %v4208 = vmul.f32 %v4200, %v211
    %v4209 = vmul.f32 %v4203, %v211
    %v4210 = vmul.f32 %v4206, %v211
    %v4211 = vsub.f32 %v4184, %v4207
    %v4212 = vsub.f32 %v4187, %v4208
    %v4213 = vsub.f32 %v4190, %v4209
    %v4214 = vsub.f32 %v4193, %v4210
    %v4215 = vmul.f32 %v4211, %v4211
    %v4216 = vmul.f32 %v4212, %v4212
    %v4217 = vmul.f32 %v4213, %v4213
    %v4218 = vmul.f32 %v4214, %v4214
    %v4219 = vsel %vm191, %v4215, 0.0
    %4220 = vadd.xlane.f32.xlu0 %v4219
    %v4221 = vpop.xlane.xlu0 %4220
    %v4222 = vsel %vm191, %v4216, 0.0
    %4223 = vadd.xlane.f32.xlu0 %v4222
    %v4224 = vpop.xlane.xlu0 %4223
    %v4225 = vsel %vm191, %v4217, 0.0
    %4226 = vadd.xlane.f32.xlu0 %v4225
    %v4227 = vpop.xlane.xlu0 %4226
    %v4228 = vsel %vm201, %v4218, 0.0
    %4229 = vadd.xlane.f32.xlu0 %v4228
    %v4230 = vpop.xlane.xlu0 %4229
    %v4231 = vmul.f32 %v4221, %v211
    %v4232 = vmul.f32 %v4224, %v211
    %v4233 = vmul.f32 %v4227, %v211
    %v4234 = vmul.f32 %v4230, %v211
    %v4235 = vadd.f32 %v4231, 1e-05
    %v4236 = vadd.f32 %v4232, 1e-05
    %v4237 = vadd.f32 %v4233, 1e-05
    %v4238 = vadd.f32 %v4234, 1e-05
    %v4239 = vrsqrt.pop %v4235
    %v4240 = vmul.f32 %v4239, %v4235
    %v4241 = vmul.f32 %v4240, %v4239
    %v4242 = vmul.f32 0.5, %v4241
    %v4243 = vsub.f32 1.5, %v4242
    %v4244 = vmul.f32 %v4239, %v4243
    %vm4245 = vweird.f32 %v4235
    %vm4246 = vweird.f32 %v4239
    %vm4247 = vmor %vm4245, %vm4246
    %v4248 = vsel %vm4247, %v4239, %v4244
    %v4249 = vrsqrt.pop %v4236
    %v4250 = vmul.f32 %v4249, %v4236
    %v4251 = vmul.f32 %v4250, %v4249
    %v4252 = vmul.f32 0.5, %v4251
    %v4253 = vsub.f32 1.5, %v4252
    %v4254 = vmul.f32 %v4249, %v4253
    %vm4255 = vweird.f32 %v4236
    %vm4256 = vweird.f32 %v4249
    %vm4257 = vmor %vm4255, %vm4256
    %v4258 = vsel %vm4257, %v4249, %v4254
    %v4259 = vrsqrt.pop %v4237
    %v4260 = vmul.f32 %v4259, %v4237
    %v4261 = vmul.f32 %v4260, %v4259
    %v4262 = vmul.f32 0.5, %v4261
    %v4263 = vsub.f32 1.5, %v4262
    %v4264 = vmul.f32 %v4259, %v4263
    %vm4265 = vweird.f32 %v4237
    %vm4266 = vweird.f32 %v4259
    %vm4267 = vmor %vm4265, %vm4266
    %v4268 = vsel %vm4267, %v4259, %v4264
    %v4269 = vrsqrt.pop %v4238
    %v4270 = vmul.f32 %v4269, %v4238
    %v4271 = vmul.f32 %v4270, %v4269
    %v4272 = vmul.f32 0.5, %v4271
    %v4273 = vsub.f32 1.5, %v4272
    %v4274 = vmul.f32 %v4269, %v4273
    %vm4275 = vweird.f32 %v4238
    %vm4276 = vweird.f32 %v4269
    %vm4277 = vmor %vm4275, %vm4276
    %v4278 = vsel %vm4277, %v4269, %v4274
    %v4279 = vmul.f32 %v4211, %v4248
    %v4280 = vmul.f32 %v4212, %v4258
    %v4281 = vmul.f32 %v4213, %v4268
    %v4282 = vmul.f32 %v4214, %v4278
    %v4283 = vperm.slane %v2321, 1
    %v4284 = vmul.f32 %v4279, %v4283
    %v4285 = vmul.f32 %v4280, %v4283
    %v4286 = vmul.f32 %v4281, %v4283
    %v4287 = vmul.f32 %v4282, %v4283
    %v4288 = vperm.slane %v2321, 2
    %v4289 = vadd.f32 %v4284, %v4288
    %v4290 = vadd.f32 %v4285, %v4288
    %v4291 = vadd.f32 %v4286, %v4288
    %v4292 = vadd.f32 %v4287, %v4288
    %vm4293 = vcmp.gt.f32.partialorder %v4289, 0.0
    %vm4294 = vcmp.gt.f32.partialorder %v4290, 0.0
    %vm4295 = vcmp.gt.f32.partialorder %v4291, 0.0
    %vm4296 = vcmp.gt.f32.partialorder %v4292, 0.0
    %v4297 = vmin.f32 %v4289, 0.0
    %v4298 = vmin.f32 %v4290, 0.0
    %v4299 = vmin.f32 %v4291, 0.0
    %v4300 = vmin.f32 %v4292, 0.0
    %v4301 = vmul.f32 %v4297, 1.442695
    %v4302 = vpow.pop %v4301
    %v4303 = vmul.f32 %v4298, 1.442695
    %v4304 = vpow.pop %v4303
    %v4305 = vmul.f32 %v4299, 1.442695
    %v4306 = vpow.pop %v4305
    %v4307 = vmul.f32 %v4300, 1.442695
    %v4308 = vpow.pop %v4307
    %v4309 = vsub.f32 %v4302, 1.0
    %v4310 = vsub.f32 %v4304, 1.0
    %v4311 = vsub.f32 %v4306, 1.0
    %v4312 = vsub.f32 %v4308, 1.0
    %v4313 = vsel %vm4293, %v4289, %v4309
    %v4314 = vsel %vm4294, %v4290, %v4310
    %v4315 = vsel %vm4295, %v4291, %v4311
    %v4316 = vsel %vm4296, %v4292, %v4312
    %s4317 = scalar_lea.vmem [#allocation12], 8
    %v4318 = vld [vmem:[%s4317] sm:$0x7]
    %s4319 = scalar_lea.vmem [#allocation9], 256
    %v4320 = vld [vmem:[%s4319] sm:$0xff]
    %v4321 = vld [vmem:[%s4319 + $0x8] sm:$0xff]
    %v4322 = vld [vmem:[%s4319 + $0x10] sm:$0xff]
    %v4323 = vld [vmem:[%s4319 + $0x18] sm:$0xff]
    %v4324 = vld [vmem:[%s4319 + $0x20] sm:$0xff]
    %v4325 = vld [vmem:[%s4319 + $0x28] sm:$0xff]
    %v4326 = vld [vmem:[%s4319 + $0x30] sm:$0xff]
    %v4327 = vld [vmem:[%s4319 + $0x38] sm:$0xff]
    %v4328 = vld [vmem:[%s4319 + $0x40] sm:$0xff]
    %v4329 = vld [vmem:[%s4319 + $0x48] sm:$0xff]
    %v4330 = vld [vmem:[%s4319 + $0x50] sm:$0xff]
    %v4331 = vld [vmem:[%s4319 + $0x58] sm:$0xff]
    %v4332 = vld [vmem:[%s4319 + $0x60] sm:$0xff]
    %v4333 = vld [vmem:[%s4319 + $0x68] sm:$0xff]
    %v4334 = vld [vmem:[%s4319 + $0x70] sm:$0xff]
    %v4335 = vld [vmem:[%s4319 + $0x78] sm:$0xff]
    %s4336 = scalar_lea.vmem [#allocation10], 4
    %v4337 = vld [vmem:[%s4336] sm:$0x3]
    %v4339 = vperm.slane %v4337, 0
    %v4340 = vperm.slane %v4337, 1
    %v4344 = vsel %vm191, %v4313, 0
    %v4347 = vsel %vm191, %v4314, 0
    %v4350 = vsel %vm191, %v4315, 0
    %v4353 = vsel %vm191, %v4316, 0
    %4355 = vmatpush.msra.mxu0 0.0
    %4356 = vmatpush.msra.mxu0 0.0
    %4357 = vmatpush.msra.mxu0 0.0
    %4358 = vmatpush.msra.mxu0 0.0
    %4359 = vmatpush.msra.mxu0 0.0
    %4360 = vmatpush.msra.mxu0 0.0
    %4361 = vmatpush.msra.mxu0 0.0
    %4362 = vmatpush.msra.mxu0 0.0
    %4363 = vmatpush.msra.mxu0 %v4334
    %4364 = vmatpush.msra.mxu0 %v4332
    %4365 = vmatpush.msra.mxu0 %v4330
    %4366 = vmatpush.msra.mxu0 %v4328
    %4367 = vmatpush.msra.mxu0 %v4326
    %4368 = vmatpush.msra.mxu0 %v4324
    %4369 = vmatpush.msra.mxu0 %v4322
    %4370 = vmatpush.msra.mxu0 %v4320
    %4371 = vmatmul.f32.gmra.mxu0 %v4344
    %v4372 = vpop.f32.mrf.mxu0
    %v4373 = vadd.f32 %v4339, %v4372
    %4374 = vmatmul.f32.gmra.mxu0 %v4347
    %v4375 = vpop.f32.mrf.mxu0
    %v4376 = vadd.f32 %v4339, %v4375
    %4377 = vmatmul.f32.gmra.mxu0 %v4350
    %v4378 = vpop.f32.mrf.mxu0
    %v4379 = vadd.f32 %v4339, %v4378
    %4380 = vmatmul.f32.gmra.mxu0 %v4353
    %v4381 = vpop.f32.mrf.mxu0
    %v4382 = vadd.f32 %v4339, %v4381
    %4383 = vdwg.mxu0
    %4384 = vmatpush.msra.mxu0 0.0
    %4385 = vmatpush.msra.mxu0 0.0
    %4386 = vmatpush.msra.mxu0 0.0
    %4387 = vmatpush.msra.mxu0 0.0
    %4388 = vmatpush.msra.mxu0 0.0
    %4389 = vmatpush.msra.mxu0 0.0
    %4390 = vmatpush.msra.mxu0 0.0
    %4391 = vmatpush.msra.mxu0 0.0
    %4392 = vmatpush.msra.mxu0 %v4335
    %4393 = vmatpush.msra.mxu0 %v4333
    %4394 = vmatpush.msra.mxu0 %v4331
    %4395 = vmatpush.msra.mxu0 %v4329
    %4396 = vmatpush.msra.mxu0 %v4327
    %4397 = vmatpush.msra.mxu0 %v4325
    %4398 = vmatpush.msra.mxu0 %v4323
    %4399 = vmatpush.msra.mxu0 %v4321
    %4400 = vmatmul.f32.gmra.mxu0 %v4344
    %v4401 = vpop.f32.mrf.mxu0
    %v4402 = vadd.f32 %v4340, %v4401
    %4403 = vmatmul.f32.gmra.mxu0 %v4347
    %v4404 = vpop.f32.mrf.mxu0
    %v4405 = vadd.f32 %v4340, %v4404
    %4406 = vmatmul.f32.gmra.mxu0 %v4350
    %v4407 = vpop.f32.mrf.mxu0
    %v4408 = vadd.f32 %v4340, %v4407
    %4409 = vmatmul.f32.gmra.mxu0 %v4353
    %v4410 = vpop.f32.mrf.mxu0
    %v4411 = vadd.f32 %v4340, %v4410
    %4412 = vdwg.mxu0
    %4413 = vst [vmem:[#allocation2] sm:$0xff] %v4373
    %4414 = vst.msk [vmem:[#allocation2 + $0x8] sm:$0xff] %vm191, %v4402
    %4415 = vst [vmem:[#allocation2 + $0x10] sm:$0xff] %v4376
    %4416 = vst.msk [vmem:[#allocation2 + $0x18] sm:$0xff] %vm191, %v4405
    %4417 = vst [vmem:[#allocation2 + $0x20] sm:$0xff] %v4379
    %4418 = vst.msk [vmem:[#allocation2 + $0x28] sm:$0xff] %vm191, %v4408
    %4419 = vst [vmem:[#allocation2 + $0x30] sm:$0xf] %v4382
    %4420 = vst.msk [vmem:[#allocation2 + $0x38] sm:$0xf] %vm201, %v4411
    %v4421 = vld [vmem:[#allocation2] sm:$0xff]
    %v4422 = vld [vmem:[#allocation2 + $0x10] sm:$0x3f]
    %v4423 = vld [vmem:[#allocation2 + $0x8] sm:$0xff]
    %v4424 = vld [vmem:[#allocation2 + $0x18] sm:$0x3f]
    %v4425 = vmul.f32 %v4421, %v411
    %v4426 = vmul.f32 %v4422, %v411
    %v4427 = vmul.f32 %v4421, %v412
    %v4428 = vmul.f32 %v4422, %v412
    %v4429 = vmul.f32 %v4421, %v413
    %v4430 = vmul.f32 %v4422, %v413
    %v4431 = vmul.f32 %v4421, %v414
    %v4432 = vmul.f32 %v4422, %v414
    %v4433 = vmul.f32 %v4421, %v415
    %v4434 = vmul.f32 %v4422, %v415
    %v4435 = vmul.f32 %v4421, %v416
    %v4436 = vmul.f32 %v4422, %v416
    %v4437 = vmul.f32 %v4421, %v417
    %v4438 = vmul.f32 %v4422, %v417
    %v4439 = vmul.f32 %v4421, %v418
    %v4440 = vmul.f32 %v4422, %v418
    %v4441 = vmul.f32 %v4423, %v411
    %v4442 = vmul.f32 %v4424, %v411
    %v4443 = vmul.f32 %v4423, %v412
    %v4444 = vmul.f32 %v4424, %v412
    %v4445 = vmul.f32 %v4423, %v413
    %v4446 = vmul.f32 %v4424, %v413
    %v4447 = vmul.f32 %v4423, %v414
    %v4448 = vmul.f32 %v4424, %v414
    %v4449 = vmul.f32 %v4423, %v415
    %v4450 = vmul.f32 %v4424, %v415
    %v4451 = vmul.f32 %v4423, %v416
    %v4452 = vmul.f32 %v4424, %v416
    %v4453 = vmul.f32 %v4423, %v417
    %v4454 = vmul.f32 %v4424, %v417
    %v4455 = vmul.f32 %v4423, %v418
    %v4456 = vmul.f32 %v4424, %v418
    %4459 = vrot.lane.b32.xlu0 %v4421, 64
    %v4460 = vpop.permute.xlu0 %4459
    %4461 = vrot.lane.b32.xlu0 %v4422, 64
    %v4462 = vpop.permute.xlu0 %4461
    %v4464 = vsel %vm191, %v4425, 0
    %v4467 = vsel %vm191, %v4426, 0
    %v4469 = vsel %vm191, %v4460, 0
    %v4471 = vsel %vm191, %v4462, 0
    %4473 = vmatpush.xpose.msra.mxu0 0.0
    %4474 = vmatpush.xpose.msra.mxu0 0.0
    %4475 = vmatpush.xpose.msra.mxu0 0.0
    %4476 = vmatpush.xpose.msra.mxu0 0.0
    %4477 = vmatpush.xpose.msra.mxu0 0.0
    %4478 = vmatpush.xpose.msra.mxu0 0.0
    %4479 = vmatpush.xpose.msra.mxu0 0.0
    %4480 = vmatpush.xpose.msra.mxu0 0.0
    %4481 = vmatpush.xpose.msra.mxu0 0.0
    %4482 = vmatpush.xpose.msra.mxu0 0.0
    %4483 = vmatpush.xpose.msra.mxu0 0.0
    %4484 = vmatpush.xpose.msra.mxu0 0.0
    %4485 = vmatpush.xpose.msra.mxu0 0.0
    %4486 = vmatpush.xpose.msra.mxu0 0.0
    %4487 = vmatpush.xpose.msra.mxu0 %v4471
    %4488 = vmatpush.xpose.msra.mxu0 %v4469
    %4489 = vmatmul.f32.gmra.mxu0 %v4464
    %v4490 = vpop.f32.mrf.mxu0
    %v4491 = vadd.f32 0.0, %v4490
    %4492 = vmatmul.f32.gmra.mxu0 %v4467
    %v4493 = vpop.f32.mrf.mxu0
    %v4494 = vadd.f32 0.0, %v4493
    %4495 = vdwg.mxu0
    %v4497 = vsel %vm191, %v4427, 0
    %v4500 = vsel %vm191, %v4428, 0
    %4502 = vmatpush.xpose.msra.mxu0 0.0
    %4503 = vmatpush.xpose.msra.mxu0 0.0
    %4504 = vmatpush.xpose.msra.mxu0 0.0
    %4505 = vmatpush.xpose.msra.mxu0 0.0
    %4506 = vmatpush.xpose.msra.mxu0 0.0
    %4507 = vmatpush.xpose.msra.mxu0 0.0
    %4508 = vmatpush.xpose.msra.mxu0 0.0
    %4509 = vmatpush.xpose.msra.mxu0 0.0
    %4510 = vmatpush.xpose.msra.mxu0 0.0
    %4511 = vmatpush.xpose.msra.mxu0 0.0
    %4512 = vmatpush.xpose.msra.mxu0 0.0
    %4513 = vmatpush.xpose.msra.mxu0 0.0
    %4514 = vmatpush.xpose.msra.mxu0 0.0
    %4515 = vmatpush.xpose.msra.mxu0 0.0
    %4516 = vmatpush.xpose.msra.mxu0 %v4471
    %4517 = vmatpush.xpose.msra.mxu0 %v4469
    %4518 = vmatmul.f32.gmra.mxu0 %v4497
    %v4519 = vpop.f32.mrf.mxu0
    %v4520 = vadd.f32 0.0, %v4519
    %4521 = vmatmul.f32.gmra.mxu0 %v4500
    %v4522 = vpop.f32.mrf.mxu0
    %v4523 = vadd.f32 0.0, %v4522
    %4524 = vdwg.mxu0
    %v4526 = vsel %vm191, %v4429, 0
    %v4529 = vsel %vm191, %v4430, 0
    %4531 = vmatpush.xpose.msra.mxu0 0.0
    %4532 = vmatpush.xpose.msra.mxu0 0.0
    %4533 = vmatpush.xpose.msra.mxu0 0.0
    %4534 = vmatpush.xpose.msra.mxu0 0.0
    %4535 = vmatpush.xpose.msra.mxu0 0.0
    %4536 = vmatpush.xpose.msra.mxu0 0.0
    %4537 = vmatpush.xpose.msra.mxu0 0.0
    %4538 = vmatpush.xpose.msra.mxu0 0.0
    %4539 = vmatpush.xpose.msra.mxu0 0.0
    %4540 = vmatpush.xpose.msra.mxu0 0.0
    %4541 = vmatpush.xpose.msra.mxu0 0.0
    %4542 = vmatpush.xpose.msra.mxu0 0.0
    %4543 = vmatpush.xpose.msra.mxu0 0.0
    %4544 = vmatpush.xpose.msra.mxu0 0.0
    %4545 = vmatpush.xpose.msra.mxu0 %v4471
    %4546 = vmatpush.xpose.msra.mxu0 %v4469
    %4547 = vmatmul.f32.gmra.mxu0 %v4526
    %v4548 = vpop.f32.mrf.mxu0
    %v4549 = vadd.f32 0.0, %v4548
    %4550 = vmatmul.f32.gmra.mxu0 %v4529
    %v4551 = vpop.f32.mrf.mxu0
    %v4552 = vadd.f32 0.0, %v4551
    %4553 = vdwg.mxu0
    %v4555 = vsel %vm191, %v4431, 0
    %v4558 = vsel %vm191, %v4432, 0
    %4560 = vmatpush.xpose.msra.mxu0 0.0
    %4561 = vmatpush.xpose.msra.mxu0 0.0
    %4562 = vmatpush.xpose.msra.mxu0 0.0
    %4563 = vmatpush.xpose.msra.mxu0 0.0
    %4564 = vmatpush.xpose.msra.mxu0 0.0
    %4565 = vmatpush.xpose.msra.mxu0 0.0
    %4566 = vmatpush.xpose.msra.mxu0 0.0
    %4567 = vmatpush.xpose.msra.mxu0 0.0
    %4568 = vmatpush.xpose.msra.mxu0 0.0
    %4569 = vmatpush.xpose.msra.mxu0 0.0
    %4570 = vmatpush.xpose.msra.mxu0 0.0
    %4571 = vmatpush.xpose.msra.mxu0 0.0
    %4572 = vmatpush.xpose.msra.mxu0 0.0
    %4573 = vmatpush.xpose.msra.mxu0 0.0
    %4574 = vmatpush.xpose.msra.mxu0 %v4471
    %4575 = vmatpush.xpose.msra.mxu0 %v4469
    %4576 = vmatmul.f32.gmra.mxu0 %v4555
    %v4577 = vpop.f32.mrf.mxu0
    %v4578 = vadd.f32 0.0, %v4577
    %4579 = vmatmul.f32.gmra.mxu0 %v4558
    %v4580 = vpop.f32.mrf.mxu0
    %v4581 = vadd.f32 0.0, %v4580
    %4582 = vdwg.mxu0
    %v4584 = vsel %vm191, %v4433, 0
    %v4587 = vsel %vm191, %v4434, 0
    %4589 = vmatpush.xpose.msra.mxu0 0.0
    %4590 = vmatpush.xpose.msra.mxu0 0.0
    %4591 = vmatpush.xpose.msra.mxu0 0.0
    %4592 = vmatpush.xpose.msra.mxu0 0.0
    %4593 = vmatpush.xpose.msra.mxu0 0.0
    %4594 = vmatpush.xpose.msra.mxu0 0.0
    %4595 = vmatpush.xpose.msra.mxu0 0.0
    %4596 = vmatpush.xpose.msra.mxu0 0.0
    %4597 = vmatpush.xpose.msra.mxu0 0.0
    %4598 = vmatpush.xpose.msra.mxu0 0.0
    %4599 = vmatpush.xpose.msra.mxu0 0.0
    %4600 = vmatpush.xpose.msra.mxu0 0.0
    %4601 = vmatpush.xpose.msra.mxu0 0.0
    %4602 = vmatpush.xpose.msra.mxu0 0.0
    %4603 = vmatpush.xpose.msra.mxu0 %v4471
    %4604 = vmatpush.xpose.msra.mxu0 %v4469
    %4605 = vmatmul.f32.gmra.mxu0 %v4584
    %v4606 = vpop.f32.mrf.mxu0
    %v4607 = vadd.f32 0.0, %v4606
    %4608 = vmatmul.f32.gmra.mxu0 %v4587
    %v4609 = vpop.f32.mrf.mxu0
    %v4610 = vadd.f32 0.0, %v4609
    %4611 = vdwg.mxu0
    %v4613 = vsel %vm191, %v4435, 0
    %v4616 = vsel %vm191, %v4436, 0
    %4618 = vmatpush.xpose.msra.mxu0 0.0
    %4619 = vmatpush.xpose.msra.mxu0 0.0
    %4620 = vmatpush.xpose.msra.mxu0 0.0
    %4621 = vmatpush.xpose.msra.mxu0 0.0
    %4622 = vmatpush.xpose.msra.mxu0 0.0
    %4623 = vmatpush.xpose.msra.mxu0 0.0
    %4624 = vmatpush.xpose.msra.mxu0 0.0
    %4625 = vmatpush.xpose.msra.mxu0 0.0
    %4626 = vmatpush.xpose.msra.mxu0 0.0
    %4627 = vmatpush.xpose.msra.mxu0 0.0
    %4628 = vmatpush.xpose.msra.mxu0 0.0
    %4629 = vmatpush.xpose.msra.mxu0 0.0
    %4630 = vmatpush.xpose.msra.mxu0 0.0
    %4631 = vmatpush.xpose.msra.mxu0 0.0
    %4632 = vmatpush.xpose.msra.mxu0 %v4471
    %4633 = vmatpush.xpose.msra.mxu0 %v4469
    %4634 = vmatmul.f32.gmra.mxu0 %v4613
    %v4635 = vpop.f32.mrf.mxu0
    %v4636 = vadd.f32 0.0, %v4635
    %4637 = vmatmul.f32.gmra.mxu0 %v4616
    %v4638 = vpop.f32.mrf.mxu0
    %v4639 = vadd.f32 0.0, %v4638
    %4640 = vdwg.mxu0
    %v4642 = vsel %vm191, %v4437, 0
    %v4645 = vsel %vm191, %v4438, 0
    %4647 = vmatpush.xpose.msra.mxu0 0.0
    %4648 = vmatpush.xpose.msra.mxu0 0.0
    %4649 = vmatpush.xpose.msra.mxu0 0.0
    %4650 = vmatpush.xpose.msra.mxu0 0.0
    %4651 = vmatpush.xpose.msra.mxu0 0.0
    %4652 = vmatpush.xpose.msra.mxu0 0.0
    %4653 = vmatpush.xpose.msra.mxu0 0.0
    %4654 = vmatpush.xpose.msra.mxu0 0.0
    %4655 = vmatpush.xpose.msra.mxu0 0.0
    %4656 = vmatpush.xpose.msra.mxu0 0.0
    %4657 = vmatpush.xpose.msra.mxu0 0.0
    %4658 = vmatpush.xpose.msra.mxu0 0.0
    %4659 = vmatpush.xpose.msra.mxu0 0.0
    %4660 = vmatpush.xpose.msra.mxu0 0.0
    %4661 = vmatpush.xpose.msra.mxu0 %v4471
    %4662 = vmatpush.xpose.msra.mxu0 %v4469
    %4663 = vmatmul.f32.gmra.mxu0 %v4642
    %v4664 = vpop.f32.mrf.mxu0
    %v4665 = vadd.f32 0.0, %v4664
    %4666 = vmatmul.f32.gmra.mxu0 %v4645
    %v4667 = vpop.f32.mrf.mxu0
    %v4668 = vadd.f32 0.0, %v4667
    %4669 = vdwg.mxu0
    %v4671 = vsel %vm191, %v4439, 0
    %v4674 = vsel %vm191, %v4440, 0
    %4676 = vmatpush.xpose.msra.mxu0 0.0
    %4677 = vmatpush.xpose.msra.mxu0 0.0
    %4678 = vmatpush.xpose.msra.mxu0 0.0
    %4679 = vmatpush.xpose.msra.mxu0 0.0
    %4680 = vmatpush.xpose.msra.mxu0 0.0
    %4681 = vmatpush.xpose.msra.mxu0 0.0
    %4682 = vmatpush.xpose.msra.mxu0 0.0
    %4683 = vmatpush.xpose.msra.mxu0 0.0
    %4684 = vmatpush.xpose.msra.mxu0 0.0
    %4685 = vmatpush.xpose.msra.mxu0 0.0
    %4686 = vmatpush.xpose.msra.mxu0 0.0
    %4687 = vmatpush.xpose.msra.mxu0 0.0
    %4688 = vmatpush.xpose.msra.mxu0 0.0
    %4689 = vmatpush.xpose.msra.mxu0 0.0
    %4690 = vmatpush.xpose.msra.mxu0 %v4471
    %4691 = vmatpush.xpose.msra.mxu0 %v4469
    %4692 = vmatmul.f32.gmra.mxu0 %v4671
    %v4693 = vpop.f32.mrf.mxu0
    %v4694 = vadd.f32 0.0, %v4693
    %4695 = vmatmul.f32.gmra.mxu0 %v4674
    %v4696 = vpop.f32.mrf.mxu0
    %v4697 = vadd.f32 0.0, %v4696
    %4698 = vdwg.mxu0
    %v4699 = vmul.f32 %v4491, 0.35355338
    %v4700 = vmul.f32 %v4494, 0.35355338
    %v4701 = vmul.f32 %v4520, 0.35355338
    %v4702 = vmul.f32 %v4523, 0.35355338
    %v4703 = vmul.f32 %v4549, 0.35355338
    %v4704 = vmul.f32 %v4552, 0.35355338
    %v4705 = vmul.f32 %v4578, 0.35355338
    %v4706 = vmul.f32 %v4581, 0.35355338
    %v4707 = vmul.f32 %v4607, 0.35355338
    %v4708 = vmul.f32 %v4610, 0.35355338
    %v4709 = vmul.f32 %v4636, 0.35355338
    %v4710 = vmul.f32 %v4639, 0.35355338
    %v4711 = vmul.f32 %v4665, 0.35355338
    %v4712 = vmul.f32 %v4668, 0.35355338
    %v4713 = vmul.f32 %v4694, 0.35355338
    %v4714 = vmul.f32 %v4697, 0.35355338
    %v4715 = vsel %vm717, %v4699, -inf
    %4716 = vmax.xlane.f32.xlu0 %v4715
    %v4717 = vpop.xlane.xlu0 %4716
    %v4718 = vsel %vm721, %v4700, -inf
    %4719 = vmax.xlane.f32.xlu0 %v4718
    %v4720 = vpop.xlane.xlu0 %4719
    %v4721 = vsel %vm717, %v4701, -inf
    %4722 = vmax.xlane.f32.xlu0 %v4721
    %v4723 = vpop.xlane.xlu0 %4722
    %v4724 = vsel %vm721, %v4702, -inf
    %4725 = vmax.xlane.f32.xlu0 %v4724
    %v4726 = vpop.xlane.xlu0 %4725
    %v4727 = vsel %vm717, %v4703, -inf
    %4728 = vmax.xlane.f32.xlu0 %v4727
    %v4729 = vpop.xlane.xlu0 %4728
    %v4730 = vsel %vm721, %v4704, -inf
    %4731 = vmax.xlane.f32.xlu0 %v4730
    %v4732 = vpop.xlane.xlu0 %4731
    %v4733 = vsel %vm717, %v4705, -inf
    %4734 = vmax.xlane.f32.xlu0 %v4733
    %v4735 = vpop.xlane.xlu0 %4734
    %v4736 = vsel %vm721, %v4706, -inf
    %4737 = vmax.xlane.f32.xlu0 %v4736
    %v4738 = vpop.xlane.xlu0 %4737
    %v4739 = vsel %vm717, %v4707, -inf
    %4740 = vmax.xlane.f32.xlu0 %v4739
    %v4741 = vpop.xlane.xlu0 %4740
    %v4742 = vsel %vm721, %v4708, -inf
    %4743 = vmax.xlane.f32.xlu0 %v4742
    %v4744 = vpop.xlane.xlu0 %4743
    %v4745 = vsel %vm717, %v4709, -inf
    %4746 = vmax.xlane.f32.xlu0 %v4745
    %v4747 = vpop.xlane.xlu0 %4746
    %v4748 = vsel %vm721, %v4710, -inf
    %4749 = vmax.xlane.f32.xlu0 %v4748
    %v4750 = vpop.xlane.xlu0 %4749
    %v4751 = vsel %vm717, %v4711, -inf
    %4752 = vmax.xlane.f32.xlu0 %v4751
    %v4753 = vpop.xlane.xlu0 %4752
    %v4754 = vsel %vm721, %v4712, -inf
    %4755 = vmax.xlane.f32.xlu0 %v4754
    %v4756 = vpop.xlane.xlu0 %4755
    %v4757 = vsel %vm717, %v4713, -inf
    %4758 = vmax.xlane.f32.xlu0 %v4757
    %v4759 = vpop.xlane.xlu0 %4758
    %v4760 = vsel %vm721, %v4714, -inf
    %4761 = vmax.xlane.f32.xlu0 %v4760
    %v4762 = vpop.xlane.xlu0 %4761
    %v4763 = vsub.f32 %v4699, %v4717
    %v4764 = vsub.f32 %v4700, %v4720
    %v4765 = vsub.f32 %v4701, %v4723
    %v4766 = vsub.f32 %v4702, %v4726
    %v4767 = vsub.f32 %v4703, %v4729
    %v4768 = vsub.f32 %v4704, %v4732
    %v4769 = vsub.f32 %v4705, %v4735
    %v4770 = vsub.f32 %v4706, %v4738
    %v4771 = vsub.f32 %v4707, %v4741
    %v4772 = vsub.f32 %v4708, %v4744
    %v4773 = vsub.f32 %v4709, %v4747
    %v4774 = vsub.f32 %v4710, %v4750
    %v4775 = vsub.f32 %v4711, %v4753
    %v4776 = vsub.f32 %v4712, %v4756
    %v4777 = vsub.f32 %v4713, %v4759
    %v4778 = vsub.f32 %v4714, %v4762
    %v4779 = vmul.f32 %v4763, 1.442695
    %v4780 = vpow.pop %v4779
    %v4781 = vmul.f32 %v4764, 1.442695
    %v4782 = vpow.pop %v4781
    %v4783 = vmul.f32 %v4765, 1.442695
    %v4784 = vpow.pop %v4783
    %v4785 = vmul.f32 %v4766, 1.442695
    %v4786 = vpow.pop %v4785
    %v4787 = vmul.f32 %v4767, 1.442695
    %v4788 = vpow.pop %v4787
    %v4789 = vmul.f32 %v4768, 1.442695
    %v4790 = vpow.pop %v4789
    %v4791 = vmul.f32 %v4769, 1.442695
    %v4792 = vpow.pop %v4791
    %v4793 = vmul.f32 %v4770, 1.442695
    %v4794 = vpow.pop %v4793
    %v4795 = vmul.f32 %v4771, 1.442695
    %v4796 = vpow.pop %v4795
    %v4797 = vmul.f32 %v4772, 1.442695
    %v4798 = vpow.pop %v4797
    %v4799 = vmul.f32 %v4773, 1.442695
    %v4800 = vpow.pop %v4799
    %v4801 = vmul.f32 %v4774, 1.442695
    %v4802 = vpow.pop %v4801
    %v4803 = vmul.f32 %v4775, 1.442695
    %v4804 = vpow.pop %v4803
    %v4805 = vmul.f32 %v4776, 1.442695
    %v4806 = vpow.pop %v4805
    %v4807 = vmul.f32 %v4777, 1.442695
    %v4808 = vpow.pop %v4807
    %v4809 = vmul.f32 %v4778, 1.442695
    %v4810 = vpow.pop %v4809
    %v4811 = vsel %vm717, %v4780, 0.0
    %4812 = vadd.xlane.f32.xlu0 %v4811
    %v4813 = vpop.xlane.xlu0 %4812
    %v4814 = vsel %vm721, %v4782, 0.0
    %4815 = vadd.xlane.f32.xlu0 %v4814
    %v4816 = vpop.xlane.xlu0 %4815
    %v4817 = vsel %vm717, %v4784, 0.0
    %4818 = vadd.xlane.f32.xlu0 %v4817
    %v4819 = vpop.xlane.xlu0 %4818
    %v4820 = vsel %vm721, %v4786, 0.0
    %4821 = vadd.xlane.f32.xlu0 %v4820
    %v4822 = vpop.xlane.xlu0 %4821
    %v4823 = vsel %vm717, %v4788, 0.0
    %4824 = vadd.xlane.f32.xlu0 %v4823
    %v4825 = vpop.xlane.xlu0 %4824
    %v4826 = vsel %vm721, %v4790, 0.0
    %4827 = vadd.xlane.f32.xlu0 %v4826
    %v4828 = vpop.xlane.xlu0 %4827
    %v4829 = vsel %vm717, %v4792, 0.0
    %4830 = vadd.xlane.f32.xlu0 %v4829
    %v4831 = vpop.xlane.xlu0 %4830
    %v4832 = vsel %vm721, %v4794, 0.0
    %4833 = vadd.xlane.f32.xlu0 %v4832
    %v4834 = vpop.xlane.xlu0 %4833
    %v4835 = vsel %vm717, %v4796, 0.0
    %4836 = vadd.xlane.f32.xlu0 %v4835
    %v4837 = vpop.xlane.xlu0 %4836
    %v4838 = vsel %vm721, %v4798, 0.0
    %4839 = vadd.xlane.f32.xlu0 %v4838
    %v4840 = vpop.xlane.xlu0 %4839
    %v4841 = vsel %vm717, %v4800, 0.0
    %4842 = vadd.xlane.f32.xlu0 %v4841
    %v4843 = vpop.xlane.xlu0 %4842
    %v4844 = vsel %vm721, %v4802, 0.0
    %4845 = vadd.xlane.f32.xlu0 %v4844
    %v4846 = vpop.xlane.xlu0 %4845
    %v4847 = vsel %vm717, %v4804, 0.0
    %4848 = vadd.xlane.f32.xlu0 %v4847
    %v4849 = vpop.xlane.xlu0 %4848
    %v4850 = vsel %vm721, %v4806, 0.0
    %4851 = vadd.xlane.f32.xlu0 %v4850
    %v4852 = vpop.xlane.xlu0 %4851
    %v4853 = vsel %vm717, %v4808, 0.0
    %4854 = vadd.xlane.f32.xlu0 %v4853
    %v4855 = vpop.xlane.xlu0 %4854
    %v4856 = vsel %vm721, %v4810, 0.0
    %4857 = vadd.xlane.f32.xlu0 %v4856
    %v4858 = vpop.xlane.xlu0 %4857
    %v4859 = vrcp.pop %v4813
    %v4860 = vrcp.pop %v4816
    %v4861 = vrcp.pop %v4819
    %v4862 = vrcp.pop %v4822
    %v4863 = vrcp.pop %v4825
    %v4864 = vrcp.pop %v4828
    %v4865 = vrcp.pop %v4831
    %v4866 = vrcp.pop %v4834
    %v4867 = vrcp.pop %v4837
    %v4868 = vrcp.pop %v4840
    %v4869 = vrcp.pop %v4843
    %v4870 = vrcp.pop %v4846
    %v4871 = vrcp.pop %v4849
    %v4872 = vrcp.pop %v4852
    %v4873 = vrcp.pop %v4855
    %v4874 = vrcp.pop %v4858
    %v4875 = vmul.f32 %v4780, %v4859
    %v4876 = vmul.f32 %v4782, %v4860
    %v4877 = vmul.f32 %v4784, %v4861
    %v4878 = vmul.f32 %v4786, %v4862
    %v4879 = vmul.f32 %v4788, %v4863
    %v4880 = vmul.f32 %v4790, %v4864
    %v4881 = vmul.f32 %v4792, %v4865
    %v4882 = vmul.f32 %v4794, %v4866
    %v4883 = vmul.f32 %v4796, %v4867
    %v4884 = vmul.f32 %v4798, %v4868
    %v4885 = vmul.f32 %v4800, %v4869
    %v4886 = vmul.f32 %v4802, %v4870
    %v4887 = vmul.f32 %v4804, %v4871
    %v4888 = vmul.f32 %v4806, %v4872
    %v4889 = vmul.f32 %v4808, %v4873
    %v4890 = vmul.f32 %v4810, %v4874
    %v4891 = vsel %vm717, %v4875, 0.0
    %v4892 = vsel %vm717, %v4877, 0.0
    %v4893 = vadd.f32 %v4891, %v4892
    %v4894 = vsel %vm717, %v4879, 0.0
    %v4895 = vadd.f32 %v4893, %v4894
    %v4896 = vsel %vm717, %v4881, 0.0
    %v4897 = vadd.f32 %v4895, %v4896
    %v4898 = vsel %vm717, %v4883, 0.0
    %v4899 = vadd.f32 %v4897, %v4898
    %v4900 = vsel %vm717, %v4885, 0.0
    %v4901 = vadd.f32 %v4899, %v4900
    %v4902 = vsel %vm717, %v4887, 0.0
    %v4903 = vadd.f32 %v4901, %v4902
    %v4904 = vsel %vm717, %v4889, 0.0
    %v4905 = vadd.f32 %v4903, %v4904
    %v4906 = vsel %vm721, %v4876, 0.0
    %v4907 = vsel %vm721, %v4878, 0.0
    %v4908 = vadd.f32 %v4906, %v4907
    %v4909 = vsel %vm721, %v4880, 0.0
    %v4910 = vadd.f32 %v4908, %v4909
    %v4911 = vsel %vm721, %v4882, 0.0
    %v4912 = vadd.f32 %v4910, %v4911
    %v4913 = vsel %vm721, %v4884, 0.0
    %v4914 = vadd.f32 %v4912, %v4913
    %v4915 = vsel %vm721, %v4886, 0.0
    %v4916 = vadd.f32 %v4914, %v4915
    %v4917 = vsel %vm721, %v4888, 0.0
    %v4918 = vadd.f32 %v4916, %v4917
    %v4919 = vsel %vm721, %v4890, 0.0
    %v4920 = vadd.f32 %v4918, %v4919
    %v4921 = vadd.f32 %v2924, %v4905
    %v4922 = vadd.f32 %v2925, %v4920
    %v4924 = vsel %vm717, %v4875, 0
    %v4927 = vsel %vm717, %v4876, 0
    %v4930 = vsel %vm933, %v4442, 0
    %4932 = vmatpush.msra.mxu0 0.0
    %4933 = vmatpush.msra.mxu0 0.0
    %4934 = vmatpush.msra.mxu0 0.0
    %4935 = vmatpush.msra.mxu0 0.0
    %4936 = vmatpush.msra.mxu0 0.0
    %4937 = vmatpush.msra.mxu0 0.0
    %4938 = vmatpush.msra.mxu0 0.0
    %4939 = vmatpush.msra.mxu0 0.0
    %4940 = vmatpush.msra.mxu0 0.0
    %4941 = vmatpush.msra.mxu0 0.0
    %4942 = vmatpush.msra.mxu0 0.0
    %4943 = vmatpush.msra.mxu0 0.0
    %4944 = vmatpush.msra.mxu0 0.0
    %4945 = vmatpush.msra.mxu0 0.0
    %4946 = vmatpush.msra.mxu0 %v4930
    %4947 = vmatpush.msra.mxu0 %v4441
    %4948 = vmatmul.f32.gmra.mxu0 %v4924
    %v4949 = vpop.f32.mrf.mxu0
    %v4950 = vadd.f32 0.0, %v4949
    %4951 = vmatmul.f32.gmra.mxu0 %v4927
    %v4952 = vpop.f32.mrf.mxu0
    %v4953 = vadd.f32 0.0, %v4952
    %4954 = vdwg.mxu0
    %v4956 = vsel %vm717, %v4877, 0
    %v4959 = vsel %vm717, %v4878, 0
    %v4962 = vsel %vm933, %v4444, 0
    %4964 = vmatpush.msra.mxu0 0.0
    %4965 = vmatpush.msra.mxu0 0.0
    %4966 = vmatpush.msra.mxu0 0.0
    %4967 = vmatpush.msra.mxu0 0.0
    %4968 = vmatpush.msra.mxu0 0.0
    %4969 = vmatpush.msra.mxu0 0.0
    %4970 = vmatpush.msra.mxu0 0.0
    %4971 = vmatpush.msra.mxu0 0.0
    %4972 = vmatpush.msra.mxu0 0.0
    %4973 = vmatpush.msra.mxu0 0.0
    %4974 = vmatpush.msra.mxu0 0.0
    %4975 = vmatpush.msra.mxu0 0.0
    %4976 = vmatpush.msra.mxu0 0.0
    %4977 = vmatpush.msra.mxu0 0.0
    %4978 = vmatpush.msra.mxu0 %v4962
    %4979 = vmatpush.msra.mxu0 %v4443
    %4980 = vmatmul.f32.gmra.mxu0 %v4956
    %v4981 = vpop.f32.mrf.mxu0
    %v4982 = vadd.f32 0.0, %v4981
    %4983 = vmatmul.f32.gmra.mxu0 %v4959
    %v4984 = vpop.f32.mrf.mxu0
    %v4985 = vadd.f32 0.0, %v4984
    %4986 = vdwg.mxu0
    %v4988 = vsel %vm717, %v4879, 0
    %v4991 = vsel %vm717, %v4880, 0
    %v4994 = vsel %vm933, %v4446, 0
    %4996 = vmatpush.msra.mxu0 0.0
    %4997 = vmatpush.msra.mxu0 0.0
    %4998 = vmatpush.msra.mxu0 0.0
    %4999 = vmatpush.msra.mxu0 0.0
    %5000 = vmatpush.msra.mxu0 0.0
    %5001 = vmatpush.msra.mxu0 0.0
    %5002 = vmatpush.msra.mxu0 0.0
    %5003 = vmatpush.msra.mxu0 0.0
    %5004 = vmatpush.msra.mxu0 0.0
    %5005 = vmatpush.msra.mxu0 0.0
    %5006 = vmatpush.msra.mxu0 0.0
    %5007 = vmatpush.msra.mxu0 0.0
    %5008 = vmatpush.msra.mxu0 0.0
    %5009 = vmatpush.msra.mxu0 0.0
    %5010 = vmatpush.msra.mxu0 %v4994
    %5011 = vmatpush.msra.mxu0 %v4445
    %5012 = vmatmul.f32.gmra.mxu0 %v4988
    %v5013 = vpop.f32.mrf.mxu0
    %v5014 = vadd.f32 0.0, %v5013
    %5015 = vmatmul.f32.gmra.mxu0 %v4991
    %v5016 = vpop.f32.mrf.mxu0
    %v5017 = vadd.f32 0.0, %v5016
    %5018 = vdwg.mxu0
    %v5020 = vsel %vm717, %v4881, 0
    %v5023 = vsel %vm717, %v4882, 0
    %v5026 = vsel %vm933, %v4448, 0
    %5028 = vmatpush.msra.mxu0 0.0
    %5029 = vmatpush.msra.mxu0 0.0
    %5030 = vmatpush.msra.mxu0 0.0
    %5031 = vmatpush.msra.mxu0 0.0
    %5032 = vmatpush.msra.mxu0 0.0
    %5033 = vmatpush.msra.mxu0 0.0
    %5034 = vmatpush.msra.mxu0 0.0
    %5035 = vmatpush.msra.mxu0 0.0
    %5036 = vmatpush.msra.mxu0 0.0
    %5037 = vmatpush.msra.mxu0 0.0
    %5038 = vmatpush.msra.mxu0 0.0
    %5039 = vmatpush.msra.mxu0 0.0
    %5040 = vmatpush.msra.mxu0 0.0
    %5041 = vmatpush.msra.mxu0 0.0
    %5042 = vmatpush.msra.mxu0 %v5026
    %5043 = vmatpush.msra.mxu0 %v4447
    %5044 = vmatmul.f32.gmra.mxu0 %v5020
    %v5045 = vpop.f32.mrf.mxu0
    %v5046 = vadd.f32 0.0, %v5045
    %5047 = vmatmul.f32.gmra.mxu0 %v5023
    %v5048 = vpop.f32.mrf.mxu0
    %v5049 = vadd.f32 0.0, %v5048
    %5050 = vdwg.mxu0
    %v5052 = vsel %vm717, %v4883, 0
    %v5055 = vsel %vm717, %v4884, 0
    %v5058 = vsel %vm933, %v4450, 0
    %5060 = vmatpush.msra.mxu0 0.0
    %5061 = vmatpush.msra.mxu0 0.0
    %5062 = vmatpush.msra.mxu0 0.0
    %5063 = vmatpush.msra.mxu0 0.0
    %5064 = vmatpush.msra.mxu0 0.0
    %5065 = vmatpush.msra.mxu0 0.0
    %5066 = vmatpush.msra.mxu0 0.0
    %5067 = vmatpush.msra.mxu0 0.0
    %5068 = vmatpush.msra.mxu0 0.0
    %5069 = vmatpush.msra.mxu0 0.0
    %5070 = vmatpush.msra.mxu0 0.0
    %5071 = vmatpush.msra.mxu0 0.0
    %5072 = vmatpush.msra.mxu0 0.0
    %5073 = vmatpush.msra.mxu0 0.0
    %5074 = vmatpush.msra.mxu0 %v5058
    %5075 = vmatpush.msra.mxu0 %v4449
    %5076 = vmatmul.f32.gmra.mxu0 %v5052
    %v5077 = vpop.f32.mrf.mxu0
    %v5078 = vadd.f32 0.0, %v5077
    %5079 = vmatmul.f32.gmra.mxu0 %v5055
    %v5080 = vpop.f32.mrf.mxu0
    %v5081 = vadd.f32 0.0, %v5080
    %5082 = vdwg.mxu0
    %v5084 = vsel %vm717, %v4885, 0
    %v5087 = vsel %vm717, %v4886, 0
    %v5090 = vsel %vm933, %v4452, 0
    %5092 = vmatpush.msra.mxu0 0.0
    %5093 = vmatpush.msra.mxu0 0.0
    %5094 = vmatpush.msra.mxu0 0.0
    %5095 = vmatpush.msra.mxu0 0.0
    %5096 = vmatpush.msra.mxu0 0.0
    %5097 = vmatpush.msra.mxu0 0.0
    %5098 = vmatpush.msra.mxu0 0.0
    %5099 = vmatpush.msra.mxu0 0.0
    %5100 = vmatpush.msra.mxu0 0.0
    %5101 = vmatpush.msra.mxu0 0.0
    %5102 = vmatpush.msra.mxu0 0.0
    %5103 = vmatpush.msra.mxu0 0.0
    %5104 = vmatpush.msra.mxu0 0.0
    %5105 = vmatpush.msra.mxu0 0.0
    %5106 = vmatpush.msra.mxu0 %v5090
    %5107 = vmatpush.msra.mxu0 %v4451
    %5108 = vmatmul.f32.gmra.mxu0 %v5084
    %v5109 = vpop.f32.mrf.mxu0
    %v5110 = vadd.f32 0.0, %v5109
    %5111 = vmatmul.f32.gmra.mxu0 %v5087
    %v5112 = vpop.f32.mrf.mxu0
    %v5113 = vadd.f32 0.0, %v5112
    %5114 = vdwg.mxu0
    %v5116 = vsel %vm717, %v4887, 0
    %v5119 = vsel %vm717, %v4888, 0
    %v5122 = vsel %vm933, %v4454, 0
    %5124 = vmatpush.msra.mxu0 0.0
    %5125 = vmatpush.msra.mxu0 0.0
    %5126 = vmatpush.msra.mxu0 0.0
    %5127 = vmatpush.msra.mxu0 0.0
    %5128 = vmatpush.msra.mxu0 0.0
    %5129 = vmatpush.msra.mxu0 0.0
    %5130 = vmatpush.msra.mxu0 0.0
    %5131 = vmatpush.msra.mxu0 0.0
    %5132 = vmatpush.msra.mxu0 0.0
    %5133 = vmatpush.msra.mxu0 0.0
    %5134 = vmatpush.msra.mxu0 0.0
    %5135 = vmatpush.msra.mxu0 0.0
    %5136 = vmatpush.msra.mxu0 0.0
    %5137 = vmatpush.msra.mxu0 0.0
    %5138 = vmatpush.msra.mxu0 %v5122
    %5139 = vmatpush.msra.mxu0 %v4453
    %5140 = vmatmul.f32.gmra.mxu0 %v5116
    %v5141 = vpop.f32.mrf.mxu0
    %v5142 = vadd.f32 0.0, %v5141
    %5143 = vmatmul.f32.gmra.mxu0 %v5119
    %v5144 = vpop.f32.mrf.mxu0
    %v5145 = vadd.f32 0.0, %v5144
    %5146 = vdwg.mxu0
    %v5148 = vsel %vm717, %v4889, 0
    %v5151 = vsel %vm717, %v4890, 0
    %v5154 = vsel %vm933, %v4456, 0
    %5156 = vmatpush.msra.mxu0 0.0
    %5157 = vmatpush.msra.mxu0 0.0
    %5158 = vmatpush.msra.mxu0 0.0
    %5159 = vmatpush.msra.mxu0 0.0
    %5160 = vmatpush.msra.mxu0 0.0
    %5161 = vmatpush.msra.mxu0 0.0
    %5162 = vmatpush.msra.mxu0 0.0
    %5163 = vmatpush.msra.mxu0 0.0
    %5164 = vmatpush.msra.mxu0 0.0
    %5165 = vmatpush.msra.mxu0 0.0
    %5166 = vmatpush.msra.mxu0 0.0
    %5167 = vmatpush.msra.mxu0 0.0
    %5168 = vmatpush.msra.mxu0 0.0
    %5169 = vmatpush.msra.mxu0 0.0
    %5170 = vmatpush.msra.mxu0 %v5154
    %5171 = vmatpush.msra.mxu0 %v4455
    %5172 = vmatmul.f32.gmra.mxu0 %v5148
    %v5173 = vpop.f32.mrf.mxu0
    %v5174 = vadd.f32 0.0, %v5173
    %5175 = vmatmul.f32.gmra.mxu0 %v5151
    %v5176 = vpop.f32.mrf.mxu0
    %v5177 = vadd.f32 0.0, %v5176
    %5178 = vdwg.mxu0
    %v5179 = vsel %vm191, %v4950, 0.0
    %v5180 = vsel %vm191, %v4982, 0.0
    %v5181 = vadd.f32 %v5179, %v5180
    %v5182 = vsel %vm191, %v5014, 0.0
    %v5183 = vadd.f32 %v5181, %v5182
    %v5184 = vsel %vm191, %v5046, 0.0
    %v5185 = vadd.f32 %v5183, %v5184
    %v5186 = vsel %vm191, %v5078, 0.0
    %v5187 = vadd.f32 %v5185, %v5186
    %v5188 = vsel %vm191, %v5110, 0.0
    %v5189 = vadd.f32 %v5187, %v5188
    %v5190 = vsel %vm191, %v5142, 0.0
    %v5191 = vadd.f32 %v5189, %v5190
    %v5192 = vsel %vm191, %v5174, 0.0
    %v5193 = vadd.f32 %v5191, %v5192
    %v5194 = vsel %vm1199, %v4953, 0.0
    %v5195 = vsel %vm1199, %v4985, 0.0
    %v5196 = vadd.f32 %v5194, %v5195
    %v5197 = vsel %vm1199, %v5017, 0.0
    %v5198 = vadd.f32 %v5196, %v5197
    %v5199 = vsel %vm1199, %v5049, 0.0
    %v5200 = vadd.f32 %v5198, %v5199
    %v5201 = vsel %vm1199, %v5081, 0.0
    %v5202 = vadd.f32 %v5200, %v5201
    %v5203 = vsel %vm1199, %v5113, 0.0
    %v5204 = vadd.f32 %v5202, %v5203
    %v5205 = vsel %vm1199, %v5145, 0.0
    %v5206 = vadd.f32 %v5204, %v5205
    %v5207 = vsel %vm1199, %v5177, 0.0
    %v5208 = vadd.f32 %v5206, %v5207
    %5209 = vst.msk [vmem:[#allocation3] sm:$0xff] %vm191, %v5193
    %5210 = vst.msk [vmem:[#allocation3 + $0x8] sm:$0x3f] %vm1199, %v5208
    %v5211 = vld [vmem:[#allocation2 + $0x10] sm:$0xc0]
    %v5212 = vld [vmem:[#allocation2 + $0x20] sm:$0xff]
    %v5213 = vld [vmem:[#allocation2 + $0x30] sm:$0xf]
    %v5214 = vld [vmem:[#allocation2 + $0x18] sm:$0xc0]
    %v5215 = vld [vmem:[#allocation2 + $0x28] sm:$0xff]
    %v5216 = vld [vmem:[#allocation2 + $0x38] sm:$0xf]
    %v5217 = vmul.f32 %v5211, %v411
    %v5218 = vmul.f32 %v5212, %v411
    %v5219 = vmul.f32 %v5213, %v411
    %v5220 = vmul.f32 %v5211, %v412
    %v5221 = vmul.f32 %v5212, %v412
    %v5222 = vmul.f32 %v5213, %v412
    %v5223 = vmul.f32 %v5211, %v413
    %v5224 = vmul.f32 %v5212, %v413
    %v5225 = vmul.f32 %v5213, %v413
    %v5226 = vmul.f32 %v5211, %v414
    %v5227 = vmul.f32 %v5212, %v414
    %v5228 = vmul.f32 %v5213, %v414
    %v5229 = vmul.f32 %v5211, %v415
    %v5230 = vmul.f32 %v5212, %v415
    %v5231 = vmul.f32 %v5213, %v415
    %v5232 = vmul.f32 %v5211, %v416
    %v5233 = vmul.f32 %v5212, %v416
    %v5234 = vmul.f32 %v5213, %v416
    %v5235 = vmul.f32 %v5211, %v417
    %v5236 = vmul.f32 %v5212, %v417
    %v5237 = vmul.f32 %v5213, %v417
    %v5238 = vmul.f32 %v5211, %v418
    %v5239 = vmul.f32 %v5212, %v418
    %v5240 = vmul.f32 %v5213, %v418
    %v5241 = vmul.f32 %v5214, %v411
    %v5242 = vmul.f32 %v5215, %v411
    %v5243 = vmul.f32 %v5216, %v411
    %v5244 = vmul.f32 %v5214, %v412
    %v5245 = vmul.f32 %v5215, %v412
    %v5246 = vmul.f32 %v5216, %v412
    %v5247 = vmul.f32 %v5214, %v413
    %v5248 = vmul.f32 %v5215, %v413
    %v5249 = vmul.f32 %v5216, %v413
    %v5250 = vmul.f32 %v5214, %v414
    %v5251 = vmul.f32 %v5215, %v414
    %v5252 = vmul.f32 %v5216, %v414
    %v5253 = vmul.f32 %v5214, %v415
    %v5254 = vmul.f32 %v5215, %v415
    %v5255 = vmul.f32 %v5216, %v415
    %v5256 = vmul.f32 %v5214, %v416
    %v5257 = vmul.f32 %v5215, %v416
    %v5258 = vmul.f32 %v5216, %v416
    %v5259 = vmul.f32 %v5214, %v417
    %v5260 = vmul.f32 %v5215, %v417
    %v5261 = vmul.f32 %v5216, %v417
    %v5262 = vmul.f32 %v5214, %v418
    %v5263 = vmul.f32 %v5215, %v418
    %v5264 = vmul.f32 %v5216, %v418
    %v5268 = vrot.slane %v5217, 6
    %v5269 = vrot.slane %v5218, 6
    %v5270 = vsel %vm1274, %v5268, %v5269
    %v5271 = vrot.slane %v5219, 6
    %v5272 = vsel %vm1274, %v5269, %v5271
    %v5276 = vrot.slane %v5211, 6
    %v5277 = vrot.slane %v5212, 6
    %v5278 = vsel %vm1274, %v5276, %v5277
    %v5279 = vrot.slane %v5213, 6
    %v5280 = vsel %vm1274, %v5277, %v5279
    %5281 = vrot.lane.b32.xlu0 %v5278, 64
    %v5282 = vpop.permute.xlu0 %5281
    %5283 = vrot.lane.b32.xlu0 %v5280, 64
    %v5284 = vpop.permute.xlu0 %5283
    %v5285 = vsel %vm191, %v5270, 0
    %v5287 = vsel %vm191, %v5272, 0
    %v5289 = vsel %vm191, %v5282, 0
    %v5291 = vsel %vm191, %v5284, 0
    %5293 = vmatpush.xpose.msra.mxu0 0.0
    %5294 = vmatpush.xpose.msra.mxu0 0.0
    %5295 = vmatpush.xpose.msra.mxu0 0.0
    %5296 = vmatpush.xpose.msra.mxu0 0.0
    %5297 = vmatpush.xpose.msra.mxu0 0.0
    %5298 = vmatpush.xpose.msra.mxu0 0.0
    %5299 = vmatpush.xpose.msra.mxu0 0.0
    %5300 = vmatpush.xpose.msra.mxu0 0.0
    %5301 = vmatpush.xpose.msra.mxu0 0.0
    %5302 = vmatpush.xpose.msra.mxu0 0.0
    %5303 = vmatpush.xpose.msra.mxu0 0.0
    %5304 = vmatpush.xpose.msra.mxu0 0.0
    %5305 = vmatpush.xpose.msra.mxu0 0.0
    %5306 = vmatpush.xpose.msra.mxu0 0.0
    %5307 = vmatpush.xpose.msra.mxu0 %v5291
    %5308 = vmatpush.xpose.msra.mxu0 %v5289
    %5309 = vmatmul.f32.gmra.mxu0 %v5285
    %v5310 = vpop.f32.mrf.mxu0
    %v5311 = vadd.f32 0.0, %v5310
    %5312 = vmatmul.f32.gmra.mxu0 %v5287
    %v5313 = vpop.f32.mrf.mxu0
    %v5314 = vadd.f32 0.0, %v5313
    %5315 = vdwg.mxu0
    %v5319 = vrot.slane %v5220, 6
    %v5320 = vrot.slane %v5221, 6
    %v5321 = vsel %vm1274, %v5319, %v5320
    %v5322 = vrot.slane %v5222, 6
    %v5323 = vsel %vm1274, %v5320, %v5322
    %v5324 = vsel %vm191, %v5321, 0
    %v5326 = vsel %vm191, %v5323, 0
    %5328 = vmatpush.xpose.msra.mxu0 0.0
    %5329 = vmatpush.xpose.msra.mxu0 0.0
    %5330 = vmatpush.xpose.msra.mxu0 0.0
    %5331 = vmatpush.xpose.msra.mxu0 0.0
    %5332 = vmatpush.xpose.msra.mxu0 0.0
    %5333 = vmatpush.xpose.msra.mxu0 0.0
    %5334 = vmatpush.xpose.msra.mxu0 0.0
    %5335 = vmatpush.xpose.msra.mxu0 0.0
    %5336 = vmatpush.xpose.msra.mxu0 0.0
    %5337 = vmatpush.xpose.msra.mxu0 0.0
    %5338 = vmatpush.xpose.msra.mxu0 0.0
    %5339 = vmatpush.xpose.msra.mxu0 0.0
    %5340 = vmatpush.xpose.msra.mxu0 0.0
    %5341 = vmatpush.xpose.msra.mxu0 0.0
    %5342 = vmatpush.xpose.msra.mxu0 %v5291
    %5343 = vmatpush.xpose.msra.mxu0 %v5289
    %5344 = vmatmul.f32.gmra.mxu0 %v5324
    %v5345 = vpop.f32.mrf.mxu0
    %v5346 = vadd.f32 0.0, %v5345
    %5347 = vmatmul.f32.gmra.mxu0 %v5326
    %v5348 = vpop.f32.mrf.mxu0
    %v5349 = vadd.f32 0.0, %v5348
    %5350 = vdwg.mxu0
    %v5354 = vrot.slane %v5223, 6
    %v5355 = vrot.slane %v5224, 6
    %v5356 = vsel %vm1274, %v5354, %v5355
    %v5357 = vrot.slane %v5225, 6
    %v5358 = vsel %vm1274, %v5355, %v5357
    %v5359 = vsel %vm191, %v5356, 0
    %v5361 = vsel %vm191, %v5358, 0
    %5363 = vmatpush.xpose.msra.mxu0 0.0
    %5364 = vmatpush.xpose.msra.mxu0 0.0
    %5365 = vmatpush.xpose.msra.mxu0 0.0
    %5366 = vmatpush.xpose.msra.mxu0 0.0
    %5367 = vmatpush.xpose.msra.mxu0 0.0
    %5368 = vmatpush.xpose.msra.mxu0 0.0
    %5369 = vmatpush.xpose.msra.mxu0 0.0
    %5370 = vmatpush.xpose.msra.mxu0 0.0
    %5371 = vmatpush.xpose.msra.mxu0 0.0
    %5372 = vmatpush.xpose.msra.mxu0 0.0
    %5373 = vmatpush.xpose.msra.mxu0 0.0
    %5374 = vmatpush.xpose.msra.mxu0 0.0
    %5375 = vmatpush.xpose.msra.mxu0 0.0
    %5376 = vmatpush.xpose.msra.mxu0 0.0
    %5377 = vmatpush.xpose.msra.mxu0 %v5291
    %5378 = vmatpush.xpose.msra.mxu0 %v5289
    %5379 = vmatmul.f32.gmra.mxu0 %v5359
    %v5380 = vpop.f32.mrf.mxu0
    %v5381 = vadd.f32 0.0, %v5380
    %5382 = vmatmul.f32.gmra.mxu0 %v5361
    %v5383 = vpop.f32.mrf.mxu0
    %v5384 = vadd.f32 0.0, %v5383
    %5385 = vdwg.mxu0
    %v5389 = vrot.slane %v5226, 6
    %v5390 = vrot.slane %v5227, 6
    %v5391 = vsel %vm1274, %v5389, %v5390
    %v5392 = vrot.slane %v5228, 6
    %v5393 = vsel %vm1274, %v5390, %v5392
    %v5394 = vsel %vm191, %v5391, 0
    %v5396 = vsel %vm191, %v5393, 0
    %5398 = vmatpush.xpose.msra.mxu0 0.0
    %5399 = vmatpush.xpose.msra.mxu0 0.0
    %5400 = vmatpush.xpose.msra.mxu0 0.0
    %5401 = vmatpush.xpose.msra.mxu0 0.0
    %5402 = vmatpush.xpose.msra.mxu0 0.0
    %5403 = vmatpush.xpose.msra.mxu0 0.0
    %5404 = vmatpush.xpose.msra.mxu0 0.0
    %5405 = vmatpush.xpose.msra.mxu0 0.0
    %5406 = vmatpush.xpose.msra.mxu0 0.0
    %5407 = vmatpush.xpose.msra.mxu0 0.0
    %5408 = vmatpush.xpose.msra.mxu0 0.0
    %5409 = vmatpush.xpose.msra.mxu0 0.0
    %5410 = vmatpush.xpose.msra.mxu0 0.0
    %5411 = vmatpush.xpose.msra.mxu0 0.0
    %5412 = vmatpush.xpose.msra.mxu0 %v5291
    %5413 = vmatpush.xpose.msra.mxu0 %v5289
    %5414 = vmatmul.f32.gmra.mxu0 %v5394
    %v5415 = vpop.f32.mrf.mxu0
    %v5416 = vadd.f32 0.0, %v5415
    %5417 = vmatmul.f32.gmra.mxu0 %v5396
    %v5418 = vpop.f32.mrf.mxu0
    %v5419 = vadd.f32 0.0, %v5418
    %5420 = vdwg.mxu0
    %v5424 = vrot.slane %v5229, 6
    %v5425 = vrot.slane %v5230, 6
    %v5426 = vsel %vm1274, %v5424, %v5425
    %v5427 = vrot.slane %v5231, 6
    %v5428 = vsel %vm1274, %v5425, %v5427
    %v5429 = vsel %vm191, %v5426, 0
    %v5431 = vsel %vm191, %v5428, 0
    %5433 = vmatpush.xpose.msra.mxu0 0.0
    %5434 = vmatpush.xpose.msra.mxu0 0.0
    %5435 = vmatpush.xpose.msra.mxu0 0.0
    %5436 = vmatpush.xpose.msra.mxu0 0.0
    %5437 = vmatpush.xpose.msra.mxu0 0.0
    %5438 = vmatpush.xpose.msra.mxu0 0.0
    %5439 = vmatpush.xpose.msra.mxu0 0.0
    %5440 = vmatpush.xpose.msra.mxu0 0.0
    %5441 = vmatpush.xpose.msra.mxu0 0.0
    %5442 = vmatpush.xpose.msra.mxu0 0.0
    %5443 = vmatpush.xpose.msra.mxu0 0.0
    %5444 = vmatpush.xpose.msra.mxu0 0.0
    %5445 = vmatpush.xpose.msra.mxu0 0.0
    %5446 = vmatpush.xpose.msra.mxu0 0.0
    %5447 = vmatpush.xpose.msra.mxu0 %v5291
    %5448 = vmatpush.xpose.msra.mxu0 %v5289
    %5449 = vmatmul.f32.gmra.mxu0 %v5429
    %v5450 = vpop.f32.mrf.mxu0
    %v5451 = vadd.f32 0.0, %v5450
    %5452 = vmatmul.f32.gmra.mxu0 %v5431
    %v5453 = vpop.f32.mrf.mxu0
    %v5454 = vadd.f32 0.0, %v5453
    %5455 = vdwg.mxu0
    %v5459 = vrot.slane %v5232, 6
    %v5460 = vrot.slane %v5233, 6
    %v5461 = vsel %vm1274, %v5459, %v5460
    %v5462 = vrot.slane %v5234, 6
    %v5463 = vsel %vm1274, %v5460, %v5462
    %v5464 = vsel %vm191, %v5461, 0
    %v5466 = vsel %vm191, %v5463, 0
    %5468 = vmatpush.xpose.msra.mxu0 0.0
    %5469 = vmatpush.xpose.msra.mxu0 0.0
    %5470 = vmatpush.xpose.msra.mxu0 0.0
    %5471 = vmatpush.xpose.msra.mxu0 0.0
    %5472 = vmatpush.xpose.msra.mxu0 0.0
    %5473 = vmatpush.xpose.msra.mxu0 0.0
    %5474 = vmatpush.xpose.msra.mxu0 0.0
    %5475 = vmatpush.xpose.msra.mxu0 0.0
    %5476 = vmatpush.xpose.msra.mxu0 0.0
    %5477 = vmatpush.xpose.msra.mxu0 0.0
    %5478 = vmatpush.xpose.msra.mxu0 0.0
    %5479 = vmatpush.xpose.msra.mxu0 0.0
    %5480 = vmatpush.xpose.msra.mxu0 0.0
    %5481 = vmatpush.xpose.msra.mxu0 0.0
    %5482 = vmatpush.xpose.msra.mxu0 %v5291
    %5483 = vmatpush.xpose.msra.mxu0 %v5289
    %5484 = vmatmul.f32.gmra.mxu0 %v5464
    %v5485 = vpop.f32.mrf.mxu0
    %v5486 = vadd.f32 0.0, %v5485
    %5487 = vmatmul.f32.gmra.mxu0 %v5466
    %v5488 = vpop.f32.mrf.mxu0
    %v5489 = vadd.f32 0.0, %v5488
    %5490 = vdwg.mxu0
    %v5494 = vrot.slane %v5235, 6
    %v5495 = vrot.slane %v5236, 6
    %v5496 = vsel %vm1274, %v5494, %v5495
    %v5497 = vrot.slane %v5237, 6
    %v5498 = vsel %vm1274, %v5495, %v5497
    %v5499 = vsel %vm191, %v5496, 0
    %v5501 = vsel %vm191, %v5498, 0
    %5503 = vmatpush.xpose.msra.mxu0 0.0
    %5504 = vmatpush.xpose.msra.mxu0 0.0
    %5505 = vmatpush.xpose.msra.mxu0 0.0
    %5506 = vmatpush.xpose.msra.mxu0 0.0
    %5507 = vmatpush.xpose.msra.mxu0 0.0
    %5508 = vmatpush.xpose.msra.mxu0 0.0
    %5509 = vmatpush.xpose.msra.mxu0 0.0
    %5510 = vmatpush.xpose.msra.mxu0 0.0
    %5511 = vmatpush.xpose.msra.mxu0 0.0
    %5512 = vmatpush.xpose.msra.mxu0 0.0
    %5513 = vmatpush.xpose.msra.mxu0 0.0
    %5514 = vmatpush.xpose.msra.mxu0 0.0
    %5515 = vmatpush.xpose.msra.mxu0 0.0
    %5516 = vmatpush.xpose.msra.mxu0 0.0
    %5517 = vmatpush.xpose.msra.mxu0 %v5291
    %5518 = vmatpush.xpose.msra.mxu0 %v5289
    %5519 = vmatmul.f32.gmra.mxu0 %v5499
    %v5520 = vpop.f32.mrf.mxu0
    %v5521 = vadd.f32 0.0, %v5520
    %5522 = vmatmul.f32.gmra.mxu0 %v5501
    %v5523 = vpop.f32.mrf.mxu0
    %v5524 = vadd.f32 0.0, %v5523
    %5525 = vdwg.mxu0
    %v5529 = vrot.slane %v5238, 6
    %v5530 = vrot.slane %v5239, 6
    %v5531 = vsel %vm1274, %v5529, %v5530
    %v5532 = vrot.slane %v5240, 6
    %v5533 = vsel %vm1274, %v5530, %v5532
    %v5534 = vsel %vm191, %v5531, 0
    %v5536 = vsel %vm191, %v5533, 0
    %5538 = vmatpush.xpose.msra.mxu0 0.0
    %5539 = vmatpush.xpose.msra.mxu0 0.0
    %5540 = vmatpush.xpose.msra.mxu0 0.0
    %5541 = vmatpush.xpose.msra.mxu0 0.0
    %5542 = vmatpush.xpose.msra.mxu0 0.0
    %5543 = vmatpush.xpose.msra.mxu0 0.0
    %5544 = vmatpush.xpose.msra.mxu0 0.0
    %5545 = vmatpush.xpose.msra.mxu0 0.0
    %5546 = vmatpush.xpose.msra.mxu0 0.0
    %5547 = vmatpush.xpose.msra.mxu0 0.0
    %5548 = vmatpush.xpose.msra.mxu0 0.0
    %5549 = vmatpush.xpose.msra.mxu0 0.0
    %5550 = vmatpush.xpose.msra.mxu0 0.0
    %5551 = vmatpush.xpose.msra.mxu0 0.0
    %5552 = vmatpush.xpose.msra.mxu0 %v5291
    %5553 = vmatpush.xpose.msra.mxu0 %v5289
    %5554 = vmatmul.f32.gmra.mxu0 %v5534
    %v5555 = vpop.f32.mrf.mxu0
    %v5556 = vadd.f32 0.0, %v5555
    %5557 = vmatmul.f32.gmra.mxu0 %v5536
    %v5558 = vpop.f32.mrf.mxu0
    %v5559 = vadd.f32 0.0, %v5558
    %5560 = vdwg.mxu0
    %v5561 = vmul.f32 %v5311, 0.35355338
    %v5562 = vmul.f32 %v5314, 0.35355338
    %v5563 = vmul.f32 %v5346, 0.35355338
    %v5564 = vmul.f32 %v5349, 0.35355338
    %v5565 = vmul.f32 %v5381, 0.35355338
    %v5566 = vmul.f32 %v5384, 0.35355338
    %v5567 = vmul.f32 %v5416, 0.35355338
    %v5568 = vmul.f32 %v5419, 0.35355338
    %v5569 = vmul.f32 %v5451, 0.35355338
    %v5570 = vmul.f32 %v5454, 0.35355338
    %v5571 = vmul.f32 %v5486, 0.35355338
    %v5572 = vmul.f32 %v5489, 0.35355338
    %v5573 = vmul.f32 %v5521, 0.35355338
    %v5574 = vmul.f32 %v5524, 0.35355338
    %v5575 = vmul.f32 %v5556, 0.35355338
    %v5576 = vmul.f32 %v5559, 0.35355338
    %v5577 = vsel %vm717, %v5561, -inf
    %5578 = vmax.xlane.f32.xlu0 %v5577
    %v5579 = vpop.xlane.xlu0 %5578
    %v5580 = vsel %vm721, %v5562, -inf
    %5581 = vmax.xlane.f32.xlu0 %v5580
    %v5582 = vpop.xlane.xlu0 %5581
    %v5583 = vsel %vm717, %v5563, -inf
    %5584 = vmax.xlane.f32.xlu0 %v5583
    %v5585 = vpop.xlane.xlu0 %5584
    %v5586 = vsel %vm721, %v5564, -inf
    %5587 = vmax.xlane.f32.xlu0 %v5586
    %v5588 = vpop.xlane.xlu0 %5587
    %v5589 = vsel %vm717, %v5565, -inf
    %5590 = vmax.xlane.f32.xlu0 %v5589
    %v5591 = vpop.xlane.xlu0 %5590
    %v5592 = vsel %vm721, %v5566, -inf
    %5593 = vmax.xlane.f32.xlu0 %v5592
    %v5594 = vpop.xlane.xlu0 %5593
    %v5595 = vsel %vm717, %v5567, -inf
    %5596 = vmax.xlane.f32.xlu0 %v5595
    %v5597 = vpop.xlane.xlu0 %5596
    %v5598 = vsel %vm721, %v5568, -inf
    %5599 = vmax.xlane.f32.xlu0 %v5598
    %v5600 = vpop.xlane.xlu0 %5599
    %v5601 = vsel %vm717, %v5569, -inf
    %5602 = vmax.xlane.f32.xlu0 %v5601
    %v5603 = vpop.xlane.xlu0 %5602
    %v5604 = vsel %vm721, %v5570, -inf
    %5605 = vmax.xlane.f32.xlu0 %v5604
    %v5606 = vpop.xlane.xlu0 %5605
    %v5607 = vsel %vm717, %v5571, -inf
    %5608 = vmax.xlane.f32.xlu0 %v5607
    %v5609 = vpop.xlane.xlu0 %5608
    %v5610 = vsel %vm721, %v5572, -inf
    %5611 = vmax.xlane.f32.xlu0 %v5610
    %v5612 = vpop.xlane.xlu0 %5611
    %v5613 = vsel %vm717, %v5573, -inf
    %5614 = vmax.xlane.f32.xlu0 %v5613
    %v5615 = vpop.xlane.xlu0 %5614
    %v5616 = vsel %vm721, %v5574, -inf
    %5617 = vmax.xlane.f32.xlu0 %v5616
    %v5618 = vpop.xlane.xlu0 %5617
    %v5619 = vsel %vm717, %v5575, -inf
    %5620 = vmax.xlane.f32.xlu0 %v5619
    %v5621 = vpop.xlane.xlu0 %5620
    %v5622 = vsel %vm721, %v5576, -inf
    %5623 = vmax.xlane.f32.xlu0 %v5622
    %v5624 = vpop.xlane.xlu0 %5623
    %v5625 = vsub.f32 %v5561, %v5579
    %v5626 = vsub.f32 %v5562, %v5582
    %v5627 = vsub.f32 %v5563, %v5585
    %v5628 = vsub.f32 %v5564, %v5588
    %v5629 = vsub.f32 %v5565, %v5591
    %v5630 = vsub.f32 %v5566, %v5594
    %v5631 = vsub.f32 %v5567, %v5597
    %v5632 = vsub.f32 %v5568, %v5600
    %v5633 = vsub.f32 %v5569, %v5603
    %v5634 = vsub.f32 %v5570, %v5606
    %v5635 = vsub.f32 %v5571, %v5609
    %v5636 = vsub.f32 %v5572, %v5612
    %v5637 = vsub.f32 %v5573, %v5615
    %v5638 = vsub.f32 %v5574, %v5618
    %v5639 = vsub.f32 %v5575, %v5621
    %v5640 = vsub.f32 %v5576, %v5624
    %v5641 = vmul.f32 %v5625, 1.442695
    %v5642 = vpow.pop %v5641
    %v5643 = vmul.f32 %v5626, 1.442695
    %v5644 = vpow.pop %v5643
    %v5645 = vmul.f32 %v5627, 1.442695
    %v5646 = vpow.pop %v5645
    %v5647 = vmul.f32 %v5628, 1.442695
    %v5648 = vpow.pop %v5647
    %v5649 = vmul.f32 %v5629, 1.442695
    %v5650 = vpow.pop %v5649
    %v5651 = vmul.f32 %v5630, 1.442695
    %v5652 = vpow.pop %v5651
    %v5653 = vmul.f32 %v5631, 1.442695
    %v5654 = vpow.pop %v5653
    %v5655 = vmul.f32 %v5632, 1.442695
    %v5656 = vpow.pop %v5655
    %v5657 = vmul.f32 %v5633, 1.442695
    %v5658 = vpow.pop %v5657
    %v5659 = vmul.f32 %v5634, 1.442695
    %v5660 = vpow.pop %v5659
    %v5661 = vmul.f32 %v5635, 1.442695
    %v5662 = vpow.pop %v5661
    %v5663 = vmul.f32 %v5636, 1.442695
    %v5664 = vpow.pop %v5663
    %v5665 = vmul.f32 %v5637, 1.442695
    %v5666 = vpow.pop %v5665
    %v5667 = vmul.f32 %v5638, 1.442695
    %v5668 = vpow.pop %v5667
    %v5669 = vmul.f32 %v5639, 1.442695
    %v5670 = vpow.pop %v5669
    %v5671 = vmul.f32 %v5640, 1.442695
    %v5672 = vpow.pop %v5671
    %v5673 = vsel %vm717, %v5642, 0.0
    %5674 = vadd.xlane.f32.xlu0 %v5673
    %v5675 = vpop.xlane.xlu0 %5674
    %v5676 = vsel %vm721, %v5644, 0.0
    %5677 = vadd.xlane.f32.xlu0 %v5676
    %v5678 = vpop.xlane.xlu0 %5677
    %v5679 = vsel %vm717, %v5646, 0.0
    %5680 = vadd.xlane.f32.xlu0 %v5679
    %v5681 = vpop.xlane.xlu0 %5680
    %v5682 = vsel %vm721, %v5648, 0.0
    %5683 = vadd.xlane.f32.xlu0 %v5682
    %v5684 = vpop.xlane.xlu0 %5683
    %v5685 = vsel %vm717, %v5650, 0.0
    %5686 = vadd.xlane.f32.xlu0 %v5685
    %v5687 = vpop.xlane.xlu0 %5686
    %v5688 = vsel %vm721, %v5652, 0.0
    %5689 = vadd.xlane.f32.xlu0 %v5688
    %v5690 = vpop.xlane.xlu0 %5689
    %v5691 = vsel %vm717, %v5654, 0.0
    %5692 = vadd.xlane.f32.xlu0 %v5691
    %v5693 = vpop.xlane.xlu0 %5692
    %v5694 = vsel %vm721, %v5656, 0.0
    %5695 = vadd.xlane.f32.xlu0 %v5694
    %v5696 = vpop.xlane.xlu0 %5695
    %v5697 = vsel %vm717, %v5658, 0.0
    %5698 = vadd.xlane.f32.xlu0 %v5697
    %v5699 = vpop.xlane.xlu0 %5698
    %v5700 = vsel %vm721, %v5660, 0.0
    %5701 = vadd.xlane.f32.xlu0 %v5700
    %v5702 = vpop.xlane.xlu0 %5701
    %v5703 = vsel %vm717, %v5662, 0.0
    %5704 = vadd.xlane.f32.xlu0 %v5703
    %v5705 = vpop.xlane.xlu0 %5704
    %v5706 = vsel %vm721, %v5664, 0.0
    %5707 = vadd.xlane.f32.xlu0 %v5706
    %v5708 = vpop.xlane.xlu0 %5707
    %v5709 = vsel %vm717, %v5666, 0.0
    %5710 = vadd.xlane.f32.xlu0 %v5709
    %v5711 = vpop.xlane.xlu0 %5710
    %v5712 = vsel %vm721, %v5668, 0.0
    %5713 = vadd.xlane.f32.xlu0 %v5712
    %v5714 = vpop.xlane.xlu0 %5713
    %v5715 = vsel %vm717, %v5670, 0.0
    %5716 = vadd.xlane.f32.xlu0 %v5715
    %v5717 = vpop.xlane.xlu0 %5716
    %v5718 = vsel %vm721, %v5672, 0.0
    %5719 = vadd.xlane.f32.xlu0 %v5718
    %v5720 = vpop.xlane.xlu0 %5719
    %v5721 = vrcp.pop %v5675
    %v5722 = vrcp.pop %v5678
    %v5723 = vrcp.pop %v5681
    %v5724 = vrcp.pop %v5684
    %v5725 = vrcp.pop %v5687
    %v5726 = vrcp.pop %v5690
    %v5727 = vrcp.pop %v5693
    %v5728 = vrcp.pop %v5696
    %v5729 = vrcp.pop %v5699
    %v5730 = vrcp.pop %v5702
    %v5731 = vrcp.pop %v5705
    %v5732 = vrcp.pop %v5708
    %v5733 = vrcp.pop %v5711
    %v5734 = vrcp.pop %v5714
    %v5735 = vrcp.pop %v5717
    %v5736 = vrcp.pop %v5720
    %v5737 = vmul.f32 %v5642, %v5721
    %v5738 = vmul.f32 %v5644, %v5722
    %v5739 = vmul.f32 %v5646, %v5723
    %v5740 = vmul.f32 %v5648, %v5724
    %v5741 = vmul.f32 %v5650, %v5725
    %v5742 = vmul.f32 %v5652, %v5726
    %v5743 = vmul.f32 %v5654, %v5727
    %v5744 = vmul.f32 %v5656, %v5728
    %v5745 = vmul.f32 %v5658, %v5729
    %v5746 = vmul.f32 %v5660, %v5730
    %v5747 = vmul.f32 %v5662, %v5731
    %v5748 = vmul.f32 %v5664, %v5732
    %v5749 = vmul.f32 %v5666, %v5733
    %v5750 = vmul.f32 %v5668, %v5734
    %v5751 = vmul.f32 %v5670, %v5735
    %v5752 = vmul.f32 %v5672, %v5736
    %v5753 = vsel %vm717, %v5737, 0.0
    %v5754 = vsel %vm717, %v5739, 0.0
    %v5755 = vadd.f32 %v5753, %v5754
    %v5756 = vsel %vm717, %v5741, 0.0
    %v5757 = vadd.f32 %v5755, %v5756
    %v5758 = vsel %vm717, %v5743, 0.0
    %v5759 = vadd.f32 %v5757, %v5758
    %v5760 = vsel %vm717, %v5745, 0.0
    %v5761 = vadd.f32 %v5759, %v5760
    %v5762 = vsel %vm717, %v5747, 0.0
    %v5763 = vadd.f32 %v5761, %v5762
    %v5764 = vsel %vm717, %v5749, 0.0
    %v5765 = vadd.f32 %v5763, %v5764
    %v5766 = vsel %vm717, %v5751, 0.0
    %v5767 = vadd.f32 %v5765, %v5766
    %v5768 = vsel %vm721, %v5738, 0.0
    %v5769 = vsel %vm721, %v5740, 0.0
    %v5770 = vadd.f32 %v5768, %v5769
    %v5771 = vsel %vm721, %v5742, 0.0
    %v5772 = vadd.f32 %v5770, %v5771
    %v5773 = vsel %vm721, %v5744, 0.0
    %v5774 = vadd.f32 %v5772, %v5773
    %v5775 = vsel %vm721, %v5746, 0.0
    %v5776 = vadd.f32 %v5774, %v5775
    %v5777 = vsel %vm721, %v5748, 0.0
    %v5778 = vadd.f32 %v5776, %v5777
    %v5779 = vsel %vm721, %v5750, 0.0
    %v5780 = vadd.f32 %v5778, %v5779
    %v5781 = vsel %vm721, %v5752, 0.0
    %v5782 = vadd.f32 %v5780, %v5781
    %v5783 = vadd.f32 %v3786, %v5767
    %v5784 = vadd.f32 %v3787, %v5782
    %v5788 = vrot.slane %v5241, 6
    %v5789 = vrot.slane %v5242, 6
    %v5790 = vsel %vm1274, %v5788, %v5789
    %v5791 = vrot.slane %v5243, 6
    %v5792 = vsel %vm1274, %v5789, %v5791
    %v5795 = vsel %vm717, %v5737, 0
    %v5798 = vsel %vm717, %v5738, 0
    %v5800 = vsel %vm933, %v5792, 0
    %5802 = vmatpush.msra.mxu0 0.0
    %5803 = vmatpush.msra.mxu0 0.0
    %5804 = vmatpush.msra.mxu0 0.0
    %5805 = vmatpush.msra.mxu0 0.0
    %5806 = vmatpush.msra.mxu0 0.0
    %5807 = vmatpush.msra.mxu0 0.0
    %5808 = vmatpush.msra.mxu0 0.0
    %5809 = vmatpush.msra.mxu0 0.0
    %5810 = vmatpush.msra.mxu0 0.0
    %5811 = vmatpush.msra.mxu0 0.0
    %5812 = vmatpush.msra.mxu0 0.0
    %5813 = vmatpush.msra.mxu0 0.0
    %5814 = vmatpush.msra.mxu0 0.0
    %5815 = vmatpush.msra.mxu0 0.0
    %5816 = vmatpush.msra.mxu0 %v5800
    %5817 = vmatpush.msra.mxu0 %v5790
    %5818 = vmatmul.f32.gmra.mxu0 %v5795
    %v5819 = vpop.f32.mrf.mxu0
    %v5820 = vadd.f32 0.0, %v5819
    %5821 = vmatmul.f32.gmra.mxu0 %v5798
    %v5822 = vpop.f32.mrf.mxu0
    %v5823 = vadd.f32 0.0, %v5822
    %5824 = vdwg.mxu0
    %v5828 = vrot.slane %v5244, 6
    %v5829 = vrot.slane %v5245, 6
    %v5830 = vsel %vm1274, %v5828, %v5829
    %v5831 = vrot.slane %v5246, 6
    %v5832 = vsel %vm1274, %v5829, %v5831
    %v5835 = vsel %vm717, %v5739, 0
    %v5838 = vsel %vm717, %v5740, 0
    %v5840 = vsel %vm933, %v5832, 0
    %5842 = vmatpush.msra.mxu0 0.0
    %5843 = vmatpush.msra.mxu0 0.0
    %5844 = vmatpush.msra.mxu0 0.0
    %5845 = vmatpush.msra.mxu0 0.0
    %5846 = vmatpush.msra.mxu0 0.0
    %5847 = vmatpush.msra.mxu0 0.0
    %5848 = vmatpush.msra.mxu0 0.0
    %5849 = vmatpush.msra.mxu0 0.0
    %5850 = vmatpush.msra.mxu0 0.0
    %5851 = vmatpush.msra.mxu0 0.0
    %5852 = vmatpush.msra.mxu0 0.0
    %5853 = vmatpush.msra.mxu0 0.0
    %5854 = vmatpush.msra.mxu0 0.0
    %5855 = vmatpush.msra.mxu0 0.0
    %5856 = vmatpush.msra.mxu0 %v5840
    %5857 = vmatpush.msra.mxu0 %v5830
    %5858 = vmatmul.f32.gmra.mxu0 %v5835
    %v5859 = vpop.f32.mrf.mxu0
    %v5860 = vadd.f32 0.0, %v5859
    %5861 = vmatmul.f32.gmra.mxu0 %v5838
    %v5862 = vpop.f32.mrf.mxu0
    %v5863 = vadd.f32 0.0, %v5862
    %5864 = vdwg.mxu0
    %v5868 = vrot.slane %v5247, 6
    %v5869 = vrot.slane %v5248, 6
    %v5870 = vsel %vm1274, %v5868, %v5869
    %v5871 = vrot.slane %v5249, 6
    %v5872 = vsel %vm1274, %v5869, %v5871
    %v5875 = vsel %vm717, %v5741, 0
    %v5878 = vsel %vm717, %v5742, 0
    %v5880 = vsel %vm933, %v5872, 0
    %5882 = vmatpush.msra.mxu0 0.0
    %5883 = vmatpush.msra.mxu0 0.0
    %5884 = vmatpush.msra.mxu0 0.0
    %5885 = vmatpush.msra.mxu0 0.0
    %5886 = vmatpush.msra.mxu0 0.0
    %5887 = vmatpush.msra.mxu0 0.0
    %5888 = vmatpush.msra.mxu0 0.0
    %5889 = vmatpush.msra.mxu0 0.0
    %5890 = vmatpush.msra.mxu0 0.0
    %5891 = vmatpush.msra.mxu0 0.0
    %5892 = vmatpush.msra.mxu0 0.0
    %5893 = vmatpush.msra.mxu0 0.0
    %5894 = vmatpush.msra.mxu0 0.0
    %5895 = vmatpush.msra.mxu0 0.0
    %5896 = vmatpush.msra.mxu0 %v5880
    %5897 = vmatpush.msra.mxu0 %v5870
    %5898 = vmatmul.f32.gmra.mxu0 %v5875
    %v5899 = vpop.f32.mrf.mxu0
    %v5900 = vadd.f32 0.0, %v5899
    %5901 = vmatmul.f32.gmra.mxu0 %v5878
    %v5902 = vpop.f32.mrf.mxu0
    %v5903 = vadd.f32 0.0, %v5902
    %5904 = vdwg.mxu0
    %v5908 = vrot.slane %v5250, 6
    %v5909 = vrot.slane %v5251, 6
    %v5910 = vsel %vm1274, %v5908, %v5909
    %v5911 = vrot.slane %v5252, 6
    %v5912 = vsel %vm1274, %v5909, %v5911
    %v5915 = vsel %vm717, %v5743, 0
    %v5918 = vsel %vm717, %v5744, 0
    %v5920 = vsel %vm933, %v5912, 0
    %5922 = vmatpush.msra.mxu0 0.0
    %5923 = vmatpush.msra.mxu0 0.0
    %5924 = vmatpush.msra.mxu0 0.0
    %5925 = vmatpush.msra.mxu0 0.0
    %5926 = vmatpush.msra.mxu0 0.0
    %5927 = vmatpush.msra.mxu0 0.0
    %5928 = vmatpush.msra.mxu0 0.0
    %5929 = vmatpush.msra.mxu0 0.0
    %5930 = vmatpush.msra.mxu0 0.0
    %5931 = vmatpush.msra.mxu0 0.0
    %5932 = vmatpush.msra.mxu0 0.0
    %5933 = vmatpush.msra.mxu0 0.0
    %5934 = vmatpush.msra.mxu0 0.0
    %5935 = vmatpush.msra.mxu0 0.0
    %5936 = vmatpush.msra.mxu0 %v5920
    %5937 = vmatpush.msra.mxu0 %v5910
    %5938 = vmatmul.f32.gmra.mxu0 %v5915
    %v5939 = vpop.f32.mrf.mxu0
    %v5940 = vadd.f32 0.0, %v5939
    %5941 = vmatmul.f32.gmra.mxu0 %v5918
    %v5942 = vpop.f32.mrf.mxu0
    %v5943 = vadd.f32 0.0, %v5942
    %5944 = vdwg.mxu0
    %v5948 = vrot.slane %v5253, 6
    %v5949 = vrot.slane %v5254, 6
    %v5950 = vsel %vm1274, %v5948, %v5949
    %v5951 = vrot.slane %v5255, 6
    %v5952 = vsel %vm1274, %v5949, %v5951
    %v5955 = vsel %vm717, %v5745, 0
    %v5958 = vsel %vm717, %v5746, 0
    %v5960 = vsel %vm933, %v5952, 0
    %5962 = vmatpush.msra.mxu0 0.0
    %5963 = vmatpush.msra.mxu0 0.0
    %5964 = vmatpush.msra.mxu0 0.0
    %5965 = vmatpush.msra.mxu0 0.0
    %5966 = vmatpush.msra.mxu0 0.0
    %5967 = vmatpush.msra.mxu0 0.0
    %5968 = vmatpush.msra.mxu0 0.0
    %5969 = vmatpush.msra.mxu0 0.0
    %5970 = vmatpush.msra.mxu0 0.0
    %5971 = vmatpush.msra.mxu0 0.0
    %5972 = vmatpush.msra.mxu0 0.0
    %5973 = vmatpush.msra.mxu0 0.0
    %5974 = vmatpush.msra.mxu0 0.0
    %5975 = vmatpush.msra.mxu0 0.0
    %5976 = vmatpush.msra.mxu0 %v5960
    %5977 = vmatpush.msra.mxu0 %v5950
    %5978 = vmatmul.f32.gmra.mxu0 %v5955
    %v5979 = vpop.f32.mrf.mxu0
    %v5980 = vadd.f32 0.0, %v5979
    %5981 = vmatmul.f32.gmra.mxu0 %v5958
    %v5982 = vpop.f32.mrf.mxu0
    %v5983 = vadd.f32 0.0, %v5982
    %5984 = vdwg.mxu0
    %v5988 = vrot.slane %v5256, 6
    %v5989 = vrot.slane %v5257, 6
    %v5990 = vsel %vm1274, %v5988, %v5989
    %v5991 = vrot.slane %v5258, 6
    %v5992 = vsel %vm1274, %v5989, %v5991
    %v5995 = vsel %vm717, %v5747, 0
    %v5998 = vsel %vm717, %v5748, 0
    %v6000 = vsel %vm933, %v5992, 0
    %6002 = vmatpush.msra.mxu0 0.0
    %6003 = vmatpush.msra.mxu0 0.0
    %6004 = vmatpush.msra.mxu0 0.0
    %6005 = vmatpush.msra.mxu0 0.0
    %6006 = vmatpush.msra.mxu0 0.0
    %6007 = vmatpush.msra.mxu0 0.0
    %6008 = vmatpush.msra.mxu0 0.0
    %6009 = vmatpush.msra.mxu0 0.0
    %6010 = vmatpush.msra.mxu0 0.0
    %6011 = vmatpush.msra.mxu0 0.0
    %6012 = vmatpush.msra.mxu0 0.0
    %6013 = vmatpush.msra.mxu0 0.0
    %6014 = vmatpush.msra.mxu0 0.0
    %6015 = vmatpush.msra.mxu0 0.0
    %6016 = vmatpush.msra.mxu0 %v6000
    %6017 = vmatpush.msra.mxu0 %v5990
    %6018 = vmatmul.f32.gmra.mxu0 %v5995
    %v6019 = vpop.f32.mrf.mxu0
    %v6020 = vadd.f32 0.0, %v6019
    %6021 = vmatmul.f32.gmra.mxu0 %v5998
    %v6022 = vpop.f32.mrf.mxu0
    %v6023 = vadd.f32 0.0, %v6022
    %6024 = vdwg.mxu0
    %v6028 = vrot.slane %v5259, 6
    %v6029 = vrot.slane %v5260, 6
    %v6030 = vsel %vm1274, %v6028, %v6029
    %v6031 = vrot.slane %v5261, 6
    %v6032 = vsel %vm1274, %v6029, %v6031
    %v6035 = vsel %vm717, %v5749, 0
    %v6038 = vsel %vm717, %v5750, 0
    %v6040 = vsel %vm933, %v6032, 0
    %6042 = vmatpush.msra.mxu0 0.0
    %6043 = vmatpush.msra.mxu0 0.0
    %6044 = vmatpush.msra.mxu0 0.0
    %6045 = vmatpush.msra.mxu0 0.0
    %6046 = vmatpush.msra.mxu0 0.0
    %6047 = vmatpush.msra.mxu0 0.0
    %6048 = vmatpush.msra.mxu0 0.0
    %6049 = vmatpush.msra.mxu0 0.0
    %6050 = vmatpush.msra.mxu0 0.0
    %6051 = vmatpush.msra.mxu0 0.0
    %6052 = vmatpush.msra.mxu0 0.0
    %6053 = vmatpush.msra.mxu0 0.0
    %6054 = vmatpush.msra.mxu0 0.0
    %6055 = vmatpush.msra.mxu0 0.0
    %6056 = vmatpush.msra.mxu0 %v6040
    %6057 = vmatpush.msra.mxu0 %v6030
    %6058 = vmatmul.f32.gmra.mxu0 %v6035
    %v6059 = vpop.f32.mrf.mxu0
    %v6060 = vadd.f32 0.0, %v6059
    %6061 = vmatmul.f32.gmra.mxu0 %v6038
    %v6062 = vpop.f32.mrf.mxu0
    %v6063 = vadd.f32 0.0, %v6062
    %6064 = vdwg.mxu0
    %v6068 = vrot.slane %v5262, 6
    %v6069 = vrot.slane %v5263, 6
    %v6070 = vsel %vm1274, %v6068, %v6069
    %v6071 = vrot.slane %v5264, 6
    %v6072 = vsel %vm1274, %v6069, %v6071
    %v6075 = vsel %vm717, %v5751, 0
    %v6078 = vsel %vm717, %v5752, 0
    %v6080 = vsel %vm933, %v6072, 0
    %6082 = vmatpush.msra.mxu0 0.0
    %6083 = vmatpush.msra.mxu0 0.0
    %6084 = vmatpush.msra.mxu0 0.0
    %6085 = vmatpush.msra.mxu0 0.0
    %6086 = vmatpush.msra.mxu0 0.0
    %6087 = vmatpush.msra.mxu0 0.0
    %6088 = vmatpush.msra.mxu0 0.0
    %6089 = vmatpush.msra.mxu0 0.0
    %6090 = vmatpush.msra.mxu0 0.0
    %6091 = vmatpush.msra.mxu0 0.0
    %6092 = vmatpush.msra.mxu0 0.0
    %6093 = vmatpush.msra.mxu0 0.0
    %6094 = vmatpush.msra.mxu0 0.0
    %6095 = vmatpush.msra.mxu0 0.0
    %6096 = vmatpush.msra.mxu0 %v6080
    %6097 = vmatpush.msra.mxu0 %v6070
    %6098 = vmatmul.f32.gmra.mxu0 %v6075
    %v6099 = vpop.f32.mrf.mxu0
    %v6100 = vadd.f32 0.0, %v6099
    %6101 = vmatmul.f32.gmra.mxu0 %v6078
    %v6102 = vpop.f32.mrf.mxu0
    %v6103 = vadd.f32 0.0, %v6102
    %6104 = vdwg.mxu0
    %v6105 = vsel %vm191, %v5820, 0.0
    %v6106 = vsel %vm191, %v5860, 0.0
    %v6107 = vadd.f32 %v6105, %v6106
    %v6108 = vsel %vm191, %v5900, 0.0
    %v6109 = vadd.f32 %v6107, %v6108
    %v6110 = vsel %vm191, %v5940, 0.0
    %v6111 = vadd.f32 %v6109, %v6110
    %v6112 = vsel %vm191, %v5980, 0.0
    %v6113 = vadd.f32 %v6111, %v6112
    %v6114 = vsel %vm191, %v6020, 0.0
    %v6115 = vadd.f32 %v6113, %v6114
    %v6116 = vsel %vm191, %v6060, 0.0
    %v6117 = vadd.f32 %v6115, %v6116
    %v6118 = vsel %vm191, %v6100, 0.0
    %v6119 = vadd.f32 %v6117, %v6118
    %v6120 = vsel %vm1199, %v5823, 0.0
    %v6121 = vsel %vm1199, %v5863, 0.0
    %v6122 = vadd.f32 %v6120, %v6121
    %v6123 = vsel %vm1199, %v5903, 0.0
    %v6124 = vadd.f32 %v6122, %v6123
    %v6125 = vsel %vm1199, %v5943, 0.0
    %v6126 = vadd.f32 %v6124, %v6125
    %v6127 = vsel %vm1199, %v5983, 0.0
    %v6128 = vadd.f32 %v6126, %v6127
    %v6129 = vsel %vm1199, %v6023, 0.0
    %v6130 = vadd.f32 %v6128, %v6129
    %v6131 = vsel %vm1199, %v6063, 0.0
    %v6132 = vadd.f32 %v6130, %v6131
    %v6133 = vsel %vm1199, %v6103, 0.0
    %v6134 = vadd.f32 %v6132, %v6133
    %6135 = vst.msk [vmem:[#allocation3 + $0xe] sm:$0xff] %vm191, %v6119
    %6136 = vst.msk [vmem:[#allocation3 + $0x16] sm:$0x3f] %vm1199, %v6134
    %v6137 = vld [vmem:[#allocation3] sm:$0xff]
    %v6138 = vld [vmem:[#allocation3 + $0x8] sm:$0xff]
    %v6139 = vld [vmem:[#allocation3 + $0x10] sm:$0xff]
    %v6140 = vld [vmem:[#allocation3 + $0x18] sm:$0xf]
    %s6141 = scalar_lea.vmem %s6, 128
    %v6142 = vld [vmem:[%s6141] sm:$0xff]
    %v6143 = vld [vmem:[%s6141 + $0x8] sm:$0xff]
    %v6144 = vld [vmem:[%s6141 + $0x10] sm:$0xff]
    %v6145 = vld [vmem:[%s6141 + $0x18] sm:$0xff]
    %v6146 = vld [vmem:[%s6141 + $0x20] sm:$0xff]
    %v6147 = vld [vmem:[%s6141 + $0x28] sm:$0xff]
    %v6148 = vld [vmem:[%s6141 + $0x30] sm:$0xff]
    %v6149 = vld [vmem:[%s6141 + $0x38] sm:$0xff]
    %v6150 = vperm.slane %v4318, 0
    %v6152 = vsel %vm191, %v6137, 0
    %v6155 = vsel %vm191, %v6138, 0
    %v6158 = vsel %vm191, %v6139, 0
    %v6161 = vsel %vm191, %v6140, 0
    %6163 = vmatpush.msra.mxu0 0.0
    %6164 = vmatpush.msra.mxu0 0.0
    %6165 = vmatpush.msra.mxu0 0.0
    %6166 = vmatpush.msra.mxu0 0.0
    %6167 = vmatpush.msra.mxu0 0.0
    %6168 = vmatpush.msra.mxu0 0.0
    %6169 = vmatpush.msra.mxu0 0.0
    %6170 = vmatpush.msra.mxu0 0.0
    %6171 = vmatpush.msra.mxu0 %v6149
    %6172 = vmatpush.msra.mxu0 %v6148
    %6173 = vmatpush.msra.mxu0 %v6147
    %6174 = vmatpush.msra.mxu0 %v6146
    %6175 = vmatpush.msra.mxu0 %v6145
    %6176 = vmatpush.msra.mxu0 %v6144
    %6177 = vmatpush.msra.mxu0 %v6143
    %6178 = vmatpush.msra.mxu0 %v6142
    %6179 = vmatmul.f32.gmra.mxu0 %v6152
    %v6180 = vpop.f32.mrf.mxu0
    %v6181 = vadd.f32 %v6150, %v6180
    %6182 = vmatmul.f32.gmra.mxu0 %v6155
    %v6183 = vpop.f32.mrf.mxu0
    %v6184 = vadd.f32 %v6150, %v6183
    %6185 = vmatmul.f32.gmra.mxu0 %v6158
    %v6186 = vpop.f32.mrf.mxu0
    %v6187 = vadd.f32 %v6150, %v6186
    %6188 = vmatmul.f32.gmra.mxu0 %v6161
    %v6189 = vpop.f32.mrf.mxu0
    %v6190 = vadd.f32 %v6150, %v6189
    %6191 = vdwg.mxu0
    %v6192 = vsel %vm191, %v6181, 0.0
    %6193 = vadd.xlane.f32.xlu0 %v6192
    %v6194 = vpop.xlane.xlu0 %6193
    %v6195 = vsel %vm191, %v6184, 0.0
    %6196 = vadd.xlane.f32.xlu0 %v6195
    %v6197 = vpop.xlane.xlu0 %6196
    %v6198 = vsel %vm191, %v6187, 0.0
    %6199 = vadd.xlane.f32.xlu0 %v6198
    %v6200 = vpop.xlane.xlu0 %6199
    %v6201 = vsel %vm201, %v6190, 0.0
    %6202 = vadd.xlane.f32.xlu0 %v6201
    %v6203 = vpop.xlane.xlu0 %6202
    %v6204 = vmul.f32 %v6194, %v211
    %v6205 = vmul.f32 %v6197, %v211
    %v6206 = vmul.f32 %v6200, %v211
    %v6207 = vmul.f32 %v6203, %v211
    %v6208 = vsub.f32 %v6181, %v6204
    %v6209 = vsub.f32 %v6184, %v6205
    %v6210 = vsub.f32 %v6187, %v6206
    %v6211 = vsub.f32 %v6190, %v6207
    %v6212 = vmul.f32 %v6208, %v6208
    %v6213 = vmul.f32 %v6209, %v6209
    %v6214 = vmul.f32 %v6210, %v6210
    %v6215 = vmul.f32 %v6211, %v6211
    %v6216 = vsel %vm191, %v6212, 0.0
    %6217 = vadd.xlane.f32.xlu0 %v6216
    %v6218 = vpop.xlane.xlu0 %6217
    %v6219 = vsel %vm191, %v6213, 0.0
    %6220 = vadd.xlane.f32.xlu0 %v6219
    %v6221 = vpop.xlane.xlu0 %6220
    %v6222 = vsel %vm191, %v6214, 0.0
    %6223 = vadd.xlane.f32.xlu0 %v6222
    %v6224 = vpop.xlane.xlu0 %6223
    %v6225 = vsel %vm201, %v6215, 0.0
    %6226 = vadd.xlane.f32.xlu0 %v6225
    %v6227 = vpop.xlane.xlu0 %6226
    %v6228 = vmul.f32 %v6218, %v211
    %v6229 = vmul.f32 %v6221, %v211
    %v6230 = vmul.f32 %v6224, %v211
    %v6231 = vmul.f32 %v6227, %v211
    %v6232 = vadd.f32 %v6228, 1e-05
    %v6233 = vadd.f32 %v6229, 1e-05
    %v6234 = vadd.f32 %v6230, 1e-05
    %v6235 = vadd.f32 %v6231, 1e-05
    %v6236 = vrsqrt.pop %v6232
    %v6237 = vmul.f32 %v6236, %v6232
    %v6238 = vmul.f32 %v6237, %v6236
    %v6239 = vmul.f32 0.5, %v6238
    %v6240 = vsub.f32 1.5, %v6239
    %v6241 = vmul.f32 %v6236, %v6240
    %vm6242 = vweird.f32 %v6232
    %vm6243 = vweird.f32 %v6236
    %vm6244 = vmor %vm6242, %vm6243
    %v6245 = vsel %vm6244, %v6236, %v6241
    %v6246 = vrsqrt.pop %v6233
    %v6247 = vmul.f32 %v6246, %v6233
    %v6248 = vmul.f32 %v6247, %v6246
    %v6249 = vmul.f32 0.5, %v6248
    %v6250 = vsub.f32 1.5, %v6249
    %v6251 = vmul.f32 %v6246, %v6250
    %vm6252 = vweird.f32 %v6233
    %vm6253 = vweird.f32 %v6246
    %vm6254 = vmor %vm6252, %vm6253
    %v6255 = vsel %vm6254, %v6246, %v6251
    %v6256 = vrsqrt.pop %v6234
    %v6257 = vmul.f32 %v6256, %v6234
    %v6258 = vmul.f32 %v6257, %v6256
    %v6259 = vmul.f32 0.5, %v6258
    %v6260 = vsub.f32 1.5, %v6259
    %v6261 = vmul.f32 %v6256, %v6260
    %vm6262 = vweird.f32 %v6234
    %vm6263 = vweird.f32 %v6256
    %vm6264 = vmor %vm6262, %vm6263
    %v6265 = vsel %vm6264, %v6256, %v6261
    %v6266 = vrsqrt.pop %v6235
    %v6267 = vmul.f32 %v6266, %v6235
    %v6268 = vmul.f32 %v6267, %v6266
    %v6269 = vmul.f32 0.5, %v6268
    %v6270 = vsub.f32 1.5, %v6269
    %v6271 = vmul.f32 %v6266, %v6270
    %vm6272 = vweird.f32 %v6235
    %vm6273 = vweird.f32 %v6266
    %vm6274 = vmor %vm6272, %vm6273
    %v6275 = vsel %vm6274, %v6266, %v6271
    %v6276 = vmul.f32 %v6208, %v6245
    %v6277 = vmul.f32 %v6209, %v6255
    %v6278 = vmul.f32 %v6210, %v6265
    %v6279 = vmul.f32 %v6211, %v6275
    %v6280 = vperm.slane %v4318, 1
    %v6281 = vmul.f32 %v6276, %v6280
    %v6282 = vmul.f32 %v6277, %v6280
    %v6283 = vmul.f32 %v6278, %v6280
    %v6284 = vmul.f32 %v6279, %v6280
    %v6285 = vperm.slane %v4318, 2
    %v6286 = vadd.f32 %v6281, %v6285
    %v6287 = vadd.f32 %v6282, %v6285
    %v6288 = vadd.f32 %v6283, %v6285
    %v6289 = vadd.f32 %v6284, %v6285
    %vm6290 = vcmp.gt.f32.partialorder %v6286, 0.0
    %vm6291 = vcmp.gt.f32.partialorder %v6287, 0.0
    %vm6292 = vcmp.gt.f32.partialorder %v6288, 0.0
    %vm6293 = vcmp.gt.f32.partialorder %v6289, 0.0
    %v6294 = vmin.f32 %v6286, 0.0
    %v6295 = vmin.f32 %v6287, 0.0
    %v6296 = vmin.f32 %v6288, 0.0
    %v6297 = vmin.f32 %v6289, 0.0
    %v6298 = vmul.f32 %v6294, 1.442695
    %v6299 = vpow.pop %v6298
    %v6300 = vmul.f32 %v6295, 1.442695
    %v6301 = vpow.pop %v6300
    %v6302 = vmul.f32 %v6296, 1.442695
    %v6303 = vpow.pop %v6302
    %v6304 = vmul.f32 %v6297, 1.442695
    %v6305 = vpow.pop %v6304
    %v6306 = vsub.f32 %v6299, 1.0
    %v6307 = vsub.f32 %v6301, 1.0
    %v6308 = vsub.f32 %v6303, 1.0
    %v6309 = vsub.f32 %v6305, 1.0
    %v6310 = vsel %vm6290, %v6286, %v6306
    %v6311 = vsel %vm6291, %v6287, %v6307
    %v6312 = vsel %vm6292, %v6288, %v6308
    %v6313 = vsel %vm6293, %v6289, %v6309
    %v6314 = vld [vmem:[%s9] sm:$0x7]
    %v6315 = vld [vmem:[#allocation13] sm:$0xff]
    %v6316 = vld [vmem:[#allocation13 + $0x8] sm:$0xff]
    %v6317 = vld [vmem:[#allocation13 + $0x10] sm:$0xff]
    %v6318 = vld [vmem:[#allocation13 + $0x18] sm:$0xff]
    %v6319 = vld [vmem:[#allocation13 + $0x20] sm:$0xff]
    %v6320 = vld [vmem:[#allocation13 + $0x28] sm:$0xff]
    %v6321 = vld [vmem:[#allocation13 + $0x30] sm:$0xff]
    %v6322 = vld [vmem:[#allocation13 + $0x38] sm:$0xff]
    %v6323 = vperm.slane %v6314, 0
    %v6325 = vsel %vm191, %v6310, 0
    %v6328 = vsel %vm191, %v6311, 0
    %v6331 = vsel %vm191, %v6312, 0
    %v6334 = vsel %vm191, %v6313, 0
    %6336 = vmatpush.msra.mxu0 0.0
    %6337 = vmatpush.msra.mxu0 0.0
    %6338 = vmatpush.msra.mxu0 0.0
    %6339 = vmatpush.msra.mxu0 0.0
    %6340 = vmatpush.msra.mxu0 0.0
    %6341 = vmatpush.msra.mxu0 0.0
    %6342 = vmatpush.msra.mxu0 0.0
    %6343 = vmatpush.msra.mxu0 0.0
    %6344 = vmatpush.msra.mxu0 %v6322
    %6345 = vmatpush.msra.mxu0 %v6321
    %6346 = vmatpush.msra.mxu0 %v6320
    %6347 = vmatpush.msra.mxu0 %v6319
    %6348 = vmatpush.msra.mxu0 %v6318
    %6349 = vmatpush.msra.mxu0 %v6317
    %6350 = vmatpush.msra.mxu0 %v6316
    %6351 = vmatpush.msra.mxu0 %v6315
    %6352 = vmatmul.f32.gmra.mxu0 %v6325
    %v6353 = vpop.f32.mrf.mxu0
    %v6354 = vadd.f32 %v6323, %v6353
    %6355 = vmatmul.f32.gmra.mxu0 %v6328
    %v6356 = vpop.f32.mrf.mxu0
    %v6357 = vadd.f32 %v6323, %v6356
    %6358 = vmatmul.f32.gmra.mxu0 %v6331
    %v6359 = vpop.f32.mrf.mxu0
    %v6360 = vadd.f32 %v6323, %v6359
    %6361 = vmatmul.f32.gmra.mxu0 %v6334
    %v6362 = vpop.f32.mrf.mxu0
    %v6363 = vadd.f32 %v6323, %v6362
    %6364 = vdwg.mxu0
    %6365 = vadd.xlane.f32.xlu0 %v6354
    %v6366 = vpop.xlane.xlu0 %6365
    %6367 = vadd.xlane.f32.xlu0 %v6357
    %v6368 = vpop.xlane.xlu0 %6367
    %6369 = vadd.xlane.f32.xlu0 %v6360
    %v6370 = vpop.xlane.xlu0 %6369
    %vm6371 = vcmask 1043456
    %v6372 = vsel %vm6371, %v6363, 0.0
    %6373 = vadd.xlane.f32.xlu0 %v6372
    %v6374 = vpop.xlane.xlu0 %6373
    %v6375 = vrcp.pop 128.0
    %v6376 = vmul.f32 128.0, %v6375
    %v6377 = vsub.f32 1.0, %v6376
    %v6378 = vmul.f32 %v6375, %v6377
    %v6379 = vadd.f32 %v6375, %v6378
    %vm6380 = vweird.f32 %v6375
    %v6381 = vsel %vm6380, %v6375, %v6379
    %v6382 = vmul.f32 %v6366, %v6381
    %v6383 = vmul.f32 %v6368, %v6381
    %v6384 = vmul.f32 %v6370, %v6381
    %v6385 = vmul.f32 %v6374, %v6381
    %v6386 = vsub.f32 %v6354, %v6382
    %v6387 = vsub.f32 %v6357, %v6383
    %v6388 = vsub.f32 %v6360, %v6384
    %v6389 = vsub.f32 %v6363, %v6385
    %v6390 = vmul.f32 %v6386, %v6386
    %v6391 = vmul.f32 %v6387, %v6387
    %v6392 = vmul.f32 %v6388, %v6388
    %v6393 = vmul.f32 %v6389, %v6389
    %6394 = vadd.xlane.f32.xlu0 %v6390
    %v6395 = vpop.xlane.xlu0 %6394
    %6396 = vadd.xlane.f32.xlu0 %v6391
    %v6397 = vpop.xlane.xlu0 %6396
    %6398 = vadd.xlane.f32.xlu0 %v6392
    %v6399 = vpop.xlane.xlu0 %6398
    %v6400 = vsel %vm6371, %v6393, 0.0
    %6401 = vadd.xlane.f32.xlu0 %v6400
    %v6402 = vpop.xlane.xlu0 %6401
    %v6403 = vmul.f32 %v6395, %v6381
    %v6404 = vmul.f32 %v6397, %v6381
    %v6405 = vmul.f32 %v6399, %v6381
    %v6406 = vmul.f32 %v6402, %v6381
    %v6407 = vadd.f32 %v6403, 1e-05
    %v6408 = vadd.f32 %v6404, 1e-05
    %v6409 = vadd.f32 %v6405, 1e-05
    %v6410 = vadd.f32 %v6406, 1e-05
    %v6411 = vrsqrt.pop %v6407
    %v6412 = vmul.f32 %v6411, %v6407
    %v6413 = vmul.f32 %v6412, %v6411
    %v6414 = vmul.f32 0.5, %v6413
    %v6415 = vsub.f32 1.5, %v6414
    %v6416 = vmul.f32 %v6411, %v6415
    %vm6417 = vweird.f32 %v6407
    %vm6418 = vweird.f32 %v6411
    %vm6419 = vmor %vm6417, %vm6418
    %v6420 = vsel %vm6419, %v6411, %v6416
    %v6421 = vrsqrt.pop %v6408
    %v6422 = vmul.f32 %v6421, %v6408
    %v6423 = vmul.f32 %v6422, %v6421
    %v6424 = vmul.f32 0.5, %v6423
    %v6425 = vsub.f32 1.5, %v6424
    %v6426 = vmul.f32 %v6421, %v6425
    %vm6427 = vweird.f32 %v6408
    %vm6428 = vweird.f32 %v6421
    %vm6429 = vmor %vm6427, %vm6428
    %v6430 = vsel %vm6429, %v6421, %v6426
    %v6431 = vrsqrt.pop %v6409
    %v6432 = vmul.f32 %v6431, %v6409
    %v6433 = vmul.f32 %v6432, %v6431
    %v6434 = vmul.f32 0.5, %v6433
    %v6435 = vsub.f32 1.5, %v6434
    %v6436 = vmul.f32 %v6431, %v6435
    %vm6437 = vweird.f32 %v6409
    %vm6438 = vweird.f32 %v6431
    %vm6439 = vmor %vm6437, %vm6438
    %v6440 = vsel %vm6439, %v6431, %v6436
    %v6441 = vrsqrt.pop %v6410
    %v6442 = vmul.f32 %v6441, %v6410
    %v6443 = vmul.f32 %v6442, %v6441
    %v6444 = vmul.f32 0.5, %v6443
    %v6445 = vsub.f32 1.5, %v6444
    %v6446 = vmul.f32 %v6441, %v6445
    %vm6447 = vweird.f32 %v6410
    %vm6448 = vweird.f32 %v6441
    %vm6449 = vmor %vm6447, %vm6448
    %v6450 = vsel %vm6449, %v6441, %v6446
    %v6451 = vmul.f32 %v6386, %v6420
    %v6452 = vmul.f32 %v6387, %v6430
    %v6453 = vmul.f32 %v6388, %v6440
    %v6454 = vmul.f32 %v6389, %v6450
    %v6455 = vperm.slane %v6314, 1
    %v6456 = vmul.f32 %v6451, %v6455
    %v6457 = vmul.f32 %v6452, %v6455
    %v6458 = vmul.f32 %v6453, %v6455
    %v6459 = vmul.f32 %v6454, %v6455
    %v6460 = vperm.slane %v6314, 2
    %v6461 = vadd.f32 %v6456, %v6460
    %v6462 = vadd.f32 %v6457, %v6460
    %v6463 = vadd.f32 %v6458, %v6460
    %v6464 = vadd.f32 %v6459, %v6460
    %6465 = vst [vmem:[#allocation15] sm:$0xff] %v6461
    %6466 = vst [vmem:[#allocation15 + $0x8] sm:$0xff] %v6462
    %6467 = vst [vmem:[#allocation15 + $0x10] sm:$0xff] %v6463
    %6468 = vst [vmem:[#allocation15 + $0x18] sm:$0xf] %v6464
    %v6469 = vmul.f32 %v4921, 0.041666668
    %v6470 = vmul.f32 %v4922, 0.041666668
    %6471 = vst.msk [vmem:[%s11] sm:$0xff] %vm717, %v6469
    %6472 = vst.msk [vmem:[%s11 + $0x8] sm:$0x3f] %vm721, %v6470
    %v6473 = vmul.f32 %v5783, 0.041666668
    %v6474 = vmul.f32 %v5784, 0.041666668
    %s6475 = scalar_lea.vmem %s11, 16
    %6476 = vst.msk [vmem:[%s6475] sm:$0xff] %vm717, %v6473
    %6477 = vst.msk [vmem:[%s6475 + $0x8] sm:$0x3f] %vm721, %v6474
    // Predicated region
    $region66: #{tpu_custom_call.1} parent=1 // pred_check
      _
    $region67: #{tpu_custom_call.1} parent=1 // pred_check_branch
      %6479 = sbr.rel (0) target = $region69
    $region68: #{tpu_custom_call.1} parent=1 // pred_region
      %6481 = vsyncadd [#allocation6], 0
      %s6482 = sshll.u32 [#allocation15], 4
      %s6483 = int_to_ptr.vmem [resolvable:$true] %s6482
      %s6484 = sshll.u32 %s10, 4
      %s6485 = int_to_ptr.hbm [resolvable:$true] %s6484
      %6490 = dma.vmem_to_hbm [thread:$0]  %s6483, 512, %s6485, [#allocation6], 128, 128, 8
    $region69: #{tpu_custom_call.1} parent=1 // pred_fallthru
      _
    // Predicated region
    $region70: #{tpu_custom_call.1} parent=1 // pred_check
      _
    $region71: #{tpu_custom_call.1} parent=1 // pred_check_branch
      %6492 = sbr.rel (0) target = $region73
    $region72: #{tpu_custom_call.1} parent=1 // pred_region
      _
    $region73: #{tpu_custom_call.1} parent=1 // pred_fallthru
      _
    // Predicated region
    $region74: #{tpu_custom_call.1} parent=1 // pred_check
      _
    $region75: #{tpu_custom_call.1} parent=1 // pred_check_branch
      %6494 = sbr.rel (0) target = $region77
    $region76: #{tpu_custom_call.1} parent=1 // pred_region
      %6496 = dma.done [#allocation6], 512
    $region77: #{tpu_custom_call.1} parent=1 // pred_fallthru
      _
    // Predicated region
    $region78: #{tpu_custom_call.1} parent=1 // pred_check
      _
    $region79: #{tpu_custom_call.1} parent=1 // pred_check_branch
      %6498 = sbr.rel (0) target = $region81
    $region80: #{tpu_custom_call.1} parent=1 // pred_region
      _
    $region81: #{tpu_custom_call.1} parent=1 // pred_fallthru
      _
    %6499 = vsyncpa [#allocation5], 1
    %6500 = vsyncpa [#allocation8], 1
    %6501 = vsyncpa [#allocation11], 1
    %6502 = vsyncpa [#allocation14], 1
    %6503 = vsyncpa [#allocation6], 1

</llo_original>
